<compile_context>
chip_gen: v6e
topology: v6e:2x2x1
jax: 0.10.0
libtpu: 0.0.40
codegen_flags: <defaults>
</compile_context>

<pallas_src>
import functools

import jax
import jax.numpy as jnp
from jax.experimental import pallas as pl
from jax.experimental.pallas import tpu as pltpu


def _up_conv_phase_kernel(x_ref, w_ref, shift_ref, o_ref, lhs_ref):
    # x_ref:     (1, 1, TH+2, W+2, Cin)   halo'd row tile, original resolution
    # w_ref:     (4, 4*Cin, Cout)         per-phase fused 2x2 taps, BN scale folded
    # shift_ref: (1, Cout)                folded conv-bias + BN shift (f32)
    # o_ref:     (1, TH, W, 4*Cout)       phase-fused-lane, lane-dense output
    # lhs_ref:   (TH, W, 4*Cin)           VMEM im2col scratch
    TH, W, K = lhs_ref.shape
    Cin = x_ref.shape[4]
    Cout = w_ref.shape[2]

    # Loaded once per grid step (hoisted out of the phase loop).
    shift_row = shift_ref[...]                      # (1, Cout) f32

    for a in range(2):            # output row parity
        for bcol in range(2):     # output col parity
            p = 2 * a + bcol
            # im2col: stage the 2x2 effective-tap window into one K=4*Cin LHS so
            # a single MXU dot replaces 4 narrow dots + 3 f32 accumulate adds.
            for ri in range(2):
                for ci in range(2):
                    tap = 2 * ri + ci
                    lhs_ref[:, :, tap * Cin:(tap + 1) * Cin] = (
                        x_ref[0, 0, a + ri:a + ri + TH, bcol + ci:bcol + ci + W, :])
            acc = jnp.dot(lhs_ref[...].reshape(TH * W, K), w_ref[p],
                          preferred_element_type=jnp.float32)
            # Folded (conv bias + BN eval) shift, then ReLU -- in f32.
            y = jnp.maximum(acc + shift_row, 0.0)
            # Store into the phase's lane slice of the (TH, W, 4*Cout) block.
            o_ref[0, :, :, p * Cout:(p + 1) * Cout] = (
                y.astype(o_ref.dtype).reshape(TH, W, Cout))


def _round_up(x, m):
    return -(-x // m) * m


def _tile_footprint_bytes(th, W, Cin, Cout, itemsize):
    """Layout-aware (lane/sublane padded) VMEM working-set estimate per grid step."""
    sub = 32 // itemsize                 # sublane tile: 8 (f32) / 16 (bf16)
    lane = 128
    in_blk = (th + 2) * _round_up(W + 2, sub) * _round_up(Cin, lane) * itemsize
    out_blk = th * _round_up(W, sub) * _round_up(4 * Cout, lane) * itemsize
    w_blk = 4 * _round_up(4 * Cin, sub) * _round_up(Cout, lane) * itemsize
    shift_blk = 8 * lane * 4
    scratch = th * _round_up(W, sub) * _round_up(4 * Cin, lane) * itemsize
    # f32 accumulator + in-kernel relayout temporaries (rough upper bound).
    temps = th * W * (_round_up(Cout, lane) + _round_up(4 * Cin, lane)) * 4
    # Inputs / outputs are double-buffered by the Pallas pipeline.
    return 2 * (in_blk + out_blk + w_blk + shift_blk) + scratch + 2 * temps


def _vmem_budget_bytes():
    """Generation-aware VMEM budget (64 MiB on v7x, 128 MiB on v5e/v6e)."""
    cap = 64 * 1024 * 1024
    try:
        info = pltpu.get_tpu_info()
        cap = int(getattr(info, "vmem_capacity_bytes", cap))
    except Exception:  # pragma: no cover - conservative fallback off-TPU
        pass
    budget = min(cap // 2, 48 * 1024 * 1024)
    limit = int(min(cap * 3 // 4, budget * 2))
    return budget, limit


def _pick_tile_rows(H, W, Cin, Cout, itemsize, budget_bytes):
    """Largest row-tile whose padded, double-buffered footprint fits the budget."""
    if _tile_footprint_bytes(H, W, Cin, Cout, itemsize) <= budget_bytes:
        return H                                   # whole image per grid step
    sub = 32 // itemsize
    divs = sorted((d for d in range(1, H) if H % d == 0), reverse=True)
    ordered = [d for d in divs if d % sub == 0] + [d for d in divs if d % sub]
    for d in ordered:
        if _tile_footprint_bytes(d, W, Cin, Cout, itemsize) <= budget_bytes:
            return d
    return divs[-1] if divs else H                 # best effort


@functools.partial(jax.jit, static_argnames=("eps", "tile_rows", "use_bf16"))
def up_conv_forward(x_nchw, w_oihw, bias, gamma, beta, running_mean, running_var,
                    eps=1e-5, tile_rows=None, use_bf16=True):
    """Upsample(2x nearest) -> Conv2d(3x3, pad=1, bias) -> BN(eval) -> ReLU.

    x_nchw: (N, Cin, H, W) float32.  Returns (N, Cout, 2H, 2W) in bf16 when
    use_bf16=True (kernel compute dtype), else float32.
    """
    N, Cin, H, W = x_nchw.shape
    Cout = w_oihw.shape[0]
    compute_dtype = jnp.bfloat16 if use_bf16 else jnp.float32
    out_dtype = compute_dtype
    itemsize = jnp.dtype(compute_dtype).itemsize

    budget, vmem_limit = _vmem_budget_bytes()
    TH = _pick_tile_rows(H, W, Cin, Cout, itemsize, budget) if tile_rows is None \
        else int(tile_rows)
    assert H % TH == 0, (H, TH)
    T = H // TH

    # ---- host-side glue on the 1x-resolution input (cast first: halves glue bytes)
    x_nhwc = jnp.transpose(x_nchw, (0, 2, 3, 1)).astype(compute_dtype)
    x_pad = jnp.pad(x_nhwc, ((0, 0), (1, 1), (1, 1), (0, 0)))   # (N, H+2, W+2, Cin)
    if T == 1:
        x_tiles = x_pad[:, None]                   # no halo duplication needed
    else:
        row_idx = (jnp.arange(T)[:, None] * TH +
                   jnp.arange(TH + 2)[None, :]).reshape(-1)
        x_tiles = x_pad[:, row_idx].reshape(N, T, TH + 2, W + 2, Cin)

    # ---- sub-pixel phase weights: phase p=2a+b, tap=2ri+ci ----
    # Output pixel (2i+a, 2j+b) of the upsampled conv only touches input rows
    # {i+a-1, i+a} and cols {j+b-1, j+b}; rmap[a][kh] maps kernel row kh -> ri.
    w_hwio = jnp.transpose(w_oihw, (2, 3, 1, 0)).astype(jnp.float32)  # (3,3,Cin,Cout)
    rmap = ((0, 1, 1), (0, 0, 1))
    w_phase = jnp.zeros((4, 4, Cin, Cout), dtype=jnp.float32)
    for a in range(2):
        for bb in range(2):
            for kh in range(3):
                for kw in range(3):
                    tap = 2 * rmap[a][kh] + rmap[bb][kw]
                    w_phase = w_phase.at[2 * a + bb, tap].add(w_hwio[kh, kw])

    # Fold eval-mode BN:  y = scale*conv + (scale*(bias-mean)+beta), scale folded
    # into the weights (per-output-channel => exact), shift kept in f32.
    inv_std = 1.0 / jnp.sqrt(running_var + eps)
    scale = (gamma * inv_std).astype(jnp.float32)                       # (Cout,)
    shift = (beta + scale * (bias - running_mean)).reshape(1, Cout).astype(jnp.float32)
    w_fused = (w_phase * scale.reshape(1, 1, 1, Cout)
               ).reshape(4, 4 * Cin, Cout).astype(compute_dtype)

    flops = 2 * N * 4 * H * W * (4 * Cin) * Cout
    bytes_accessed = int(x_tiles.size * itemsize + w_fused.size * itemsize
                         + shift.size * 4 + N * H * W * 4 * Cout * itemsize)

    out_ph = pl.pallas_call(
        _up_conv_phase_kernel,
        out_shape=jax.ShapeDtypeStruct((N, H, W, 4 * Cout), out_dtype),
        grid_spec=pltpu.PrefetchScalarGridSpec(
            num_scalar_prefetch=0,
            grid=(N, T),
            in_specs=[
                pl.BlockSpec((1, 1, TH + 2, W + 2, Cin),
                             lambda n, t: (n, t, 0, 0, 0)),
                pl.BlockSpec((4, 4 * Cin, Cout), lambda n, t: (0, 0, 0)),
                pl.BlockSpec((1, Cout), lambda n, t: (0, 0)),
            ],
            out_specs=pl.BlockSpec((1, TH, W, 4 * Cout),
                                   lambda n, t: (n, t, 0, 0)),
            scratch_shapes=[pltpu.VMEM((TH, W, 4 * Cin), compute_dtype)],
        ),
        compiler_params=pltpu.CompilerParams(
            dimension_semantics=("parallel", "parallel"),
            vmem_limit_bytes=vmem_limit),
        cost_estimate=pl.CostEstimate(flops=flops, transcendentals=0,
                                      bytes_accessed=bytes_accessed),
    )(x_tiles, w_fused, shift)

    # Single post-kernel pass (on the narrow out dtype): phase interleave + NCHW.
    out = out_ph.reshape(N, H, W, 2, 2, Cout)
    out = jnp.transpose(out, (0, 5, 1, 3, 2, 4))       # (N, Cout, H, 2, W, 2)
    return out.reshape(N, Cout, 2 * H, 2 * W)


def _reference(x_nchw, w_oihw, b, gamma, beta, running_mean, running_var,
               eps=1e-5):
    """Pure-JAX f32 reference for checking the kernel."""
    x_nhwc = jnp.transpose(x_nchw, (0, 2, 3, 1))
    x_up = jnp.repeat(jnp.repeat(x_nhwc, 2, axis=1), 2, axis=2)
    w_hwio = jnp.transpose(w_oihw, (2, 3, 1, 0))
    conv = jax.lax.conv_general_dilated(
        x_up, w_hwio, window_strides=(1, 1), padding="SAME",
        dimension_numbers=("NHWC", "HWIO", "NHWC"))
    conv = conv + b.reshape(1, 1, 1, -1)
    inv_std = 1.0 / jnp.sqrt(running_var + eps)
    y = gamma * (conv - running_mean) * inv_std + beta
    y = jnp.maximum(y, 0.0)
    return jnp.transpose(y, (0, 3, 1, 2))


if __name__ == "__main__":
    # Small shapes consistent with up_conv(ch_in=4, ch_out=8) on a 2x4x16x16 input.
    N, Cin, H, W = 2, 4, 16, 16
    Cout = 8

    key = jax.random.PRNGKey(0)
    kx, kw, kb, kg, kbeta = jax.random.split(key, 5)

    x = jax.random.normal(kx, (N, Cin, H, W), dtype=jnp.float32)
    w = 0.1 * jax.random.normal(kw, (Cout, Cin, 3, 3), dtype=jnp.float32)  # OIHW
    b = 0.1 * jax.random.normal(kb, (Cout,), dtype=jnp.float32)
    gamma = 1.0 + 0.1 * jax.random.normal(kg, (Cout,), dtype=jnp.float32)
    beta = 0.1 * jax.random.normal(kbeta, (Cout,), dtype=jnp.float32)
    running_mean = jnp.zeros((Cout,), dtype=jnp.float32)   # PyTorch defaults
    running_var = jnp.ones((Cout,), dtype=jnp.float32)

    ref = _reference(x, w, b, gamma, beta, running_mean, running_var)

    # Default path: bf16 MXU, bf16 lane-dense output, auto (layout-aware) tiling.
    out = up_conv_forward(x, w, b, gamma, beta, running_mean, running_var)
    out = jax.block_until_ready(out)
    assert out.shape == (N, Cout, 2 * H, 2 * W), out.shape
    assert out.dtype == jnp.bfloat16, out.dtype
    err_bf16 = float(jnp.max(jnp.abs(out.astype(jnp.float32) - ref)))
    assert jnp.allclose(out.astype(jnp.float32), ref, atol=1e-1, rtol=5e-2), err_bf16

    # f32 path with forced row tiling (exercises the halo/tiling machinery) for a
    # tight numerical check of the phase decomposition + K-fused im2col.
    out32 = up_conv_forward(x, w, b, gamma, beta, running_mean, running_var,
                            tile_rows=8, use_bf16=False)
    out32 = jax.block_until_ready(out32)
    err_f32 = float(jnp.max(jnp.abs(out32 - ref)))
    assert jnp.allclose(out32, ref, atol=2e-3, rtol=2e-3), err_f32

    print("KERNEL_OK")
</pallas_src>

<mosaic_0001>
module attributes {stable_mosaic.version = 11 : i64} {
  func.func @_up_conv_phase_kernel(%arg0: i32, %arg1: i32, %arg2: memref<1x1x18x18x4xbf16, #tpu.memory_space<vmem>>, %arg3: memref<4x16x8xbf16, #tpu.memory_space<vmem>>, %arg4: memref<1x8xf32, #tpu.memory_space<vmem>>, %arg5: memref<1x16x16x32xbf16, #tpu.memory_space<vmem>>, %arg6: memref<16x16x16xbf16, #tpu.memory_space<vmem>>) attributes {dimension_semantics = [#tpu.dimension_semantics<parallel>, #tpu.dimension_semantics<parallel>], iteration_bounds = array<i64: 2, 1>, scalar_prefetch = 0 : i64, scratch_operands = 1 : i64, tpu.core_type = #tpu.core_type<tc>, window_params = [{transform_indices = @transform_0, window_bounds = array<i64: 1, 1, 18, 18, 4>}, {pipeline_mode = #tpu.pipeline_mode<synchronous>, transform_indices = @transform_1, window_bounds = array<i64: 4, 16, 8>}, {pipeline_mode = #tpu.pipeline_mode<synchronous>, transform_indices = @transform_2, window_bounds = array<i64: 1, 8>}, {transform_indices = @transform_3, window_bounds = array<i64: 1, 16, 16, 32>}]} {
    %c0 = arith.constant 0 : index
    %c0_0 = arith.constant 0 : index
    %0 = vector.load %arg4[%c0, %c0_0] : memref<1x8xf32, #tpu.memory_space<vmem>>, vector<1x8xf32>
    %c0_1 = arith.constant 0 : index
    %c0_2 = arith.constant 0 : index
    %c0_3 = arith.constant 0 : index
    %c0_4 = arith.constant 0 : index
    %c0_5 = arith.constant 0 : index
    %1 = vector.load %arg2[%c0_1, %c0_2, %c0_3, %c0_4, %c0_5] : memref<1x1x18x18x4xbf16, #tpu.memory_space<vmem>>, vector<1x1x16x16x4xbf16>
    %2 = vector.shape_cast %1 : vector<1x1x16x16x4xbf16> to vector<16x16x4xbf16>
    %c0_6 = arith.constant 0 : index
    %c0_7 = arith.constant 0 : index
    %c0_8 = arith.constant 0 : index
    %3 = vector.load %arg6[%c0_6, %c0_7, %c0_8] : memref<16x16x16xbf16, #tpu.memory_space<vmem>>, vector<16x16x4xbf16>
    tpu.vector_store %arg6[%c0_6, %c0_7, %c0_8], %2 {strides = array<i32>} : memref<16x16x16xbf16, #tpu.memory_space<vmem>>, vector<16x16x4xbf16>,
    %c0_9 = arith.constant 0 : index
    %c0_10 = arith.constant 0 : index
    %c0_11 = arith.constant 0 : index
    %c1 = arith.constant 1 : index
    %c0_12 = arith.constant 0 : index
    %4 = vector.load %arg2[%c0_9, %c0_10, %c0_11, %c1, %c0_12] : memref<1x1x18x18x4xbf16, #tpu.memory_space<vmem>>, vector<1x1x16x16x4xbf16>
    %5 = vector.shape_cast %4 : vector<1x1x16x16x4xbf16> to vector<16x16x4xbf16>
    %c0_13 = arith.constant 0 : index
    %c0_14 = arith.constant 0 : index
    %c4 = arith.constant 4 : index
    %6 = vector.load %arg6[%c0_13, %c0_14, %c4] : memref<16x16x16xbf16, #tpu.memory_space<vmem>>, vector<16x16x4xbf16>
    tpu.vector_store %arg6[%c0_13, %c0_14, %c4], %5 {strides = array<i32>} : memref<16x16x16xbf16, #tpu.memory_space<vmem>>, vector<16x16x4xbf16>,
    %c0_15 = arith.constant 0 : index
    %c0_16 = arith.constant 0 : index
    %c1_17 = arith.constant 1 : index
    %c0_18 = arith.constant 0 : index
    %c0_19 = arith.constant 0 : index
    %7 = vector.load %arg2[%c0_15, %c0_16, %c1_17, %c0_18, %c0_19] : memref<1x1x18x18x4xbf16, #tpu.memory_space<vmem>>, vector<1x1x16x16x4xbf16>
    %8 = vector.shape_cast %7 : vector<1x1x16x16x4xbf16> to vector<16x16x4xbf16>
    %c0_20 = arith.constant 0 : index
    %c0_21 = arith.constant 0 : index
    %c8 = arith.constant 8 : index
    %9 = vector.load %arg6[%c0_20, %c0_21, %c8] : memref<16x16x16xbf16, #tpu.memory_space<vmem>>, vector<16x16x4xbf16>
    tpu.vector_store %arg6[%c0_20, %c0_21, %c8], %8 {strides = array<i32>} : memref<16x16x16xbf16, #tpu.memory_space<vmem>>, vector<16x16x4xbf16>,
    %c0_22 = arith.constant 0 : index
    %c0_23 = arith.constant 0 : index
    %c1_24 = arith.constant 1 : index
    %c1_25 = arith.constant 1 : index
    %c0_26 = arith.constant 0 : index
    %10 = vector.load %arg2[%c0_22, %c0_23, %c1_24, %c1_25, %c0_26] : memref<1x1x18x18x4xbf16, #tpu.memory_space<vmem>>, vector<1x1x16x16x4xbf16>
    %11 = vector.shape_cast %10 : vector<1x1x16x16x4xbf16> to vector<16x16x4xbf16>
    %c0_27 = arith.constant 0 : index
    %c0_28 = arith.constant 0 : index
    %c12 = arith.constant 12 : index
    %12 = vector.load %arg6[%c0_27, %c0_28, %c12] : memref<16x16x16xbf16, #tpu.memory_space<vmem>>, vector<16x16x4xbf16>
    tpu.vector_store %arg6[%c0_27, %c0_28, %c12], %11 {strides = array<i32>} : memref<16x16x16xbf16, #tpu.memory_space<vmem>>, vector<16x16x4xbf16>,
    %c0_29 = arith.constant 0 : index
    %c0_30 = arith.constant 0 : index
    %c0_31 = arith.constant 0 : index
    %13 = vector.load %arg6[%c0_29, %c0_30, %c0_31] : memref<16x16x16xbf16, #tpu.memory_space<vmem>>, vector<16x16x16xbf16>
    %14 = vector.shape_cast %13 : vector<16x16x16xbf16> to vector<256x16xbf16>
    %c0_32 = arith.constant 0 : index
    %c0_33 = arith.constant 0 : index
    %c0_34 = arith.constant 0 : index
    %15 = vector.load %arg3[%c0_32, %c0_33, %c0_34] : memref<4x16x8xbf16, #tpu.memory_space<vmem>>, vector<1x16x8xbf16>
    %16 = vector.shape_cast %15 : vector<1x16x8xbf16> to vector<16x8xbf16>
    %cst = arith.constant dense<0.000000e+00> : vector<256x8xf32>
    %17 = tpu.matmul %14, %16, %cst {dimension_numbers = #tpu.dot_dimension_numbers<[1], [0], [0], [1], [0, 0, 1, 1], [], []>} : vector<256x16xbf16>, vector<16x8xbf16>, vector<256x8xf32> -> vector<256x8xf32>
    %18 = vector.broadcast %0 : vector<1x8xf32> to vector<256x8xf32>
    %19 = arith.addf %17, %18 : vector<256x8xf32>
    %cst_35 = arith.constant 0.000000e+00 : f32
    %20 = vector.broadcast %cst_35 : f32 to vector<256x8xf32>
    %21 = arith.maximumf %19, %20 : vector<256x8xf32>
    %22 = arith.truncf %21 : vector<256x8xf32> to vector<256x8xbf16>
    %23 = vector.shape_cast %22 : vector<256x8xbf16> to vector<16x16x8xbf16>
    %c0_36 = arith.constant 0 : index
    %c0_37 = arith.constant 0 : index
    %c0_38 = arith.constant 0 : index
    %c0_39 = arith.constant 0 : index
    %24 = vector.load %arg5[%c0_36, %c0_37, %c0_38, %c0_39] : memref<1x16x16x32xbf16, #tpu.memory_space<vmem>>, vector<1x16x16x8xbf16>
    %25 = vector.shape_cast %24 : vector<1x16x16x8xbf16> to vector<16x16x8xbf16>
    %26 = vector.shape_cast %23 : vector<16x16x8xbf16> to vector<1x16x16x8xbf16>
    tpu.vector_store %arg5[%c0_36, %c0_37, %c0_38, %c0_39], %26 {strides = array<i32>} : memref<1x16x16x32xbf16, #tpu.memory_space<vmem>>, vector<1x16x16x8xbf16>,
    %c0_40 = arith.constant 0 : index
    %c0_41 = arith.constant 0 : index
    %c0_42 = arith.constant 0 : index
    %c1_43 = arith.constant 1 : index
    %c0_44 = arith.constant 0 : index
    %27 = vector.load %arg2[%c0_40, %c0_41, %c0_42, %c1_43, %c0_44] : memref<1x1x18x18x4xbf16, #tpu.memory_space<vmem>>, vector<1x1x16x16x4xbf16>
    %28 = vector.shape_cast %27 : vector<1x1x16x16x4xbf16> to vector<16x16x4xbf16>
    %c0_45 = arith.constant 0 : index
    %c0_46 = arith.constant 0 : index
    %c0_47 = arith.constant 0 : index
    %29 = vector.load %arg6[%c0_45, %c0_46, %c0_47] : memref<16x16x16xbf16, #tpu.memory_space<vmem>>, vector<16x16x4xbf16>
    tpu.vector_store %arg6[%c0_45, %c0_46, %c0_47], %28 {strides = array<i32>} : memref<16x16x16xbf16, #tpu.memory_space<vmem>>, vector<16x16x4xbf16>,
    %c0_48 = arith.constant 0 : index
    %c0_49 = arith.constant 0 : index
    %c0_50 = arith.constant 0 : index
    %c2 = arith.constant 2 : index
    %c0_51 = arith.constant 0 : index
    %30 = vector.load %arg2[%c0_48, %c0_49, %c0_50, %c2, %c0_51] : memref<1x1x18x18x4xbf16, #tpu.memory_space<vmem>>, vector<1x1x16x16x4xbf16>
    %31 = vector.shape_cast %30 : vector<1x1x16x16x4xbf16> to vector<16x16x4xbf16>
    %c0_52 = arith.constant 0 : index
    %c0_53 = arith.constant 0 : index
    %c4_54 = arith.constant 4 : index
    %32 = vector.load %arg6[%c0_52, %c0_53, %c4_54] : memref<16x16x16xbf16, #tpu.memory_space<vmem>>, vector<16x16x4xbf16>
    tpu.vector_store %arg6[%c0_52, %c0_53, %c4_54], %31 {strides = array<i32>} : memref<16x16x16xbf16, #tpu.memory_space<vmem>>, vector<16x16x4xbf16>,
    %c0_55 = arith.constant 0 : index
    %c0_56 = arith.constant 0 : index
    %c1_57 = arith.constant 1 : index
    %c1_58 = arith.constant 1 : index
    %c0_59 = arith.constant 0 : index
    %33 = vector.load %arg2[%c0_55, %c0_56, %c1_57, %c1_58, %c0_59] : memref<1x1x18x18x4xbf16, #tpu.memory_space<vmem>>, vector<1x1x16x16x4xbf16>
    %34 = vector.shape_cast %33 : vector<1x1x16x16x4xbf16> to vector<16x16x4xbf16>
    %c0_60 = arith.constant 0 : index
    %c0_61 = arith.constant 0 : index
    %c8_62 = arith.constant 8 : index
    %35 = vector.load %arg6[%c0_60, %c0_61, %c8_62] : memref<16x16x16xbf16, #tpu.memory_space<vmem>>, vector<16x16x4xbf16>
    tpu.vector_store %arg6[%c0_60, %c0_61, %c8_62], %34 {strides = array<i32>} : memref<16x16x16xbf16, #tpu.memory_space<vmem>>, vector<16x16x4xbf16>,
    %c0_63 = arith.constant 0 : index
    %c0_64 = arith.constant 0 : index
    %c1_65 = arith.constant 1 : index
    %c2_66 = arith.constant 2 : index
    %c0_67 = arith.constant 0 : index
    %36 = vector.load %arg2[%c0_63, %c0_64, %c1_65, %c2_66, %c0_67] : memref<1x1x18x18x4xbf16, #tpu.memory_space<vmem>>, vector<1x1x16x16x4xbf16>
    %37 = vector.shape_cast %36 : vector<1x1x16x16x4xbf16> to vector<16x16x4xbf16>
    %c0_68 = arith.constant 0 : index
    %c0_69 = arith.constant 0 : index
    %c12_70 = arith.constant 12 : index
    %38 = vector.load %arg6[%c0_68, %c0_69, %c12_70] : memref<16x16x16xbf16, #tpu.memory_space<vmem>>, vector<16x16x4xbf16>
    tpu.vector_store %arg6[%c0_68, %c0_69, %c12_70], %37 {strides = array<i32>} : memref<16x16x16xbf16, #tpu.memory_space<vmem>>, vector<16x16x4xbf16>,
    %c0_71 = arith.constant 0 : index
    %c0_72 = arith.constant 0 : index
    %c0_73 = arith.constant 0 : index
    %39 = vector.load %arg6[%c0_71, %c0_72, %c0_73] : memref<16x16x16xbf16, #tpu.memory_space<vmem>>, vector<16x16x16xbf16>
    %40 = vector.shape_cast %39 : vector<16x16x16xbf16> to vector<256x16xbf16>
    %c1_74 = arith.constant 1 : index
    %c0_75 = arith.constant 0 : index
    %c0_76 = arith.constant 0 : index
    %41 = vector.load %arg3[%c1_74, %c0_75, %c0_76] : memref<4x16x8xbf16, #tpu.memory_space<vmem>>, vector<1x16x8xbf16>
    %42 = vector.shape_cast %41 : vector<1x16x8xbf16> to vector<16x8xbf16>
    %cst_77 = arith.constant dense<0.000000e+00> : vector<256x8xf32>
    %43 = tpu.matmul %40, %42, %cst_77 {dimension_numbers = #tpu.dot_dimension_numbers<[1], [0], [0], [1], [0, 0, 1, 1], [], []>} : vector<256x16xbf16>, vector<16x8xbf16>, vector<256x8xf32> -> vector<256x8xf32>
    %44 = vector.broadcast %0 : vector<1x8xf32> to vector<256x8xf32>
    %45 = arith.addf %43, %44 : vector<256x8xf32>
    %cst_78 = arith.constant 0.000000e+00 : f32
    %46 = vector.broadcast %cst_78 : f32 to vector<256x8xf32>
    %47 = arith.maximumf %45, %46 : vector<256x8xf32>
    %48 = arith.truncf %47 : vector<256x8xf32> to vector<256x8xbf16>
    %49 = vector.shape_cast %48 : vector<256x8xbf16> to vector<16x16x8xbf16>
    %c0_79 = arith.constant 0 : index
    %c0_80 = arith.constant 0 : index
    %c0_81 = arith.constant 0 : index
    %c8_82 = arith.constant 8 : index
    %50 = vector.load %arg5[%c0_79, %c0_80, %c0_81, %c8_82] : memref<1x16x16x32xbf16, #tpu.memory_space<vmem>>, vector<1x16x16x8xbf16>
    %51 = vector.shape_cast %50 : vector<1x16x16x8xbf16> to vector<16x16x8xbf16>
    %52 = vector.shape_cast %49 : vector<16x16x8xbf16> to vector<1x16x16x8xbf16>
    tpu.vector_store %arg5[%c0_79, %c0_80, %c0_81, %c8_82], %52 {strides = array<i32>} : memref<1x16x16x32xbf16, #tpu.memory_space<vmem>>, vector<1x16x16x8xbf16>,
    %c0_83 = arith.constant 0 : index
    %c0_84 = arith.constant 0 : index
    %c1_85 = arith.constant 1 : index
    %c0_86 = arith.constant 0 : index
    %c0_87 = arith.constant 0 : index
    %53 = vector.load %arg2[%c0_83, %c0_84, %c1_85, %c0_86, %c0_87] : memref<1x1x18x18x4xbf16, #tpu.memory_space<vmem>>, vector<1x1x16x16x4xbf16>
    %54 = vector.shape_cast %53 : vector<1x1x16x16x4xbf16> to vector<16x16x4xbf16>
    %c0_88 = arith.constant 0 : index
    %c0_89 = arith.constant 0 : index
    %c0_90 = arith.constant 0 : index
    %55 = vector.load %arg6[%c0_88, %c0_89, %c0_90] : memref<16x16x16xbf16, #tpu.memory_space<vmem>>, vector<16x16x4xbf16>
    tpu.vector_store %arg6[%c0_88, %c0_89, %c0_90], %54 {strides = array<i32>} : memref<16x16x16xbf16, #tpu.memory_space<vmem>>, vector<16x16x4xbf16>,
    %c0_91 = arith.constant 0 : index
    %c0_92 = arith.constant 0 : index
    %c1_93 = arith.constant 1 : index
    %c1_94 = arith.constant 1 : index
    %c0_95 = arith.constant 0 : index
    %56 = vector.load %arg2[%c0_91, %c0_92, %c1_93, %c1_94, %c0_95] : memref<1x1x18x18x4xbf16, #tpu.memory_space<vmem>>, vector<1x1x16x16x4xbf16>
    %57 = vector.shape_cast %56 : vector<1x1x16x16x4xbf16> to vector<16x16x4xbf16>
    %c0_96 = arith.constant 0 : index
    %c0_97 = arith.constant 0 : index
    %c4_98 = arith.constant 4 : index
    %58 = vector.load %arg6[%c0_96, %c0_97, %c4_98] : memref<16x16x16xbf16, #tpu.memory_space<vmem>>, vector<16x16x4xbf16>
    tpu.vector_store %arg6[%c0_96, %c0_97, %c4_98], %57 {strides = array<i32>} : memref<16x16x16xbf16, #tpu.memory_space<vmem>>, vector<16x16x4xbf16>,
    %c0_99 = arith.constant 0 : index
    %c0_100 = arith.constant 0 : index
    %c2_101 = arith.constant 2 : index
    %c0_102 = arith.constant 0 : index
    %c0_103 = arith.constant 0 : index
    %59 = vector.load %arg2[%c0_99, %c0_100, %c2_101, %c0_102, %c0_103] : memref<1x1x18x18x4xbf16, #tpu.memory_space<vmem>>, vector<1x1x16x16x4xbf16>
    %60 = vector.shape_cast %59 : vector<1x1x16x16x4xbf16> to vector<16x16x4xbf16>
    %c0_104 = arith.constant 0 : index
    %c0_105 = arith.constant 0 : index
    %c8_106 = arith.constant 8 : index
    %61 = vector.load %arg6[%c0_104, %c0_105, %c8_106] : memref<16x16x16xbf16, #tpu.memory_space<vmem>>, vector<16x16x4xbf16>
    tpu.vector_store %arg6[%c0_104, %c0_105, %c8_106], %60 {strides = array<i32>} : memref<16x16x16xbf16, #tpu.memory_space<vmem>>, vector<16x16x4xbf16>,
    %c0_107 = arith.constant 0 : index
    %c0_108 = arith.constant 0 : index
    %c2_109 = arith.constant 2 : index
    %c1_110 = arith.constant 1 : index
    %c0_111 = arith.constant 0 : index
    %62 = vector.load %arg2[%c0_107, %c0_108, %c2_109, %c1_110, %c0_111] : memref<1x1x18x18x4xbf16, #tpu.memory_space<vmem>>, vector<1x1x16x16x4xbf16>
    %63 = vector.shape_cast %62 : vector<1x1x16x16x4xbf16> to vector<16x16x4xbf16>
    %c0_112 = arith.constant 0 : index
    %c0_113 = arith.constant 0 : index
    %c12_114 = arith.constant 12 : index
    %64 = vector.load %arg6[%c0_112, %c0_113, %c12_114] : memref<16x16x16xbf16, #tpu.memory_space<vmem>>, vector<16x16x4xbf16>
    tpu.vector_store %arg6[%c0_112, %c0_113, %c12_114], %63 {strides = array<i32>} : memref<16x16x16xbf16, #tpu.memory_space<vmem>>, vector<16x16x4xbf16>,
    %c0_115 = arith.constant 0 : index
    %c0_116 = arith.constant 0 : index
    %c0_117 = arith.constant 0 : index
    %65 = vector.load %arg6[%c0_115, %c0_116, %c0_117] : memref<16x16x16xbf16, #tpu.memory_space<vmem>>, vector<16x16x16xbf16>
    %66 = vector.shape_cast %65 : vector<16x16x16xbf16> to vector<256x16xbf16>
    %c2_118 = arith.constant 2 : index
    %c0_119 = arith.constant 0 : index
    %c0_120 = arith.constant 0 : index
    %67 = vector.load %arg3[%c2_118, %c0_119, %c0_120] : memref<4x16x8xbf16, #tpu.memory_space<vmem>>, vector<1x16x8xbf16>
    %68 = vector.shape_cast %67 : vector<1x16x8xbf16> to vector<16x8xbf16>
    %cst_121 = arith.constant dense<0.000000e+00> : vector<256x8xf32>
    %69 = tpu.matmul %66, %68, %cst_121 {dimension_numbers = #tpu.dot_dimension_numbers<[1], [0], [0], [1], [0, 0, 1, 1], [], []>} : vector<256x16xbf16>, vector<16x8xbf16>, vector<256x8xf32> -> vector<256x8xf32>
    %70 = vector.broadcast %0 : vector<1x8xf32> to vector<256x8xf32>
    %71 = arith.addf %69, %70 : vector<256x8xf32>
    %cst_122 = arith.constant 0.000000e+00 : f32
    %72 = vector.broadcast %cst_122 : f32 to vector<256x8xf32>
    %73 = arith.maximumf %71, %72 : vector<256x8xf32>
    %74 = arith.truncf %73 : vector<256x8xf32> to vector<256x8xbf16>
    %75 = vector.shape_cast %74 : vector<256x8xbf16> to vector<16x16x8xbf16>
    %c0_123 = arith.constant 0 : index
    %c0_124 = arith.constant 0 : index
    %c0_125 = arith.constant 0 : index
    %c16 = arith.constant 16 : index
    %76 = vector.load %arg5[%c0_123, %c0_124, %c0_125, %c16] : memref<1x16x16x32xbf16, #tpu.memory_space<vmem>>, vector<1x16x16x8xbf16>
    %77 = vector.shape_cast %76 : vector<1x16x16x8xbf16> to vector<16x16x8xbf16>
    %78 = vector.shape_cast %75 : vector<16x16x8xbf16> to vector<1x16x16x8xbf16>
    tpu.vector_store %arg5[%c0_123, %c0_124, %c0_125, %c16], %78 {strides = array<i32>} : memref<1x16x16x32xbf16, #tpu.memory_space<vmem>>, vector<1x16x16x8xbf16>,
    %c0_126 = arith.constant 0 : index
    %c0_127 = arith.constant 0 : index
    %c1_128 = arith.constant 1 : index
    %c1_129 = arith.constant 1 : index
    %c0_130 = arith.constant 0 : index
    %79 = vector.load %arg2[%c0_126, %c0_127, %c1_128, %c1_129, %c0_130] : memref<1x1x18x18x4xbf16, #tpu.memory_space<vmem>>, vector<1x1x16x16x4xbf16>
    %80 = vector.shape_cast %79 : vector<1x1x16x16x4xbf16> to vector<16x16x4xbf16>
    %c0_131 = arith.constant 0 : index
    %c0_132 = arith.constant 0 : index
    %c0_133 = arith.constant 0 : index
    %81 = vector.load %arg6[%c0_131, %c0_132, %c0_133] : memref<16x16x16xbf16, #tpu.memory_space<vmem>>, vector<16x16x4xbf16>
    tpu.vector_store %arg6[%c0_131, %c0_132, %c0_133], %80 {strides = array<i32>} : memref<16x16x16xbf16, #tpu.memory_space<vmem>>, vector<16x16x4xbf16>,
    %c0_134 = arith.constant 0 : index
    %c0_135 = arith.constant 0 : index
    %c1_136 = arith.constant 1 : index
    %c2_137 = arith.constant 2 : index
    %c0_138 = arith.constant 0 : index
    %82 = vector.load %arg2[%c0_134, %c0_135, %c1_136, %c2_137, %c0_138] : memref<1x1x18x18x4xbf16, #tpu.memory_space<vmem>>, vector<1x1x16x16x4xbf16>
    %83 = vector.shape_cast %82 : vector<1x1x16x16x4xbf16> to vector<16x16x4xbf16>
    %c0_139 = arith.constant 0 : index
    %c0_140 = arith.constant 0 : index
    %c4_141 = arith.constant 4 : index
    %84 = vector.load %arg6[%c0_139, %c0_140, %c4_141] : memref<16x16x16xbf16, #tpu.memory_space<vmem>>, vector<16x16x4xbf16>
    tpu.vector_store %arg6[%c0_139, %c0_140, %c4_141], %83 {strides = array<i32>} : memref<16x16x16xbf16, #tpu.memory_space<vmem>>, vector<16x16x4xbf16>,
    %c0_142 = arith.constant 0 : index
    %c0_143 = arith.constant 0 : index
    %c2_144 = arith.constant 2 : index
    %c1_145 = arith.constant 1 : index
    %c0_146 = arith.constant 0 : index
    %85 = vector.load %arg2[%c0_142, %c0_143, %c2_144, %c1_145, %c0_146] : memref<1x1x18x18x4xbf16, #tpu.memory_space<vmem>>, vector<1x1x16x16x4xbf16>
    %86 = vector.shape_cast %85 : vector<1x1x16x16x4xbf16> to vector<16x16x4xbf16>
    %c0_147 = arith.constant 0 : index
    %c0_148 = arith.constant 0 : index
    %c8_149 = arith.constant 8 : index
    %87 = vector.load %arg6[%c0_147, %c0_148, %c8_149] : memref<16x16x16xbf16, #tpu.memory_space<vmem>>, vector<16x16x4xbf16>
    tpu.vector_store %arg6[%c0_147, %c0_148, %c8_149], %86 {strides = array<i32>} : memref<16x16x16xbf16, #tpu.memory_space<vmem>>, vector<16x16x4xbf16>,
    %c0_150 = arith.constant 0 : index
    %c0_151 = arith.constant 0 : index
    %c2_152 = arith.constant 2 : index
    %c2_153 = arith.constant 2 : index
    %c0_154 = arith.constant 0 : index
    %88 = vector.load %arg2[%c0_150, %c0_151, %c2_152, %c2_153, %c0_154] : memref<1x1x18x18x4xbf16, #tpu.memory_space<vmem>>, vector<1x1x16x16x4xbf16>
    %89 = vector.shape_cast %88 : vector<1x1x16x16x4xbf16> to vector<16x16x4xbf16>
    %c0_155 = arith.constant 0 : index
    %c0_156 = arith.constant 0 : index
    %c12_157 = arith.constant 12 : index
    %90 = vector.load %arg6[%c0_155, %c0_156, %c12_157] : memref<16x16x16xbf16, #tpu.memory_space<vmem>>, vector<16x16x4xbf16>
    tpu.vector_store %arg6[%c0_155, %c0_156, %c12_157], %89 {strides = array<i32>} : memref<16x16x16xbf16, #tpu.memory_space<vmem>>, vector<16x16x4xbf16>,
    %c0_158 = arith.constant 0 : index
    %c0_159 = arith.constant 0 : index
    %c0_160 = arith.constant 0 : index
    %91 = vector.load %arg6[%c0_158, %c0_159, %c0_160] : memref<16x16x16xbf16, #tpu.memory_space<vmem>>, vector<16x16x16xbf16>
    %92 = vector.shape_cast %91 : vector<16x16x16xbf16> to vector<256x16xbf16>
    %c3 = arith.constant 3 : index
    %c0_161 = arith.constant 0 : index
    %c0_162 = arith.constant 0 : index
    %93 = vector.load %arg3[%c3, %c0_161, %c0_162] : memref<4x16x8xbf16, #tpu.memory_space<vmem>>, vector<1x16x8xbf16>
    %94 = vector.shape_cast %93 : vector<1x16x8xbf16> to vector<16x8xbf16>
    %cst_163 = arith.constant dense<0.000000e+00> : vector<256x8xf32>
    %95 = tpu.matmul %92, %94, %cst_163 {dimension_numbers = #tpu.dot_dimension_numbers<[1], [0], [0], [1], [0, 0, 1, 1], [], []>} : vector<256x16xbf16>, vector<16x8xbf16>, vector<256x8xf32> -> vector<256x8xf32>
    %96 = vector.broadcast %0 : vector<1x8xf32> to vector<256x8xf32>
    %97 = arith.addf %95, %96 : vector<256x8xf32>
    %cst_164 = arith.constant 0.000000e+00 : f32
    %98 = vector.broadcast %cst_164 : f32 to vector<256x8xf32>
    %99 = arith.maximumf %97, %98 : vector<256x8xf32>
    %100 = arith.truncf %99 : vector<256x8xf32> to vector<256x8xbf16>
    %101 = vector.shape_cast %100 : vector<256x8xbf16> to vector<16x16x8xbf16>
    %c0_165 = arith.constant 0 : index
    %c0_166 = arith.constant 0 : index
    %c0_167 = arith.constant 0 : index
    %c24 = arith.constant 24 : index
    %102 = vector.load %arg5[%c0_165, %c0_166, %c0_167, %c24] : memref<1x16x16x32xbf16, #tpu.memory_space<vmem>>, vector<1x16x16x8xbf16>
    %103 = vector.shape_cast %102 : vector<1x16x16x8xbf16> to vector<16x16x8xbf16>
    %104 = vector.shape_cast %101 : vector<16x16x8xbf16> to vector<1x16x16x8xbf16>
    tpu.vector_store %arg5[%c0_165, %c0_166, %c0_167, %c24], %104 {strides = array<i32>} : memref<1x16x16x32xbf16, #tpu.memory_space<vmem>>, vector<1x16x16x8xbf16>,
    return
  }
  func.func @transform_0(%arg0: i32, %arg1: i32) -> (i32, i32, i32, i32, i32) {
    %c0_i32 = arith.constant 0 : i32
    %c0_i32_0 = arith.constant 0 : i32
    %c0_i32_1 = arith.constant 0 : i32
    %c0_i32_2 = arith.constant 0 : i32
    return %arg0, %arg1, %c0_i32, %c0_i32_0, %c0_i32_1 : i32, i32, i32, i32, i32
  }
  func.func @transform_1(%arg0: i32, %arg1: i32) -> (i32, i32, i32) {
    %c0_i32 = arith.constant 0 : i32
    %c0_i32_0 = arith.constant 0 : i32
    %c0_i32_1 = arith.constant 0 : i32
    %c0_i32_2 = arith.constant 0 : i32
    return %c0_i32, %c0_i32_0, %c0_i32_1 : i32, i32, i32
  }
  func.func @transform_2(%arg0: i32, %arg1: i32) -> (i32, i32) {
    %c0_i32 = arith.constant 0 : i32
    %c0_i32_0 = arith.constant 0 : i32
    %c0_i32_1 = arith.constant 0 : i32
    return %c0_i32, %c0_i32_0 : i32, i32
  }
  func.func @transform_3(%arg0: i32, %arg1: i32) -> (i32, i32, i32, i32) {
    %c0_i32 = arith.constant 0 : i32
    %c0_i32_0 = arith.constant 0 : i32
    %c0_i32_1 = arith.constant 0 : i32
    return %arg0, %arg1, %c0_i32, %c0_i32_0 : i32, i32, i32, i32
  }
}

</mosaic_0001>

<llo_original>
// kernel: up_conv_forward.1
$region0: #{up_conv_forward.1}
  #allocation0 [shape = 'u32[]', space=smem, size = 0x4, offset = 0x4, fixed_abs, tag = 'smem constant byte address 0x4 - core index']
  #allocation1 [shape = 'u32[144,128]{1,0:T(1,128)}', space=vmem, size = 0x12000, scoped, tag = 'internal scratch']
  #allocation2 [shape = 'bf16[16,16,16]{2,1,0:T(8,128)(2,1)}', space=vmem, size = 0x10000, scoped, tag = 'scratch operand']
  %s0 = inlined_call_operand.vmem [shape: bf16[2,1,18,18,4], index: 0, kind: input, shape index: {}]
  %s1 = inlined_call_operand.vmem [shape: bf16[4,16,8], index: 1, kind: input, shape index: {}]
  %s2 = inlined_call_operand.vmem [shape: f32[1,8], index: 2, kind: input, shape index: {}]
  %s3 = inlined_call_operand.vmem [shape: bf16[2,16,16,32], index: 3, kind: output, shape index: {}]
  %s4 = sld [smem:[#allocation0]]
  $region45: #{up_conv_forward.1} parent=0
    _
  %s6 = ssub.s32 1, %s4
  %s7 = scalar_select 0, %s6, %s4
  loop: start=0, step=1, limit=4
  $region2: #{up_conv_forward.1} parent=0 // loop_pre_header
    _
  $region3: #{up_conv_forward.1} parent=0 // loop_header
    %s9 = sphi 0, %s13
    %p10 = scmp.ge.s32.totalorder %s9, 4
    %s16 = sphi 0, %s28
    %s17 = sphi 0, %s24
    %s18 = sphi 0, %s16
    %s19 = sphi 0, %s17
    %s20 = sphi 0, %s18
    %s21 = sphi 0, %s19
    %s33 = sphi 0, %s35
    %s36 = sphi 0, %s33
    %s37 = sphi 0, %s36
    %s53 = sphi 0, %s37
    %s57 = sphi 0, %s57
    %s59 = sphi 0, %s57
    %s60 = sphi 0, %s59
    %s74 = sphi 0, %s60
    %s78 = sphi 0, %s78
    %s80 = sphi 0, %s78
    %s81 = sphi 0, %s80
    %s95 = sphi 0, %s81
    %s103 = sphi 0, %s105
    %s106 = sphi 0, %s103
    %s107 = sphi 0, %s106
    %s123 = sphi 0, %s107
  $region4: #{up_conv_forward.1} parent=0 // loop_header_branch
    %12 = sbr.rel (%p10) target = $region8
  $region5: #{up_conv_forward.1} parent=0 // loop_body
    %s14 = ssub.s32 %s9, 1
    %s15 = ssub.s32 %s9, 2
    %s22 = sadd.s32 1, %s17
    %p23 = scmp.ge.s32.totalorder %s22, 1
    %s24 = scalar_select %p23, 0, %s22
    %s25 = sadd.s32 1, %s16
    %s26 = scalar_select %p23, %s25, %s16
    %p27 = scmp.ge.s32.totalorder %s26, 2
    %s28 = scalar_select %p27, 0, %s26
    %s29 = ssub.s32 %s16, %s28
    %s30 = ssub.s32 %s17, %s24
    %s31 = sor.u32 %s29, %s30
    %p32 = scmp.eq.s32.totalorder %s31, 0
    %s34 = sadd.s32 %s33, 1
    %s35 = scalar_select %p32, %s33, %s34
    %p38 = pneg %p32
    %p39 = scmp.eq.s32.totalorder %s9, 1
    %p40 = por %p38, %p39
    %p41 = scmp.ne.s32.totalorder %s33, %s36
    %p42 = scmp.eq.s32.totalorder %s9, 0
    %p43 = por %p41, %p42
    %p44 = scmp.ne.s32.totalorder %s33, %s36
    %p45 = scmp.eq.s32.totalorder %s14, 1
    %p46 = por %p44, %p45
    %p47 = scmp.ne.s32.totalorder %s36, %s37
    %p48 = scmp.eq.s32.totalorder %s14, 0
    %p49 = por %p47, %p48
    %p50 = scmp.ne.s32.totalorder %s36, %s37
    %p51 = scmp.eq.s32.totalorder %s15, 1
    %p52 = por %p50, %p51
    %p54 = scmp.ne.s32.totalorder %s37, %s53
    %p55 = scmp.eq.s32.totalorder %s15, 0
    %p56 = por %p54, %p55
    %s58 = sadd.s32 %s57, 1
    %p61 = scmp.eq.s32.totalorder %s9, 1
    %p62 = scmp.ne.s32.totalorder %s57, %s59
    %p63 = scmp.eq.s32.totalorder %s9, 0
    %p64 = por %p62, %p63
    %p65 = scmp.ne.s32.totalorder %s57, %s59
    %p66 = scmp.eq.s32.totalorder %s14, 1
    %p67 = por %p65, %p66
    %p68 = scmp.ne.s32.totalorder %s59, %s60
    %p69 = scmp.eq.s32.totalorder %s14, 0
    %p70 = por %p68, %p69
    %p71 = scmp.ne.s32.totalorder %s59, %s60
    %p72 = scmp.eq.s32.totalorder %s15, 1
    %p73 = por %p71, %p72
    %p75 = scmp.ne.s32.totalorder %s60, %s74
    %p76 = scmp.eq.s32.totalorder %s15, 0
    %p77 = por %p75, %p76
    %s79 = sadd.s32 %s78, 1
    %p82 = scmp.eq.s32.totalorder %s9, 1
    %p83 = scmp.ne.s32.totalorder %s78, %s80
    %p84 = scmp.eq.s32.totalorder %s9, 0
    %p85 = por %p83, %p84
    %p86 = scmp.ne.s32.totalorder %s78, %s80
    %p87 = scmp.eq.s32.totalorder %s14, 1
    %p88 = por %p86, %p87
    %p89 = scmp.ne.s32.totalorder %s80, %s81
    %p90 = scmp.eq.s32.totalorder %s14, 0
    %p91 = por %p89, %p90
    %p92 = scmp.ne.s32.totalorder %s80, %s81
    %p93 = scmp.eq.s32.totalorder %s15, 1
    %p94 = por %p92, %p93
    %p96 = scmp.ne.s32.totalorder %s81, %s95
    %p97 = scmp.eq.s32.totalorder %s15, 0
    %p98 = por %p96, %p97
    %s99 = ssub.s32 %s16, %s28
    %s100 = ssub.s32 %s17, %s24
    %s101 = sor.u32 %s99, %s100
    %p102 = scmp.eq.s32.totalorder %s101, 0
    %s104 = sadd.s32 %s103, 1
    %s105 = scalar_select %p102, %s103, %s104
    %p108 = pneg %p102
    %p109 = scmp.eq.s32.totalorder %s9, 1
    %p110 = por %p108, %p109
    %p111 = scmp.ne.s32.totalorder %s103, %s106
    %p112 = scmp.eq.s32.totalorder %s9, 0
    %p113 = por %p111, %p112
    %p114 = scmp.ne.s32.totalorder %s103, %s106
    %p115 = scmp.eq.s32.totalorder %s14, 1
    %p116 = por %p114, %p115
    %p117 = scmp.ne.s32.totalorder %s106, %s107
    %p118 = scmp.eq.s32.totalorder %s14, 0
    %p119 = por %p117, %p118
    %p120 = scmp.ne.s32.totalorder %s106, %s107
    %p121 = scmp.eq.s32.totalorder %s15, 1
    %p122 = por %p120, %p121
    %p124 = scmp.ne.s32.totalorder %s107, %s123
    %p125 = scmp.eq.s32.totalorder %s15, 0
    %p126 = por %p124, %p125
    %p127 = scmp.le.s32.totalorder 1, %s9
    %p128 = scmp.lt.s32.totalorder %s9, 3
    %p129 = pnand %p127, %p128
    %p130 = pneg %p129
    // Predicated region
    $region9: #{up_conv_forward.1} parent=5 // pred_check
      _
    $region10: #{up_conv_forward.1} parent=5 // pred_check_branch
      %132 = sbr.rel (%p129) target = $region12
    $region11: #{up_conv_forward.1} parent=5 // pred_region
      %s133 = ssub.s32 %s9, 1
      // Predicated region
      $region13: #{up_conv_forward.1} parent=11 // pred_check
        %p134 = pneg %p70
      $region14: #{up_conv_forward.1} parent=11 // pred_check_branch
        %136 = sbr.rel (%p134) target = $region16
      $region15: #{up_conv_forward.1} parent=11 // pred_region
        _
      $region16: #{up_conv_forward.1} parent=11 // pred_fallthru
        _
      // Predicated region
      $region17: #{up_conv_forward.1} parent=11 // pred_check
        %p137 = pneg %p91
      $region18: #{up_conv_forward.1} parent=11 // pred_check_branch
        %139 = sbr.rel (%p137) target = $region20
      $region19: #{up_conv_forward.1} parent=11 // pred_region
        _
      $region20: #{up_conv_forward.1} parent=11 // pred_fallthru
        _
    $region12: #{up_conv_forward.1} parent=5 // pred_fallthru
      _
    %p140 = scmp.lt.s32.totalorder %s9, 2
    // Predicated region
    $region21: #{up_conv_forward.1} parent=5 // pred_check
      %p141 = pneg %p140
    $region22: #{up_conv_forward.1} parent=5 // pred_check_branch
      %143 = sbr.rel (%p141) target = $region24
    $region23: #{up_conv_forward.1} parent=5 // pred_region
      // Predicated region
      $region25: #{up_conv_forward.1} parent=23 // pred_check
        %p144 = pneg %p43
      $region26: #{up_conv_forward.1} parent=23 // pred_check_branch
        %146 = sbr.rel (%p144) target = $region28
      $region27: #{up_conv_forward.1} parent=23 // pred_region
        %p147 = scmp.lt.s32.totalorder %s16, 1
        %s148 = scalar_select %p147, %s16, 1
        %p149 = scmp.lt.s32.totalorder %s17, 0
        %s150 = scalar_select %p149, %s17, 0
        %s151 = smul.addr %s150, 54
        %s152 = smul.addr %s148, 54
        %s153 = sadd.s32 %s151, %s152
        %s154 = smul.addr %s153, 4
        %s155 = scalar_lea.vmem %s0, %s154
      $region28: #{up_conv_forward.1} parent=23 // pred_fallthru
        _
    $region24: #{up_conv_forward.1} parent=5 // pred_fallthru
      _
    %p156 = scmp.le.s32.totalorder 1, %s9
    %p157 = scmp.lt.s32.totalorder %s9, 3
    %p158 = pnand %p156, %p157
    %p159 = pneg %p158
    // Predicated region
    $region29: #{up_conv_forward.1} parent=5 // pred_check
      _
    $region30: #{up_conv_forward.1} parent=5 // pred_check_branch
      %161 = sbr.rel (%p158) target = $region32
    $region31: #{up_conv_forward.1} parent=5 // pred_region
      %s162 = ssub.s32 %s9, 1
      %p163 = scmp.lt.s32.totalorder %s18, 1
      %s164 = scalar_select %p163, %s18, 1
      %p165 = scmp.lt.s32.totalorder %s19, 0
      %s166 = scalar_select %p165, %s19, 0
      %s167 = smul.addr %s166, 54
      %s168 = smul.addr %s164, 54
      %s169 = sadd.s32 %s167, %s168
      %s170 = smul.addr %s169, 4
      %s171 = scalar_lea.vmem %s0, %s170
      %p172 = pneg %p49
      %p173 = pneg %p46
      %p174 = pneg %p70
      %p175 = pneg %p67
      %p176 = pneg %p91
      %p177 = pneg %p88
      %p178 = pneg %p119
      %p179 = pneg %p116
      %s180 = smul.u32 16, %s19
      %p181 = scmp.lt.s32.totalorder %s18, 1
      %s182 = scalar_select %p181, %s18, 1
      %p183 = scmp.lt.s32.totalorder %s180, 15
      %s184 = scalar_select %p183, %s180, 15
      %s185 = smul.addr %s184, 2
      %s186 = smul.addr %s182, 32
      %s187 = sadd.s32 %s185, %s186
      %s188 = smul.addr %s187, 4
      %s189 = scalar_lea.vmem %s3, %s188
      %p190 = scmp.lt.s32.totalorder %s18, 1
      %s191 = scalar_select %p190, %s18, 1
      %p192 = scmp.lt.s32.totalorder %s19, 0
      %s193 = scalar_select %p192, %s19, 0
      %s194 = smul.addr %s193, 54
      %s195 = smul.addr %s191, 54
      %s196 = sadd.s32 %s194, %s195
      %s197 = smul.addr %s196, 4
      %s198 = scalar_lea.vmem %s0, %s197
      %s199 = smul.u32 16, %s19
      %p200 = scmp.lt.s32.totalorder %s18, 1
      %s201 = scalar_select %p200, %s18, 1
      %p202 = scmp.lt.s32.totalorder %s199, 15
      %s203 = scalar_select %p202, %s199, 15
      %s204 = smul.addr %s203, 2
      %s205 = smul.addr %s201, 32
      %s206 = sadd.s32 %s204, %s205
      %s207 = smul.addr %s206, 4
      %s208 = scalar_lea.vmem %s3, %s207
      %s209 = smul.u32 16, %s19
      %v211 = vld [vmem:[%s2] sm:$0x1]
      %v212 = vld [vmem:[%s198] sm:$0xf]
      %v213 = vld [vmem:[%s198 + $0x4] sm:$0xf]
      %v214 = vld [vmem:[%s198 + $0xc] sm:$0xf]
      %v215 = vld [vmem:[%s198 + $0x10] sm:$0xf]
      %v216 = vld [vmem:[%s198 + $0x18] sm:$0xf]
      %v217 = vld [vmem:[%s198 + $0x1c] sm:$0xf]
      %v218 = vld [vmem:[%s198 + $0x24] sm:$0xf]
      %v219 = vld [vmem:[%s198 + $0x28] sm:$0xf]
      %v220 = vld [vmem:[%s198 + $0x30] sm:$0xf]
      %v221 = vld [vmem:[%s198 + $0x34] sm:$0xf]
      %v222 = vld [vmem:[%s198 + $0x3c] sm:$0xf]
      %v223 = vld [vmem:[%s198 + $0x40] sm:$0xf]
      %v224 = vld [vmem:[%s198 + $0x48] sm:$0xf]
      %v225 = vld [vmem:[%s198 + $0x4c] sm:$0xf]
      %v226 = vld [vmem:[%s198 + $0x54] sm:$0xf]
      %v227 = vld [vmem:[%s198 + $0x58] sm:$0xf]
      %v228 = vld [vmem:[%s198 + $0x60] sm:$0xf]
      %v229 = vld [vmem:[%s198 + $0x64] sm:$0xf]
      %v230 = vld [vmem:[%s198 + $0x6c] sm:$0xf]
      %v231 = vld [vmem:[%s198 + $0x70] sm:$0xf]
      %v232 = vld [vmem:[%s198 + $0x78] sm:$0xf]
      %v233 = vld [vmem:[%s198 + $0x7c] sm:$0xf]
      %v234 = vld [vmem:[%s198 + $0x84] sm:$0xf]
      %v235 = vld [vmem:[%s198 + $0x88] sm:$0xf]
      %v236 = vld [vmem:[%s198 + $0x90] sm:$0xf]
      %v237 = vld [vmem:[%s198 + $0x94] sm:$0xf]
      %v238 = vld [vmem:[%s198 + $0x9c] sm:$0xf]
      %v239 = vld [vmem:[%s198 + $0xa0] sm:$0xf]
      %v240 = vld [vmem:[%s198 + $0xa8] sm:$0xf]
      %v241 = vld [vmem:[%s198 + $0xac] sm:$0xf]
      %v242 = vld [vmem:[%s198 + $0xb4] sm:$0xf]
      %v243 = vld [vmem:[%s198 + $0xb8] sm:$0xf]
      %vm244 = vcmask 27648
      %245 = vst.msk [vmem:[#allocation2] sm:$0xf] %vm244, %v212
      %246 = vst.msk [vmem:[#allocation2 + $0x4] sm:$0xf] %vm244, %v213
      %247 = vst.msk [vmem:[#allocation2 + $0x8] sm:$0xf] %vm244, %v214
      %248 = vst.msk [vmem:[#allocation2 + $0xc] sm:$0xf] %vm244, %v215
      %249 = vst.msk [vmem:[#allocation2 + $0x10] sm:$0xf] %vm244, %v216
      %250 = vst.msk [vmem:[#allocation2 + $0x14] sm:$0xf] %vm244, %v217
      %251 = vst.msk [vmem:[#allocation2 + $0x18] sm:$0xf] %vm244, %v218
      %252 = vst.msk [vmem:[#allocation2 + $0x1c] sm:$0xf] %vm244, %v219
      %253 = vst.msk [vmem:[#allocation2 + $0x20] sm:$0xf] %vm244, %v220
      %254 = vst.msk [vmem:[#allocation2 + $0x24] sm:$0xf] %vm244, %v221
      %255 = vst.msk [vmem:[#allocation2 + $0x28] sm:$0xf] %vm244, %v222
      %256 = vst.msk [vmem:[#allocation2 + $0x2c] sm:$0xf] %vm244, %v223
      %257 = vst.msk [vmem:[#allocation2 + $0x30] sm:$0xf] %vm244, %v224
      %258 = vst.msk [vmem:[#allocation2 + $0x34] sm:$0xf] %vm244, %v225
      %259 = vst.msk [vmem:[#allocation2 + $0x38] sm:$0xf] %vm244, %v226
      %260 = vst.msk [vmem:[#allocation2 + $0x3c] sm:$0xf] %vm244, %v227
      %261 = vst.msk [vmem:[#allocation2 + $0x40] sm:$0xf] %vm244, %v228
      %262 = vst.msk [vmem:[#allocation2 + $0x44] sm:$0xf] %vm244, %v229
      %263 = vst.msk [vmem:[#allocation2 + $0x48] sm:$0xf] %vm244, %v230
      %264 = vst.msk [vmem:[#allocation2 + $0x4c] sm:$0xf] %vm244, %v231
      %265 = vst.msk [vmem:[#allocation2 + $0x50] sm:$0xf] %vm244, %v232
      %266 = vst.msk [vmem:[#allocation2 + $0x54] sm:$0xf] %vm244, %v233
      %267 = vst.msk [vmem:[#allocation2 + $0x58] sm:$0xf] %vm244, %v234
      %268 = vst.msk [vmem:[#allocation2 + $0x5c] sm:$0xf] %vm244, %v235
      %269 = vst.msk [vmem:[#allocation2 + $0x60] sm:$0xf] %vm244, %v236
      %270 = vst.msk [vmem:[#allocation2 + $0x64] sm:$0xf] %vm244, %v237
      %271 = vst.msk [vmem:[#allocation2 + $0x68] sm:$0xf] %vm244, %v238
      %272 = vst.msk [vmem:[#allocation2 + $0x6c] sm:$0xf] %vm244, %v239
      %273 = vst.msk [vmem:[#allocation2 + $0x70] sm:$0xf] %vm244, %v240
      %274 = vst.msk [vmem:[#allocation2 + $0x74] sm:$0xf] %vm244, %v241
      %275 = vst.msk [vmem:[#allocation2 + $0x78] sm:$0xf] %vm244, %v242
      %276 = vst.msk [vmem:[#allocation2 + $0x7c] sm:$0xf] %vm244, %v243
      %v277 = vld [vmem:[%s198] sm:$0xf]
      %v278 = vld [vmem:[%s198 + $0x4] sm:$0xf]
      %v279 = vld [vmem:[%s198 + $0x8] sm:$0x1]
      %v280 = vld [vmem:[%s198 + $0xc] sm:$0xf]
      %v281 = vld [vmem:[%s198 + $0x10] sm:$0xf]
      %v282 = vld [vmem:[%s198 + $0x14] sm:$0x1]
      %v283 = vld [vmem:[%s198 + $0x18] sm:$0xf]
      %v284 = vld [vmem:[%s198 + $0x1c] sm:$0xf]
      %v285 = vld [vmem:[%s198 + $0x20] sm:$0x1]
      %v286 = vld [vmem:[%s198 + $0x24] sm:$0xf]
      %v287 = vld [vmem:[%s198 + $0x28] sm:$0xf]
      %v288 = vld [vmem:[%s198 + $0x2c] sm:$0x1]
      %v289 = vld [vmem:[%s198 + $0x30] sm:$0xf]
      %v290 = vld [vmem:[%s198 + $0x34] sm:$0xf]
      %v291 = vld [vmem:[%s198 + $0x38] sm:$0x1]
      %v292 = vld [vmem:[%s198 + $0x3c] sm:$0xf]
      %v293 = vld [vmem:[%s198 + $0x40] sm:$0xf]
      %v294 = vld [vmem:[%s198 + $0x44] sm:$0x1]
      %v295 = vld [vmem:[%s198 + $0x48] sm:$0xf]
      %v296 = vld [vmem:[%s198 + $0x4c] sm:$0xf]
      %v297 = vld [vmem:[%s198 + $0x50] sm:$0x1]
      %v298 = vld [vmem:[%s198 + $0x54] sm:$0xf]
      %v299 = vld [vmem:[%s198 + $0x58] sm:$0xf]
      %v300 = vld [vmem:[%s198 + $0x5c] sm:$0x1]
      %v301 = vld [vmem:[%s198 + $0x60] sm:$0xf]
      %v302 = vld [vmem:[%s198 + $0x64] sm:$0xf]
      %v303 = vld [vmem:[%s198 + $0x68] sm:$0x1]
      %v304 = vld [vmem:[%s198 + $0x6c] sm:$0xf]
      %v305 = vld [vmem:[%s198 + $0x70] sm:$0xf]
      %v306 = vld [vmem:[%s198 + $0x74] sm:$0x1]
      %v307 = vld [vmem:[%s198 + $0x78] sm:$0xf]
      %v308 = vld [vmem:[%s198 + $0x7c] sm:$0xf]
      %v309 = vld [vmem:[%s198 + $0x80] sm:$0x1]
      %v310 = vld [vmem:[%s198 + $0x84] sm:$0xf]
      %v311 = vld [vmem:[%s198 + $0x88] sm:$0xf]
      %v312 = vld [vmem:[%s198 + $0x8c] sm:$0x1]
      %v313 = vld [vmem:[%s198 + $0x90] sm:$0xf]
      %v314 = vld [vmem:[%s198 + $0x94] sm:$0xf]
      %v315 = vld [vmem:[%s198 + $0x98] sm:$0x1]
      %v316 = vld [vmem:[%s198 + $0x9c] sm:$0xf]
      %v317 = vld [vmem:[%s198 + $0xa0] sm:$0xf]
      %v318 = vld [vmem:[%s198 + $0xa4] sm:$0x1]
      %v319 = vld [vmem:[%s198 + $0xa8] sm:$0xf]
      %v320 = vld [vmem:[%s198 + $0xac] sm:$0xf]
      %v321 = vld [vmem:[%s198 + $0xb0] sm:$0x1]
      %v322 = vld [vmem:[%s198 + $0xb4] sm:$0xf]
      %v323 = vld [vmem:[%s198 + $0xb8] sm:$0xf]
      %v324 = vld [vmem:[%s198 + $0xbc] sm:$0x1]
      %vm325 = vsmask.f32 3328
      %vm326 = vsmask.f32 7440
      %vm327 = vmor %vm325, %vm326
      %v329 = vshrl.u32 %v277, 16
      %v331 = vrot.slane %v329, 4
      %v332 = vshll.u32 %v277, 16
      %v334 = vrot.slane %v332, 5
      %v335 = vor.u32 %v331, %v334
      %v336 = vrot.slane %v335, 4
      %v338 = vshll.u32 %v278, 16
      %v340 = vrot.slane %v338, 5
      %v341 = vsel %vm327, %v336, %v340
      %v342 = vshrl.u32 %v278, 16
      %v344 = vrot.slane %v342, 4
      %v345 = vor.u32 %v344, %v340
      %v346 = vrot.slane %v345, 4
      %v348 = vshll.u32 %v279, 16
      %v350 = vrot.slane %v348, 5
      %v351 = vsel %vm327, %v346, %v350
      %v353 = vshrl.u32 %v280, 16
      %v355 = vrot.slane %v353, 4
      %v356 = vshll.u32 %v280, 16
      %v358 = vrot.slane %v356, 5
      %v359 = vor.u32 %v355, %v358
      %v360 = vrot.slane %v359, 4
      %v362 = vshll.u32 %v281, 16
      %v364 = vrot.slane %v362, 5
      %v365 = vsel %vm327, %v360, %v364
      %v366 = vshrl.u32 %v281, 16
      %v368 = vrot.slane %v366, 4
      %v369 = vor.u32 %v368, %v364
      %v370 = vrot.slane %v369, 4
      %v372 = vshll.u32 %v282, 16
      %v374 = vrot.slane %v372, 5
      %v375 = vsel %vm327, %v370, %v374
      %v377 = vshrl.u32 %v283, 16
      %v379 = vrot.slane %v377, 4
      %v380 = vshll.u32 %v283, 16
      %v382 = vrot.slane %v380, 5
      %v383 = vor.u32 %v379, %v382
      %v384 = vrot.slane %v383, 4
      %v386 = vshll.u32 %v284, 16
      %v388 = vrot.slane %v386, 5
      %v389 = vsel %vm327, %v384, %v388
      %v390 = vshrl.u32 %v284, 16
      %v392 = vrot.slane %v390, 4
      %v393 = vor.u32 %v392, %v388
      %v394 = vrot.slane %v393, 4
      %v396 = vshll.u32 %v285, 16
      %v398 = vrot.slane %v396, 5
      %v399 = vsel %vm327, %v394, %v398
      %v401 = vshrl.u32 %v286, 16
      %v403 = vrot.slane %v401, 4
      %v404 = vshll.u32 %v286, 16
      %v406 = vrot.slane %v404, 5
      %v407 = vor.u32 %v403, %v406
      %v408 = vrot.slane %v407, 4
      %v410 = vshll.u32 %v287, 16
      %v412 = vrot.slane %v410, 5
      %v413 = vsel %vm327, %v408, %v412
      %v414 = vshrl.u32 %v287, 16
      %v416 = vrot.slane %v414, 4
      %v417 = vor.u32 %v416, %v412
      %v418 = vrot.slane %v417, 4
      %v420 = vshll.u32 %v288, 16
      %v422 = vrot.slane %v420, 5
      %v423 = vsel %vm327, %v418, %v422
      %v425 = vshrl.u32 %v289, 16
      %v427 = vrot.slane %v425, 4
      %v428 = vshll.u32 %v289, 16
      %v430 = vrot.slane %v428, 5
      %v431 = vor.u32 %v427, %v430
      %v432 = vrot.slane %v431, 4
      %v434 = vshll.u32 %v290, 16
      %v436 = vrot.slane %v434, 5
      %v437 = vsel %vm327, %v432, %v436
      %v438 = vshrl.u32 %v290, 16
      %v440 = vrot.slane %v438, 4
      %v441 = vor.u32 %v440, %v436
      %v442 = vrot.slane %v441, 4
      %v444 = vshll.u32 %v291, 16
      %v446 = vrot.slane %v444, 5
      %v447 = vsel %vm327, %v442, %v446
      %v449 = vshrl.u32 %v292, 16
      %v451 = vrot.slane %v449, 4
      %v452 = vshll.u32 %v292, 16
      %v454 = vrot.slane %v452, 5
      %v455 = vor.u32 %v451, %v454
      %v456 = vrot.slane %v455, 4
      %v458 = vshll.u32 %v293, 16
      %v460 = vrot.slane %v458, 5
      %v461 = vsel %vm327, %v456, %v460
      %v462 = vshrl.u32 %v293, 16
      %v464 = vrot.slane %v462, 4
      %v465 = vor.u32 %v464, %v460
      %v466 = vrot.slane %v465, 4
      %v468 = vshll.u32 %v294, 16
      %v470 = vrot.slane %v468, 5
      %v471 = vsel %vm327, %v466, %v470
      %v473 = vshrl.u32 %v295, 16
      %v475 = vrot.slane %v473, 4
      %v476 = vshll.u32 %v295, 16
      %v478 = vrot.slane %v476, 5
      %v479 = vor.u32 %v475, %v478
      %v480 = vrot.slane %v479, 4
      %v482 = vshll.u32 %v296, 16
      %v484 = vrot.slane %v482, 5
      %v485 = vsel %vm327, %v480, %v484
      %v486 = vshrl.u32 %v296, 16
      %v488 = vrot.slane %v486, 4
      %v489 = vor.u32 %v488, %v484
      %v490 = vrot.slane %v489, 4
      %v492 = vshll.u32 %v297, 16
      %v494 = vrot.slane %v492, 5
      %v495 = vsel %vm327, %v490, %v494
      %v497 = vshrl.u32 %v298, 16
      %v499 = vrot.slane %v497, 4
      %v500 = vshll.u32 %v298, 16
      %v502 = vrot.slane %v500, 5
      %v503 = vor.u32 %v499, %v502
      %v504 = vrot.slane %v503, 4
      %v506 = vshll.u32 %v299, 16
      %v508 = vrot.slane %v506, 5
      %v509 = vsel %vm327, %v504, %v508
      %v510 = vshrl.u32 %v299, 16
      %v512 = vrot.slane %v510, 4
      %v513 = vor.u32 %v512, %v508
      %v514 = vrot.slane %v513, 4
      %v516 = vshll.u32 %v300, 16
      %v518 = vrot.slane %v516, 5
      %v519 = vsel %vm327, %v514, %v518
      %v521 = vshrl.u32 %v301, 16
      %v523 = vrot.slane %v521, 4
      %v524 = vshll.u32 %v301, 16
      %v526 = vrot.slane %v524, 5
      %v527 = vor.u32 %v523, %v526
      %v528 = vrot.slane %v527, 4
      %v530 = vshll.u32 %v302, 16
      %v532 = vrot.slane %v530, 5
      %v533 = vsel %vm327, %v528, %v532
      %v534 = vshrl.u32 %v302, 16
      %v536 = vrot.slane %v534, 4
      %v537 = vor.u32 %v536, %v532
      %v538 = vrot.slane %v537, 4
      %v540 = vshll.u32 %v303, 16
      %v542 = vrot.slane %v540, 5
      %v543 = vsel %vm327, %v538, %v542
      %v545 = vshrl.u32 %v304, 16
      %v547 = vrot.slane %v545, 4
      %v548 = vshll.u32 %v304, 16
      %v550 = vrot.slane %v548, 5
      %v551 = vor.u32 %v547, %v550
      %v552 = vrot.slane %v551, 4
      %v554 = vshll.u32 %v305, 16
      %v556 = vrot.slane %v554, 5
      %v557 = vsel %vm327, %v552, %v556
      %v558 = vshrl.u32 %v305, 16
      %v560 = vrot.slane %v558, 4
      %v561 = vor.u32 %v560, %v556
      %v562 = vrot.slane %v561, 4
      %v564 = vshll.u32 %v306, 16
      %v566 = vrot.slane %v564, 5
      %v567 = vsel %vm327, %v562, %v566
      %v569 = vshrl.u32 %v307, 16
      %v571 = vrot.slane %v569, 4
      %v572 = vshll.u32 %v307, 16
      %v574 = vrot.slane %v572, 5
      %v575 = vor.u32 %v571, %v574
      %v576 = vrot.slane %v575, 4
      %v578 = vshll.u32 %v308, 16
      %v580 = vrot.slane %v578, 5
      %v581 = vsel %vm327, %v576, %v580
      %v582 = vshrl.u32 %v308, 16
      %v584 = vrot.slane %v582, 4
      %v585 = vor.u32 %v584, %v580
      %v586 = vrot.slane %v585, 4
      %v588 = vshll.u32 %v309, 16
      %v590 = vrot.slane %v588, 5
      %v591 = vsel %vm327, %v586, %v590
      %v593 = vshrl.u32 %v310, 16
      %v595 = vrot.slane %v593, 4
      %v596 = vshll.u32 %v310, 16
      %v598 = vrot.slane %v596, 5
      %v599 = vor.u32 %v595, %v598
      %v600 = vrot.slane %v599, 4
      %v602 = vshll.u32 %v311, 16
      %v604 = vrot.slane %v602, 5
      %v605 = vsel %vm327, %v600, %v604
      %v606 = vshrl.u32 %v311, 16
      %v608 = vrot.slane %v606, 4
      %v609 = vor.u32 %v608, %v604
      %v610 = vrot.slane %v609, 4
      %v612 = vshll.u32 %v312, 16
      %v614 = vrot.slane %v612, 5
      %v615 = vsel %vm327, %v610, %v614
      %v617 = vshrl.u32 %v313, 16
      %v619 = vrot.slane %v617, 4
      %v620 = vshll.u32 %v313, 16
      %v622 = vrot.slane %v620, 5
      %v623 = vor.u32 %v619, %v622
      %v624 = vrot.slane %v623, 4
      %v626 = vshll.u32 %v314, 16
      %v628 = vrot.slane %v626, 5
      %v629 = vsel %vm327, %v624, %v628
      %v630 = vshrl.u32 %v314, 16
      %v632 = vrot.slane %v630, 4
      %v633 = vor.u32 %v632, %v628
      %v634 = vrot.slane %v633, 4
      %v636 = vshll.u32 %v315, 16
      %v638 = vrot.slane %v636, 5
      %v639 = vsel %vm327, %v634, %v638
      %v641 = vshrl.u32 %v316, 16
      %v643 = vrot.slane %v641, 4
      %v644 = vshll.u32 %v316, 16
      %v646 = vrot.slane %v644, 5
      %v647 = vor.u32 %v643, %v646
      %v648 = vrot.slane %v647, 4
      %v650 = vshll.u32 %v317, 16
      %v652 = vrot.slane %v650, 5
      %v653 = vsel %vm327, %v648, %v652
      %v654 = vshrl.u32 %v317, 16
      %v656 = vrot.slane %v654, 4
      %v657 = vor.u32 %v656, %v652
      %v658 = vrot.slane %v657, 4
      %v660 = vshll.u32 %v318, 16
      %v662 = vrot.slane %v660, 5
      %v663 = vsel %vm327, %v658, %v662
      %v665 = vshrl.u32 %v319, 16
      %v667 = vrot.slane %v665, 4
      %v668 = vshll.u32 %v319, 16
      %v670 = vrot.slane %v668, 5
      %v671 = vor.u32 %v667, %v670
      %v672 = vrot.slane %v671, 4
      %v674 = vshll.u32 %v320, 16
      %v676 = vrot.slane %v674, 5
      %v677 = vsel %vm327, %v672, %v676
      %v678 = vshrl.u32 %v320, 16
      %v680 = vrot.slane %v678, 4
      %v681 = vor.u32 %v680, %v676
      %v682 = vrot.slane %v681, 4
      %v684 = vshll.u32 %v321, 16
      %v686 = vrot.slane %v684, 5
      %v687 = vsel %vm327, %v682, %v686
      %v689 = vshrl.u32 %v322, 16
      %v691 = vrot.slane %v689, 4
      %v692 = vshll.u32 %v322, 16
      %v694 = vrot.slane %v692, 5
      %v695 = vor.u32 %v691, %v694
      %v696 = vrot.slane %v695, 4
      %v698 = vshll.u32 %v323, 16
      %v700 = vrot.slane %v698, 5
      %v701 = vsel %vm327, %v696, %v700
      %v702 = vshrl.u32 %v323, 16
      %v704 = vrot.slane %v702, 4
      %v705 = vor.u32 %v704, %v700
      %v706 = vrot.slane %v705, 4
      %v708 = vshll.u32 %v324, 16
      %v710 = vrot.slane %v708, 5
      %v711 = vsel %vm327, %v706, %v710
      %712 = vrot.lane.b32.xlu0 %v341, 4
      %v713 = vpop.permute.xlu0 %712
      %714 = vrot.lane.b32.xlu0 %v351, 4
      %v715 = vpop.permute.xlu0 %714
      %716 = vrot.lane.b32.xlu0 %v365, 4
      %v717 = vpop.permute.xlu0 %716
      %718 = vrot.lane.b32.xlu0 %v375, 4
      %v719 = vpop.permute.xlu0 %718
      %720 = vrot.lane.b32.xlu0 %v389, 4
      %v721 = vpop.permute.xlu0 %720
      %722 = vrot.lane.b32.xlu0 %v399, 4
      %v723 = vpop.permute.xlu0 %722
      %724 = vrot.lane.b32.xlu0 %v413, 4
      %v725 = vpop.permute.xlu0 %724
      %726 = vrot.lane.b32.xlu0 %v423, 4
      %v727 = vpop.permute.xlu0 %726
      %728 = vrot.lane.b32.xlu0 %v437, 4
      %v729 = vpop.permute.xlu0 %728
      %730 = vrot.lane.b32.xlu0 %v447, 4
      %v731 = vpop.permute.xlu0 %730
      %732 = vrot.lane.b32.xlu0 %v461, 4
      %v733 = vpop.permute.xlu0 %732
      %734 = vrot.lane.b32.xlu0 %v471, 4
      %v735 = vpop.permute.xlu0 %734
      %736 = vrot.lane.b32.xlu0 %v485, 4
      %v737 = vpop.permute.xlu0 %736
      %738 = vrot.lane.b32.xlu0 %v495, 4
      %v739 = vpop.permute.xlu0 %738
      %740 = vrot.lane.b32.xlu0 %v509, 4
      %v741 = vpop.permute.xlu0 %740
      %742 = vrot.lane.b32.xlu0 %v519, 4
      %v743 = vpop.permute.xlu0 %742
      %744 = vrot.lane.b32.xlu0 %v533, 4
      %v745 = vpop.permute.xlu0 %744
      %746 = vrot.lane.b32.xlu0 %v543, 4
      %v747 = vpop.permute.xlu0 %746
      %748 = vrot.lane.b32.xlu0 %v557, 4
      %v749 = vpop.permute.xlu0 %748
      %750 = vrot.lane.b32.xlu0 %v567, 4
      %v751 = vpop.permute.xlu0 %750
      %752 = vrot.lane.b32.xlu0 %v581, 4
      %v753 = vpop.permute.xlu0 %752
      %754 = vrot.lane.b32.xlu0 %v591, 4
      %v755 = vpop.permute.xlu0 %754
      %756 = vrot.lane.b32.xlu0 %v605, 4
      %v757 = vpop.permute.xlu0 %756
      %758 = vrot.lane.b32.xlu0 %v615, 4
      %v759 = vpop.permute.xlu0 %758
      %760 = vrot.lane.b32.xlu0 %v629, 4
      %v761 = vpop.permute.xlu0 %760
      %762 = vrot.lane.b32.xlu0 %v639, 4
      %v763 = vpop.permute.xlu0 %762
      %764 = vrot.lane.b32.xlu0 %v653, 4
      %v765 = vpop.permute.xlu0 %764
      %766 = vrot.lane.b32.xlu0 %v663, 4
      %v767 = vpop.permute.xlu0 %766
      %768 = vrot.lane.b32.xlu0 %v677, 4
      %v769 = vpop.permute.xlu0 %768
      %770 = vrot.lane.b32.xlu0 %v687, 4
      %v771 = vpop.permute.xlu0 %770
      %772 = vrot.lane.b32.xlu0 %v701, 4
      %v773 = vpop.permute.xlu0 %772
      %774 = vrot.lane.b32.xlu0 %v711, 4
      %v775 = vpop.permute.xlu0 %774
      %vm808 = vcmask 60448
      %809 = vst.msk [vmem:[#allocation2] sm:$0xf] %vm808, %v713
      %810 = vst.msk [vmem:[#allocation2 + $0x4] sm:$0xf] %vm808, %v715
      %811 = vst.msk [vmem:[#allocation2 + $0x8] sm:$0xf] %vm808, %v717
      %812 = vst.msk [vmem:[#allocation2 + $0xc] sm:$0xf] %vm808, %v719
      %813 = vst.msk [vmem:[#allocation2 + $0x10] sm:$0xf] %vm808, %v721
      %814 = vst.msk [vmem:[#allocation2 + $0x14] sm:$0xf] %vm808, %v723
      %815 = vst.msk [vmem:[#allocation2 + $0x18] sm:$0xf] %vm808, %v725
      %816 = vst.msk [vmem:[#allocation2 + $0x1c] sm:$0xf] %vm808, %v727
      %817 = vst.msk [vmem:[#allocation2 + $0x20] sm:$0xf] %vm808, %v729
      %818 = vst.msk [vmem:[#allocation2 + $0x24] sm:$0xf] %vm808, %v731
      %819 = vst.msk [vmem:[#allocation2 + $0x28] sm:$0xf] %vm808, %v733
      %820 = vst.msk [vmem:[#allocation2 + $0x2c] sm:$0xf] %vm808, %v735
      %821 = vst.msk [vmem:[#allocation2 + $0x30] sm:$0xf] %vm808, %v737
      %822 = vst.msk [vmem:[#allocation2 + $0x34] sm:$0xf] %vm808, %v739
      %823 = vst.msk [vmem:[#allocation2 + $0x38] sm:$0xf] %vm808, %v741
      %824 = vst.msk [vmem:[#allocation2 + $0x3c] sm:$0xf] %vm808, %v743
      %825 = vst.msk [vmem:[#allocation2 + $0x40] sm:$0xf] %vm808, %v745
      %826 = vst.msk [vmem:[#allocation2 + $0x44] sm:$0xf] %vm808, %v747
      %827 = vst.msk [vmem:[#allocation2 + $0x48] sm:$0xf] %vm808, %v749
      %828 = vst.msk [vmem:[#allocation2 + $0x4c] sm:$0xf] %vm808, %v751
      %829 = vst.msk [vmem:[#allocation2 + $0x50] sm:$0xf] %vm808, %v753
      %830 = vst.msk [vmem:[#allocation2 + $0x54] sm:$0xf] %vm808, %v755
      %831 = vst.msk [vmem:[#allocation2 + $0x58] sm:$0xf] %vm808, %v757
      %832 = vst.msk [vmem:[#allocation2 + $0x5c] sm:$0xf] %vm808, %v759
      %833 = vst.msk [vmem:[#allocation2 + $0x60] sm:$0xf] %vm808, %v761
      %834 = vst.msk [vmem:[#allocation2 + $0x64] sm:$0xf] %vm808, %v763
      %835 = vst.msk [vmem:[#allocation2 + $0x68] sm:$0xf] %vm808, %v765
      %836 = vst.msk [vmem:[#allocation2 + $0x6c] sm:$0xf] %vm808, %v767
      %837 = vst.msk [vmem:[#allocation2 + $0x70] sm:$0xf] %vm808, %v769
      %838 = vst.msk [vmem:[#allocation2 + $0x74] sm:$0xf] %vm808, %v771
      %839 = vst.msk [vmem:[#allocation2 + $0x78] sm:$0xf] %vm808, %v773
      %840 = vst.msk [vmem:[#allocation2 + $0x7c] sm:$0xf] %vm808, %v775
      %s841 = scalar_lea.vmem %s198, 12
      %v842 = vld [vmem:[%s841] sm:$0xf]
      %v843 = vld [vmem:[%s841 + $0x4] sm:$0xf]
      %v844 = vld [vmem:[%s841 + $0xc] sm:$0xf]
      %v845 = vld [vmem:[%s841 + $0x10] sm:$0xf]
      %v846 = vld [vmem:[%s841 + $0x18] sm:$0xf]
      %v847 = vld [vmem:[%s841 + $0x1c] sm:$0xf]
      %v848 = vld [vmem:[%s841 + $0x24] sm:$0xf]
      %v849 = vld [vmem:[%s841 + $0x28] sm:$0xf]
      %v850 = vld [vmem:[%s841 + $0x30] sm:$0xf]
      %v851 = vld [vmem:[%s841 + $0x34] sm:$0xf]
      %v852 = vld [vmem:[%s841 + $0x3c] sm:$0xf]
      %v853 = vld [vmem:[%s841 + $0x40] sm:$0xf]
      %v854 = vld [vmem:[%s841 + $0x48] sm:$0xf]
      %v855 = vld [vmem:[%s841 + $0x4c] sm:$0xf]
      %v856 = vld [vmem:[%s841 + $0x54] sm:$0xf]
      %v857 = vld [vmem:[%s841 + $0x58] sm:$0xf]
      %v858 = vld [vmem:[%s841 + $0x60] sm:$0xf]
      %v859 = vld [vmem:[%s841 + $0x64] sm:$0xf]
      %v860 = vld [vmem:[%s841 + $0x6c] sm:$0xf]
      %v861 = vld [vmem:[%s841 + $0x70] sm:$0xf]
      %v862 = vld [vmem:[%s841 + $0x78] sm:$0xf]
      %v863 = vld [vmem:[%s841 + $0x7c] sm:$0xf]
      %v864 = vld [vmem:[%s841 + $0x84] sm:$0xf]
      %v865 = vld [vmem:[%s841 + $0x88] sm:$0xf]
      %v866 = vld [vmem:[%s841 + $0x90] sm:$0xf]
      %v867 = vld [vmem:[%s841 + $0x94] sm:$0xf]
      %v868 = vld [vmem:[%s841 + $0x9c] sm:$0xf]
      %v869 = vld [vmem:[%s841 + $0xa0] sm:$0xf]
      %v870 = vld [vmem:[%s841 + $0xa8] sm:$0xf]
      %v871 = vld [vmem:[%s841 + $0xac] sm:$0xf]
      %v872 = vld [vmem:[%s841 + $0xb4] sm:$0xf]
      %v873 = vld [vmem:[%s841 + $0xb8] sm:$0xf]
      %906 = vrot.lane.b32.xlu0 %v842, 8
      %v907 = vpop.permute.xlu0 %906
      %908 = vrot.lane.b32.xlu0 %v843, 8
      %v909 = vpop.permute.xlu0 %908
      %910 = vrot.lane.b32.xlu0 %v844, 8
      %v911 = vpop.permute.xlu0 %910
      %912 = vrot.lane.b32.xlu0 %v845, 8
      %v913 = vpop.permute.xlu0 %912
      %914 = vrot.lane.b32.xlu0 %v846, 8
      %v915 = vpop.permute.xlu0 %914
      %916 = vrot.lane.b32.xlu0 %v847, 8
      %v917 = vpop.permute.xlu0 %916
      %918 = vrot.lane.b32.xlu0 %v848, 8
      %v919 = vpop.permute.xlu0 %918
      %920 = vrot.lane.b32.xlu0 %v849, 8
      %v921 = vpop.permute.xlu0 %920
      %922 = vrot.lane.b32.xlu0 %v850, 8
      %v923 = vpop.permute.xlu0 %922
      %924 = vrot.lane.b32.xlu0 %v851, 8
      %v925 = vpop.permute.xlu0 %924
      %926 = vrot.lane.b32.xlu0 %v852, 8
      %v927 = vpop.permute.xlu0 %926
      %928 = vrot.lane.b32.xlu0 %v853, 8
      %v929 = vpop.permute.xlu0 %928
      %930 = vrot.lane.b32.xlu0 %v854, 8
      %v931 = vpop.permute.xlu0 %930
      %932 = vrot.lane.b32.xlu0 %v855, 8
      %v933 = vpop.permute.xlu0 %932
      %934 = vrot.lane.b32.xlu0 %v856, 8
      %v935 = vpop.permute.xlu0 %934
      %936 = vrot.lane.b32.xlu0 %v857, 8
      %v937 = vpop.permute.xlu0 %936
      %938 = vrot.lane.b32.xlu0 %v858, 8
      %v939 = vpop.permute.xlu0 %938
      %940 = vrot.lane.b32.xlu0 %v859, 8
      %v941 = vpop.permute.xlu0 %940
      %942 = vrot.lane.b32.xlu0 %v860, 8
      %v943 = vpop.permute.xlu0 %942
      %944 = vrot.lane.b32.xlu0 %v861, 8
      %v945 = vpop.permute.xlu0 %944
      %946 = vrot.lane.b32.xlu0 %v862, 8
      %v947 = vpop.permute.xlu0 %946
      %948 = vrot.lane.b32.xlu0 %v863, 8
      %v949 = vpop.permute.xlu0 %948
      %950 = vrot.lane.b32.xlu0 %v864, 8
      %v951 = vpop.permute.xlu0 %950
      %952 = vrot.lane.b32.xlu0 %v865, 8
      %v953 = vpop.permute.xlu0 %952
      %954 = vrot.lane.b32.xlu0 %v866, 8
      %v955 = vpop.permute.xlu0 %954
      %956 = vrot.lane.b32.xlu0 %v867, 8
      %v957 = vpop.permute.xlu0 %956
      %958 = vrot.lane.b32.xlu0 %v868, 8
      %v959 = vpop.permute.xlu0 %958
      %960 = vrot.lane.b32.xlu0 %v869, 8
      %v961 = vpop.permute.xlu0 %960
      %962 = vrot.lane.b32.xlu0 %v870, 8
      %v963 = vpop.permute.xlu0 %962
      %964 = vrot.lane.b32.xlu0 %v871, 8
      %v965 = vpop.permute.xlu0 %964
      %966 = vrot.lane.b32.xlu0 %v872, 8
      %v967 = vpop.permute.xlu0 %966
      %968 = vrot.lane.b32.xlu0 %v873, 8
      %v969 = vpop.permute.xlu0 %968
      %vm1002 = vcmask 93248
      %1003 = vst.msk [vmem:[#allocation2] sm:$0xf] %vm1002, %v907
      %1004 = vst.msk [vmem:[#allocation2 + $0x4] sm:$0xf] %vm1002, %v909
      %1005 = vst.msk [vmem:[#allocation2 + $0x8] sm:$0xf] %vm1002, %v911
      %1006 = vst.msk [vmem:[#allocation2 + $0xc] sm:$0xf] %vm1002, %v913
      %1007 = vst.msk [vmem:[#allocation2 + $0x10] sm:$0xf] %vm1002, %v915
      %1008 = vst.msk [vmem:[#allocation2 + $0x14] sm:$0xf] %vm1002, %v917
      %1009 = vst.msk [vmem:[#allocation2 + $0x18] sm:$0xf] %vm1002, %v919
      %1010 = vst.msk [vmem:[#allocation2 + $0x1c] sm:$0xf] %vm1002, %v921
      %1011 = vst.msk [vmem:[#allocation2 + $0x20] sm:$0xf] %vm1002, %v923
      %1012 = vst.msk [vmem:[#allocation2 + $0x24] sm:$0xf] %vm1002, %v925
      %1013 = vst.msk [vmem:[#allocation2 + $0x28] sm:$0xf] %vm1002, %v927
      %1014 = vst.msk [vmem:[#allocation2 + $0x2c] sm:$0xf] %vm1002, %v929
      %1015 = vst.msk [vmem:[#allocation2 + $0x30] sm:$0xf] %vm1002, %v931
      %1016 = vst.msk [vmem:[#allocation2 + $0x34] sm:$0xf] %vm1002, %v933
      %1017 = vst.msk [vmem:[#allocation2 + $0x38] sm:$0xf] %vm1002, %v935
      %1018 = vst.msk [vmem:[#allocation2 + $0x3c] sm:$0xf] %vm1002, %v937
      %1019 = vst.msk [vmem:[#allocation2 + $0x40] sm:$0xf] %vm1002, %v939
      %1020 = vst.msk [vmem:[#allocation2 + $0x44] sm:$0xf] %vm1002, %v941
      %1021 = vst.msk [vmem:[#allocation2 + $0x48] sm:$0xf] %vm1002, %v943
      %1022 = vst.msk [vmem:[#allocation2 + $0x4c] sm:$0xf] %vm1002, %v945
      %1023 = vst.msk [vmem:[#allocation2 + $0x50] sm:$0xf] %vm1002, %v947
      %1024 = vst.msk [vmem:[#allocation2 + $0x54] sm:$0xf] %vm1002, %v949
      %1025 = vst.msk [vmem:[#allocation2 + $0x58] sm:$0xf] %vm1002, %v951
      %1026 = vst.msk [vmem:[#allocation2 + $0x5c] sm:$0xf] %vm1002, %v953
      %1027 = vst.msk [vmem:[#allocation2 + $0x60] sm:$0xf] %vm1002, %v955
      %1028 = vst.msk [vmem:[#allocation2 + $0x64] sm:$0xf] %vm1002, %v957
      %1029 = vst.msk [vmem:[#allocation2 + $0x68] sm:$0xf] %vm1002, %v959
      %1030 = vst.msk [vmem:[#allocation2 + $0x6c] sm:$0xf] %vm1002, %v961
      %1031 = vst.msk [vmem:[#allocation2 + $0x70] sm:$0xf] %vm1002, %v963
      %1032 = vst.msk [vmem:[#allocation2 + $0x74] sm:$0xf] %vm1002, %v965
      %1033 = vst.msk [vmem:[#allocation2 + $0x78] sm:$0xf] %vm1002, %v967
      %1034 = vst.msk [vmem:[#allocation2 + $0x7c] sm:$0xf] %vm1002, %v969
      %v1035 = vld [vmem:[%s841] sm:$0xf]
      %v1036 = vld [vmem:[%s841 + $0x4] sm:$0xf]
      %v1037 = vld [vmem:[%s841 + $0x8] sm:$0x1]
      %v1038 = vld [vmem:[%s841 + $0xc] sm:$0xf]
      %v1039 = vld [vmem:[%s841 + $0x10] sm:$0xf]
      %v1040 = vld [vmem:[%s841 + $0x14] sm:$0x1]
      %v1041 = vld [vmem:[%s841 + $0x18] sm:$0xf]
      %v1042 = vld [vmem:[%s841 + $0x1c] sm:$0xf]
      %v1043 = vld [vmem:[%s841 + $0x20] sm:$0x1]
      %v1044 = vld [vmem:[%s841 + $0x24] sm:$0xf]
      %v1045 = vld [vmem:[%s841 + $0x28] sm:$0xf]
      %v1046 = vld [vmem:[%s841 + $0x2c] sm:$0x1]
      %v1047 = vld [vmem:[%s841 + $0x30] sm:$0xf]
      %v1048 = vld [vmem:[%s841 + $0x34] sm:$0xf]
      %v1049 = vld [vmem:[%s841 + $0x38] sm:$0x1]
      %v1050 = vld [vmem:[%s841 + $0x3c] sm:$0xf]
      %v1051 = vld [vmem:[%s841 + $0x40] sm:$0xf]
      %v1052 = vld [vmem:[%s841 + $0x44] sm:$0x1]
      %v1053 = vld [vmem:[%s841 + $0x48] sm:$0xf]
      %v1054 = vld [vmem:[%s841 + $0x4c] sm:$0xf]
      %v1055 = vld [vmem:[%s841 + $0x50] sm:$0x1]
      %v1056 = vld [vmem:[%s841 + $0x54] sm:$0xf]
      %v1057 = vld [vmem:[%s841 + $0x58] sm:$0xf]
      %v1058 = vld [vmem:[%s841 + $0x5c] sm:$0x1]
      %v1059 = vld [vmem:[%s841 + $0x60] sm:$0xf]
      %v1060 = vld [vmem:[%s841 + $0x64] sm:$0xf]
      %v1061 = vld [vmem:[%s841 + $0x68] sm:$0x1]
      %v1062 = vld [vmem:[%s841 + $0x6c] sm:$0xf]
      %v1063 = vld [vmem:[%s841 + $0x70] sm:$0xf]
      %v1064 = vld [vmem:[%s841 + $0x74] sm:$0x1]
      %v1065 = vld [vmem:[%s841 + $0x78] sm:$0xf]
      %v1066 = vld [vmem:[%s841 + $0x7c] sm:$0xf]
      %v1067 = vld [vmem:[%s841 + $0x80] sm:$0x1]
      %v1068 = vld [vmem:[%s841 + $0x84] sm:$0xf]
      %v1069 = vld [vmem:[%s841 + $0x88] sm:$0xf]
      %v1070 = vld [vmem:[%s841 + $0x8c] sm:$0x1]
      %v1071 = vld [vmem:[%s841 + $0x90] sm:$0xf]
      %v1072 = vld [vmem:[%s841 + $0x94] sm:$0xf]
      %v1073 = vld [vmem:[%s841 + $0x98] sm:$0x1]
      %v1074 = vld [vmem:[%s841 + $0x9c] sm:$0xf]
      %v1075 = vld [vmem:[%s841 + $0xa0] sm:$0xf]
      %v1076 = vld [vmem:[%s841 + $0xa4] sm:$0x1]
      %v1077 = vld [vmem:[%s841 + $0xa8] sm:$0xf]
      %v1078 = vld [vmem:[%s841 + $0xac] sm:$0xf]
      %v1079 = vld [vmem:[%s841 + $0xb0] sm:$0x1]
      %v1080 = vld [vmem:[%s841 + $0xb4] sm:$0xf]
      %v1081 = vld [vmem:[%s841 + $0xb8] sm:$0xf]
      %v1082 = vld [vmem:[%s841 + $0xbc] sm:$0x1]
      %v1084 = vshrl.u32 %v1035, 16
      %v1086 = vrot.slane %v1084, 4
      %v1087 = vshll.u32 %v1035, 16
      %v1089 = vrot.slane %v1087, 5
      %v1090 = vor.u32 %v1086, %v1089
      %v1091 = vrot.slane %v1090, 4
      %v1093 = vshll.u32 %v1036, 16
      %v1095 = vrot.slane %v1093, 5
      %v1096 = vsel %vm327, %v1091, %v1095
      %v1097 = vshrl.u32 %v1036, 16
      %v1099 = vrot.slane %v1097, 4
      %v1100 = vor.u32 %v1099, %v1095
      %v1101 = vrot.slane %v1100, 4
      %v1103 = vshll.u32 %v1037, 16
      %v1105 = vrot.slane %v1103, 5
      %v1106 = vsel %vm327, %v1101, %v1105
      %v1108 = vshrl.u32 %v1038, 16
      %v1110 = vrot.slane %v1108, 4
      %v1111 = vshll.u32 %v1038, 16
      %v1113 = vrot.slane %v1111, 5
      %v1114 = vor.u32 %v1110, %v1113
      %v1115 = vrot.slane %v1114, 4
      %v1117 = vshll.u32 %v1039, 16
      %v1119 = vrot.slane %v1117, 5
      %v1120 = vsel %vm327, %v1115, %v1119
      %v1121 = vshrl.u32 %v1039, 16
      %v1123 = vrot.slane %v1121, 4
      %v1124 = vor.u32 %v1123, %v1119
      %v1125 = vrot.slane %v1124, 4
      %v1127 = vshll.u32 %v1040, 16
      %v1129 = vrot.slane %v1127, 5
      %v1130 = vsel %vm327, %v1125, %v1129
      %v1132 = vshrl.u32 %v1041, 16
      %v1134 = vrot.slane %v1132, 4
      %v1135 = vshll.u32 %v1041, 16
      %v1137 = vrot.slane %v1135, 5
      %v1138 = vor.u32 %v1134, %v1137
      %v1139 = vrot.slane %v1138, 4
      %v1141 = vshll.u32 %v1042, 16
      %v1143 = vrot.slane %v1141, 5
      %v1144 = vsel %vm327, %v1139, %v1143
      %v1145 = vshrl.u32 %v1042, 16
      %v1147 = vrot.slane %v1145, 4
      %v1148 = vor.u32 %v1147, %v1143
      %v1149 = vrot.slane %v1148, 4
      %v1151 = vshll.u32 %v1043, 16
      %v1153 = vrot.slane %v1151, 5
      %v1154 = vsel %vm327, %v1149, %v1153
      %v1156 = vshrl.u32 %v1044, 16
      %v1158 = vrot.slane %v1156, 4
      %v1159 = vshll.u32 %v1044, 16
      %v1161 = vrot.slane %v1159, 5
      %v1162 = vor.u32 %v1158, %v1161
      %v1163 = vrot.slane %v1162, 4
      %v1165 = vshll.u32 %v1045, 16
      %v1167 = vrot.slane %v1165, 5
      %v1168 = vsel %vm327, %v1163, %v1167
      %v1169 = vshrl.u32 %v1045, 16
      %v1171 = vrot.slane %v1169, 4
      %v1172 = vor.u32 %v1171, %v1167
      %v1173 = vrot.slane %v1172, 4
      %v1175 = vshll.u32 %v1046, 16
      %v1177 = vrot.slane %v1175, 5
      %v1178 = vsel %vm327, %v1173, %v1177
      %v1180 = vshrl.u32 %v1047, 16
      %v1182 = vrot.slane %v1180, 4
      %v1183 = vshll.u32 %v1047, 16
      %v1185 = vrot.slane %v1183, 5
      %v1186 = vor.u32 %v1182, %v1185
      %v1187 = vrot.slane %v1186, 4
      %v1189 = vshll.u32 %v1048, 16
      %v1191 = vrot.slane %v1189, 5
      %v1192 = vsel %vm327, %v1187, %v1191
      %v1193 = vshrl.u32 %v1048, 16
      %v1195 = vrot.slane %v1193, 4
      %v1196 = vor.u32 %v1195, %v1191
      %v1197 = vrot.slane %v1196, 4
      %v1199 = vshll.u32 %v1049, 16
      %v1201 = vrot.slane %v1199, 5
      %v1202 = vsel %vm327, %v1197, %v1201
      %v1204 = vshrl.u32 %v1050, 16
      %v1206 = vrot.slane %v1204, 4
      %v1207 = vshll.u32 %v1050, 16
      %v1209 = vrot.slane %v1207, 5
      %v1210 = vor.u32 %v1206, %v1209
      %v1211 = vrot.slane %v1210, 4
      %v1213 = vshll.u32 %v1051, 16
      %v1215 = vrot.slane %v1213, 5
      %v1216 = vsel %vm327, %v1211, %v1215
      %v1217 = vshrl.u32 %v1051, 16
      %v1219 = vrot.slane %v1217, 4
      %v1220 = vor.u32 %v1219, %v1215
      %v1221 = vrot.slane %v1220, 4
      %v1223 = vshll.u32 %v1052, 16
      %v1225 = vrot.slane %v1223, 5
      %v1226 = vsel %vm327, %v1221, %v1225
      %v1228 = vshrl.u32 %v1053, 16
      %v1230 = vrot.slane %v1228, 4
      %v1231 = vshll.u32 %v1053, 16
      %v1233 = vrot.slane %v1231, 5
      %v1234 = vor.u32 %v1230, %v1233
      %v1235 = vrot.slane %v1234, 4
      %v1237 = vshll.u32 %v1054, 16
      %v1239 = vrot.slane %v1237, 5
      %v1240 = vsel %vm327, %v1235, %v1239
      %v1241 = vshrl.u32 %v1054, 16
      %v1243 = vrot.slane %v1241, 4
      %v1244 = vor.u32 %v1243, %v1239
      %v1245 = vrot.slane %v1244, 4
      %v1247 = vshll.u32 %v1055, 16
      %v1249 = vrot.slane %v1247, 5
      %v1250 = vsel %vm327, %v1245, %v1249
      %v1252 = vshrl.u32 %v1056, 16
      %v1254 = vrot.slane %v1252, 4
      %v1255 = vshll.u32 %v1056, 16
      %v1257 = vrot.slane %v1255, 5
      %v1258 = vor.u32 %v1254, %v1257
      %v1259 = vrot.slane %v1258, 4
      %v1261 = vshll.u32 %v1057, 16
      %v1263 = vrot.slane %v1261, 5
      %v1264 = vsel %vm327, %v1259, %v1263
      %v1265 = vshrl.u32 %v1057, 16
      %v1267 = vrot.slane %v1265, 4
      %v1268 = vor.u32 %v1267, %v1263
      %v1269 = vrot.slane %v1268, 4
      %v1271 = vshll.u32 %v1058, 16
      %v1273 = vrot.slane %v1271, 5
      %v1274 = vsel %vm327, %v1269, %v1273
      %v1276 = vshrl.u32 %v1059, 16
      %v1278 = vrot.slane %v1276, 4
      %v1279 = vshll.u32 %v1059, 16
      %v1281 = vrot.slane %v1279, 5
      %v1282 = vor.u32 %v1278, %v1281
      %v1283 = vrot.slane %v1282, 4
      %v1285 = vshll.u32 %v1060, 16
      %v1287 = vrot.slane %v1285, 5
      %v1288 = vsel %vm327, %v1283, %v1287
      %v1289 = vshrl.u32 %v1060, 16
      %v1291 = vrot.slane %v1289, 4
      %v1292 = vor.u32 %v1291, %v1287
      %v1293 = vrot.slane %v1292, 4
      %v1295 = vshll.u32 %v1061, 16
      %v1297 = vrot.slane %v1295, 5
      %v1298 = vsel %vm327, %v1293, %v1297
      %v1300 = vshrl.u32 %v1062, 16
      %v1302 = vrot.slane %v1300, 4
      %v1303 = vshll.u32 %v1062, 16
      %v1305 = vrot.slane %v1303, 5
      %v1306 = vor.u32 %v1302, %v1305
      %v1307 = vrot.slane %v1306, 4
      %v1309 = vshll.u32 %v1063, 16
      %v1311 = vrot.slane %v1309, 5
      %v1312 = vsel %vm327, %v1307, %v1311
      %v1313 = vshrl.u32 %v1063, 16
      %v1315 = vrot.slane %v1313, 4
      %v1316 = vor.u32 %v1315, %v1311
      %v1317 = vrot.slane %v1316, 4
      %v1319 = vshll.u32 %v1064, 16
      %v1321 = vrot.slane %v1319, 5
      %v1322 = vsel %vm327, %v1317, %v1321
      %v1324 = vshrl.u32 %v1065, 16
      %v1326 = vrot.slane %v1324, 4
      %v1327 = vshll.u32 %v1065, 16
      %v1329 = vrot.slane %v1327, 5
      %v1330 = vor.u32 %v1326, %v1329
      %v1331 = vrot.slane %v1330, 4
      %v1333 = vshll.u32 %v1066, 16
      %v1335 = vrot.slane %v1333, 5
      %v1336 = vsel %vm327, %v1331, %v1335
      %v1337 = vshrl.u32 %v1066, 16
      %v1339 = vrot.slane %v1337, 4
      %v1340 = vor.u32 %v1339, %v1335
      %v1341 = vrot.slane %v1340, 4
      %v1343 = vshll.u32 %v1067, 16
      %v1345 = vrot.slane %v1343, 5
      %v1346 = vsel %vm327, %v1341, %v1345
      %v1348 = vshrl.u32 %v1068, 16
      %v1350 = vrot.slane %v1348, 4
      %v1351 = vshll.u32 %v1068, 16
      %v1353 = vrot.slane %v1351, 5
      %v1354 = vor.u32 %v1350, %v1353
      %v1355 = vrot.slane %v1354, 4
      %v1357 = vshll.u32 %v1069, 16
      %v1359 = vrot.slane %v1357, 5
      %v1360 = vsel %vm327, %v1355, %v1359
      %v1361 = vshrl.u32 %v1069, 16
      %v1363 = vrot.slane %v1361, 4
      %v1364 = vor.u32 %v1363, %v1359
      %v1365 = vrot.slane %v1364, 4
      %v1367 = vshll.u32 %v1070, 16
      %v1369 = vrot.slane %v1367, 5
      %v1370 = vsel %vm327, %v1365, %v1369
      %v1372 = vshrl.u32 %v1071, 16
      %v1374 = vrot.slane %v1372, 4
      %v1375 = vshll.u32 %v1071, 16
      %v1377 = vrot.slane %v1375, 5
      %v1378 = vor.u32 %v1374, %v1377
      %v1379 = vrot.slane %v1378, 4
      %v1381 = vshll.u32 %v1072, 16
      %v1383 = vrot.slane %v1381, 5
      %v1384 = vsel %vm327, %v1379, %v1383
      %v1385 = vshrl.u32 %v1072, 16
      %v1387 = vrot.slane %v1385, 4
      %v1388 = vor.u32 %v1387, %v1383
      %v1389 = vrot.slane %v1388, 4
      %v1391 = vshll.u32 %v1073, 16
      %v1393 = vrot.slane %v1391, 5
      %v1394 = vsel %vm327, %v1389, %v1393
      %v1396 = vshrl.u32 %v1074, 16
      %v1398 = vrot.slane %v1396, 4
      %v1399 = vshll.u32 %v1074, 16
      %v1401 = vrot.slane %v1399, 5
      %v1402 = vor.u32 %v1398, %v1401
      %v1403 = vrot.slane %v1402, 4
      %v1405 = vshll.u32 %v1075, 16
      %v1407 = vrot.slane %v1405, 5
      %v1408 = vsel %vm327, %v1403, %v1407
      %v1409 = vshrl.u32 %v1075, 16
      %v1411 = vrot.slane %v1409, 4
      %v1412 = vor.u32 %v1411, %v1407
      %v1413 = vrot.slane %v1412, 4
      %v1415 = vshll.u32 %v1076, 16
      %v1417 = vrot.slane %v1415, 5
      %v1418 = vsel %vm327, %v1413, %v1417
      %v1420 = vshrl.u32 %v1077, 16
      %v1422 = vrot.slane %v1420, 4
      %v1423 = vshll.u32 %v1077, 16
      %v1425 = vrot.slane %v1423, 5
      %v1426 = vor.u32 %v1422, %v1425
      %v1427 = vrot.slane %v1426, 4
      %v1429 = vshll.u32 %v1078, 16
      %v1431 = vrot.slane %v1429, 5
      %v1432 = vsel %vm327, %v1427, %v1431
      %v1433 = vshrl.u32 %v1078, 16
      %v1435 = vrot.slane %v1433, 4
      %v1436 = vor.u32 %v1435, %v1431
      %v1437 = vrot.slane %v1436, 4
      %v1439 = vshll.u32 %v1079, 16
      %v1441 = vrot.slane %v1439, 5
      %v1442 = vsel %vm327, %v1437, %v1441
      %v1444 = vshrl.u32 %v1080, 16
      %v1446 = vrot.slane %v1444, 4
      %v1447 = vshll.u32 %v1080, 16
      %v1449 = vrot.slane %v1447, 5
      %v1450 = vor.u32 %v1446, %v1449
      %v1451 = vrot.slane %v1450, 4
      %v1453 = vshll.u32 %v1081, 16
      %v1455 = vrot.slane %v1453, 5
      %v1456 = vsel %vm327, %v1451, %v1455
      %v1457 = vshrl.u32 %v1081, 16
      %v1459 = vrot.slane %v1457, 4
      %v1460 = vor.u32 %v1459, %v1455
      %v1461 = vrot.slane %v1460, 4
      %v1463 = vshll.u32 %v1082, 16
      %v1465 = vrot.slane %v1463, 5
      %v1466 = vsel %vm327, %v1461, %v1465
      %1467 = vrot.lane.b32.xlu0 %v1096, 12
      %v1468 = vpop.permute.xlu0 %1467
      %1469 = vrot.lane.b32.xlu0 %v1106, 12
      %v1470 = vpop.permute.xlu0 %1469
      %1471 = vrot.lane.b32.xlu0 %v1120, 12
      %v1472 = vpop.permute.xlu0 %1471
      %1473 = vrot.lane.b32.xlu0 %v1130, 12
      %v1474 = vpop.permute.xlu0 %1473
      %1475 = vrot.lane.b32.xlu0 %v1144, 12
      %v1476 = vpop.permute.xlu0 %1475
      %1477 = vrot.lane.b32.xlu0 %v1154, 12
      %v1478 = vpop.permute.xlu0 %1477
      %1479 = vrot.lane.b32.xlu0 %v1168, 12
      %v1480 = vpop.permute.xlu0 %1479
      %1481 = vrot.lane.b32.xlu0 %v1178, 12
      %v1482 = vpop.permute.xlu0 %1481
      %1483 = vrot.lane.b32.xlu0 %v1192, 12
      %v1484 = vpop.permute.xlu0 %1483
      %1485 = vrot.lane.b32.xlu0 %v1202, 12
      %v1486 = vpop.permute.xlu0 %1485
      %1487 = vrot.lane.b32.xlu0 %v1216, 12
      %v1488 = vpop.permute.xlu0 %1487
      %1489 = vrot.lane.b32.xlu0 %v1226, 12
      %v1490 = vpop.permute.xlu0 %1489
      %1491 = vrot.lane.b32.xlu0 %v1240, 12
      %v1492 = vpop.permute.xlu0 %1491
      %1493 = vrot.lane.b32.xlu0 %v1250, 12
      %v1494 = vpop.permute.xlu0 %1493
      %1495 = vrot.lane.b32.xlu0 %v1264, 12
      %v1496 = vpop.permute.xlu0 %1495
      %1497 = vrot.lane.b32.xlu0 %v1274, 12
      %v1498 = vpop.permute.xlu0 %1497
      %1499 = vrot.lane.b32.xlu0 %v1288, 12
      %v1500 = vpop.permute.xlu0 %1499
      %1501 = vrot.lane.b32.xlu0 %v1298, 12
      %v1502 = vpop.permute.xlu0 %1501
      %1503 = vrot.lane.b32.xlu0 %v1312, 12
      %v1504 = vpop.permute.xlu0 %1503
      %1505 = vrot.lane.b32.xlu0 %v1322, 12
      %v1506 = vpop.permute.xlu0 %1505
      %1507 = vrot.lane.b32.xlu0 %v1336, 12
      %v1508 = vpop.permute.xlu0 %1507
      %1509 = vrot.lane.b32.xlu0 %v1346, 12
      %v1510 = vpop.permute.xlu0 %1509
      %1511 = vrot.lane.b32.xlu0 %v1360, 12
      %v1512 = vpop.permute.xlu0 %1511
      %1513 = vrot.lane.b32.xlu0 %v1370, 12
      %v1514 = vpop.permute.xlu0 %1513
      %1515 = vrot.lane.b32.xlu0 %v1384, 12
      %v1516 = vpop.permute.xlu0 %1515
      %1517 = vrot.lane.b32.xlu0 %v1394, 12
      %v1518 = vpop.permute.xlu0 %1517
      %1519 = vrot.lane.b32.xlu0 %v1408, 12
      %v1520 = vpop.permute.xlu0 %1519
      %1521 = vrot.lane.b32.xlu0 %v1418, 12
      %v1522 = vpop.permute.xlu0 %1521
      %1523 = vrot.lane.b32.xlu0 %v1432, 12
      %v1524 = vpop.permute.xlu0 %1523
      %1525 = vrot.lane.b32.xlu0 %v1442, 12
      %v1526 = vpop.permute.xlu0 %1525
      %1527 = vrot.lane.b32.xlu0 %v1456, 12
      %v1528 = vpop.permute.xlu0 %1527
      %1529 = vrot.lane.b32.xlu0 %v1466, 12
      %v1530 = vpop.permute.xlu0 %1529
      %vm1563 = vcmask 126048
      %1564 = vst.msk [vmem:[#allocation2] sm:$0xf] %vm1563, %v1468
      %1565 = vst.msk [vmem:[#allocation2 + $0x4] sm:$0xf] %vm1563, %v1470
      %1566 = vst.msk [vmem:[#allocation2 + $0x8] sm:$0xf] %vm1563, %v1472
      %1567 = vst.msk [vmem:[#allocation2 + $0xc] sm:$0xf] %vm1563, %v1474
      %1568 = vst.msk [vmem:[#allocation2 + $0x10] sm:$0xf] %vm1563, %v1476
      %1569 = vst.msk [vmem:[#allocation2 + $0x14] sm:$0xf] %vm1563, %v1478
      %1570 = vst.msk [vmem:[#allocation2 + $0x18] sm:$0xf] %vm1563, %v1480
      %1571 = vst.msk [vmem:[#allocation2 + $0x1c] sm:$0xf] %vm1563, %v1482
      %1572 = vst.msk [vmem:[#allocation2 + $0x20] sm:$0xf] %vm1563, %v1484
      %1573 = vst.msk [vmem:[#allocation2 + $0x24] sm:$0xf] %vm1563, %v1486
      %1574 = vst.msk [vmem:[#allocation2 + $0x28] sm:$0xf] %vm1563, %v1488
      %1575 = vst.msk [vmem:[#allocation2 + $0x2c] sm:$0xf] %vm1563, %v1490
      %1576 = vst.msk [vmem:[#allocation2 + $0x30] sm:$0xf] %vm1563, %v1492
      %1577 = vst.msk [vmem:[#allocation2 + $0x34] sm:$0xf] %vm1563, %v1494
      %1578 = vst.msk [vmem:[#allocation2 + $0x38] sm:$0xf] %vm1563, %v1496
      %1579 = vst.msk [vmem:[#allocation2 + $0x3c] sm:$0xf] %vm1563, %v1498
      %1580 = vst.msk [vmem:[#allocation2 + $0x40] sm:$0xf] %vm1563, %v1500
      %1581 = vst.msk [vmem:[#allocation2 + $0x44] sm:$0xf] %vm1563, %v1502
      %1582 = vst.msk [vmem:[#allocation2 + $0x48] sm:$0xf] %vm1563, %v1504
      %1583 = vst.msk [vmem:[#allocation2 + $0x4c] sm:$0xf] %vm1563, %v1506
      %1584 = vst.msk [vmem:[#allocation2 + $0x50] sm:$0xf] %vm1563, %v1508
      %1585 = vst.msk [vmem:[#allocation2 + $0x54] sm:$0xf] %vm1563, %v1510
      %1586 = vst.msk [vmem:[#allocation2 + $0x58] sm:$0xf] %vm1563, %v1512
      %1587 = vst.msk [vmem:[#allocation2 + $0x5c] sm:$0xf] %vm1563, %v1514
      %1588 = vst.msk [vmem:[#allocation2 + $0x60] sm:$0xf] %vm1563, %v1516
      %1589 = vst.msk [vmem:[#allocation2 + $0x64] sm:$0xf] %vm1563, %v1518
      %1590 = vst.msk [vmem:[#allocation2 + $0x68] sm:$0xf] %vm1563, %v1520
      %1591 = vst.msk [vmem:[#allocation2 + $0x6c] sm:$0xf] %vm1563, %v1522
      %1592 = vst.msk [vmem:[#allocation2 + $0x70] sm:$0xf] %vm1563, %v1524
      %1593 = vst.msk [vmem:[#allocation2 + $0x74] sm:$0xf] %vm1563, %v1526
      %1594 = vst.msk [vmem:[#allocation2 + $0x78] sm:$0xf] %vm1563, %v1528
      %1595 = vst.msk [vmem:[#allocation2 + $0x7c] sm:$0xf] %vm1563, %v1530
      %v1596 = vld [vmem:[#allocation2] sm:$0xf]
      %v1597 = vld [vmem:[#allocation2 + $0x4] sm:$0xf]
      %v1598 = vld [vmem:[#allocation2 + $0x8] sm:$0xf]
      %v1599 = vld [vmem:[#allocation2 + $0xc] sm:$0xf]
      %v1600 = vld [vmem:[#allocation2 + $0x10] sm:$0xf]
      %v1601 = vld [vmem:[#allocation2 + $0x14] sm:$0xf]
      %v1602 = vld [vmem:[#allocation2 + $0x18] sm:$0xf]
      %v1603 = vld [vmem:[#allocation2 + $0x1c] sm:$0xf]
      %v1604 = vld [vmem:[#allocation2 + $0x20] sm:$0xf]
      %v1605 = vld [vmem:[#allocation2 + $0x24] sm:$0xf]
      %v1606 = vld [vmem:[#allocation2 + $0x28] sm:$0xf]
      %v1607 = vld [vmem:[#allocation2 + $0x2c] sm:$0xf]
      %v1608 = vld [vmem:[#allocation2 + $0x30] sm:$0xf]
      %v1609 = vld [vmem:[#allocation2 + $0x34] sm:$0xf]
      %v1610 = vld [vmem:[#allocation2 + $0x38] sm:$0xf]
      %v1611 = vld [vmem:[#allocation2 + $0x3c] sm:$0xf]
      %v1612 = vld [vmem:[#allocation2 + $0x40] sm:$0xf]
      %v1613 = vld [vmem:[#allocation2 + $0x44] sm:$0xf]
      %v1614 = vld [vmem:[#allocation2 + $0x48] sm:$0xf]
      %v1615 = vld [vmem:[#allocation2 + $0x4c] sm:$0xf]
      %v1616 = vld [vmem:[#allocation2 + $0x50] sm:$0xf]
      %v1617 = vld [vmem:[#allocation2 + $0x54] sm:$0xf]
      %v1618 = vld [vmem:[#allocation2 + $0x58] sm:$0xf]
      %v1619 = vld [vmem:[#allocation2 + $0x5c] sm:$0xf]
      %v1620 = vld [vmem:[#allocation2 + $0x60] sm:$0xf]
      %v1621 = vld [vmem:[#allocation2 + $0x64] sm:$0xf]
      %v1622 = vld [vmem:[#allocation2 + $0x68] sm:$0xf]
      %v1623 = vld [vmem:[#allocation2 + $0x6c] sm:$0xf]
      %v1624 = vld [vmem:[#allocation2 + $0x70] sm:$0xf]
      %v1625 = vld [vmem:[#allocation2 + $0x74] sm:$0xf]
      %v1626 = vld [vmem:[#allocation2 + $0x78] sm:$0xf]
      %v1627 = vld [vmem:[#allocation2 + $0x7c] sm:$0xf]
      %v1628 = vld [vmem:[%s1] sm:$0xf]
      %v1629 = vld [vmem:[%s1 + $0x4] sm:$0xf]
      %v1631 = vlaneseq
      %v1632 = vshrl.u32 %v1631, 7
      %v1633 = vsub.s32 0, %v1632
      %v1634 = vrot.slane %v211, %v1633
      %v1668 = vunpack.c.l.b16 %v1596
      %v1669 = vunpack.c.l.b16 %v1597
      %v1670 = vunpack.c.l.b16 %v1598
      %v1671 = vunpack.c.l.b16 %v1599
      %v1672 = vunpack.c.l.b16 %v1600
      %v1673 = vunpack.c.l.b16 %v1601
      %v1674 = vunpack.c.l.b16 %v1602
      %v1675 = vunpack.c.l.b16 %v1603
      %v1676 = vunpack.c.l.b16 %v1604
      %v1677 = vunpack.c.l.b16 %v1605
      %v1678 = vunpack.c.l.b16 %v1606
      %v1679 = vunpack.c.l.b16 %v1607
      %v1680 = vunpack.c.l.b16 %v1608
      %v1681 = vunpack.c.l.b16 %v1609
      %v1682 = vunpack.c.l.b16 %v1610
      %v1683 = vunpack.c.l.b16 %v1611
      %v1684 = vunpack.c.l.b16 %v1612
      %v1685 = vunpack.c.l.b16 %v1613
      %v1686 = vunpack.c.l.b16 %v1614
      %v1687 = vunpack.c.l.b16 %v1615
      %v1688 = vunpack.c.l.b16 %v1616
      %v1689 = vunpack.c.l.b16 %v1617
      %v1690 = vunpack.c.l.b16 %v1618
      %v1691 = vunpack.c.l.b16 %v1619
      %v1692 = vunpack.c.l.b16 %v1620
      %v1693 = vunpack.c.l.b16 %v1621
      %v1694 = vunpack.c.l.b16 %v1622
      %v1695 = vunpack.c.l.b16 %v1623
      %v1696 = vunpack.c.l.b16 %v1624
      %v1697 = vunpack.c.l.b16 %v1625
      %v1698 = vunpack.c.l.b16 %v1626
      %v1699 = vunpack.c.l.b16 %v1627
      %v1700 = vpack.c.b16 %v1669, %v1668
      %v1701 = vpack.c.b16 %v1671, %v1670
      %v1702 = vpack.c.b16 %v1673, %v1672
      %v1703 = vpack.c.b16 %v1675, %v1674
      %v1704 = vpack.c.b16 %v1677, %v1676
      %v1705 = vpack.c.b16 %v1679, %v1678
      %v1706 = vpack.c.b16 %v1681, %v1680
      %v1707 = vpack.c.b16 %v1683, %v1682
      %v1708 = vpack.c.b16 %v1685, %v1684
      %v1709 = vpack.c.b16 %v1687, %v1686
      %v1710 = vpack.c.b16 %v1689, %v1688
      %v1711 = vpack.c.b16 %v1691, %v1690
      %v1712 = vpack.c.b16 %v1693, %v1692
      %v1713 = vpack.c.b16 %v1695, %v1694
      %v1714 = vpack.c.b16 %v1697, %v1696
      %v1715 = vpack.c.b16 %v1699, %v1698
      %v1718 = vunpack.c.l.b16 %v1628
      %v1719 = vunpack.c.l.b16 %v1629
      %v1720 = vpack.c.b16 %v1719, %v1718
      %vm1722 = vcmask 130048
      %v1724 = vsel %vm1722, %v1700, 0
      %v1727 = vsel %vm1722, %v1701, 0
      %v1730 = vsel %vm1722, %v1702, 0
      %v1733 = vsel %vm1722, %v1703, 0
      %v1736 = vsel %vm1722, %v1704, 0
      %v1739 = vsel %vm1722, %v1705, 0
      %v1742 = vsel %vm1722, %v1706, 0
      %v1745 = vsel %vm1722, %v1707, 0
      %v1748 = vsel %vm1722, %v1708, 0
      %v1751 = vsel %vm1722, %v1709, 0
      %v1754 = vsel %vm1722, %v1710, 0
      %v1757 = vsel %vm1722, %v1711, 0
      %v1760 = vsel %vm1722, %v1712, 0
      %v1763 = vsel %vm1722, %v1713, 0
      %v1766 = vsel %vm1722, %v1714, 0
      %v1769 = vsel %vm1722, %v1715, 0
      %1771 = vmatprep.subr.bf16.mxu0 0
      %1772 = vmatpush1.bf16.msra.mxu0 0
      %1773 = vmatprep.subr.bf16.mxu0 0
      %1774 = vmatpush1.bf16.msra.mxu0 0
      %1775 = vmatprep.subr.bf16.mxu0 0
      %1776 = vmatpush1.bf16.msra.mxu0 0
      %1777 = vmatprep.subr.bf16.mxu0 0
      %1778 = vmatpush1.bf16.msra.mxu0 0
      %1779 = vmatprep.subr.bf16.mxu0 0
      %1780 = vmatpush1.bf16.msra.mxu0 0
      %1781 = vmatprep.subr.bf16.mxu0 0
      %1782 = vmatpush1.bf16.msra.mxu0 0
      %1783 = vmatprep.subr.bf16.mxu0 0
      %1784 = vmatpush1.bf16.msra.mxu0 0
      %1785 = vmatprep.subr.bf16.mxu0 0
      %1786 = vmatpush1.bf16.msra.mxu0 %v1720
      %1787 = vmatprep.subr.bf16.mxu0 0
      %1788 = vmatpush2.bf16.msra.mxu0 0
      %1789 = vmatprep.subr.bf16.mxu0 0
      %1790 = vmatpush2.bf16.msra.mxu0 0
      %1791 = vmatprep.subr.bf16.mxu0 0
      %1792 = vmatpush2.bf16.msra.mxu0 0
      %1793 = vmatprep.subr.bf16.mxu0 0
      %1794 = vmatpush2.bf16.msra.mxu0 0
      %1795 = vmatprep.subr.bf16.mxu0 0
      %1796 = vmatpush2.bf16.msra.mxu0 0
      %1797 = vmatprep.subr.bf16.mxu0 0
      %1798 = vmatpush2.bf16.msra.mxu0 0
      %1799 = vmatprep.subr.bf16.mxu0 0
      %1800 = vmatpush2.bf16.msra.mxu0 0
      %1801 = vmatprep.subr.bf16.mxu0 0
      %1802 = vmatpush2.bf16.msra.mxu0 0
      %1803 = vmatprep.mubr.bf16.mxu0 0
      %1804 = vmatmul.mubr.bf16.gmra.mxu0 %v1724
      %v1805 = vpop.f32.mrf.mxu0
      %v1806 = vadd.f32 %v1634, %v1805
      %v1807 = vpop.f32.mrf.mxu0
      %v1808 = vpop.f32.mrf.mxu0
      %v1809 = vadd.f32 %v1634, %v1808
      %v1810 = vpop.f32.mrf.mxu0
      %1811 = vmatprep.mubr.bf16.mxu0 0
      %1812 = vmatmul.mubr.bf16.gmra.mxu0 %v1727
      %v1813 = vpop.f32.mrf.mxu0
      %v1814 = vadd.f32 %v1634, %v1813
      %v1815 = vpop.f32.mrf.mxu0
      %v1816 = vpop.f32.mrf.mxu0
      %v1817 = vadd.f32 %v1634, %v1816
      %v1818 = vpop.f32.mrf.mxu0
      %1819 = vmatprep.mubr.bf16.mxu0 0
      %1820 = vmatmul.mubr.bf16.gmra.mxu0 %v1730
      %v1821 = vpop.f32.mrf.mxu0
      %v1822 = vadd.f32 %v1634, %v1821
      %v1823 = vpop.f32.mrf.mxu0
      %v1824 = vpop.f32.mrf.mxu0
      %v1825 = vadd.f32 %v1634, %v1824
      %v1826 = vpop.f32.mrf.mxu0
      %1827 = vmatprep.mubr.bf16.mxu0 0
      %1828 = vmatmul.mubr.bf16.gmra.mxu0 %v1733
      %v1829 = vpop.f32.mrf.mxu0
      %v1830 = vadd.f32 %v1634, %v1829
      %v1831 = vpop.f32.mrf.mxu0
      %v1832 = vpop.f32.mrf.mxu0
      %v1833 = vadd.f32 %v1634, %v1832
      %v1834 = vpop.f32.mrf.mxu0
      %1835 = vmatprep.mubr.bf16.mxu0 0
      %1836 = vmatmul.mubr.bf16.gmra.mxu0 %v1736
      %v1837 = vpop.f32.mrf.mxu0
      %v1838 = vadd.f32 %v1634, %v1837
      %v1839 = vpop.f32.mrf.mxu0
      %v1840 = vpop.f32.mrf.mxu0
      %v1841 = vadd.f32 %v1634, %v1840
      %v1842 = vpop.f32.mrf.mxu0
      %1843 = vmatprep.mubr.bf16.mxu0 0
      %1844 = vmatmul.mubr.bf16.gmra.mxu0 %v1739
      %v1845 = vpop.f32.mrf.mxu0
      %v1846 = vadd.f32 %v1634, %v1845
      %v1847 = vpop.f32.mrf.mxu0
      %v1848 = vpop.f32.mrf.mxu0
      %v1849 = vadd.f32 %v1634, %v1848
      %v1850 = vpop.f32.mrf.mxu0
      %1851 = vmatprep.mubr.bf16.mxu0 0
      %1852 = vmatmul.mubr.bf16.gmra.mxu0 %v1742
      %v1853 = vpop.f32.mrf.mxu0
      %v1854 = vadd.f32 %v1634, %v1853
      %v1855 = vpop.f32.mrf.mxu0
      %v1856 = vpop.f32.mrf.mxu0
      %v1857 = vadd.f32 %v1634, %v1856
      %v1858 = vpop.f32.mrf.mxu0
      %1859 = vmatprep.mubr.bf16.mxu0 0
      %1860 = vmatmul.mubr.bf16.gmra.mxu0 %v1745
      %v1861 = vpop.f32.mrf.mxu0
      %v1862 = vadd.f32 %v1634, %v1861
      %v1863 = vpop.f32.mrf.mxu0
      %v1864 = vpop.f32.mrf.mxu0
      %v1865 = vadd.f32 %v1634, %v1864
      %v1866 = vpop.f32.mrf.mxu0
      %1867 = vmatprep.mubr.bf16.mxu0 0
      %1868 = vmatmul.mubr.bf16.gmra.mxu0 %v1748
      %v1869 = vpop.f32.mrf.mxu0
      %v1870 = vadd.f32 %v1634, %v1869
      %v1871 = vpop.f32.mrf.mxu0
      %v1872 = vpop.f32.mrf.mxu0
      %v1873 = vadd.f32 %v1634, %v1872
      %v1874 = vpop.f32.mrf.mxu0
      %1875 = vmatprep.mubr.bf16.mxu0 0
      %1876 = vmatmul.mubr.bf16.gmra.mxu0 %v1751
      %v1877 = vpop.f32.mrf.mxu0
      %v1878 = vadd.f32 %v1634, %v1877
      %v1879 = vpop.f32.mrf.mxu0
      %v1880 = vpop.f32.mrf.mxu0
      %v1881 = vadd.f32 %v1634, %v1880
      %v1882 = vpop.f32.mrf.mxu0
      %1883 = vmatprep.mubr.bf16.mxu0 0
      %1884 = vmatmul.mubr.bf16.gmra.mxu0 %v1754
      %v1885 = vpop.f32.mrf.mxu0
      %v1886 = vadd.f32 %v1634, %v1885
      %v1887 = vpop.f32.mrf.mxu0
      %v1888 = vpop.f32.mrf.mxu0
      %v1889 = vadd.f32 %v1634, %v1888
      %v1890 = vpop.f32.mrf.mxu0
      %1891 = vmatprep.mubr.bf16.mxu0 0
      %1892 = vmatmul.mubr.bf16.gmra.mxu0 %v1757
      %v1893 = vpop.f32.mrf.mxu0
      %v1894 = vadd.f32 %v1634, %v1893
      %v1895 = vpop.f32.mrf.mxu0
      %v1896 = vpop.f32.mrf.mxu0
      %v1897 = vadd.f32 %v1634, %v1896
      %v1898 = vpop.f32.mrf.mxu0
      %1899 = vmatprep.mubr.bf16.mxu0 0
      %1900 = vmatmul.mubr.bf16.gmra.mxu0 %v1760
      %v1901 = vpop.f32.mrf.mxu0
      %v1902 = vadd.f32 %v1634, %v1901
      %v1903 = vpop.f32.mrf.mxu0
      %v1904 = vpop.f32.mrf.mxu0
      %v1905 = vadd.f32 %v1634, %v1904
      %v1906 = vpop.f32.mrf.mxu0
      %1907 = vmatprep.mubr.bf16.mxu0 0
      %1908 = vmatmul.mubr.bf16.gmra.mxu0 %v1763
      %v1909 = vpop.f32.mrf.mxu0
      %v1910 = vadd.f32 %v1634, %v1909
      %v1911 = vpop.f32.mrf.mxu0
      %v1912 = vpop.f32.mrf.mxu0
      %v1913 = vadd.f32 %v1634, %v1912
      %v1914 = vpop.f32.mrf.mxu0
      %1915 = vmatprep.mubr.bf16.mxu0 0
      %1916 = vmatmul.mubr.bf16.gmra.mxu0 %v1766
      %v1917 = vpop.f32.mrf.mxu0
      %v1918 = vadd.f32 %v1634, %v1917
      %v1919 = vpop.f32.mrf.mxu0
      %v1920 = vpop.f32.mrf.mxu0
      %v1921 = vadd.f32 %v1634, %v1920
      %v1922 = vpop.f32.mrf.mxu0
      %1923 = vmatprep.mubr.bf16.mxu0 0
      %1924 = vmatmul.mubr.bf16.gmra.mxu0 %v1769
      %v1925 = vpop.f32.mrf.mxu0
      %v1926 = vadd.f32 %v1634, %v1925
      %v1927 = vpop.f32.mrf.mxu0
      %v1928 = vpop.f32.mrf.mxu0
      %v1929 = vadd.f32 %v1634, %v1928
      %v1930 = vpop.f32.mrf.mxu0
      %1931 = vdwg.mxu0
      %v1932 = vmax.f32 %v1806, 0.0
      %v1933 = vmax.f32 %v1809, 0.0
      %v1934 = vmax.f32 %v1814, 0.0
      %v1935 = vmax.f32 %v1817, 0.0
      %v1936 = vmax.f32 %v1822, 0.0
      %v1937 = vmax.f32 %v1825, 0.0
      %v1938 = vmax.f32 %v1830, 0.0
      %v1939 = vmax.f32 %v1833, 0.0
      %v1940 = vmax.f32 %v1838, 0.0
      %v1941 = vmax.f32 %v1841, 0.0
      %v1942 = vmax.f32 %v1846, 0.0
      %v1943 = vmax.f32 %v1849, 0.0
      %v1944 = vmax.f32 %v1854, 0.0
      %v1945 = vmax.f32 %v1857, 0.0
      %v1946 = vmax.f32 %v1862, 0.0
      %v1947 = vmax.f32 %v1865, 0.0
      %v1948 = vmax.f32 %v1870, 0.0
      %v1949 = vmax.f32 %v1873, 0.0
      %v1950 = vmax.f32 %v1878, 0.0
      %v1951 = vmax.f32 %v1881, 0.0
      %v1952 = vmax.f32 %v1886, 0.0
      %v1953 = vmax.f32 %v1889, 0.0
      %v1954 = vmax.f32 %v1894, 0.0
      %v1955 = vmax.f32 %v1897, 0.0
      %v1956 = vmax.f32 %v1902, 0.0
      %v1957 = vmax.f32 %v1905, 0.0
      %v1958 = vmax.f32 %v1910, 0.0
      %v1959 = vmax.f32 %v1913, 0.0
      %v1960 = vmax.f32 %v1918, 0.0
      %v1961 = vmax.f32 %v1921, 0.0
      %v1962 = vmax.f32 %v1926, 0.0
      %v1963 = vmax.f32 %v1929, 0.0
      %v1964 = vpack.c.bf16 %v1933, %v1932
      %v1965 = vpack.c.bf16 %v1935, %v1934
      %v1966 = vpack.c.bf16 %v1937, %v1936
      %v1967 = vpack.c.bf16 %v1939, %v1938
      %v1968 = vpack.c.bf16 %v1941, %v1940
      %v1969 = vpack.c.bf16 %v1943, %v1942
      %v1970 = vpack.c.bf16 %v1945, %v1944
      %v1971 = vpack.c.bf16 %v1947, %v1946
      %v1972 = vpack.c.bf16 %v1949, %v1948
      %v1973 = vpack.c.bf16 %v1951, %v1950
      %v1974 = vpack.c.bf16 %v1953, %v1952
      %v1975 = vpack.c.bf16 %v1955, %v1954
      %v1976 = vpack.c.bf16 %v1957, %v1956
      %v1977 = vpack.c.bf16 %v1959, %v1958
      %v1978 = vpack.c.bf16 %v1961, %v1960
      %v1979 = vpack.c.bf16 %v1963, %v1962
      %v1996 = vunpack.c.l.b16 %v1964
      %v1997 = vunpack.c.h.b16 %v1964
      %v1998 = vunpack.c.l.b16 %v1965
      %v1999 = vunpack.c.h.b16 %v1965
      %v2000 = vunpack.c.l.b16 %v1966
      %v2001 = vunpack.c.h.b16 %v1966
      %v2002 = vunpack.c.l.b16 %v1967
      %v2003 = vunpack.c.h.b16 %v1967
      %v2004 = vunpack.c.l.b16 %v1968
      %v2005 = vunpack.c.h.b16 %v1968
      %v2006 = vunpack.c.l.b16 %v1969
      %v2007 = vunpack.c.h.b16 %v1969
      %v2008 = vunpack.c.l.b16 %v1970
      %v2009 = vunpack.c.h.b16 %v1970
      %v2010 = vunpack.c.l.b16 %v1971
      %v2011 = vunpack.c.h.b16 %v1971
      %v2012 = vunpack.c.l.b16 %v1972
      %v2013 = vunpack.c.h.b16 %v1972
      %v2014 = vunpack.c.l.b16 %v1973
      %v2015 = vunpack.c.h.b16 %v1973
      %v2016 = vunpack.c.l.b16 %v1974
      %v2017 = vunpack.c.h.b16 %v1974
      %v2018 = vunpack.c.l.b16 %v1975
      %v2019 = vunpack.c.h.b16 %v1975
      %v2020 = vunpack.c.l.b16 %v1976
      %v2021 = vunpack.c.h.b16 %v1976
      %v2022 = vunpack.c.l.b16 %v1977
      %v2023 = vunpack.c.h.b16 %v1977
      %v2024 = vunpack.c.l.b16 %v1978
      %v2025 = vunpack.c.h.b16 %v1978
      %v2026 = vunpack.c.l.b16 %v1979
      %v2027 = vunpack.c.h.b16 %v1979
      %v2028 = vpack.c.b16 %v1996, %v1996
      %v2029 = vpack.c.b16 %v1997, %v1997
      %v2030 = vpack.c.b16 %v1998, %v1998
      %v2031 = vpack.c.b16 %v1999, %v1999
      %v2032 = vpack.c.b16 %v2000, %v2000
      %v2033 = vpack.c.b16 %v2001, %v2001
      %v2034 = vpack.c.b16 %v2002, %v2002
      %v2035 = vpack.c.b16 %v2003, %v2003
      %v2036 = vpack.c.b16 %v2004, %v2004
      %v2037 = vpack.c.b16 %v2005, %v2005
      %v2038 = vpack.c.b16 %v2006, %v2006
      %v2039 = vpack.c.b16 %v2007, %v2007
      %v2040 = vpack.c.b16 %v2008, %v2008
      %v2041 = vpack.c.b16 %v2009, %v2009
      %v2042 = vpack.c.b16 %v2010, %v2010
      %v2043 = vpack.c.b16 %v2011, %v2011
      %v2044 = vpack.c.b16 %v2012, %v2012
      %v2045 = vpack.c.b16 %v2013, %v2013
      %v2046 = vpack.c.b16 %v2014, %v2014
      %v2047 = vpack.c.b16 %v2015, %v2015
      %v2048 = vpack.c.b16 %v2016, %v2016
      %v2049 = vpack.c.b16 %v2017, %v2017
      %v2050 = vpack.c.b16 %v2018, %v2018
      %v2051 = vpack.c.b16 %v2019, %v2019
      %v2052 = vpack.c.b16 %v2020, %v2020
      %v2053 = vpack.c.b16 %v2021, %v2021
      %v2054 = vpack.c.b16 %v2022, %v2022
      %v2055 = vpack.c.b16 %v2023, %v2023
      %v2056 = vpack.c.b16 %v2024, %v2024
      %v2057 = vpack.c.b16 %v2025, %v2025
      %v2058 = vpack.c.b16 %v2026, %v2026
      %v2059 = vpack.c.b16 %v2027, %v2027
      %vm2092 = vcmask 60416
      %2093 = vst.msk [vmem:[%s208] sm:$0xf] %vm2092, %v2028
      %2094 = vst.msk [vmem:[%s208 + $0x4] sm:$0xf] %vm2092, %v2029
      %2095 = vst.msk [vmem:[%s208 + $0x8] sm:$0xf] %vm2092, %v2030
      %2096 = vst.msk [vmem:[%s208 + $0xc] sm:$0xf] %vm2092, %v2031
      %2097 = vst.msk [vmem:[%s208 + $0x10] sm:$0xf] %vm2092, %v2032
      %2098 = vst.msk [vmem:[%s208 + $0x14] sm:$0xf] %vm2092, %v2033
      %2099 = vst.msk [vmem:[%s208 + $0x18] sm:$0xf] %vm2092, %v2034
      %2100 = vst.msk [vmem:[%s208 + $0x1c] sm:$0xf] %vm2092, %v2035
      %2101 = vst.msk [vmem:[%s208 + $0x20] sm:$0xf] %vm2092, %v2036
      %2102 = vst.msk [vmem:[%s208 + $0x24] sm:$0xf] %vm2092, %v2037
      %2103 = vst.msk [vmem:[%s208 + $0x28] sm:$0xf] %vm2092, %v2038
      %2104 = vst.msk [vmem:[%s208 + $0x2c] sm:$0xf] %vm2092, %v2039
      %2105 = vst.msk [vmem:[%s208 + $0x30] sm:$0xf] %vm2092, %v2040
      %2106 = vst.msk [vmem:[%s208 + $0x34] sm:$0xf] %vm2092, %v2041
      %2107 = vst.msk [vmem:[%s208 + $0x38] sm:$0xf] %vm2092, %v2042
      %2108 = vst.msk [vmem:[%s208 + $0x3c] sm:$0xf] %vm2092, %v2043
      %2109 = vst.msk [vmem:[%s208 + $0x40] sm:$0xf] %vm2092, %v2044
      %2110 = vst.msk [vmem:[%s208 + $0x44] sm:$0xf] %vm2092, %v2045
      %2111 = vst.msk [vmem:[%s208 + $0x48] sm:$0xf] %vm2092, %v2046
      %2112 = vst.msk [vmem:[%s208 + $0x4c] sm:$0xf] %vm2092, %v2047
      %2113 = vst.msk [vmem:[%s208 + $0x50] sm:$0xf] %vm2092, %v2048
      %2114 = vst.msk [vmem:[%s208 + $0x54] sm:$0xf] %vm2092, %v2049
      %2115 = vst.msk [vmem:[%s208 + $0x58] sm:$0xf] %vm2092, %v2050
      %2116 = vst.msk [vmem:[%s208 + $0x5c] sm:$0xf] %vm2092, %v2051
      %2117 = vst.msk [vmem:[%s208 + $0x60] sm:$0xf] %vm2092, %v2052
      %2118 = vst.msk [vmem:[%s208 + $0x64] sm:$0xf] %vm2092, %v2053
      %2119 = vst.msk [vmem:[%s208 + $0x68] sm:$0xf] %vm2092, %v2054
      %2120 = vst.msk [vmem:[%s208 + $0x6c] sm:$0xf] %vm2092, %v2055
      %2121 = vst.msk [vmem:[%s208 + $0x70] sm:$0xf] %vm2092, %v2056
      %2122 = vst.msk [vmem:[%s208 + $0x74] sm:$0xf] %vm2092, %v2057
      %2123 = vst.msk [vmem:[%s208 + $0x78] sm:$0xf] %vm2092, %v2058
      %2124 = vst.msk [vmem:[%s208 + $0x7c] sm:$0xf] %vm2092, %v2059
      %v2125 = vld [vmem:[%s198] sm:$0xf]
      %v2126 = vld [vmem:[%s198 + $0x4] sm:$0xf]
      %v2127 = vld [vmem:[%s198 + $0x8] sm:$0x1]
      %v2128 = vld [vmem:[%s198 + $0xc] sm:$0xf]
      %v2129 = vld [vmem:[%s198 + $0x10] sm:$0xf]
      %v2130 = vld [vmem:[%s198 + $0x14] sm:$0x1]
      %v2131 = vld [vmem:[%s198 + $0x18] sm:$0xf]
      %v2132 = vld [vmem:[%s198 + $0x1c] sm:$0xf]
      %v2133 = vld [vmem:[%s198 + $0x20] sm:$0x1]
      %v2134 = vld [vmem:[%s198 + $0x24] sm:$0xf]
      %v2135 = vld [vmem:[%s198 + $0x28] sm:$0xf]
      %v2136 = vld [vmem:[%s198 + $0x2c] sm:$0x1]
      %v2137 = vld [vmem:[%s198 + $0x30] sm:$0xf]
      %v2138 = vld [vmem:[%s198 + $0x34] sm:$0xf]
      %v2139 = vld [vmem:[%s198 + $0x38] sm:$0x1]
      %v2140 = vld [vmem:[%s198 + $0x3c] sm:$0xf]
      %v2141 = vld [vmem:[%s198 + $0x40] sm:$0xf]
      %v2142 = vld [vmem:[%s198 + $0x44] sm:$0x1]
      %v2143 = vld [vmem:[%s198 + $0x48] sm:$0xf]
      %v2144 = vld [vmem:[%s198 + $0x4c] sm:$0xf]
      %v2145 = vld [vmem:[%s198 + $0x50] sm:$0x1]
      %v2146 = vld [vmem:[%s198 + $0x54] sm:$0xf]
      %v2147 = vld [vmem:[%s198 + $0x58] sm:$0xf]
      %v2148 = vld [vmem:[%s198 + $0x5c] sm:$0x1]
      %v2149 = vld [vmem:[%s198 + $0x60] sm:$0xf]
      %v2150 = vld [vmem:[%s198 + $0x64] sm:$0xf]
      %v2151 = vld [vmem:[%s198 + $0x68] sm:$0x1]
      %v2152 = vld [vmem:[%s198 + $0x6c] sm:$0xf]
      %v2153 = vld [vmem:[%s198 + $0x70] sm:$0xf]
      %v2154 = vld [vmem:[%s198 + $0x74] sm:$0x1]
      %v2155 = vld [vmem:[%s198 + $0x78] sm:$0xf]
      %v2156 = vld [vmem:[%s198 + $0x7c] sm:$0xf]
      %v2157 = vld [vmem:[%s198 + $0x80] sm:$0x1]
      %v2158 = vld [vmem:[%s198 + $0x84] sm:$0xf]
      %v2159 = vld [vmem:[%s198 + $0x88] sm:$0xf]
      %v2160 = vld [vmem:[%s198 + $0x8c] sm:$0x1]
      %v2161 = vld [vmem:[%s198 + $0x90] sm:$0xf]
      %v2162 = vld [vmem:[%s198 + $0x94] sm:$0xf]
      %v2163 = vld [vmem:[%s198 + $0x98] sm:$0x1]
      %v2164 = vld [vmem:[%s198 + $0x9c] sm:$0xf]
      %v2165 = vld [vmem:[%s198 + $0xa0] sm:$0xf]
      %v2166 = vld [vmem:[%s198 + $0xa4] sm:$0x1]
      %v2167 = vld [vmem:[%s198 + $0xa8] sm:$0xf]
      %v2168 = vld [vmem:[%s198 + $0xac] sm:$0xf]
      %v2169 = vld [vmem:[%s198 + $0xb0] sm:$0x1]
      %v2170 = vld [vmem:[%s198 + $0xb4] sm:$0xf]
      %v2171 = vld [vmem:[%s198 + $0xb8] sm:$0xf]
      %v2172 = vld [vmem:[%s198 + $0xbc] sm:$0x1]
      %v2174 = vshrl.u32 %v2125, 16
      %v2176 = vrot.slane %v2174, 4
      %v2177 = vshll.u32 %v2125, 16
      %v2179 = vrot.slane %v2177, 5
      %v2180 = vor.u32 %v2176, %v2179
      %v2181 = vrot.slane %v2180, 4
      %v2183 = vshll.u32 %v2126, 16
      %v2185 = vrot.slane %v2183, 5
      %v2186 = vsel %vm327, %v2181, %v2185
      %v2187 = vshrl.u32 %v2126, 16
      %v2189 = vrot.slane %v2187, 4
      %v2190 = vor.u32 %v2189, %v2185
      %v2191 = vrot.slane %v2190, 4
      %v2193 = vshll.u32 %v2127, 16
      %v2195 = vrot.slane %v2193, 5
      %v2196 = vsel %vm327, %v2191, %v2195
      %v2198 = vshrl.u32 %v2128, 16
      %v2200 = vrot.slane %v2198, 4
      %v2201 = vshll.u32 %v2128, 16
      %v2203 = vrot.slane %v2201, 5
      %v2204 = vor.u32 %v2200, %v2203
      %v2205 = vrot.slane %v2204, 4
      %v2207 = vshll.u32 %v2129, 16
      %v2209 = vrot.slane %v2207, 5
      %v2210 = vsel %vm327, %v2205, %v2209
      %v2211 = vshrl.u32 %v2129, 16
      %v2213 = vrot.slane %v2211, 4
      %v2214 = vor.u32 %v2213, %v2209
      %v2215 = vrot.slane %v2214, 4
      %v2217 = vshll.u32 %v2130, 16
      %v2219 = vrot.slane %v2217, 5
      %v2220 = vsel %vm327, %v2215, %v2219
      %v2222 = vshrl.u32 %v2131, 16
      %v2224 = vrot.slane %v2222, 4
      %v2225 = vshll.u32 %v2131, 16
      %v2227 = vrot.slane %v2225, 5
      %v2228 = vor.u32 %v2224, %v2227
      %v2229 = vrot.slane %v2228, 4
      %v2231 = vshll.u32 %v2132, 16
      %v2233 = vrot.slane %v2231, 5
      %v2234 = vsel %vm327, %v2229, %v2233
      %v2235 = vshrl.u32 %v2132, 16
      %v2237 = vrot.slane %v2235, 4
      %v2238 = vor.u32 %v2237, %v2233
      %v2239 = vrot.slane %v2238, 4
      %v2241 = vshll.u32 %v2133, 16
      %v2243 = vrot.slane %v2241, 5
      %v2244 = vsel %vm327, %v2239, %v2243
      %v2246 = vshrl.u32 %v2134, 16
      %v2248 = vrot.slane %v2246, 4
      %v2249 = vshll.u32 %v2134, 16
      %v2251 = vrot.slane %v2249, 5
      %v2252 = vor.u32 %v2248, %v2251
      %v2253 = vrot.slane %v2252, 4
      %v2255 = vshll.u32 %v2135, 16
      %v2257 = vrot.slane %v2255, 5
      %v2258 = vsel %vm327, %v2253, %v2257
      %v2259 = vshrl.u32 %v2135, 16
      %v2261 = vrot.slane %v2259, 4
      %v2262 = vor.u32 %v2261, %v2257
      %v2263 = vrot.slane %v2262, 4
      %v2265 = vshll.u32 %v2136, 16
      %v2267 = vrot.slane %v2265, 5
      %v2268 = vsel %vm327, %v2263, %v2267
      %v2270 = vshrl.u32 %v2137, 16
      %v2272 = vrot.slane %v2270, 4
      %v2273 = vshll.u32 %v2137, 16
      %v2275 = vrot.slane %v2273, 5
      %v2276 = vor.u32 %v2272, %v2275
      %v2277 = vrot.slane %v2276, 4
      %v2279 = vshll.u32 %v2138, 16
      %v2281 = vrot.slane %v2279, 5
      %v2282 = vsel %vm327, %v2277, %v2281
      %v2283 = vshrl.u32 %v2138, 16
      %v2285 = vrot.slane %v2283, 4
      %v2286 = vor.u32 %v2285, %v2281
      %v2287 = vrot.slane %v2286, 4
      %v2289 = vshll.u32 %v2139, 16
      %v2291 = vrot.slane %v2289, 5
      %v2292 = vsel %vm327, %v2287, %v2291
      %v2294 = vshrl.u32 %v2140, 16
      %v2296 = vrot.slane %v2294, 4
      %v2297 = vshll.u32 %v2140, 16
      %v2299 = vrot.slane %v2297, 5
      %v2300 = vor.u32 %v2296, %v2299
      %v2301 = vrot.slane %v2300, 4
      %v2303 = vshll.u32 %v2141, 16
      %v2305 = vrot.slane %v2303, 5
      %v2306 = vsel %vm327, %v2301, %v2305
      %v2307 = vshrl.u32 %v2141, 16
      %v2309 = vrot.slane %v2307, 4
      %v2310 = vor.u32 %v2309, %v2305
      %v2311 = vrot.slane %v2310, 4
      %v2313 = vshll.u32 %v2142, 16
      %v2315 = vrot.slane %v2313, 5
      %v2316 = vsel %vm327, %v2311, %v2315
      %v2318 = vshrl.u32 %v2143, 16
      %v2320 = vrot.slane %v2318, 4
      %v2321 = vshll.u32 %v2143, 16
      %v2323 = vrot.slane %v2321, 5
      %v2324 = vor.u32 %v2320, %v2323
      %v2325 = vrot.slane %v2324, 4
      %v2327 = vshll.u32 %v2144, 16
      %v2329 = vrot.slane %v2327, 5
      %v2330 = vsel %vm327, %v2325, %v2329
      %v2331 = vshrl.u32 %v2144, 16
      %v2333 = vrot.slane %v2331, 4
      %v2334 = vor.u32 %v2333, %v2329
      %v2335 = vrot.slane %v2334, 4
      %v2337 = vshll.u32 %v2145, 16
      %v2339 = vrot.slane %v2337, 5
      %v2340 = vsel %vm327, %v2335, %v2339
      %v2342 = vshrl.u32 %v2146, 16
      %v2344 = vrot.slane %v2342, 4
      %v2345 = vshll.u32 %v2146, 16
      %v2347 = vrot.slane %v2345, 5
      %v2348 = vor.u32 %v2344, %v2347
      %v2349 = vrot.slane %v2348, 4
      %v2351 = vshll.u32 %v2147, 16
      %v2353 = vrot.slane %v2351, 5
      %v2354 = vsel %vm327, %v2349, %v2353
      %v2355 = vshrl.u32 %v2147, 16
      %v2357 = vrot.slane %v2355, 4
      %v2358 = vor.u32 %v2357, %v2353
      %v2359 = vrot.slane %v2358, 4
      %v2361 = vshll.u32 %v2148, 16
      %v2363 = vrot.slane %v2361, 5
      %v2364 = vsel %vm327, %v2359, %v2363
      %v2366 = vshrl.u32 %v2149, 16
      %v2368 = vrot.slane %v2366, 4
      %v2369 = vshll.u32 %v2149, 16
      %v2371 = vrot.slane %v2369, 5
      %v2372 = vor.u32 %v2368, %v2371
      %v2373 = vrot.slane %v2372, 4
      %v2375 = vshll.u32 %v2150, 16
      %v2377 = vrot.slane %v2375, 5
      %v2378 = vsel %vm327, %v2373, %v2377
      %v2379 = vshrl.u32 %v2150, 16
      %v2381 = vrot.slane %v2379, 4
      %v2382 = vor.u32 %v2381, %v2377
      %v2383 = vrot.slane %v2382, 4
      %v2385 = vshll.u32 %v2151, 16
      %v2387 = vrot.slane %v2385, 5
      %v2388 = vsel %vm327, %v2383, %v2387
      %v2390 = vshrl.u32 %v2152, 16
      %v2392 = vrot.slane %v2390, 4
      %v2393 = vshll.u32 %v2152, 16
      %v2395 = vrot.slane %v2393, 5
      %v2396 = vor.u32 %v2392, %v2395
      %v2397 = vrot.slane %v2396, 4
      %v2399 = vshll.u32 %v2153, 16
      %v2401 = vrot.slane %v2399, 5
      %v2402 = vsel %vm327, %v2397, %v2401
      %v2403 = vshrl.u32 %v2153, 16
      %v2405 = vrot.slane %v2403, 4
      %v2406 = vor.u32 %v2405, %v2401
      %v2407 = vrot.slane %v2406, 4
      %v2409 = vshll.u32 %v2154, 16
      %v2411 = vrot.slane %v2409, 5
      %v2412 = vsel %vm327, %v2407, %v2411
      %v2414 = vshrl.u32 %v2155, 16
      %v2416 = vrot.slane %v2414, 4
      %v2417 = vshll.u32 %v2155, 16
      %v2419 = vrot.slane %v2417, 5
      %v2420 = vor.u32 %v2416, %v2419
      %v2421 = vrot.slane %v2420, 4
      %v2423 = vshll.u32 %v2156, 16
      %v2425 = vrot.slane %v2423, 5
      %v2426 = vsel %vm327, %v2421, %v2425
      %v2427 = vshrl.u32 %v2156, 16
      %v2429 = vrot.slane %v2427, 4
      %v2430 = vor.u32 %v2429, %v2425
      %v2431 = vrot.slane %v2430, 4
      %v2433 = vshll.u32 %v2157, 16
      %v2435 = vrot.slane %v2433, 5
      %v2436 = vsel %vm327, %v2431, %v2435
      %v2438 = vshrl.u32 %v2158, 16
      %v2440 = vrot.slane %v2438, 4
      %v2441 = vshll.u32 %v2158, 16
      %v2443 = vrot.slane %v2441, 5
      %v2444 = vor.u32 %v2440, %v2443
      %v2445 = vrot.slane %v2444, 4
      %v2447 = vshll.u32 %v2159, 16
      %v2449 = vrot.slane %v2447, 5
      %v2450 = vsel %vm327, %v2445, %v2449
      %v2451 = vshrl.u32 %v2159, 16
      %v2453 = vrot.slane %v2451, 4
      %v2454 = vor.u32 %v2453, %v2449
      %v2455 = vrot.slane %v2454, 4
      %v2457 = vshll.u32 %v2160, 16
      %v2459 = vrot.slane %v2457, 5
      %v2460 = vsel %vm327, %v2455, %v2459
      %v2462 = vshrl.u32 %v2161, 16
      %v2464 = vrot.slane %v2462, 4
      %v2465 = vshll.u32 %v2161, 16
      %v2467 = vrot.slane %v2465, 5
      %v2468 = vor.u32 %v2464, %v2467
      %v2469 = vrot.slane %v2468, 4
      %v2471 = vshll.u32 %v2162, 16
      %v2473 = vrot.slane %v2471, 5
      %v2474 = vsel %vm327, %v2469, %v2473
      %v2475 = vshrl.u32 %v2162, 16
      %v2477 = vrot.slane %v2475, 4
      %v2478 = vor.u32 %v2477, %v2473
      %v2479 = vrot.slane %v2478, 4
      %v2481 = vshll.u32 %v2163, 16
      %v2483 = vrot.slane %v2481, 5
      %v2484 = vsel %vm327, %v2479, %v2483
      %v2486 = vshrl.u32 %v2164, 16
      %v2488 = vrot.slane %v2486, 4
      %v2489 = vshll.u32 %v2164, 16
      %v2491 = vrot.slane %v2489, 5
      %v2492 = vor.u32 %v2488, %v2491
      %v2493 = vrot.slane %v2492, 4
      %v2495 = vshll.u32 %v2165, 16
      %v2497 = vrot.slane %v2495, 5
      %v2498 = vsel %vm327, %v2493, %v2497
      %v2499 = vshrl.u32 %v2165, 16
      %v2501 = vrot.slane %v2499, 4
      %v2502 = vor.u32 %v2501, %v2497
      %v2503 = vrot.slane %v2502, 4
      %v2505 = vshll.u32 %v2166, 16
      %v2507 = vrot.slane %v2505, 5
      %v2508 = vsel %vm327, %v2503, %v2507
      %v2510 = vshrl.u32 %v2167, 16
      %v2512 = vrot.slane %v2510, 4
      %v2513 = vshll.u32 %v2167, 16
      %v2515 = vrot.slane %v2513, 5
      %v2516 = vor.u32 %v2512, %v2515
      %v2517 = vrot.slane %v2516, 4
      %v2519 = vshll.u32 %v2168, 16
      %v2521 = vrot.slane %v2519, 5
      %v2522 = vsel %vm327, %v2517, %v2521
      %v2523 = vshrl.u32 %v2168, 16
      %v2525 = vrot.slane %v2523, 4
      %v2526 = vor.u32 %v2525, %v2521
      %v2527 = vrot.slane %v2526, 4
      %v2529 = vshll.u32 %v2169, 16
      %v2531 = vrot.slane %v2529, 5
      %v2532 = vsel %vm327, %v2527, %v2531
      %v2534 = vshrl.u32 %v2170, 16
      %v2536 = vrot.slane %v2534, 4
      %v2537 = vshll.u32 %v2170, 16
      %v2539 = vrot.slane %v2537, 5
      %v2540 = vor.u32 %v2536, %v2539
      %v2541 = vrot.slane %v2540, 4
      %v2543 = vshll.u32 %v2171, 16
      %v2545 = vrot.slane %v2543, 5
      %v2546 = vsel %vm327, %v2541, %v2545
      %v2547 = vshrl.u32 %v2171, 16
      %v2549 = vrot.slane %v2547, 4
      %v2550 = vor.u32 %v2549, %v2545
      %v2551 = vrot.slane %v2550, 4
      %v2553 = vshll.u32 %v2172, 16
      %v2555 = vrot.slane %v2553, 5
      %v2556 = vsel %vm327, %v2551, %v2555
      %2589 = vst.msk [vmem:[#allocation2] sm:$0xf] %vm244, %v2186
      %2590 = vst.msk [vmem:[#allocation2 + $0x4] sm:$0xf] %vm244, %v2196
      %2591 = vst.msk [vmem:[#allocation2 + $0x8] sm:$0xf] %vm244, %v2210
      %2592 = vst.msk [vmem:[#allocation2 + $0xc] sm:$0xf] %vm244, %v2220
      %2593 = vst.msk [vmem:[#allocation2 + $0x10] sm:$0xf] %vm244, %v2234
      %2594 = vst.msk [vmem:[#allocation2 + $0x14] sm:$0xf] %vm244, %v2244
      %2595 = vst.msk [vmem:[#allocation2 + $0x18] sm:$0xf] %vm244, %v2258
      %2596 = vst.msk [vmem:[#allocation2 + $0x1c] sm:$0xf] %vm244, %v2268
      %2597 = vst.msk [vmem:[#allocation2 + $0x20] sm:$0xf] %vm244, %v2282
      %2598 = vst.msk [vmem:[#allocation2 + $0x24] sm:$0xf] %vm244, %v2292
      %2599 = vst.msk [vmem:[#allocation2 + $0x28] sm:$0xf] %vm244, %v2306
      %2600 = vst.msk [vmem:[#allocation2 + $0x2c] sm:$0xf] %vm244, %v2316
      %2601 = vst.msk [vmem:[#allocation2 + $0x30] sm:$0xf] %vm244, %v2330
      %2602 = vst.msk [vmem:[#allocation2 + $0x34] sm:$0xf] %vm244, %v2340
      %2603 = vst.msk [vmem:[#allocation2 + $0x38] sm:$0xf] %vm244, %v2354
      %2604 = vst.msk [vmem:[#allocation2 + $0x3c] sm:$0xf] %vm244, %v2364
      %2605 = vst.msk [vmem:[#allocation2 + $0x40] sm:$0xf] %vm244, %v2378
      %2606 = vst.msk [vmem:[#allocation2 + $0x44] sm:$0xf] %vm244, %v2388
      %2607 = vst.msk [vmem:[#allocation2 + $0x48] sm:$0xf] %vm244, %v2402
      %2608 = vst.msk [vmem:[#allocation2 + $0x4c] sm:$0xf] %vm244, %v2412
      %2609 = vst.msk [vmem:[#allocation2 + $0x50] sm:$0xf] %vm244, %v2426
      %2610 = vst.msk [vmem:[#allocation2 + $0x54] sm:$0xf] %vm244, %v2436
      %2611 = vst.msk [vmem:[#allocation2 + $0x58] sm:$0xf] %vm244, %v2450
      %2612 = vst.msk [vmem:[#allocation2 + $0x5c] sm:$0xf] %vm244, %v2460
      %2613 = vst.msk [vmem:[#allocation2 + $0x60] sm:$0xf] %vm244, %v2474
      %2614 = vst.msk [vmem:[#allocation2 + $0x64] sm:$0xf] %vm244, %v2484
      %2615 = vst.msk [vmem:[#allocation2 + $0x68] sm:$0xf] %vm244, %v2498
      %2616 = vst.msk [vmem:[#allocation2 + $0x6c] sm:$0xf] %vm244, %v2508
      %2617 = vst.msk [vmem:[#allocation2 + $0x70] sm:$0xf] %vm244, %v2522
      %2618 = vst.msk [vmem:[#allocation2 + $0x74] sm:$0xf] %vm244, %v2532
      %2619 = vst.msk [vmem:[#allocation2 + $0x78] sm:$0xf] %vm244, %v2546
      %2620 = vst.msk [vmem:[#allocation2 + $0x7c] sm:$0xf] %vm244, %v2556
      %v2621 = vld [vmem:[%s198] sm:$0xe]
      %v2622 = vld [vmem:[%s198 + $0x4] sm:$0xf]
      %v2623 = vld [vmem:[%s198 + $0x8] sm:$0x1]
      %v2624 = vld [vmem:[%s198 + $0xc] sm:$0xe]
      %v2625 = vld [vmem:[%s198 + $0x10] sm:$0xf]
      %v2626 = vld [vmem:[%s198 + $0x14] sm:$0x1]
      %v2627 = vld [vmem:[%s198 + $0x18] sm:$0xe]
      %v2628 = vld [vmem:[%s198 + $0x1c] sm:$0xf]
      %v2629 = vld [vmem:[%s198 + $0x20] sm:$0x1]
      %v2630 = vld [vmem:[%s198 + $0x24] sm:$0xe]
      %v2631 = vld [vmem:[%s198 + $0x28] sm:$0xf]
      %v2632 = vld [vmem:[%s198 + $0x2c] sm:$0x1]
      %v2633 = vld [vmem:[%s198 + $0x30] sm:$0xe]
      %v2634 = vld [vmem:[%s198 + $0x34] sm:$0xf]
      %v2635 = vld [vmem:[%s198 + $0x38] sm:$0x1]
      %v2636 = vld [vmem:[%s198 + $0x3c] sm:$0xe]
      %v2637 = vld [vmem:[%s198 + $0x40] sm:$0xf]
      %v2638 = vld [vmem:[%s198 + $0x44] sm:$0x1]
      %v2639 = vld [vmem:[%s198 + $0x48] sm:$0xe]
      %v2640 = vld [vmem:[%s198 + $0x4c] sm:$0xf]
      %v2641 = vld [vmem:[%s198 + $0x50] sm:$0x1]
      %v2642 = vld [vmem:[%s198 + $0x54] sm:$0xe]
      %v2643 = vld [vmem:[%s198 + $0x58] sm:$0xf]
      %v2644 = vld [vmem:[%s198 + $0x5c] sm:$0x1]
      %v2645 = vld [vmem:[%s198 + $0x60] sm:$0xe]
      %v2646 = vld [vmem:[%s198 + $0x64] sm:$0xf]
      %v2647 = vld [vmem:[%s198 + $0x68] sm:$0x1]
      %v2648 = vld [vmem:[%s198 + $0x6c] sm:$0xe]
      %v2649 = vld [vmem:[%s198 + $0x70] sm:$0xf]
      %v2650 = vld [vmem:[%s198 + $0x74] sm:$0x1]
      %v2651 = vld [vmem:[%s198 + $0x78] sm:$0xe]
      %v2652 = vld [vmem:[%s198 + $0x7c] sm:$0xf]
      %v2653 = vld [vmem:[%s198 + $0x80] sm:$0x1]
      %v2654 = vld [vmem:[%s198 + $0x84] sm:$0xe]
      %v2655 = vld [vmem:[%s198 + $0x88] sm:$0xf]
      %v2656 = vld [vmem:[%s198 + $0x8c] sm:$0x1]
      %v2657 = vld [vmem:[%s198 + $0x90] sm:$0xe]
      %v2658 = vld [vmem:[%s198 + $0x94] sm:$0xf]
      %v2659 = vld [vmem:[%s198 + $0x98] sm:$0x1]
      %v2660 = vld [vmem:[%s198 + $0x9c] sm:$0xe]
      %v2661 = vld [vmem:[%s198 + $0xa0] sm:$0xf]
      %v2662 = vld [vmem:[%s198 + $0xa4] sm:$0x1]
      %v2663 = vld [vmem:[%s198 + $0xa8] sm:$0xe]
      %v2664 = vld [vmem:[%s198 + $0xac] sm:$0xf]
      %v2665 = vld [vmem:[%s198 + $0xb0] sm:$0x1]
      %v2666 = vld [vmem:[%s198 + $0xb4] sm:$0xe]
      %v2667 = vld [vmem:[%s198 + $0xb8] sm:$0xf]
      %v2668 = vld [vmem:[%s198 + $0xbc] sm:$0x1]
      %vm2717 = vcmask 1042432
      %vm2718 = vcmask 1046532
      %vm2719 = vmor %vm2717, %vm2718
      %v2720 = vrot.slane %v2621, 5
      %v2721 = vrot.slane %v2720, 4
      %v2722 = vrot.slane %v2622, 5
      %v2723 = vsel %vm2719, %v2721, %v2722
      %v2724 = vrot.slane %v2722, 4
      %v2725 = vrot.slane %v2623, 5
      %v2726 = vsel %vm2719, %v2724, %v2725
      %v2727 = vrot.slane %v2624, 5
      %v2728 = vrot.slane %v2727, 4
      %v2729 = vrot.slane %v2625, 5
      %v2730 = vsel %vm2719, %v2728, %v2729
      %v2731 = vrot.slane %v2729, 4
      %v2732 = vrot.slane %v2626, 5
      %v2733 = vsel %vm2719, %v2731, %v2732
      %v2734 = vrot.slane %v2627, 5
      %v2735 = vrot.slane %v2734, 4
      %v2736 = vrot.slane %v2628, 5
      %v2737 = vsel %vm2719, %v2735, %v2736
      %v2738 = vrot.slane %v2736, 4
      %v2739 = vrot.slane %v2629, 5
      %v2740 = vsel %vm2719, %v2738, %v2739
      %v2741 = vrot.slane %v2630, 5
      %v2742 = vrot.slane %v2741, 4
      %v2743 = vrot.slane %v2631, 5
      %v2744 = vsel %vm2719, %v2742, %v2743
      %v2745 = vrot.slane %v2743, 4
      %v2746 = vrot.slane %v2632, 5
      %v2747 = vsel %vm2719, %v2745, %v2746
      %v2748 = vrot.slane %v2633, 5
      %v2749 = vrot.slane %v2748, 4
      %v2750 = vrot.slane %v2634, 5
      %v2751 = vsel %vm2719, %v2749, %v2750
      %v2752 = vrot.slane %v2750, 4
      %v2753 = vrot.slane %v2635, 5
      %v2754 = vsel %vm2719, %v2752, %v2753
      %v2755 = vrot.slane %v2636, 5
      %v2756 = vrot.slane %v2755, 4
      %v2757 = vrot.slane %v2637, 5
      %v2758 = vsel %vm2719, %v2756, %v2757
      %v2759 = vrot.slane %v2757, 4
      %v2760 = vrot.slane %v2638, 5
      %v2761 = vsel %vm2719, %v2759, %v2760
      %v2762 = vrot.slane %v2639, 5
      %v2763 = vrot.slane %v2762, 4
      %v2764 = vrot.slane %v2640, 5
      %v2765 = vsel %vm2719, %v2763, %v2764
      %v2766 = vrot.slane %v2764, 4
      %v2767 = vrot.slane %v2641, 5
      %v2768 = vsel %vm2719, %v2766, %v2767
      %v2769 = vrot.slane %v2642, 5
      %v2770 = vrot.slane %v2769, 4
      %v2771 = vrot.slane %v2643, 5
      %v2772 = vsel %vm2719, %v2770, %v2771
      %v2773 = vrot.slane %v2771, 4
      %v2774 = vrot.slane %v2644, 5
      %v2775 = vsel %vm2719, %v2773, %v2774
      %v2776 = vrot.slane %v2645, 5
      %v2777 = vrot.slane %v2776, 4
      %v2778 = vrot.slane %v2646, 5
      %v2779 = vsel %vm2719, %v2777, %v2778
      %v2780 = vrot.slane %v2778, 4
      %v2781 = vrot.slane %v2647, 5
      %v2782 = vsel %vm2719, %v2780, %v2781
      %v2783 = vrot.slane %v2648, 5
      %v2784 = vrot.slane %v2783, 4
      %v2785 = vrot.slane %v2649, 5
      %v2786 = vsel %vm2719, %v2784, %v2785
      %v2787 = vrot.slane %v2785, 4
      %v2788 = vrot.slane %v2650, 5
      %v2789 = vsel %vm2719, %v2787, %v2788
      %v2790 = vrot.slane %v2651, 5
      %v2791 = vrot.slane %v2790, 4
      %v2792 = vrot.slane %v2652, 5
      %v2793 = vsel %vm2719, %v2791, %v2792
      %v2794 = vrot.slane %v2792, 4
      %v2795 = vrot.slane %v2653, 5
      %v2796 = vsel %vm2719, %v2794, %v2795
      %v2797 = vrot.slane %v2654, 5
      %v2798 = vrot.slane %v2797, 4
      %v2799 = vrot.slane %v2655, 5
      %v2800 = vsel %vm2719, %v2798, %v2799
      %v2801 = vrot.slane %v2799, 4
      %v2802 = vrot.slane %v2656, 5
      %v2803 = vsel %vm2719, %v2801, %v2802
      %v2804 = vrot.slane %v2657, 5
      %v2805 = vrot.slane %v2804, 4
      %v2806 = vrot.slane %v2658, 5
      %v2807 = vsel %vm2719, %v2805, %v2806
      %v2808 = vrot.slane %v2806, 4
      %v2809 = vrot.slane %v2659, 5
      %v2810 = vsel %vm2719, %v2808, %v2809
      %v2811 = vrot.slane %v2660, 5
      %v2812 = vrot.slane %v2811, 4
      %v2813 = vrot.slane %v2661, 5
      %v2814 = vsel %vm2719, %v2812, %v2813
      %v2815 = vrot.slane %v2813, 4
      %v2816 = vrot.slane %v2662, 5
      %v2817 = vsel %vm2719, %v2815, %v2816
      %v2818 = vrot.slane %v2663, 5
      %v2819 = vrot.slane %v2818, 4
      %v2820 = vrot.slane %v2664, 5
      %v2821 = vsel %vm2719, %v2819, %v2820
      %v2822 = vrot.slane %v2820, 4
      %v2823 = vrot.slane %v2665, 5
      %v2824 = vsel %vm2719, %v2822, %v2823
      %v2825 = vrot.slane %v2666, 5
      %v2826 = vrot.slane %v2825, 4
      %v2827 = vrot.slane %v2667, 5
      %v2828 = vsel %vm2719, %v2826, %v2827
      %v2829 = vrot.slane %v2827, 4
      %v2830 = vrot.slane %v2668, 5
      %v2831 = vsel %vm2719, %v2829, %v2830
      %2832 = vrot.lane.b32.xlu0 %v2723, 4
      %v2833 = vpop.permute.xlu0 %2832
      %2834 = vrot.lane.b32.xlu0 %v2726, 4
      %v2835 = vpop.permute.xlu0 %2834
      %2836 = vrot.lane.b32.xlu0 %v2730, 4
      %v2837 = vpop.permute.xlu0 %2836
      %2838 = vrot.lane.b32.xlu0 %v2733, 4
      %v2839 = vpop.permute.xlu0 %2838
      %2840 = vrot.lane.b32.xlu0 %v2737, 4
      %v2841 = vpop.permute.xlu0 %2840
      %2842 = vrot.lane.b32.xlu0 %v2740, 4
      %v2843 = vpop.permute.xlu0 %2842
      %2844 = vrot.lane.b32.xlu0 %v2744, 4
      %v2845 = vpop.permute.xlu0 %2844
      %2846 = vrot.lane.b32.xlu0 %v2747, 4
      %v2847 = vpop.permute.xlu0 %2846
      %2848 = vrot.lane.b32.xlu0 %v2751, 4
      %v2849 = vpop.permute.xlu0 %2848
      %2850 = vrot.lane.b32.xlu0 %v2754, 4
      %v2851 = vpop.permute.xlu0 %2850
      %2852 = vrot.lane.b32.xlu0 %v2758, 4
      %v2853 = vpop.permute.xlu0 %2852
      %2854 = vrot.lane.b32.xlu0 %v2761, 4
      %v2855 = vpop.permute.xlu0 %2854
      %2856 = vrot.lane.b32.xlu0 %v2765, 4
      %v2857 = vpop.permute.xlu0 %2856
      %2858 = vrot.lane.b32.xlu0 %v2768, 4
      %v2859 = vpop.permute.xlu0 %2858
      %2860 = vrot.lane.b32.xlu0 %v2772, 4
      %v2861 = vpop.permute.xlu0 %2860
      %2862 = vrot.lane.b32.xlu0 %v2775, 4
      %v2863 = vpop.permute.xlu0 %2862
      %2864 = vrot.lane.b32.xlu0 %v2779, 4
      %v2865 = vpop.permute.xlu0 %2864
      %2866 = vrot.lane.b32.xlu0 %v2782, 4
      %v2867 = vpop.permute.xlu0 %2866
      %2868 = vrot.lane.b32.xlu0 %v2786, 4
      %v2869 = vpop.permute.xlu0 %2868
      %2870 = vrot.lane.b32.xlu0 %v2789, 4
      %v2871 = vpop.permute.xlu0 %2870
      %2872 = vrot.lane.b32.xlu0 %v2793, 4
      %v2873 = vpop.permute.xlu0 %2872
      %2874 = vrot.lane.b32.xlu0 %v2796, 4
      %v2875 = vpop.permute.xlu0 %2874
      %2876 = vrot.lane.b32.xlu0 %v2800, 4
      %v2877 = vpop.permute.xlu0 %2876
      %2878 = vrot.lane.b32.xlu0 %v2803, 4
      %v2879 = vpop.permute.xlu0 %2878
      %2880 = vrot.lane.b32.xlu0 %v2807, 4
      %v2881 = vpop.permute.xlu0 %2880
      %2882 = vrot.lane.b32.xlu0 %v2810, 4
      %v2883 = vpop.permute.xlu0 %2882
      %2884 = vrot.lane.b32.xlu0 %v2814, 4
      %v2885 = vpop.permute.xlu0 %2884
      %2886 = vrot.lane.b32.xlu0 %v2817, 4
      %v2887 = vpop.permute.xlu0 %2886
      %2888 = vrot.lane.b32.xlu0 %v2821, 4
      %v2889 = vpop.permute.xlu0 %2888
      %2890 = vrot.lane.b32.xlu0 %v2824, 4
      %v2891 = vpop.permute.xlu0 %2890
      %2892 = vrot.lane.b32.xlu0 %v2828, 4
      %v2893 = vpop.permute.xlu0 %2892
      %2894 = vrot.lane.b32.xlu0 %v2831, 4
      %v2895 = vpop.permute.xlu0 %2894
      %2928 = vst.msk [vmem:[#allocation2] sm:$0xf] %vm808, %v2833
      %2929 = vst.msk [vmem:[#allocation2 + $0x4] sm:$0xf] %vm808, %v2835
      %2930 = vst.msk [vmem:[#allocation2 + $0x8] sm:$0xf] %vm808, %v2837
      %2931 = vst.msk [vmem:[#allocation2 + $0xc] sm:$0xf] %vm808, %v2839
      %2932 = vst.msk [vmem:[#allocation2 + $0x10] sm:$0xf] %vm808, %v2841
      %2933 = vst.msk [vmem:[#allocation2 + $0x14] sm:$0xf] %vm808, %v2843
      %2934 = vst.msk [vmem:[#allocation2 + $0x18] sm:$0xf] %vm808, %v2845
      %2935 = vst.msk [vmem:[#allocation2 + $0x1c] sm:$0xf] %vm808, %v2847
      %2936 = vst.msk [vmem:[#allocation2 + $0x20] sm:$0xf] %vm808, %v2849
      %2937 = vst.msk [vmem:[#allocation2 + $0x24] sm:$0xf] %vm808, %v2851
      %2938 = vst.msk [vmem:[#allocation2 + $0x28] sm:$0xf] %vm808, %v2853
      %2939 = vst.msk [vmem:[#allocation2 + $0x2c] sm:$0xf] %vm808, %v2855
      %2940 = vst.msk [vmem:[#allocation2 + $0x30] sm:$0xf] %vm808, %v2857
      %2941 = vst.msk [vmem:[#allocation2 + $0x34] sm:$0xf] %vm808, %v2859
      %2942 = vst.msk [vmem:[#allocation2 + $0x38] sm:$0xf] %vm808, %v2861
      %2943 = vst.msk [vmem:[#allocation2 + $0x3c] sm:$0xf] %vm808, %v2863
      %2944 = vst.msk [vmem:[#allocation2 + $0x40] sm:$0xf] %vm808, %v2865
      %2945 = vst.msk [vmem:[#allocation2 + $0x44] sm:$0xf] %vm808, %v2867
      %2946 = vst.msk [vmem:[#allocation2 + $0x48] sm:$0xf] %vm808, %v2869
      %2947 = vst.msk [vmem:[#allocation2 + $0x4c] sm:$0xf] %vm808, %v2871
      %2948 = vst.msk [vmem:[#allocation2 + $0x50] sm:$0xf] %vm808, %v2873
      %2949 = vst.msk [vmem:[#allocation2 + $0x54] sm:$0xf] %vm808, %v2875
      %2950 = vst.msk [vmem:[#allocation2 + $0x58] sm:$0xf] %vm808, %v2877
      %2951 = vst.msk [vmem:[#allocation2 + $0x5c] sm:$0xf] %vm808, %v2879
      %2952 = vst.msk [vmem:[#allocation2 + $0x60] sm:$0xf] %vm808, %v2881
      %2953 = vst.msk [vmem:[#allocation2 + $0x64] sm:$0xf] %vm808, %v2883
      %2954 = vst.msk [vmem:[#allocation2 + $0x68] sm:$0xf] %vm808, %v2885
      %2955 = vst.msk [vmem:[#allocation2 + $0x6c] sm:$0xf] %vm808, %v2887
      %2956 = vst.msk [vmem:[#allocation2 + $0x70] sm:$0xf] %vm808, %v2889
      %2957 = vst.msk [vmem:[#allocation2 + $0x74] sm:$0xf] %vm808, %v2891
      %2958 = vst.msk [vmem:[#allocation2 + $0x78] sm:$0xf] %vm808, %v2893
      %2959 = vst.msk [vmem:[#allocation2 + $0x7c] sm:$0xf] %vm808, %v2895
      %v2960 = vld [vmem:[%s841] sm:$0xf]
      %v2961 = vld [vmem:[%s841 + $0x4] sm:$0xf]
      %v2962 = vld [vmem:[%s841 + $0x8] sm:$0x1]
      %v2963 = vld [vmem:[%s841 + $0xc] sm:$0xf]
      %v2964 = vld [vmem:[%s841 + $0x10] sm:$0xf]
      %v2965 = vld [vmem:[%s841 + $0x14] sm:$0x1]
      %v2966 = vld [vmem:[%s841 + $0x18] sm:$0xf]
      %v2967 = vld [vmem:[%s841 + $0x1c] sm:$0xf]
      %v2968 = vld [vmem:[%s841 + $0x20] sm:$0x1]
      %v2969 = vld [vmem:[%s841 + $0x24] sm:$0xf]
      %v2970 = vld [vmem:[%s841 + $0x28] sm:$0xf]
      %v2971 = vld [vmem:[%s841 + $0x2c] sm:$0x1]
      %v2972 = vld [vmem:[%s841 + $0x30] sm:$0xf]
      %v2973 = vld [vmem:[%s841 + $0x34] sm:$0xf]
      %v2974 = vld [vmem:[%s841 + $0x38] sm:$0x1]
      %v2975 = vld [vmem:[%s841 + $0x3c] sm:$0xf]
      %v2976 = vld [vmem:[%s841 + $0x40] sm:$0xf]
      %v2977 = vld [vmem:[%s841 + $0x44] sm:$0x1]
      %v2978 = vld [vmem:[%s841 + $0x48] sm:$0xf]
      %v2979 = vld [vmem:[%s841 + $0x4c] sm:$0xf]
      %v2980 = vld [vmem:[%s841 + $0x50] sm:$0x1]
      %v2981 = vld [vmem:[%s841 + $0x54] sm:$0xf]
      %v2982 = vld [vmem:[%s841 + $0x58] sm:$0xf]
      %v2983 = vld [vmem:[%s841 + $0x5c] sm:$0x1]
      %v2984 = vld [vmem:[%s841 + $0x60] sm:$0xf]
      %v2985 = vld [vmem:[%s841 + $0x64] sm:$0xf]
      %v2986 = vld [vmem:[%s841 + $0x68] sm:$0x1]
      %v2987 = vld [vmem:[%s841 + $0x6c] sm:$0xf]
      %v2988 = vld [vmem:[%s841 + $0x70] sm:$0xf]
      %v2989 = vld [vmem:[%s841 + $0x74] sm:$0x1]
      %v2990 = vld [vmem:[%s841 + $0x78] sm:$0xf]
      %v2991 = vld [vmem:[%s841 + $0x7c] sm:$0xf]
      %v2992 = vld [vmem:[%s841 + $0x80] sm:$0x1]
      %v2993 = vld [vmem:[%s841 + $0x84] sm:$0xf]
      %v2994 = vld [vmem:[%s841 + $0x88] sm:$0xf]
      %v2995 = vld [vmem:[%s841 + $0x8c] sm:$0x1]
      %v2996 = vld [vmem:[%s841 + $0x90] sm:$0xf]
      %v2997 = vld [vmem:[%s841 + $0x94] sm:$0xf]
      %v2998 = vld [vmem:[%s841 + $0x98] sm:$0x1]
      %v2999 = vld [vmem:[%s841 + $0x9c] sm:$0xf]
      %v3000 = vld [vmem:[%s841 + $0xa0] sm:$0xf]
      %v3001 = vld [vmem:[%s841 + $0xa4] sm:$0x1]
      %v3002 = vld [vmem:[%s841 + $0xa8] sm:$0xf]
      %v3003 = vld [vmem:[%s841 + $0xac] sm:$0xf]
      %v3004 = vld [vmem:[%s841 + $0xb0] sm:$0x1]
      %v3005 = vld [vmem:[%s841 + $0xb4] sm:$0xf]
      %v3006 = vld [vmem:[%s841 + $0xb8] sm:$0xf]
      %v3007 = vld [vmem:[%s841 + $0xbc] sm:$0x1]
      %v3009 = vshrl.u32 %v2960, 16
      %v3011 = vrot.slane %v3009, 4
      %v3012 = vshll.u32 %v2960, 16
      %v3014 = vrot.slane %v3012, 5
      %v3015 = vor.u32 %v3011, %v3014
      %v3016 = vrot.slane %v3015, 4
      %v3018 = vshll.u32 %v2961, 16
      %v3020 = vrot.slane %v3018, 5
      %v3021 = vsel %vm327, %v3016, %v3020
      %v3022 = vshrl.u32 %v2961, 16
      %v3024 = vrot.slane %v3022, 4
      %v3025 = vor.u32 %v3024, %v3020
      %v3026 = vrot.slane %v3025, 4
      %v3028 = vshll.u32 %v2962, 16
      %v3030 = vrot.slane %v3028, 5
      %v3031 = vsel %vm327, %v3026, %v3030
      %v3033 = vshrl.u32 %v2963, 16
      %v3035 = vrot.slane %v3033, 4
      %v3036 = vshll.u32 %v2963, 16
      %v3038 = vrot.slane %v3036, 5
      %v3039 = vor.u32 %v3035, %v3038
      %v3040 = vrot.slane %v3039, 4
      %v3042 = vshll.u32 %v2964, 16
      %v3044 = vrot.slane %v3042, 5
      %v3045 = vsel %vm327, %v3040, %v3044
      %v3046 = vshrl.u32 %v2964, 16
      %v3048 = vrot.slane %v3046, 4
      %v3049 = vor.u32 %v3048, %v3044
      %v3050 = vrot.slane %v3049, 4
      %v3052 = vshll.u32 %v2965, 16
      %v3054 = vrot.slane %v3052, 5
      %v3055 = vsel %vm327, %v3050, %v3054
      %v3057 = vshrl.u32 %v2966, 16
      %v3059 = vrot.slane %v3057, 4
      %v3060 = vshll.u32 %v2966, 16
      %v3062 = vrot.slane %v3060, 5
      %v3063 = vor.u32 %v3059, %v3062
      %v3064 = vrot.slane %v3063, 4
      %v3066 = vshll.u32 %v2967, 16
      %v3068 = vrot.slane %v3066, 5
      %v3069 = vsel %vm327, %v3064, %v3068
      %v3070 = vshrl.u32 %v2967, 16
      %v3072 = vrot.slane %v3070, 4
      %v3073 = vor.u32 %v3072, %v3068
      %v3074 = vrot.slane %v3073, 4
      %v3076 = vshll.u32 %v2968, 16
      %v3078 = vrot.slane %v3076, 5
      %v3079 = vsel %vm327, %v3074, %v3078
      %v3081 = vshrl.u32 %v2969, 16
      %v3083 = vrot.slane %v3081, 4
      %v3084 = vshll.u32 %v2969, 16
      %v3086 = vrot.slane %v3084, 5
      %v3087 = vor.u32 %v3083, %v3086
      %v3088 = vrot.slane %v3087, 4
      %v3090 = vshll.u32 %v2970, 16
      %v3092 = vrot.slane %v3090, 5
      %v3093 = vsel %vm327, %v3088, %v3092
      %v3094 = vshrl.u32 %v2970, 16
      %v3096 = vrot.slane %v3094, 4
      %v3097 = vor.u32 %v3096, %v3092
      %v3098 = vrot.slane %v3097, 4
      %v3100 = vshll.u32 %v2971, 16
      %v3102 = vrot.slane %v3100, 5
      %v3103 = vsel %vm327, %v3098, %v3102
      %v3105 = vshrl.u32 %v2972, 16
      %v3107 = vrot.slane %v3105, 4
      %v3108 = vshll.u32 %v2972, 16
      %v3110 = vrot.slane %v3108, 5
      %v3111 = vor.u32 %v3107, %v3110
      %v3112 = vrot.slane %v3111, 4
      %v3114 = vshll.u32 %v2973, 16
      %v3116 = vrot.slane %v3114, 5
      %v3117 = vsel %vm327, %v3112, %v3116
      %v3118 = vshrl.u32 %v2973, 16
      %v3120 = vrot.slane %v3118, 4
      %v3121 = vor.u32 %v3120, %v3116
      %v3122 = vrot.slane %v3121, 4
      %v3124 = vshll.u32 %v2974, 16
      %v3126 = vrot.slane %v3124, 5
      %v3127 = vsel %vm327, %v3122, %v3126
      %v3129 = vshrl.u32 %v2975, 16
      %v3131 = vrot.slane %v3129, 4
      %v3132 = vshll.u32 %v2975, 16
      %v3134 = vrot.slane %v3132, 5
      %v3135 = vor.u32 %v3131, %v3134
      %v3136 = vrot.slane %v3135, 4
      %v3138 = vshll.u32 %v2976, 16
      %v3140 = vrot.slane %v3138, 5
      %v3141 = vsel %vm327, %v3136, %v3140
      %v3142 = vshrl.u32 %v2976, 16
      %v3144 = vrot.slane %v3142, 4
      %v3145 = vor.u32 %v3144, %v3140
      %v3146 = vrot.slane %v3145, 4
      %v3148 = vshll.u32 %v2977, 16
      %v3150 = vrot.slane %v3148, 5
      %v3151 = vsel %vm327, %v3146, %v3150
      %v3153 = vshrl.u32 %v2978, 16
      %v3155 = vrot.slane %v3153, 4
      %v3156 = vshll.u32 %v2978, 16
      %v3158 = vrot.slane %v3156, 5
      %v3159 = vor.u32 %v3155, %v3158
      %v3160 = vrot.slane %v3159, 4
      %v3162 = vshll.u32 %v2979, 16
      %v3164 = vrot.slane %v3162, 5
      %v3165 = vsel %vm327, %v3160, %v3164
      %v3166 = vshrl.u32 %v2979, 16
      %v3168 = vrot.slane %v3166, 4
      %v3169 = vor.u32 %v3168, %v3164
      %v3170 = vrot.slane %v3169, 4
      %v3172 = vshll.u32 %v2980, 16
      %v3174 = vrot.slane %v3172, 5
      %v3175 = vsel %vm327, %v3170, %v3174
      %v3177 = vshrl.u32 %v2981, 16
      %v3179 = vrot.slane %v3177, 4
      %v3180 = vshll.u32 %v2981, 16
      %v3182 = vrot.slane %v3180, 5
      %v3183 = vor.u32 %v3179, %v3182
      %v3184 = vrot.slane %v3183, 4
      %v3186 = vshll.u32 %v2982, 16
      %v3188 = vrot.slane %v3186, 5
      %v3189 = vsel %vm327, %v3184, %v3188
      %v3190 = vshrl.u32 %v2982, 16
      %v3192 = vrot.slane %v3190, 4
      %v3193 = vor.u32 %v3192, %v3188
      %v3194 = vrot.slane %v3193, 4
      %v3196 = vshll.u32 %v2983, 16
      %v3198 = vrot.slane %v3196, 5
      %v3199 = vsel %vm327, %v3194, %v3198
      %v3201 = vshrl.u32 %v2984, 16
      %v3203 = vrot.slane %v3201, 4
      %v3204 = vshll.u32 %v2984, 16
      %v3206 = vrot.slane %v3204, 5
      %v3207 = vor.u32 %v3203, %v3206
      %v3208 = vrot.slane %v3207, 4
      %v3210 = vshll.u32 %v2985, 16
      %v3212 = vrot.slane %v3210, 5
      %v3213 = vsel %vm327, %v3208, %v3212
      %v3214 = vshrl.u32 %v2985, 16
      %v3216 = vrot.slane %v3214, 4
      %v3217 = vor.u32 %v3216, %v3212
      %v3218 = vrot.slane %v3217, 4
      %v3220 = vshll.u32 %v2986, 16
      %v3222 = vrot.slane %v3220, 5
      %v3223 = vsel %vm327, %v3218, %v3222
      %v3225 = vshrl.u32 %v2987, 16
      %v3227 = vrot.slane %v3225, 4
      %v3228 = vshll.u32 %v2987, 16
      %v3230 = vrot.slane %v3228, 5
      %v3231 = vor.u32 %v3227, %v3230
      %v3232 = vrot.slane %v3231, 4
      %v3234 = vshll.u32 %v2988, 16
      %v3236 = vrot.slane %v3234, 5
      %v3237 = vsel %vm327, %v3232, %v3236
      %v3238 = vshrl.u32 %v2988, 16
      %v3240 = vrot.slane %v3238, 4
      %v3241 = vor.u32 %v3240, %v3236
      %v3242 = vrot.slane %v3241, 4
      %v3244 = vshll.u32 %v2989, 16
      %v3246 = vrot.slane %v3244, 5
      %v3247 = vsel %vm327, %v3242, %v3246
      %v3249 = vshrl.u32 %v2990, 16
      %v3251 = vrot.slane %v3249, 4
      %v3252 = vshll.u32 %v2990, 16
      %v3254 = vrot.slane %v3252, 5
      %v3255 = vor.u32 %v3251, %v3254
      %v3256 = vrot.slane %v3255, 4
      %v3258 = vshll.u32 %v2991, 16
      %v3260 = vrot.slane %v3258, 5
      %v3261 = vsel %vm327, %v3256, %v3260
      %v3262 = vshrl.u32 %v2991, 16
      %v3264 = vrot.slane %v3262, 4
      %v3265 = vor.u32 %v3264, %v3260
      %v3266 = vrot.slane %v3265, 4
      %v3268 = vshll.u32 %v2992, 16
      %v3270 = vrot.slane %v3268, 5
      %v3271 = vsel %vm327, %v3266, %v3270
      %v3273 = vshrl.u32 %v2993, 16
      %v3275 = vrot.slane %v3273, 4
      %v3276 = vshll.u32 %v2993, 16
      %v3278 = vrot.slane %v3276, 5
      %v3279 = vor.u32 %v3275, %v3278
      %v3280 = vrot.slane %v3279, 4
      %v3282 = vshll.u32 %v2994, 16
      %v3284 = vrot.slane %v3282, 5
      %v3285 = vsel %vm327, %v3280, %v3284
      %v3286 = vshrl.u32 %v2994, 16
      %v3288 = vrot.slane %v3286, 4
      %v3289 = vor.u32 %v3288, %v3284
      %v3290 = vrot.slane %v3289, 4
      %v3292 = vshll.u32 %v2995, 16
      %v3294 = vrot.slane %v3292, 5
      %v3295 = vsel %vm327, %v3290, %v3294
      %v3297 = vshrl.u32 %v2996, 16
      %v3299 = vrot.slane %v3297, 4
      %v3300 = vshll.u32 %v2996, 16
      %v3302 = vrot.slane %v3300, 5
      %v3303 = vor.u32 %v3299, %v3302
      %v3304 = vrot.slane %v3303, 4
      %v3306 = vshll.u32 %v2997, 16
      %v3308 = vrot.slane %v3306, 5
      %v3309 = vsel %vm327, %v3304, %v3308
      %v3310 = vshrl.u32 %v2997, 16
      %v3312 = vrot.slane %v3310, 4
      %v3313 = vor.u32 %v3312, %v3308
      %v3314 = vrot.slane %v3313, 4
      %v3316 = vshll.u32 %v2998, 16
      %v3318 = vrot.slane %v3316, 5
      %v3319 = vsel %vm327, %v3314, %v3318
      %v3321 = vshrl.u32 %v2999, 16
      %v3323 = vrot.slane %v3321, 4
      %v3324 = vshll.u32 %v2999, 16
      %v3326 = vrot.slane %v3324, 5
      %v3327 = vor.u32 %v3323, %v3326
      %v3328 = vrot.slane %v3327, 4
      %v3330 = vshll.u32 %v3000, 16
      %v3332 = vrot.slane %v3330, 5
      %v3333 = vsel %vm327, %v3328, %v3332
      %v3334 = vshrl.u32 %v3000, 16
      %v3336 = vrot.slane %v3334, 4
      %v3337 = vor.u32 %v3336, %v3332
      %v3338 = vrot.slane %v3337, 4
      %v3340 = vshll.u32 %v3001, 16
      %v3342 = vrot.slane %v3340, 5
      %v3343 = vsel %vm327, %v3338, %v3342
      %v3345 = vshrl.u32 %v3002, 16
      %v3347 = vrot.slane %v3345, 4
      %v3348 = vshll.u32 %v3002, 16
      %v3350 = vrot.slane %v3348, 5
      %v3351 = vor.u32 %v3347, %v3350
      %v3352 = vrot.slane %v3351, 4
      %v3354 = vshll.u32 %v3003, 16
      %v3356 = vrot.slane %v3354, 5
      %v3357 = vsel %vm327, %v3352, %v3356
      %v3358 = vshrl.u32 %v3003, 16
      %v3360 = vrot.slane %v3358, 4
      %v3361 = vor.u32 %v3360, %v3356
      %v3362 = vrot.slane %v3361, 4
      %v3364 = vshll.u32 %v3004, 16
      %v3366 = vrot.slane %v3364, 5
      %v3367 = vsel %vm327, %v3362, %v3366
      %v3369 = vshrl.u32 %v3005, 16
      %v3371 = vrot.slane %v3369, 4
      %v3372 = vshll.u32 %v3005, 16
      %v3374 = vrot.slane %v3372, 5
      %v3375 = vor.u32 %v3371, %v3374
      %v3376 = vrot.slane %v3375, 4
      %v3378 = vshll.u32 %v3006, 16
      %v3380 = vrot.slane %v3378, 5
      %v3381 = vsel %vm327, %v3376, %v3380
      %v3382 = vshrl.u32 %v3006, 16
      %v3384 = vrot.slane %v3382, 4
      %v3385 = vor.u32 %v3384, %v3380
      %v3386 = vrot.slane %v3385, 4
      %v3388 = vshll.u32 %v3007, 16
      %v3390 = vrot.slane %v3388, 5
      %v3391 = vsel %vm327, %v3386, %v3390
      %3392 = vrot.lane.b32.xlu0 %v3021, 8
      %v3393 = vpop.permute.xlu0 %3392
      %3394 = vrot.lane.b32.xlu0 %v3031, 8
      %v3395 = vpop.permute.xlu0 %3394
      %3396 = vrot.lane.b32.xlu0 %v3045, 8
      %v3397 = vpop.permute.xlu0 %3396
      %3398 = vrot.lane.b32.xlu0 %v3055, 8
      %v3399 = vpop.permute.xlu0 %3398
      %3400 = vrot.lane.b32.xlu0 %v3069, 8
      %v3401 = vpop.permute.xlu0 %3400
      %3402 = vrot.lane.b32.xlu0 %v3079, 8
      %v3403 = vpop.permute.xlu0 %3402
      %3404 = vrot.lane.b32.xlu0 %v3093, 8
      %v3405 = vpop.permute.xlu0 %3404
      %3406 = vrot.lane.b32.xlu0 %v3103, 8
      %v3407 = vpop.permute.xlu0 %3406
      %3408 = vrot.lane.b32.xlu0 %v3117, 8
      %v3409 = vpop.permute.xlu0 %3408
      %3410 = vrot.lane.b32.xlu0 %v3127, 8
      %v3411 = vpop.permute.xlu0 %3410
      %3412 = vrot.lane.b32.xlu0 %v3141, 8
      %v3413 = vpop.permute.xlu0 %3412
      %3414 = vrot.lane.b32.xlu0 %v3151, 8
      %v3415 = vpop.permute.xlu0 %3414
      %3416 = vrot.lane.b32.xlu0 %v3165, 8
      %v3417 = vpop.permute.xlu0 %3416
      %3418 = vrot.lane.b32.xlu0 %v3175, 8
      %v3419 = vpop.permute.xlu0 %3418
      %3420 = vrot.lane.b32.xlu0 %v3189, 8
      %v3421 = vpop.permute.xlu0 %3420
      %3422 = vrot.lane.b32.xlu0 %v3199, 8
      %v3423 = vpop.permute.xlu0 %3422
      %3424 = vrot.lane.b32.xlu0 %v3213, 8
      %v3425 = vpop.permute.xlu0 %3424
      %3426 = vrot.lane.b32.xlu0 %v3223, 8
      %v3427 = vpop.permute.xlu0 %3426
      %3428 = vrot.lane.b32.xlu0 %v3237, 8
      %v3429 = vpop.permute.xlu0 %3428
      %3430 = vrot.lane.b32.xlu0 %v3247, 8
      %v3431 = vpop.permute.xlu0 %3430
      %3432 = vrot.lane.b32.xlu0 %v3261, 8
      %v3433 = vpop.permute.xlu0 %3432
      %3434 = vrot.lane.b32.xlu0 %v3271, 8
      %v3435 = vpop.permute.xlu0 %3434
      %3436 = vrot.lane.b32.xlu0 %v3285, 8
      %v3437 = vpop.permute.xlu0 %3436
      %3438 = vrot.lane.b32.xlu0 %v3295, 8
      %v3439 = vpop.permute.xlu0 %3438
      %3440 = vrot.lane.b32.xlu0 %v3309, 8
      %v3441 = vpop.permute.xlu0 %3440
      %3442 = vrot.lane.b32.xlu0 %v3319, 8
      %v3443 = vpop.permute.xlu0 %3442
      %3444 = vrot.lane.b32.xlu0 %v3333, 8
      %v3445 = vpop.permute.xlu0 %3444
      %3446 = vrot.lane.b32.xlu0 %v3343, 8
      %v3447 = vpop.permute.xlu0 %3446
      %3448 = vrot.lane.b32.xlu0 %v3357, 8
      %v3449 = vpop.permute.xlu0 %3448
      %3450 = vrot.lane.b32.xlu0 %v3367, 8
      %v3451 = vpop.permute.xlu0 %3450
      %3452 = vrot.lane.b32.xlu0 %v3381, 8
      %v3453 = vpop.permute.xlu0 %3452
      %3454 = vrot.lane.b32.xlu0 %v3391, 8
      %v3455 = vpop.permute.xlu0 %3454
      %3488 = vst.msk [vmem:[#allocation2] sm:$0xf] %vm1002, %v3393
      %3489 = vst.msk [vmem:[#allocation2 + $0x4] sm:$0xf] %vm1002, %v3395
      %3490 = vst.msk [vmem:[#allocation2 + $0x8] sm:$0xf] %vm1002, %v3397
      %3491 = vst.msk [vmem:[#allocation2 + $0xc] sm:$0xf] %vm1002, %v3399
      %3492 = vst.msk [vmem:[#allocation2 + $0x10] sm:$0xf] %vm1002, %v3401
      %3493 = vst.msk [vmem:[#allocation2 + $0x14] sm:$0xf] %vm1002, %v3403
      %3494 = vst.msk [vmem:[#allocation2 + $0x18] sm:$0xf] %vm1002, %v3405
      %3495 = vst.msk [vmem:[#allocation2 + $0x1c] sm:$0xf] %vm1002, %v3407
      %3496 = vst.msk [vmem:[#allocation2 + $0x20] sm:$0xf] %vm1002, %v3409
      %3497 = vst.msk [vmem:[#allocation2 + $0x24] sm:$0xf] %vm1002, %v3411
      %3498 = vst.msk [vmem:[#allocation2 + $0x28] sm:$0xf] %vm1002, %v3413
      %3499 = vst.msk [vmem:[#allocation2 + $0x2c] sm:$0xf] %vm1002, %v3415
      %3500 = vst.msk [vmem:[#allocation2 + $0x30] sm:$0xf] %vm1002, %v3417
      %3501 = vst.msk [vmem:[#allocation2 + $0x34] sm:$0xf] %vm1002, %v3419
      %3502 = vst.msk [vmem:[#allocation2 + $0x38] sm:$0xf] %vm1002, %v3421
      %3503 = vst.msk [vmem:[#allocation2 + $0x3c] sm:$0xf] %vm1002, %v3423
      %3504 = vst.msk [vmem:[#allocation2 + $0x40] sm:$0xf] %vm1002, %v3425
      %3505 = vst.msk [vmem:[#allocation2 + $0x44] sm:$0xf] %vm1002, %v3427
      %3506 = vst.msk [vmem:[#allocation2 + $0x48] sm:$0xf] %vm1002, %v3429
      %3507 = vst.msk [vmem:[#allocation2 + $0x4c] sm:$0xf] %vm1002, %v3431
      %3508 = vst.msk [vmem:[#allocation2 + $0x50] sm:$0xf] %vm1002, %v3433
      %3509 = vst.msk [vmem:[#allocation2 + $0x54] sm:$0xf] %vm1002, %v3435
      %3510 = vst.msk [vmem:[#allocation2 + $0x58] sm:$0xf] %vm1002, %v3437
      %3511 = vst.msk [vmem:[#allocation2 + $0x5c] sm:$0xf] %vm1002, %v3439
      %3512 = vst.msk [vmem:[#allocation2 + $0x60] sm:$0xf] %vm1002, %v3441
      %3513 = vst.msk [vmem:[#allocation2 + $0x64] sm:$0xf] %vm1002, %v3443
      %3514 = vst.msk [vmem:[#allocation2 + $0x68] sm:$0xf] %vm1002, %v3445
      %3515 = vst.msk [vmem:[#allocation2 + $0x6c] sm:$0xf] %vm1002, %v3447
      %3516 = vst.msk [vmem:[#allocation2 + $0x70] sm:$0xf] %vm1002, %v3449
      %3517 = vst.msk [vmem:[#allocation2 + $0x74] sm:$0xf] %vm1002, %v3451
      %3518 = vst.msk [vmem:[#allocation2 + $0x78] sm:$0xf] %vm1002, %v3453
      %3519 = vst.msk [vmem:[#allocation2 + $0x7c] sm:$0xf] %vm1002, %v3455
      %v3520 = vld [vmem:[%s841] sm:$0xe]
      %v3521 = vld [vmem:[%s841 + $0x4] sm:$0xf]
      %v3522 = vld [vmem:[%s841 + $0x8] sm:$0x1]
      %v3523 = vld [vmem:[%s841 + $0xc] sm:$0xe]
      %v3524 = vld [vmem:[%s841 + $0x10] sm:$0xf]
      %v3525 = vld [vmem:[%s841 + $0x14] sm:$0x1]
      %v3526 = vld [vmem:[%s841 + $0x18] sm:$0xe]
      %v3527 = vld [vmem:[%s841 + $0x1c] sm:$0xf]
      %v3528 = vld [vmem:[%s841 + $0x20] sm:$0x1]
      %v3529 = vld [vmem:[%s841 + $0x24] sm:$0xe]
      %v3530 = vld [vmem:[%s841 + $0x28] sm:$0xf]
      %v3531 = vld [vmem:[%s841 + $0x2c] sm:$0x1]
      %v3532 = vld [vmem:[%s841 + $0x30] sm:$0xe]
      %v3533 = vld [vmem:[%s841 + $0x34] sm:$0xf]
      %v3534 = vld [vmem:[%s841 + $0x38] sm:$0x1]
      %v3535 = vld [vmem:[%s841 + $0x3c] sm:$0xe]
      %v3536 = vld [vmem:[%s841 + $0x40] sm:$0xf]
      %v3537 = vld [vmem:[%s841 + $0x44] sm:$0x1]
      %v3538 = vld [vmem:[%s841 + $0x48] sm:$0xe]
      %v3539 = vld [vmem:[%s841 + $0x4c] sm:$0xf]
      %v3540 = vld [vmem:[%s841 + $0x50] sm:$0x1]
      %v3541 = vld [vmem:[%s841 + $0x54] sm:$0xe]
      %v3542 = vld [vmem:[%s841 + $0x58] sm:$0xf]
      %v3543 = vld [vmem:[%s841 + $0x5c] sm:$0x1]
      %v3544 = vld [vmem:[%s841 + $0x60] sm:$0xe]
      %v3545 = vld [vmem:[%s841 + $0x64] sm:$0xf]
      %v3546 = vld [vmem:[%s841 + $0x68] sm:$0x1]
      %v3547 = vld [vmem:[%s841 + $0x6c] sm:$0xe]
      %v3548 = vld [vmem:[%s841 + $0x70] sm:$0xf]
      %v3549 = vld [vmem:[%s841 + $0x74] sm:$0x1]
      %v3550 = vld [vmem:[%s841 + $0x78] sm:$0xe]
      %v3551 = vld [vmem:[%s841 + $0x7c] sm:$0xf]
      %v3552 = vld [vmem:[%s841 + $0x80] sm:$0x1]
      %v3553 = vld [vmem:[%s841 + $0x84] sm:$0xe]
      %v3554 = vld [vmem:[%s841 + $0x88] sm:$0xf]
      %v3555 = vld [vmem:[%s841 + $0x8c] sm:$0x1]
      %v3556 = vld [vmem:[%s841 + $0x90] sm:$0xe]
      %v3557 = vld [vmem:[%s841 + $0x94] sm:$0xf]
      %v3558 = vld [vmem:[%s841 + $0x98] sm:$0x1]
      %v3559 = vld [vmem:[%s841 + $0x9c] sm:$0xe]
      %v3560 = vld [vmem:[%s841 + $0xa0] sm:$0xf]
      %v3561 = vld [vmem:[%s841 + $0xa4] sm:$0x1]
      %v3562 = vld [vmem:[%s841 + $0xa8] sm:$0xe]
      %v3563 = vld [vmem:[%s841 + $0xac] sm:$0xf]
      %v3564 = vld [vmem:[%s841 + $0xb0] sm:$0x1]
      %v3565 = vld [vmem:[%s841 + $0xb4] sm:$0xe]
      %v3566 = vld [vmem:[%s841 + $0xb8] sm:$0xf]
      %v3567 = vld [vmem:[%s841 + $0xbc] sm:$0x1]
      %v3616 = vrot.slane %v3520, 5
      %v3617 = vrot.slane %v3616, 4
      %v3618 = vrot.slane %v3521, 5
      %v3619 = vsel %vm2719, %v3617, %v3618
      %v3620 = vrot.slane %v3618, 4
      %v3621 = vrot.slane %v3522, 5
      %v3622 = vsel %vm2719, %v3620, %v3621
      %v3623 = vrot.slane %v3523, 5
      %v3624 = vrot.slane %v3623, 4
      %v3625 = vrot.slane %v3524, 5
      %v3626 = vsel %vm2719, %v3624, %v3625
      %v3627 = vrot.slane %v3625, 4
      %v3628 = vrot.slane %v3525, 5
      %v3629 = vsel %vm2719, %v3627, %v3628
      %v3630 = vrot.slane %v3526, 5
      %v3631 = vrot.slane %v3630, 4
      %v3632 = vrot.slane %v3527, 5
      %v3633 = vsel %vm2719, %v3631, %v3632
      %v3634 = vrot.slane %v3632, 4
      %v3635 = vrot.slane %v3528, 5
      %v3636 = vsel %vm2719, %v3634, %v3635
      %v3637 = vrot.slane %v3529, 5
      %v3638 = vrot.slane %v3637, 4
      %v3639 = vrot.slane %v3530, 5
      %v3640 = vsel %vm2719, %v3638, %v3639
      %v3641 = vrot.slane %v3639, 4
      %v3642 = vrot.slane %v3531, 5
      %v3643 = vsel %vm2719, %v3641, %v3642
      %v3644 = vrot.slane %v3532, 5
      %v3645 = vrot.slane %v3644, 4
      %v3646 = vrot.slane %v3533, 5
      %v3647 = vsel %vm2719, %v3645, %v3646
      %v3648 = vrot.slane %v3646, 4
      %v3649 = vrot.slane %v3534, 5
      %v3650 = vsel %vm2719, %v3648, %v3649
      %v3651 = vrot.slane %v3535, 5
      %v3652 = vrot.slane %v3651, 4
      %v3653 = vrot.slane %v3536, 5
      %v3654 = vsel %vm2719, %v3652, %v3653
      %v3655 = vrot.slane %v3653, 4
      %v3656 = vrot.slane %v3537, 5
      %v3657 = vsel %vm2719, %v3655, %v3656
      %v3658 = vrot.slane %v3538, 5
      %v3659 = vrot.slane %v3658, 4
      %v3660 = vrot.slane %v3539, 5
      %v3661 = vsel %vm2719, %v3659, %v3660
      %v3662 = vrot.slane %v3660, 4
      %v3663 = vrot.slane %v3540, 5
      %v3664 = vsel %vm2719, %v3662, %v3663
      %v3665 = vrot.slane %v3541, 5
      %v3666 = vrot.slane %v3665, 4
      %v3667 = vrot.slane %v3542, 5
      %v3668 = vsel %vm2719, %v3666, %v3667
      %v3669 = vrot.slane %v3667, 4
      %v3670 = vrot.slane %v3543, 5
      %v3671 = vsel %vm2719, %v3669, %v3670
      %v3672 = vrot.slane %v3544, 5
      %v3673 = vrot.slane %v3672, 4
      %v3674 = vrot.slane %v3545, 5
      %v3675 = vsel %vm2719, %v3673, %v3674
      %v3676 = vrot.slane %v3674, 4
      %v3677 = vrot.slane %v3546, 5
      %v3678 = vsel %vm2719, %v3676, %v3677
      %v3679 = vrot.slane %v3547, 5
      %v3680 = vrot.slane %v3679, 4
      %v3681 = vrot.slane %v3548, 5
      %v3682 = vsel %vm2719, %v3680, %v3681
      %v3683 = vrot.slane %v3681, 4
      %v3684 = vrot.slane %v3549, 5
      %v3685 = vsel %vm2719, %v3683, %v3684
      %v3686 = vrot.slane %v3550, 5
      %v3687 = vrot.slane %v3686, 4
      %v3688 = vrot.slane %v3551, 5
      %v3689 = vsel %vm2719, %v3687, %v3688
      %v3690 = vrot.slane %v3688, 4
      %v3691 = vrot.slane %v3552, 5
      %v3692 = vsel %vm2719, %v3690, %v3691
      %v3693 = vrot.slane %v3553, 5
      %v3694 = vrot.slane %v3693, 4
      %v3695 = vrot.slane %v3554, 5
      %v3696 = vsel %vm2719, %v3694, %v3695
      %v3697 = vrot.slane %v3695, 4
      %v3698 = vrot.slane %v3555, 5
      %v3699 = vsel %vm2719, %v3697, %v3698
      %v3700 = vrot.slane %v3556, 5
      %v3701 = vrot.slane %v3700, 4
      %v3702 = vrot.slane %v3557, 5
      %v3703 = vsel %vm2719, %v3701, %v3702
      %v3704 = vrot.slane %v3702, 4
      %v3705 = vrot.slane %v3558, 5
      %v3706 = vsel %vm2719, %v3704, %v3705
      %v3707 = vrot.slane %v3559, 5
      %v3708 = vrot.slane %v3707, 4
      %v3709 = vrot.slane %v3560, 5
      %v3710 = vsel %vm2719, %v3708, %v3709
      %v3711 = vrot.slane %v3709, 4
      %v3712 = vrot.slane %v3561, 5
      %v3713 = vsel %vm2719, %v3711, %v3712
      %v3714 = vrot.slane %v3562, 5
      %v3715 = vrot.slane %v3714, 4
      %v3716 = vrot.slane %v3563, 5
      %v3717 = vsel %vm2719, %v3715, %v3716
      %v3718 = vrot.slane %v3716, 4
      %v3719 = vrot.slane %v3564, 5
      %v3720 = vsel %vm2719, %v3718, %v3719
      %v3721 = vrot.slane %v3565, 5
      %v3722 = vrot.slane %v3721, 4
      %v3723 = vrot.slane %v3566, 5
      %v3724 = vsel %vm2719, %v3722, %v3723
      %v3725 = vrot.slane %v3723, 4
      %v3726 = vrot.slane %v3567, 5
      %v3727 = vsel %vm2719, %v3725, %v3726
      %3728 = vrot.lane.b32.xlu0 %v3619, 12
      %v3729 = vpop.permute.xlu0 %3728
      %3730 = vrot.lane.b32.xlu0 %v3622, 12
      %v3731 = vpop.permute.xlu0 %3730
      %3732 = vrot.lane.b32.xlu0 %v3626, 12
      %v3733 = vpop.permute.xlu0 %3732
      %3734 = vrot.lane.b32.xlu0 %v3629, 12
      %v3735 = vpop.permute.xlu0 %3734
      %3736 = vrot.lane.b32.xlu0 %v3633, 12
      %v3737 = vpop.permute.xlu0 %3736
      %3738 = vrot.lane.b32.xlu0 %v3636, 12
      %v3739 = vpop.permute.xlu0 %3738
      %3740 = vrot.lane.b32.xlu0 %v3640, 12
      %v3741 = vpop.permute.xlu0 %3740
      %3742 = vrot.lane.b32.xlu0 %v3643, 12
      %v3743 = vpop.permute.xlu0 %3742
      %3744 = vrot.lane.b32.xlu0 %v3647, 12
      %v3745 = vpop.permute.xlu0 %3744
      %3746 = vrot.lane.b32.xlu0 %v3650, 12
      %v3747 = vpop.permute.xlu0 %3746
      %3748 = vrot.lane.b32.xlu0 %v3654, 12
      %v3749 = vpop.permute.xlu0 %3748
      %3750 = vrot.lane.b32.xlu0 %v3657, 12
      %v3751 = vpop.permute.xlu0 %3750
      %3752 = vrot.lane.b32.xlu0 %v3661, 12
      %v3753 = vpop.permute.xlu0 %3752
      %3754 = vrot.lane.b32.xlu0 %v3664, 12
      %v3755 = vpop.permute.xlu0 %3754
      %3756 = vrot.lane.b32.xlu0 %v3668, 12
      %v3757 = vpop.permute.xlu0 %3756
      %3758 = vrot.lane.b32.xlu0 %v3671, 12
      %v3759 = vpop.permute.xlu0 %3758
      %3760 = vrot.lane.b32.xlu0 %v3675, 12
      %v3761 = vpop.permute.xlu0 %3760
      %3762 = vrot.lane.b32.xlu0 %v3678, 12
      %v3763 = vpop.permute.xlu0 %3762
      %3764 = vrot.lane.b32.xlu0 %v3682, 12
      %v3765 = vpop.permute.xlu0 %3764
      %3766 = vrot.lane.b32.xlu0 %v3685, 12
      %v3767 = vpop.permute.xlu0 %3766
      %3768 = vrot.lane.b32.xlu0 %v3689, 12
      %v3769 = vpop.permute.xlu0 %3768
      %3770 = vrot.lane.b32.xlu0 %v3692, 12
      %v3771 = vpop.permute.xlu0 %3770
      %3772 = vrot.lane.b32.xlu0 %v3696, 12
      %v3773 = vpop.permute.xlu0 %3772
      %3774 = vrot.lane.b32.xlu0 %v3699, 12
      %v3775 = vpop.permute.xlu0 %3774
      %3776 = vrot.lane.b32.xlu0 %v3703, 12
      %v3777 = vpop.permute.xlu0 %3776
      %3778 = vrot.lane.b32.xlu0 %v3706, 12
      %v3779 = vpop.permute.xlu0 %3778
      %3780 = vrot.lane.b32.xlu0 %v3710, 12
      %v3781 = vpop.permute.xlu0 %3780
      %3782 = vrot.lane.b32.xlu0 %v3713, 12
      %v3783 = vpop.permute.xlu0 %3782
      %3784 = vrot.lane.b32.xlu0 %v3717, 12
      %v3785 = vpop.permute.xlu0 %3784
      %3786 = vrot.lane.b32.xlu0 %v3720, 12
      %v3787 = vpop.permute.xlu0 %3786
      %3788 = vrot.lane.b32.xlu0 %v3724, 12
      %v3789 = vpop.permute.xlu0 %3788
      %3790 = vrot.lane.b32.xlu0 %v3727, 12
      %v3791 = vpop.permute.xlu0 %3790
      %3824 = vst.msk [vmem:[#allocation2] sm:$0xf] %vm1563, %v3729
      %3825 = vst.msk [vmem:[#allocation2 + $0x4] sm:$0xf] %vm1563, %v3731
      %3826 = vst.msk [vmem:[#allocation2 + $0x8] sm:$0xf] %vm1563, %v3733
      %3827 = vst.msk [vmem:[#allocation2 + $0xc] sm:$0xf] %vm1563, %v3735
      %3828 = vst.msk [vmem:[#allocation2 + $0x10] sm:$0xf] %vm1563, %v3737
      %3829 = vst.msk [vmem:[#allocation2 + $0x14] sm:$0xf] %vm1563, %v3739
      %3830 = vst.msk [vmem:[#allocation2 + $0x18] sm:$0xf] %vm1563, %v3741
      %3831 = vst.msk [vmem:[#allocation2 + $0x1c] sm:$0xf] %vm1563, %v3743
      %3832 = vst.msk [vmem:[#allocation2 + $0x20] sm:$0xf] %vm1563, %v3745
      %3833 = vst.msk [vmem:[#allocation2 + $0x24] sm:$0xf] %vm1563, %v3747
      %3834 = vst.msk [vmem:[#allocation2 + $0x28] sm:$0xf] %vm1563, %v3749
      %3835 = vst.msk [vmem:[#allocation2 + $0x2c] sm:$0xf] %vm1563, %v3751
      %3836 = vst.msk [vmem:[#allocation2 + $0x30] sm:$0xf] %vm1563, %v3753
      %3837 = vst.msk [vmem:[#allocation2 + $0x34] sm:$0xf] %vm1563, %v3755
      %3838 = vst.msk [vmem:[#allocation2 + $0x38] sm:$0xf] %vm1563, %v3757
      %3839 = vst.msk [vmem:[#allocation2 + $0x3c] sm:$0xf] %vm1563, %v3759
      %3840 = vst.msk [vmem:[#allocation2 + $0x40] sm:$0xf] %vm1563, %v3761
      %3841 = vst.msk [vmem:[#allocation2 + $0x44] sm:$0xf] %vm1563, %v3763
      %3842 = vst.msk [vmem:[#allocation2 + $0x48] sm:$0xf] %vm1563, %v3765
      %3843 = vst.msk [vmem:[#allocation2 + $0x4c] sm:$0xf] %vm1563, %v3767
      %3844 = vst.msk [vmem:[#allocation2 + $0x50] sm:$0xf] %vm1563, %v3769
      %3845 = vst.msk [vmem:[#allocation2 + $0x54] sm:$0xf] %vm1563, %v3771
      %3846 = vst.msk [vmem:[#allocation2 + $0x58] sm:$0xf] %vm1563, %v3773
      %3847 = vst.msk [vmem:[#allocation2 + $0x5c] sm:$0xf] %vm1563, %v3775
      %3848 = vst.msk [vmem:[#allocation2 + $0x60] sm:$0xf] %vm1563, %v3777
      %3849 = vst.msk [vmem:[#allocation2 + $0x64] sm:$0xf] %vm1563, %v3779
      %3850 = vst.msk [vmem:[#allocation2 + $0x68] sm:$0xf] %vm1563, %v3781
      %3851 = vst.msk [vmem:[#allocation2 + $0x6c] sm:$0xf] %vm1563, %v3783
      %3852 = vst.msk [vmem:[#allocation2 + $0x70] sm:$0xf] %vm1563, %v3785
      %3853 = vst.msk [vmem:[#allocation2 + $0x74] sm:$0xf] %vm1563, %v3787
      %3854 = vst.msk [vmem:[#allocation2 + $0x78] sm:$0xf] %vm1563, %v3789
      %3855 = vst.msk [vmem:[#allocation2 + $0x7c] sm:$0xf] %vm1563, %v3791
      %v3856 = vld [vmem:[#allocation2] sm:$0xf]
      %v3857 = vld [vmem:[#allocation2 + $0x4] sm:$0xf]
      %v3858 = vld [vmem:[#allocation2 + $0x8] sm:$0xf]
      %v3859 = vld [vmem:[#allocation2 + $0xc] sm:$0xf]
      %v3860 = vld [vmem:[#allocation2 + $0x10] sm:$0xf]
      %v3861 = vld [vmem:[#allocation2 + $0x14] sm:$0xf]
      %v3862 = vld [vmem:[#allocation2 + $0x18] sm:$0xf]
      %v3863 = vld [vmem:[#allocation2 + $0x1c] sm:$0xf]
      %v3864 = vld [vmem:[#allocation2 + $0x20] sm:$0xf]
      %v3865 = vld [vmem:[#allocation2 + $0x24] sm:$0xf]
      %v3866 = vld [vmem:[#allocation2 + $0x28] sm:$0xf]
      %v3867 = vld [vmem:[#allocation2 + $0x2c] sm:$0xf]
      %v3868 = vld [vmem:[#allocation2 + $0x30] sm:$0xf]
      %v3869 = vld [vmem:[#allocation2 + $0x34] sm:$0xf]
      %v3870 = vld [vmem:[#allocation2 + $0x38] sm:$0xf]
      %v3871 = vld [vmem:[#allocation2 + $0x3c] sm:$0xf]
      %v3872 = vld [vmem:[#allocation2 + $0x40] sm:$0xf]
      %v3873 = vld [vmem:[#allocation2 + $0x44] sm:$0xf]
      %v3874 = vld [vmem:[#allocation2 + $0x48] sm:$0xf]
      %v3875 = vld [vmem:[#allocation2 + $0x4c] sm:$0xf]
      %v3876 = vld [vmem:[#allocation2 + $0x50] sm:$0xf]
      %v3877 = vld [vmem:[#allocation2 + $0x54] sm:$0xf]
      %v3878 = vld [vmem:[#allocation2 + $0x58] sm:$0xf]
      %v3879 = vld [vmem:[#allocation2 + $0x5c] sm:$0xf]
      %v3880 = vld [vmem:[#allocation2 + $0x60] sm:$0xf]
      %v3881 = vld [vmem:[#allocation2 + $0x64] sm:$0xf]
      %v3882 = vld [vmem:[#allocation2 + $0x68] sm:$0xf]
      %v3883 = vld [vmem:[#allocation2 + $0x6c] sm:$0xf]
      %v3884 = vld [vmem:[#allocation2 + $0x70] sm:$0xf]
      %v3885 = vld [vmem:[#allocation2 + $0x74] sm:$0xf]
      %v3886 = vld [vmem:[#allocation2 + $0x78] sm:$0xf]
      %v3887 = vld [vmem:[#allocation2 + $0x7c] sm:$0xf]
      %s3888 = scalar_lea.vmem %s1, 8
      %v3889 = vld [vmem:[%s3888] sm:$0xf]
      %v3890 = vld [vmem:[%s3888 + $0x4] sm:$0xf]
      %v3923 = vunpack.c.l.b16 %v3856
      %v3924 = vunpack.c.l.b16 %v3857
      %v3925 = vunpack.c.l.b16 %v3858
      %v3926 = vunpack.c.l.b16 %v3859
      %v3927 = vunpack.c.l.b16 %v3860
      %v3928 = vunpack.c.l.b16 %v3861
      %v3929 = vunpack.c.l.b16 %v3862
      %v3930 = vunpack.c.l.b16 %v3863
      %v3931 = vunpack.c.l.b16 %v3864
      %v3932 = vunpack.c.l.b16 %v3865
      %v3933 = vunpack.c.l.b16 %v3866
      %v3934 = vunpack.c.l.b16 %v3867
      %v3935 = vunpack.c.l.b16 %v3868
      %v3936 = vunpack.c.l.b16 %v3869
      %v3937 = vunpack.c.l.b16 %v3870
      %v3938 = vunpack.c.l.b16 %v3871
      %v3939 = vunpack.c.l.b16 %v3872
      %v3940 = vunpack.c.l.b16 %v3873
      %v3941 = vunpack.c.l.b16 %v3874
      %v3942 = vunpack.c.l.b16 %v3875
      %v3943 = vunpack.c.l.b16 %v3876
      %v3944 = vunpack.c.l.b16 %v3877
      %v3945 = vunpack.c.l.b16 %v3878
      %v3946 = vunpack.c.l.b16 %v3879
      %v3947 = vunpack.c.l.b16 %v3880
      %v3948 = vunpack.c.l.b16 %v3881
      %v3949 = vunpack.c.l.b16 %v3882
      %v3950 = vunpack.c.l.b16 %v3883
      %v3951 = vunpack.c.l.b16 %v3884
      %v3952 = vunpack.c.l.b16 %v3885
      %v3953 = vunpack.c.l.b16 %v3886
      %v3954 = vunpack.c.l.b16 %v3887
      %v3955 = vpack.c.b16 %v3924, %v3923
      %v3956 = vpack.c.b16 %v3926, %v3925
      %v3957 = vpack.c.b16 %v3928, %v3927
      %v3958 = vpack.c.b16 %v3930, %v3929
      %v3959 = vpack.c.b16 %v3932, %v3931
      %v3960 = vpack.c.b16 %v3934, %v3933
      %v3961 = vpack.c.b16 %v3936, %v3935
      %v3962 = vpack.c.b16 %v3938, %v3937
      %v3963 = vpack.c.b16 %v3940, %v3939
      %v3964 = vpack.c.b16 %v3942, %v3941
      %v3965 = vpack.c.b16 %v3944, %v3943
      %v3966 = vpack.c.b16 %v3946, %v3945
      %v3967 = vpack.c.b16 %v3948, %v3947
      %v3968 = vpack.c.b16 %v3950, %v3949
      %v3969 = vpack.c.b16 %v3952, %v3951
      %v3970 = vpack.c.b16 %v3954, %v3953
      %v3973 = vunpack.c.l.b16 %v3889
      %v3974 = vunpack.c.l.b16 %v3890
      %v3975 = vpack.c.b16 %v3974, %v3973
      %v3978 = vsel %vm1722, %v3955, 0
      %v3981 = vsel %vm1722, %v3956, 0
      %v3984 = vsel %vm1722, %v3957, 0
      %v3987 = vsel %vm1722, %v3958, 0
      %v3990 = vsel %vm1722, %v3959, 0
      %v3993 = vsel %vm1722, %v3960, 0
      %v3996 = vsel %vm1722, %v3961, 0
      %v3999 = vsel %vm1722, %v3962, 0
      %v4002 = vsel %vm1722, %v3963, 0
      %v4005 = vsel %vm1722, %v3964, 0
      %v4008 = vsel %vm1722, %v3965, 0
      %v4011 = vsel %vm1722, %v3966, 0
      %v4014 = vsel %vm1722, %v3967, 0
      %v4017 = vsel %vm1722, %v3968, 0
      %v4020 = vsel %vm1722, %v3969, 0
      %v4023 = vsel %vm1722, %v3970, 0
      %4025 = vmatprep.subr.bf16.mxu0 0
      %4026 = vmatpush1.bf16.msra.mxu0 0
      %4027 = vmatprep.subr.bf16.mxu0 0
      %4028 = vmatpush1.bf16.msra.mxu0 0
      %4029 = vmatprep.subr.bf16.mxu0 0
      %4030 = vmatpush1.bf16.msra.mxu0 0
      %4031 = vmatprep.subr.bf16.mxu0 0
      %4032 = vmatpush1.bf16.msra.mxu0 0
      %4033 = vmatprep.subr.bf16.mxu0 0
      %4034 = vmatpush1.bf16.msra.mxu0 0
      %4035 = vmatprep.subr.bf16.mxu0 0
      %4036 = vmatpush1.bf16.msra.mxu0 0
      %4037 = vmatprep.subr.bf16.mxu0 0
      %4038 = vmatpush1.bf16.msra.mxu0 0
      %4039 = vmatprep.subr.bf16.mxu0 0
      %4040 = vmatpush1.bf16.msra.mxu0 %v3975
      %4041 = vmatprep.subr.bf16.mxu0 0
      %4042 = vmatpush2.bf16.msra.mxu0 0
      %4043 = vmatprep.subr.bf16.mxu0 0
      %4044 = vmatpush2.bf16.msra.mxu0 0
      %4045 = vmatprep.subr.bf16.mxu0 0
      %4046 = vmatpush2.bf16.msra.mxu0 0
      %4047 = vmatprep.subr.bf16.mxu0 0
      %4048 = vmatpush2.bf16.msra.mxu0 0
      %4049 = vmatprep.subr.bf16.mxu0 0
      %4050 = vmatpush2.bf16.msra.mxu0 0
      %4051 = vmatprep.subr.bf16.mxu0 0
      %4052 = vmatpush2.bf16.msra.mxu0 0
      %4053 = vmatprep.subr.bf16.mxu0 0
      %4054 = vmatpush2.bf16.msra.mxu0 0
      %4055 = vmatprep.subr.bf16.mxu0 0
      %4056 = vmatpush2.bf16.msra.mxu0 0
      %4057 = vmatprep.mubr.bf16.mxu0 0
      %4058 = vmatmul.mubr.bf16.gmra.mxu0 %v3978
      %v4059 = vpop.f32.mrf.mxu0
      %v4060 = vadd.f32 %v1634, %v4059
      %v4061 = vpop.f32.mrf.mxu0
      %v4062 = vpop.f32.mrf.mxu0
      %v4063 = vadd.f32 %v1634, %v4062
      %v4064 = vpop.f32.mrf.mxu0
      %4065 = vmatprep.mubr.bf16.mxu0 0
      %4066 = vmatmul.mubr.bf16.gmra.mxu0 %v3981
      %v4067 = vpop.f32.mrf.mxu0
      %v4068 = vadd.f32 %v1634, %v4067
      %v4069 = vpop.f32.mrf.mxu0
      %v4070 = vpop.f32.mrf.mxu0
      %v4071 = vadd.f32 %v1634, %v4070
      %v4072 = vpop.f32.mrf.mxu0
      %4073 = vmatprep.mubr.bf16.mxu0 0
      %4074 = vmatmul.mubr.bf16.gmra.mxu0 %v3984
      %v4075 = vpop.f32.mrf.mxu0
      %v4076 = vadd.f32 %v1634, %v4075
      %v4077 = vpop.f32.mrf.mxu0
      %v4078 = vpop.f32.mrf.mxu0
      %v4079 = vadd.f32 %v1634, %v4078
      %v4080 = vpop.f32.mrf.mxu0
      %4081 = vmatprep.mubr.bf16.mxu0 0
      %4082 = vmatmul.mubr.bf16.gmra.mxu0 %v3987
      %v4083 = vpop.f32.mrf.mxu0
      %v4084 = vadd.f32 %v1634, %v4083
      %v4085 = vpop.f32.mrf.mxu0
      %v4086 = vpop.f32.mrf.mxu0
      %v4087 = vadd.f32 %v1634, %v4086
      %v4088 = vpop.f32.mrf.mxu0
      %4089 = vmatprep.mubr.bf16.mxu0 0
      %4090 = vmatmul.mubr.bf16.gmra.mxu0 %v3990
      %v4091 = vpop.f32.mrf.mxu0
      %v4092 = vadd.f32 %v1634, %v4091
      %v4093 = vpop.f32.mrf.mxu0
      %v4094 = vpop.f32.mrf.mxu0
      %v4095 = vadd.f32 %v1634, %v4094
      %v4096 = vpop.f32.mrf.mxu0
      %4097 = vmatprep.mubr.bf16.mxu0 0
      %4098 = vmatmul.mubr.bf16.gmra.mxu0 %v3993
      %v4099 = vpop.f32.mrf.mxu0
      %v4100 = vadd.f32 %v1634, %v4099
      %v4101 = vpop.f32.mrf.mxu0
      %v4102 = vpop.f32.mrf.mxu0
      %v4103 = vadd.f32 %v1634, %v4102
      %v4104 = vpop.f32.mrf.mxu0
      %4105 = vmatprep.mubr.bf16.mxu0 0
      %4106 = vmatmul.mubr.bf16.gmra.mxu0 %v3996
      %v4107 = vpop.f32.mrf.mxu0
      %v4108 = vadd.f32 %v1634, %v4107
      %v4109 = vpop.f32.mrf.mxu0
      %v4110 = vpop.f32.mrf.mxu0
      %v4111 = vadd.f32 %v1634, %v4110
      %v4112 = vpop.f32.mrf.mxu0
      %4113 = vmatprep.mubr.bf16.mxu0 0
      %4114 = vmatmul.mubr.bf16.gmra.mxu0 %v3999
      %v4115 = vpop.f32.mrf.mxu0
      %v4116 = vadd.f32 %v1634, %v4115
      %v4117 = vpop.f32.mrf.mxu0
      %v4118 = vpop.f32.mrf.mxu0
      %v4119 = vadd.f32 %v1634, %v4118
      %v4120 = vpop.f32.mrf.mxu0
      %4121 = vmatprep.mubr.bf16.mxu0 0
      %4122 = vmatmul.mubr.bf16.gmra.mxu0 %v4002
      %v4123 = vpop.f32.mrf.mxu0
      %v4124 = vadd.f32 %v1634, %v4123
      %v4125 = vpop.f32.mrf.mxu0
      %v4126 = vpop.f32.mrf.mxu0
      %v4127 = vadd.f32 %v1634, %v4126
      %v4128 = vpop.f32.mrf.mxu0
      %4129 = vmatprep.mubr.bf16.mxu0 0
      %4130 = vmatmul.mubr.bf16.gmra.mxu0 %v4005
      %v4131 = vpop.f32.mrf.mxu0
      %v4132 = vadd.f32 %v1634, %v4131
      %v4133 = vpop.f32.mrf.mxu0
      %v4134 = vpop.f32.mrf.mxu0
      %v4135 = vadd.f32 %v1634, %v4134
      %v4136 = vpop.f32.mrf.mxu0
      %4137 = vmatprep.mubr.bf16.mxu0 0
      %4138 = vmatmul.mubr.bf16.gmra.mxu0 %v4008
      %v4139 = vpop.f32.mrf.mxu0
      %v4140 = vadd.f32 %v1634, %v4139
      %v4141 = vpop.f32.mrf.mxu0
      %v4142 = vpop.f32.mrf.mxu0
      %v4143 = vadd.f32 %v1634, %v4142
      %v4144 = vpop.f32.mrf.mxu0
      %4145 = vmatprep.mubr.bf16.mxu0 0
      %4146 = vmatmul.mubr.bf16.gmra.mxu0 %v4011
      %v4147 = vpop.f32.mrf.mxu0
      %v4148 = vadd.f32 %v1634, %v4147
      %v4149 = vpop.f32.mrf.mxu0
      %v4150 = vpop.f32.mrf.mxu0
      %v4151 = vadd.f32 %v1634, %v4150
      %v4152 = vpop.f32.mrf.mxu0
      %4153 = vmatprep.mubr.bf16.mxu0 0
      %4154 = vmatmul.mubr.bf16.gmra.mxu0 %v4014
      %v4155 = vpop.f32.mrf.mxu0
      %v4156 = vadd.f32 %v1634, %v4155
      %v4157 = vpop.f32.mrf.mxu0
      %v4158 = vpop.f32.mrf.mxu0
      %v4159 = vadd.f32 %v1634, %v4158
      %v4160 = vpop.f32.mrf.mxu0
      %4161 = vmatprep.mubr.bf16.mxu0 0
      %4162 = vmatmul.mubr.bf16.gmra.mxu0 %v4017
      %v4163 = vpop.f32.mrf.mxu0
      %v4164 = vadd.f32 %v1634, %v4163
      %v4165 = vpop.f32.mrf.mxu0
      %v4166 = vpop.f32.mrf.mxu0
      %v4167 = vadd.f32 %v1634, %v4166
      %v4168 = vpop.f32.mrf.mxu0
      %4169 = vmatprep.mubr.bf16.mxu0 0
      %4170 = vmatmul.mubr.bf16.gmra.mxu0 %v4020
      %v4171 = vpop.f32.mrf.mxu0
      %v4172 = vadd.f32 %v1634, %v4171
      %v4173 = vpop.f32.mrf.mxu0
      %v4174 = vpop.f32.mrf.mxu0
      %v4175 = vadd.f32 %v1634, %v4174
      %v4176 = vpop.f32.mrf.mxu0
      %4177 = vmatprep.mubr.bf16.mxu0 0
      %4178 = vmatmul.mubr.bf16.gmra.mxu0 %v4023
      %v4179 = vpop.f32.mrf.mxu0
      %v4180 = vadd.f32 %v1634, %v4179
      %v4181 = vpop.f32.mrf.mxu0
      %v4182 = vpop.f32.mrf.mxu0
      %v4183 = vadd.f32 %v1634, %v4182
      %v4184 = vpop.f32.mrf.mxu0
      %4185 = vdwg.mxu0
      %v4186 = vmax.f32 %v4060, 0.0
      %v4187 = vmax.f32 %v4063, 0.0
      %v4188 = vmax.f32 %v4068, 0.0
      %v4189 = vmax.f32 %v4071, 0.0
      %v4190 = vmax.f32 %v4076, 0.0
      %v4191 = vmax.f32 %v4079, 0.0
      %v4192 = vmax.f32 %v4084, 0.0
      %v4193 = vmax.f32 %v4087, 0.0
      %v4194 = vmax.f32 %v4092, 0.0
      %v4195 = vmax.f32 %v4095, 0.0
      %v4196 = vmax.f32 %v4100, 0.0
      %v4197 = vmax.f32 %v4103, 0.0
      %v4198 = vmax.f32 %v4108, 0.0
      %v4199 = vmax.f32 %v4111, 0.0
      %v4200 = vmax.f32 %v4116, 0.0
      %v4201 = vmax.f32 %v4119, 0.0
      %v4202 = vmax.f32 %v4124, 0.0
      %v4203 = vmax.f32 %v4127, 0.0
      %v4204 = vmax.f32 %v4132, 0.0
      %v4205 = vmax.f32 %v4135, 0.0
      %v4206 = vmax.f32 %v4140, 0.0
      %v4207 = vmax.f32 %v4143, 0.0
      %v4208 = vmax.f32 %v4148, 0.0
      %v4209 = vmax.f32 %v4151, 0.0
      %v4210 = vmax.f32 %v4156, 0.0
      %v4211 = vmax.f32 %v4159, 0.0
      %v4212 = vmax.f32 %v4164, 0.0
      %v4213 = vmax.f32 %v4167, 0.0
      %v4214 = vmax.f32 %v4172, 0.0
      %v4215 = vmax.f32 %v4175, 0.0
      %v4216 = vmax.f32 %v4180, 0.0
      %v4217 = vmax.f32 %v4183, 0.0
      %v4218 = vpack.c.bf16 %v4187, %v4186
      %v4219 = vpack.c.bf16 %v4189, %v4188
      %v4220 = vpack.c.bf16 %v4191, %v4190
      %v4221 = vpack.c.bf16 %v4193, %v4192
      %v4222 = vpack.c.bf16 %v4195, %v4194
      %v4223 = vpack.c.bf16 %v4197, %v4196
      %v4224 = vpack.c.bf16 %v4199, %v4198
      %v4225 = vpack.c.bf16 %v4201, %v4200
      %v4226 = vpack.c.bf16 %v4203, %v4202
      %v4227 = vpack.c.bf16 %v4205, %v4204
      %v4228 = vpack.c.bf16 %v4207, %v4206
      %v4229 = vpack.c.bf16 %v4209, %v4208
      %v4230 = vpack.c.bf16 %v4211, %v4210
      %v4231 = vpack.c.bf16 %v4213, %v4212
      %v4232 = vpack.c.bf16 %v4215, %v4214
      %v4233 = vpack.c.bf16 %v4217, %v4216
      %v4250 = vunpack.c.l.b16 %v4218
      %v4251 = vunpack.c.h.b16 %v4218
      %v4252 = vunpack.c.l.b16 %v4219
      %v4253 = vunpack.c.h.b16 %v4219
      %v4254 = vunpack.c.l.b16 %v4220
      %v4255 = vunpack.c.h.b16 %v4220
      %v4256 = vunpack.c.l.b16 %v4221
      %v4257 = vunpack.c.h.b16 %v4221
      %v4258 = vunpack.c.l.b16 %v4222
      %v4259 = vunpack.c.h.b16 %v4222
      %v4260 = vunpack.c.l.b16 %v4223
      %v4261 = vunpack.c.h.b16 %v4223
      %v4262 = vunpack.c.l.b16 %v4224
      %v4263 = vunpack.c.h.b16 %v4224
      %v4264 = vunpack.c.l.b16 %v4225
      %v4265 = vunpack.c.h.b16 %v4225
      %v4266 = vunpack.c.l.b16 %v4226
      %v4267 = vunpack.c.h.b16 %v4226
      %v4268 = vunpack.c.l.b16 %v4227
      %v4269 = vunpack.c.h.b16 %v4227
      %v4270 = vunpack.c.l.b16 %v4228
      %v4271 = vunpack.c.h.b16 %v4228
      %v4272 = vunpack.c.l.b16 %v4229
      %v4273 = vunpack.c.h.b16 %v4229
      %v4274 = vunpack.c.l.b16 %v4230
      %v4275 = vunpack.c.h.b16 %v4230
      %v4276 = vunpack.c.l.b16 %v4231
      %v4277 = vunpack.c.h.b16 %v4231
      %v4278 = vunpack.c.l.b16 %v4232
      %v4279 = vunpack.c.h.b16 %v4232
      %v4280 = vunpack.c.l.b16 %v4233
      %v4281 = vunpack.c.h.b16 %v4233
      %v4282 = vpack.c.b16 %v4250, %v4250
      %v4283 = vpack.c.b16 %v4251, %v4251
      %v4284 = vpack.c.b16 %v4252, %v4252
      %v4285 = vpack.c.b16 %v4253, %v4253
      %v4286 = vpack.c.b16 %v4254, %v4254
      %v4287 = vpack.c.b16 %v4255, %v4255
      %v4288 = vpack.c.b16 %v4256, %v4256
      %v4289 = vpack.c.b16 %v4257, %v4257
      %v4290 = vpack.c.b16 %v4258, %v4258
      %v4291 = vpack.c.b16 %v4259, %v4259
      %v4292 = vpack.c.b16 %v4260, %v4260
      %v4293 = vpack.c.b16 %v4261, %v4261
      %v4294 = vpack.c.b16 %v4262, %v4262
      %v4295 = vpack.c.b16 %v4263, %v4263
      %v4296 = vpack.c.b16 %v4264, %v4264
      %v4297 = vpack.c.b16 %v4265, %v4265
      %v4298 = vpack.c.b16 %v4266, %v4266
      %v4299 = vpack.c.b16 %v4267, %v4267
      %v4300 = vpack.c.b16 %v4268, %v4268
      %v4301 = vpack.c.b16 %v4269, %v4269
      %v4302 = vpack.c.b16 %v4270, %v4270
      %v4303 = vpack.c.b16 %v4271, %v4271
      %v4304 = vpack.c.b16 %v4272, %v4272
      %v4305 = vpack.c.b16 %v4273, %v4273
      %v4306 = vpack.c.b16 %v4274, %v4274
      %v4307 = vpack.c.b16 %v4275, %v4275
      %v4308 = vpack.c.b16 %v4276, %v4276
      %v4309 = vpack.c.b16 %v4277, %v4277
      %v4310 = vpack.c.b16 %v4278, %v4278
      %v4311 = vpack.c.b16 %v4279, %v4279
      %v4312 = vpack.c.b16 %v4280, %v4280
      %v4313 = vpack.c.b16 %v4281, %v4281
      %4314 = vrot.lane.b32.xlu0 %v4282, 8
      %v4315 = vpop.permute.xlu0 %4314
      %4316 = vrot.lane.b32.xlu0 %v4283, 8
      %v4317 = vpop.permute.xlu0 %4316
      %4318 = vrot.lane.b32.xlu0 %v4284, 8
      %v4319 = vpop.permute.xlu0 %4318
      %4320 = vrot.lane.b32.xlu0 %v4285, 8
      %v4321 = vpop.permute.xlu0 %4320
      %4322 = vrot.lane.b32.xlu0 %v4286, 8
      %v4323 = vpop.permute.xlu0 %4322
      %4324 = vrot.lane.b32.xlu0 %v4287, 8
      %v4325 = vpop.permute.xlu0 %4324
      %4326 = vrot.lane.b32.xlu0 %v4288, 8
      %v4327 = vpop.permute.xlu0 %4326
      %4328 = vrot.lane.b32.xlu0 %v4289, 8
      %v4329 = vpop.permute.xlu0 %4328
      %4330 = vrot.lane.b32.xlu0 %v4290, 8
      %v4331 = vpop.permute.xlu0 %4330
      %4332 = vrot.lane.b32.xlu0 %v4291, 8
      %v4333 = vpop.permute.xlu0 %4332
      %4334 = vrot.lane.b32.xlu0 %v4292, 8
      %v4335 = vpop.permute.xlu0 %4334
      %4336 = vrot.lane.b32.xlu0 %v4293, 8
      %v4337 = vpop.permute.xlu0 %4336
      %4338 = vrot.lane.b32.xlu0 %v4294, 8
      %v4339 = vpop.permute.xlu0 %4338
      %4340 = vrot.lane.b32.xlu0 %v4295, 8
      %v4341 = vpop.permute.xlu0 %4340
      %4342 = vrot.lane.b32.xlu0 %v4296, 8
      %v4343 = vpop.permute.xlu0 %4342
      %4344 = vrot.lane.b32.xlu0 %v4297, 8
      %v4345 = vpop.permute.xlu0 %4344
      %4346 = vrot.lane.b32.xlu0 %v4298, 8
      %v4347 = vpop.permute.xlu0 %4346
      %4348 = vrot.lane.b32.xlu0 %v4299, 8
      %v4349 = vpop.permute.xlu0 %4348
      %4350 = vrot.lane.b32.xlu0 %v4300, 8
      %v4351 = vpop.permute.xlu0 %4350
      %4352 = vrot.lane.b32.xlu0 %v4301, 8
      %v4353 = vpop.permute.xlu0 %4352
      %4354 = vrot.lane.b32.xlu0 %v4302, 8
      %v4355 = vpop.permute.xlu0 %4354
      %4356 = vrot.lane.b32.xlu0 %v4303, 8
      %v4357 = vpop.permute.xlu0 %4356
      %4358 = vrot.lane.b32.xlu0 %v4304, 8
      %v4359 = vpop.permute.xlu0 %4358
      %4360 = vrot.lane.b32.xlu0 %v4305, 8
      %v4361 = vpop.permute.xlu0 %4360
      %4362 = vrot.lane.b32.xlu0 %v4306, 8
      %v4363 = vpop.permute.xlu0 %4362
      %4364 = vrot.lane.b32.xlu0 %v4307, 8
      %v4365 = vpop.permute.xlu0 %4364
      %4366 = vrot.lane.b32.xlu0 %v4308, 8
      %v4367 = vpop.permute.xlu0 %4366
      %4368 = vrot.lane.b32.xlu0 %v4309, 8
      %v4369 = vpop.permute.xlu0 %4368
      %4370 = vrot.lane.b32.xlu0 %v4310, 8
      %v4371 = vpop.permute.xlu0 %4370
      %4372 = vrot.lane.b32.xlu0 %v4311, 8
      %v4373 = vpop.permute.xlu0 %4372
      %4374 = vrot.lane.b32.xlu0 %v4312, 8
      %v4375 = vpop.permute.xlu0 %4374
      %4376 = vrot.lane.b32.xlu0 %v4313, 8
      %v4377 = vpop.permute.xlu0 %4376
      %vm4410 = vcmask 126016
      %4411 = vst.msk [vmem:[%s208] sm:$0xf] %vm4410, %v4315
      %4412 = vst.msk [vmem:[%s208 + $0x4] sm:$0xf] %vm4410, %v4317
      %4413 = vst.msk [vmem:[%s208 + $0x8] sm:$0xf] %vm4410, %v4319
      %4414 = vst.msk [vmem:[%s208 + $0xc] sm:$0xf] %vm4410, %v4321
      %4415 = vst.msk [vmem:[%s208 + $0x10] sm:$0xf] %vm4410, %v4323
      %4416 = vst.msk [vmem:[%s208 + $0x14] sm:$0xf] %vm4410, %v4325
      %4417 = vst.msk [vmem:[%s208 + $0x18] sm:$0xf] %vm4410, %v4327
      %4418 = vst.msk [vmem:[%s208 + $0x1c] sm:$0xf] %vm4410, %v4329
      %4419 = vst.msk [vmem:[%s208 + $0x20] sm:$0xf] %vm4410, %v4331
      %4420 = vst.msk [vmem:[%s208 + $0x24] sm:$0xf] %vm4410, %v4333
      %4421 = vst.msk [vmem:[%s208 + $0x28] sm:$0xf] %vm4410, %v4335
      %4422 = vst.msk [vmem:[%s208 + $0x2c] sm:$0xf] %vm4410, %v4337
      %4423 = vst.msk [vmem:[%s208 + $0x30] sm:$0xf] %vm4410, %v4339
      %4424 = vst.msk [vmem:[%s208 + $0x34] sm:$0xf] %vm4410, %v4341
      %4425 = vst.msk [vmem:[%s208 + $0x38] sm:$0xf] %vm4410, %v4343
      %4426 = vst.msk [vmem:[%s208 + $0x3c] sm:$0xf] %vm4410, %v4345
      %4427 = vst.msk [vmem:[%s208 + $0x40] sm:$0xf] %vm4410, %v4347
      %4428 = vst.msk [vmem:[%s208 + $0x44] sm:$0xf] %vm4410, %v4349
      %4429 = vst.msk [vmem:[%s208 + $0x48] sm:$0xf] %vm4410, %v4351
      %4430 = vst.msk [vmem:[%s208 + $0x4c] sm:$0xf] %vm4410, %v4353
      %4431 = vst.msk [vmem:[%s208 + $0x50] sm:$0xf] %vm4410, %v4355
      %4432 = vst.msk [vmem:[%s208 + $0x54] sm:$0xf] %vm4410, %v4357
      %4433 = vst.msk [vmem:[%s208 + $0x58] sm:$0xf] %vm4410, %v4359
      %4434 = vst.msk [vmem:[%s208 + $0x5c] sm:$0xf] %vm4410, %v4361
      %4435 = vst.msk [vmem:[%s208 + $0x60] sm:$0xf] %vm4410, %v4363
      %4436 = vst.msk [vmem:[%s208 + $0x64] sm:$0xf] %vm4410, %v4365
      %4437 = vst.msk [vmem:[%s208 + $0x68] sm:$0xf] %vm4410, %v4367
      %4438 = vst.msk [vmem:[%s208 + $0x6c] sm:$0xf] %vm4410, %v4369
      %4439 = vst.msk [vmem:[%s208 + $0x70] sm:$0xf] %vm4410, %v4371
      %4440 = vst.msk [vmem:[%s208 + $0x74] sm:$0xf] %vm4410, %v4373
      %4441 = vst.msk [vmem:[%s208 + $0x78] sm:$0xf] %vm4410, %v4375
      %4442 = vst.msk [vmem:[%s208 + $0x7c] sm:$0xf] %vm4410, %v4377
      %v4443 = vld [vmem:[%s841] sm:$0xf]
      %v4444 = vld [vmem:[%s841 + $0x4] sm:$0xf]
      %v4445 = vld [vmem:[%s841 + $0xc] sm:$0xf]
      %v4446 = vld [vmem:[%s841 + $0x10] sm:$0xf]
      %v4447 = vld [vmem:[%s841 + $0x18] sm:$0xf]
      %v4448 = vld [vmem:[%s841 + $0x1c] sm:$0xf]
      %v4449 = vld [vmem:[%s841 + $0x24] sm:$0xf]
      %v4450 = vld [vmem:[%s841 + $0x28] sm:$0xf]
      %v4451 = vld [vmem:[%s841 + $0x30] sm:$0xf]
      %v4452 = vld [vmem:[%s841 + $0x34] sm:$0xf]
      %v4453 = vld [vmem:[%s841 + $0x3c] sm:$0xf]
      %v4454 = vld [vmem:[%s841 + $0x40] sm:$0xf]
      %v4455 = vld [vmem:[%s841 + $0x48] sm:$0xf]
      %v4456 = vld [vmem:[%s841 + $0x4c] sm:$0xf]
      %v4457 = vld [vmem:[%s841 + $0x54] sm:$0xf]
      %v4458 = vld [vmem:[%s841 + $0x58] sm:$0xf]
      %v4459 = vld [vmem:[%s841 + $0x60] sm:$0xf]
      %v4460 = vld [vmem:[%s841 + $0x64] sm:$0xf]
      %v4461 = vld [vmem:[%s841 + $0x6c] sm:$0xf]
      %v4462 = vld [vmem:[%s841 + $0x70] sm:$0xf]
      %v4463 = vld [vmem:[%s841 + $0x78] sm:$0xf]
      %v4464 = vld [vmem:[%s841 + $0x7c] sm:$0xf]
      %v4465 = vld [vmem:[%s841 + $0x84] sm:$0xf]
      %v4466 = vld [vmem:[%s841 + $0x88] sm:$0xf]
      %v4467 = vld [vmem:[%s841 + $0x90] sm:$0xf]
      %v4468 = vld [vmem:[%s841 + $0x94] sm:$0xf]
      %v4469 = vld [vmem:[%s841 + $0x9c] sm:$0xf]
      %v4470 = vld [vmem:[%s841 + $0xa0] sm:$0xf]
      %v4471 = vld [vmem:[%s841 + $0xa8] sm:$0xf]
      %v4472 = vld [vmem:[%s841 + $0xac] sm:$0xf]
      %v4473 = vld [vmem:[%s841 + $0xb4] sm:$0xf]
      %v4474 = vld [vmem:[%s841 + $0xb8] sm:$0xf]
      %4475 = vst.msk [vmem:[#allocation2] sm:$0xf] %vm244, %v4443
      %4476 = vst.msk [vmem:[#allocation2 + $0x4] sm:$0xf] %vm244, %v4444
      %4477 = vst.msk [vmem:[#allocation2 + $0x8] sm:$0xf] %vm244, %v4445
      %4478 = vst.msk [vmem:[#allocation2 + $0xc] sm:$0xf] %vm244, %v4446
      %4479 = vst.msk [vmem:[#allocation2 + $0x10] sm:$0xf] %vm244, %v4447
      %4480 = vst.msk [vmem:[#allocation2 + $0x14] sm:$0xf] %vm244, %v4448
      %4481 = vst.msk [vmem:[#allocation2 + $0x18] sm:$0xf] %vm244, %v4449
      %4482 = vst.msk [vmem:[#allocation2 + $0x1c] sm:$0xf] %vm244, %v4450
      %4483 = vst.msk [vmem:[#allocation2 + $0x20] sm:$0xf] %vm244, %v4451
      %4484 = vst.msk [vmem:[#allocation2 + $0x24] sm:$0xf] %vm244, %v4452
      %4485 = vst.msk [vmem:[#allocation2 + $0x28] sm:$0xf] %vm244, %v4453
      %4486 = vst.msk [vmem:[#allocation2 + $0x2c] sm:$0xf] %vm244, %v4454
      %4487 = vst.msk [vmem:[#allocation2 + $0x30] sm:$0xf] %vm244, %v4455
      %4488 = vst.msk [vmem:[#allocation2 + $0x34] sm:$0xf] %vm244, %v4456
      %4489 = vst.msk [vmem:[#allocation2 + $0x38] sm:$0xf] %vm244, %v4457
      %4490 = vst.msk [vmem:[#allocation2 + $0x3c] sm:$0xf] %vm244, %v4458
      %4491 = vst.msk [vmem:[#allocation2 + $0x40] sm:$0xf] %vm244, %v4459
      %4492 = vst.msk [vmem:[#allocation2 + $0x44] sm:$0xf] %vm244, %v4460
      %4493 = vst.msk [vmem:[#allocation2 + $0x48] sm:$0xf] %vm244, %v4461
      %4494 = vst.msk [vmem:[#allocation2 + $0x4c] sm:$0xf] %vm244, %v4462
      %4495 = vst.msk [vmem:[#allocation2 + $0x50] sm:$0xf] %vm244, %v4463
      %4496 = vst.msk [vmem:[#allocation2 + $0x54] sm:$0xf] %vm244, %v4464
      %4497 = vst.msk [vmem:[#allocation2 + $0x58] sm:$0xf] %vm244, %v4465
      %4498 = vst.msk [vmem:[#allocation2 + $0x5c] sm:$0xf] %vm244, %v4466
      %4499 = vst.msk [vmem:[#allocation2 + $0x60] sm:$0xf] %vm244, %v4467
      %4500 = vst.msk [vmem:[#allocation2 + $0x64] sm:$0xf] %vm244, %v4468
      %4501 = vst.msk [vmem:[#allocation2 + $0x68] sm:$0xf] %vm244, %v4469
      %4502 = vst.msk [vmem:[#allocation2 + $0x6c] sm:$0xf] %vm244, %v4470
      %4503 = vst.msk [vmem:[#allocation2 + $0x70] sm:$0xf] %vm244, %v4471
      %4504 = vst.msk [vmem:[#allocation2 + $0x74] sm:$0xf] %vm244, %v4472
      %4505 = vst.msk [vmem:[#allocation2 + $0x78] sm:$0xf] %vm244, %v4473
      %4506 = vst.msk [vmem:[#allocation2 + $0x7c] sm:$0xf] %vm244, %v4474
      %v4507 = vld [vmem:[%s841] sm:$0xf]
      %v4508 = vld [vmem:[%s841 + $0x4] sm:$0xf]
      %v4509 = vld [vmem:[%s841 + $0x8] sm:$0x1]
      %v4510 = vld [vmem:[%s841 + $0xc] sm:$0xf]
      %v4511 = vld [vmem:[%s841 + $0x10] sm:$0xf]
      %v4512 = vld [vmem:[%s841 + $0x14] sm:$0x1]
      %v4513 = vld [vmem:[%s841 + $0x18] sm:$0xf]
      %v4514 = vld [vmem:[%s841 + $0x1c] sm:$0xf]
      %v4515 = vld [vmem:[%s841 + $0x20] sm:$0x1]
      %v4516 = vld [vmem:[%s841 + $0x24] sm:$0xf]
      %v4517 = vld [vmem:[%s841 + $0x28] sm:$0xf]
      %v4518 = vld [vmem:[%s841 + $0x2c] sm:$0x1]
      %v4519 = vld [vmem:[%s841 + $0x30] sm:$0xf]
      %v4520 = vld [vmem:[%s841 + $0x34] sm:$0xf]
      %v4521 = vld [vmem:[%s841 + $0x38] sm:$0x1]
      %v4522 = vld [vmem:[%s841 + $0x3c] sm:$0xf]
      %v4523 = vld [vmem:[%s841 + $0x40] sm:$0xf]
      %v4524 = vld [vmem:[%s841 + $0x44] sm:$0x1]
      %v4525 = vld [vmem:[%s841 + $0x48] sm:$0xf]
      %v4526 = vld [vmem:[%s841 + $0x4c] sm:$0xf]
      %v4527 = vld [vmem:[%s841 + $0x50] sm:$0x1]
      %v4528 = vld [vmem:[%s841 + $0x54] sm:$0xf]
      %v4529 = vld [vmem:[%s841 + $0x58] sm:$0xf]
      %v4530 = vld [vmem:[%s841 + $0x5c] sm:$0x1]
      %v4531 = vld [vmem:[%s841 + $0x60] sm:$0xf]
      %v4532 = vld [vmem:[%s841 + $0x64] sm:$0xf]
      %v4533 = vld [vmem:[%s841 + $0x68] sm:$0x1]
      %v4534 = vld [vmem:[%s841 + $0x6c] sm:$0xf]
      %v4535 = vld [vmem:[%s841 + $0x70] sm:$0xf]
      %v4536 = vld [vmem:[%s841 + $0x74] sm:$0x1]
      %v4537 = vld [vmem:[%s841 + $0x78] sm:$0xf]
      %v4538 = vld [vmem:[%s841 + $0x7c] sm:$0xf]
      %v4539 = vld [vmem:[%s841 + $0x80] sm:$0x1]
      %v4540 = vld [vmem:[%s841 + $0x84] sm:$0xf]
      %v4541 = vld [vmem:[%s841 + $0x88] sm:$0xf]
      %v4542 = vld [vmem:[%s841 + $0x8c] sm:$0x1]
      %v4543 = vld [vmem:[%s841 + $0x90] sm:$0xf]
      %v4544 = vld [vmem:[%s841 + $0x94] sm:$0xf]
      %v4545 = vld [vmem:[%s841 + $0x98] sm:$0x1]
      %v4546 = vld [vmem:[%s841 + $0x9c] sm:$0xf]
      %v4547 = vld [vmem:[%s841 + $0xa0] sm:$0xf]
      %v4548 = vld [vmem:[%s841 + $0xa4] sm:$0x1]
      %v4549 = vld [vmem:[%s841 + $0xa8] sm:$0xf]
      %v4550 = vld [vmem:[%s841 + $0xac] sm:$0xf]
      %v4551 = vld [vmem:[%s841 + $0xb0] sm:$0x1]
      %v4552 = vld [vmem:[%s841 + $0xb4] sm:$0xf]
      %v4553 = vld [vmem:[%s841 + $0xb8] sm:$0xf]
      %v4554 = vld [vmem:[%s841 + $0xbc] sm:$0x1]
      %v4556 = vshrl.u32 %v4507, 16
      %v4558 = vrot.slane %v4556, 4
      %v4559 = vshll.u32 %v4507, 16
      %v4561 = vrot.slane %v4559, 5
      %v4562 = vor.u32 %v4558, %v4561
      %v4563 = vrot.slane %v4562, 4
      %v4565 = vshll.u32 %v4508, 16
      %v4567 = vrot.slane %v4565, 5
      %v4568 = vsel %vm327, %v4563, %v4567
      %v4569 = vshrl.u32 %v4508, 16
      %v4571 = vrot.slane %v4569, 4
      %v4572 = vor.u32 %v4571, %v4567
      %v4573 = vrot.slane %v4572, 4
      %v4575 = vshll.u32 %v4509, 16
      %v4577 = vrot.slane %v4575, 5
      %v4578 = vsel %vm327, %v4573, %v4577
      %v4580 = vshrl.u32 %v4510, 16
      %v4582 = vrot.slane %v4580, 4
      %v4583 = vshll.u32 %v4510, 16
      %v4585 = vrot.slane %v4583, 5
      %v4586 = vor.u32 %v4582, %v4585
      %v4587 = vrot.slane %v4586, 4
      %v4589 = vshll.u32 %v4511, 16
      %v4591 = vrot.slane %v4589, 5
      %v4592 = vsel %vm327, %v4587, %v4591
      %v4593 = vshrl.u32 %v4511, 16
      %v4595 = vrot.slane %v4593, 4
      %v4596 = vor.u32 %v4595, %v4591
      %v4597 = vrot.slane %v4596, 4
      %v4599 = vshll.u32 %v4512, 16
      %v4601 = vrot.slane %v4599, 5
      %v4602 = vsel %vm327, %v4597, %v4601
      %v4604 = vshrl.u32 %v4513, 16
      %v4606 = vrot.slane %v4604, 4
      %v4607 = vshll.u32 %v4513, 16
      %v4609 = vrot.slane %v4607, 5
      %v4610 = vor.u32 %v4606, %v4609
      %v4611 = vrot.slane %v4610, 4
      %v4613 = vshll.u32 %v4514, 16
      %v4615 = vrot.slane %v4613, 5
      %v4616 = vsel %vm327, %v4611, %v4615
      %v4617 = vshrl.u32 %v4514, 16
      %v4619 = vrot.slane %v4617, 4
      %v4620 = vor.u32 %v4619, %v4615
      %v4621 = vrot.slane %v4620, 4
      %v4623 = vshll.u32 %v4515, 16
      %v4625 = vrot.slane %v4623, 5
      %v4626 = vsel %vm327, %v4621, %v4625
      %v4628 = vshrl.u32 %v4516, 16
      %v4630 = vrot.slane %v4628, 4
      %v4631 = vshll.u32 %v4516, 16
      %v4633 = vrot.slane %v4631, 5
      %v4634 = vor.u32 %v4630, %v4633
      %v4635 = vrot.slane %v4634, 4
      %v4637 = vshll.u32 %v4517, 16
      %v4639 = vrot.slane %v4637, 5
      %v4640 = vsel %vm327, %v4635, %v4639
      %v4641 = vshrl.u32 %v4517, 16
      %v4643 = vrot.slane %v4641, 4
      %v4644 = vor.u32 %v4643, %v4639
      %v4645 = vrot.slane %v4644, 4
      %v4647 = vshll.u32 %v4518, 16
      %v4649 = vrot.slane %v4647, 5
      %v4650 = vsel %vm327, %v4645, %v4649
      %v4652 = vshrl.u32 %v4519, 16
      %v4654 = vrot.slane %v4652, 4
      %v4655 = vshll.u32 %v4519, 16
      %v4657 = vrot.slane %v4655, 5
      %v4658 = vor.u32 %v4654, %v4657
      %v4659 = vrot.slane %v4658, 4
      %v4661 = vshll.u32 %v4520, 16
      %v4663 = vrot.slane %v4661, 5
      %v4664 = vsel %vm327, %v4659, %v4663
      %v4665 = vshrl.u32 %v4520, 16
      %v4667 = vrot.slane %v4665, 4
      %v4668 = vor.u32 %v4667, %v4663
      %v4669 = vrot.slane %v4668, 4
      %v4671 = vshll.u32 %v4521, 16
      %v4673 = vrot.slane %v4671, 5
      %v4674 = vsel %vm327, %v4669, %v4673
      %v4676 = vshrl.u32 %v4522, 16
      %v4678 = vrot.slane %v4676, 4
      %v4679 = vshll.u32 %v4522, 16
      %v4681 = vrot.slane %v4679, 5
      %v4682 = vor.u32 %v4678, %v4681
      %v4683 = vrot.slane %v4682, 4
      %v4685 = vshll.u32 %v4523, 16
      %v4687 = vrot.slane %v4685, 5
      %v4688 = vsel %vm327, %v4683, %v4687
      %v4689 = vshrl.u32 %v4523, 16
      %v4691 = vrot.slane %v4689, 4
      %v4692 = vor.u32 %v4691, %v4687
      %v4693 = vrot.slane %v4692, 4
      %v4695 = vshll.u32 %v4524, 16
      %v4697 = vrot.slane %v4695, 5
      %v4698 = vsel %vm327, %v4693, %v4697
      %v4700 = vshrl.u32 %v4525, 16
      %v4702 = vrot.slane %v4700, 4
      %v4703 = vshll.u32 %v4525, 16
      %v4705 = vrot.slane %v4703, 5
      %v4706 = vor.u32 %v4702, %v4705
      %v4707 = vrot.slane %v4706, 4
      %v4709 = vshll.u32 %v4526, 16
      %v4711 = vrot.slane %v4709, 5
      %v4712 = vsel %vm327, %v4707, %v4711
      %v4713 = vshrl.u32 %v4526, 16
      %v4715 = vrot.slane %v4713, 4
      %v4716 = vor.u32 %v4715, %v4711
      %v4717 = vrot.slane %v4716, 4
      %v4719 = vshll.u32 %v4527, 16
      %v4721 = vrot.slane %v4719, 5
      %v4722 = vsel %vm327, %v4717, %v4721
      %v4724 = vshrl.u32 %v4528, 16
      %v4726 = vrot.slane %v4724, 4
      %v4727 = vshll.u32 %v4528, 16
      %v4729 = vrot.slane %v4727, 5
      %v4730 = vor.u32 %v4726, %v4729
      %v4731 = vrot.slane %v4730, 4
      %v4733 = vshll.u32 %v4529, 16
      %v4735 = vrot.slane %v4733, 5
      %v4736 = vsel %vm327, %v4731, %v4735
      %v4737 = vshrl.u32 %v4529, 16
      %v4739 = vrot.slane %v4737, 4
      %v4740 = vor.u32 %v4739, %v4735
      %v4741 = vrot.slane %v4740, 4
      %v4743 = vshll.u32 %v4530, 16
      %v4745 = vrot.slane %v4743, 5
      %v4746 = vsel %vm327, %v4741, %v4745
      %v4748 = vshrl.u32 %v4531, 16
      %v4750 = vrot.slane %v4748, 4
      %v4751 = vshll.u32 %v4531, 16
      %v4753 = vrot.slane %v4751, 5
      %v4754 = vor.u32 %v4750, %v4753
      %v4755 = vrot.slane %v4754, 4
      %v4757 = vshll.u32 %v4532, 16
      %v4759 = vrot.slane %v4757, 5
      %v4760 = vsel %vm327, %v4755, %v4759
      %v4761 = vshrl.u32 %v4532, 16
      %v4763 = vrot.slane %v4761, 4
      %v4764 = vor.u32 %v4763, %v4759
      %v4765 = vrot.slane %v4764, 4
      %v4767 = vshll.u32 %v4533, 16
      %v4769 = vrot.slane %v4767, 5
      %v4770 = vsel %vm327, %v4765, %v4769
      %v4772 = vshrl.u32 %v4534, 16
      %v4774 = vrot.slane %v4772, 4
      %v4775 = vshll.u32 %v4534, 16
      %v4777 = vrot.slane %v4775, 5
      %v4778 = vor.u32 %v4774, %v4777
      %v4779 = vrot.slane %v4778, 4
      %v4781 = vshll.u32 %v4535, 16
      %v4783 = vrot.slane %v4781, 5
      %v4784 = vsel %vm327, %v4779, %v4783
      %v4785 = vshrl.u32 %v4535, 16
      %v4787 = vrot.slane %v4785, 4
      %v4788 = vor.u32 %v4787, %v4783
      %v4789 = vrot.slane %v4788, 4
      %v4791 = vshll.u32 %v4536, 16
      %v4793 = vrot.slane %v4791, 5
      %v4794 = vsel %vm327, %v4789, %v4793
      %v4796 = vshrl.u32 %v4537, 16
      %v4798 = vrot.slane %v4796, 4
      %v4799 = vshll.u32 %v4537, 16
      %v4801 = vrot.slane %v4799, 5
      %v4802 = vor.u32 %v4798, %v4801
      %v4803 = vrot.slane %v4802, 4
      %v4805 = vshll.u32 %v4538, 16
      %v4807 = vrot.slane %v4805, 5
      %v4808 = vsel %vm327, %v4803, %v4807
      %v4809 = vshrl.u32 %v4538, 16
      %v4811 = vrot.slane %v4809, 4
      %v4812 = vor.u32 %v4811, %v4807
      %v4813 = vrot.slane %v4812, 4
      %v4815 = vshll.u32 %v4539, 16
      %v4817 = vrot.slane %v4815, 5
      %v4818 = vsel %vm327, %v4813, %v4817
      %v4820 = vshrl.u32 %v4540, 16
      %v4822 = vrot.slane %v4820, 4
      %v4823 = vshll.u32 %v4540, 16
      %v4825 = vrot.slane %v4823, 5
      %v4826 = vor.u32 %v4822, %v4825
      %v4827 = vrot.slane %v4826, 4
      %v4829 = vshll.u32 %v4541, 16
      %v4831 = vrot.slane %v4829, 5
      %v4832 = vsel %vm327, %v4827, %v4831
      %v4833 = vshrl.u32 %v4541, 16
      %v4835 = vrot.slane %v4833, 4
      %v4836 = vor.u32 %v4835, %v4831
      %v4837 = vrot.slane %v4836, 4
      %v4839 = vshll.u32 %v4542, 16
      %v4841 = vrot.slane %v4839, 5
      %v4842 = vsel %vm327, %v4837, %v4841
      %v4844 = vshrl.u32 %v4543, 16
      %v4846 = vrot.slane %v4844, 4
      %v4847 = vshll.u32 %v4543, 16
      %v4849 = vrot.slane %v4847, 5
      %v4850 = vor.u32 %v4846, %v4849
      %v4851 = vrot.slane %v4850, 4
      %v4853 = vshll.u32 %v4544, 16
      %v4855 = vrot.slane %v4853, 5
      %v4856 = vsel %vm327, %v4851, %v4855
      %v4857 = vshrl.u32 %v4544, 16
      %v4859 = vrot.slane %v4857, 4
      %v4860 = vor.u32 %v4859, %v4855
      %v4861 = vrot.slane %v4860, 4
      %v4863 = vshll.u32 %v4545, 16
      %v4865 = vrot.slane %v4863, 5
      %v4866 = vsel %vm327, %v4861, %v4865
      %v4868 = vshrl.u32 %v4546, 16
      %v4870 = vrot.slane %v4868, 4
      %v4871 = vshll.u32 %v4546, 16
      %v4873 = vrot.slane %v4871, 5
      %v4874 = vor.u32 %v4870, %v4873
      %v4875 = vrot.slane %v4874, 4
      %v4877 = vshll.u32 %v4547, 16
      %v4879 = vrot.slane %v4877, 5
      %v4880 = vsel %vm327, %v4875, %v4879
      %v4881 = vshrl.u32 %v4547, 16
      %v4883 = vrot.slane %v4881, 4
      %v4884 = vor.u32 %v4883, %v4879
      %v4885 = vrot.slane %v4884, 4
      %v4887 = vshll.u32 %v4548, 16
      %v4889 = vrot.slane %v4887, 5
      %v4890 = vsel %vm327, %v4885, %v4889
      %v4892 = vshrl.u32 %v4549, 16
      %v4894 = vrot.slane %v4892, 4
      %v4895 = vshll.u32 %v4549, 16
      %v4897 = vrot.slane %v4895, 5
      %v4898 = vor.u32 %v4894, %v4897
      %v4899 = vrot.slane %v4898, 4
      %v4901 = vshll.u32 %v4550, 16
      %v4903 = vrot.slane %v4901, 5
      %v4904 = vsel %vm327, %v4899, %v4903
      %v4905 = vshrl.u32 %v4550, 16
      %v4907 = vrot.slane %v4905, 4
      %v4908 = vor.u32 %v4907, %v4903
      %v4909 = vrot.slane %v4908, 4
      %v4911 = vshll.u32 %v4551, 16
      %v4913 = vrot.slane %v4911, 5
      %v4914 = vsel %vm327, %v4909, %v4913
      %v4916 = vshrl.u32 %v4552, 16
      %v4918 = vrot.slane %v4916, 4
      %v4919 = vshll.u32 %v4552, 16
      %v4921 = vrot.slane %v4919, 5
      %v4922 = vor.u32 %v4918, %v4921
      %v4923 = vrot.slane %v4922, 4
      %v4925 = vshll.u32 %v4553, 16
      %v4927 = vrot.slane %v4925, 5
      %v4928 = vsel %vm327, %v4923, %v4927
      %v4929 = vshrl.u32 %v4553, 16
      %v4931 = vrot.slane %v4929, 4
      %v4932 = vor.u32 %v4931, %v4927
      %v4933 = vrot.slane %v4932, 4
      %v4935 = vshll.u32 %v4554, 16
      %v4937 = vrot.slane %v4935, 5
      %v4938 = vsel %vm327, %v4933, %v4937
      %4939 = vrot.lane.b32.xlu0 %v4568, 4
      %v4940 = vpop.permute.xlu0 %4939
      %4941 = vrot.lane.b32.xlu0 %v4578, 4
      %v4942 = vpop.permute.xlu0 %4941
      %4943 = vrot.lane.b32.xlu0 %v4592, 4
      %v4944 = vpop.permute.xlu0 %4943
      %4945 = vrot.lane.b32.xlu0 %v4602, 4
      %v4946 = vpop.permute.xlu0 %4945
      %4947 = vrot.lane.b32.xlu0 %v4616, 4
      %v4948 = vpop.permute.xlu0 %4947
      %4949 = vrot.lane.b32.xlu0 %v4626, 4
      %v4950 = vpop.permute.xlu0 %4949
      %4951 = vrot.lane.b32.xlu0 %v4640, 4
      %v4952 = vpop.permute.xlu0 %4951
      %4953 = vrot.lane.b32.xlu0 %v4650, 4
      %v4954 = vpop.permute.xlu0 %4953
      %4955 = vrot.lane.b32.xlu0 %v4664, 4
      %v4956 = vpop.permute.xlu0 %4955
      %4957 = vrot.lane.b32.xlu0 %v4674, 4
      %v4958 = vpop.permute.xlu0 %4957
      %4959 = vrot.lane.b32.xlu0 %v4688, 4
      %v4960 = vpop.permute.xlu0 %4959
      %4961 = vrot.lane.b32.xlu0 %v4698, 4
      %v4962 = vpop.permute.xlu0 %4961
      %4963 = vrot.lane.b32.xlu0 %v4712, 4
      %v4964 = vpop.permute.xlu0 %4963
      %4965 = vrot.lane.b32.xlu0 %v4722, 4
      %v4966 = vpop.permute.xlu0 %4965
      %4967 = vrot.lane.b32.xlu0 %v4736, 4
      %v4968 = vpop.permute.xlu0 %4967
      %4969 = vrot.lane.b32.xlu0 %v4746, 4
      %v4970 = vpop.permute.xlu0 %4969
      %4971 = vrot.lane.b32.xlu0 %v4760, 4
      %v4972 = vpop.permute.xlu0 %4971
      %4973 = vrot.lane.b32.xlu0 %v4770, 4
      %v4974 = vpop.permute.xlu0 %4973
      %4975 = vrot.lane.b32.xlu0 %v4784, 4
      %v4976 = vpop.permute.xlu0 %4975
      %4977 = vrot.lane.b32.xlu0 %v4794, 4
      %v4978 = vpop.permute.xlu0 %4977
      %4979 = vrot.lane.b32.xlu0 %v4808, 4
      %v4980 = vpop.permute.xlu0 %4979
      %4981 = vrot.lane.b32.xlu0 %v4818, 4
      %v4982 = vpop.permute.xlu0 %4981
      %4983 = vrot.lane.b32.xlu0 %v4832, 4
      %v4984 = vpop.permute.xlu0 %4983
      %4985 = vrot.lane.b32.xlu0 %v4842, 4
      %v4986 = vpop.permute.xlu0 %4985
      %4987 = vrot.lane.b32.xlu0 %v4856, 4
      %v4988 = vpop.permute.xlu0 %4987
      %4989 = vrot.lane.b32.xlu0 %v4866, 4
      %v4990 = vpop.permute.xlu0 %4989
      %4991 = vrot.lane.b32.xlu0 %v4880, 4
      %v4992 = vpop.permute.xlu0 %4991
      %4993 = vrot.lane.b32.xlu0 %v4890, 4
      %v4994 = vpop.permute.xlu0 %4993
      %4995 = vrot.lane.b32.xlu0 %v4904, 4
      %v4996 = vpop.permute.xlu0 %4995
      %4997 = vrot.lane.b32.xlu0 %v4914, 4
      %v4998 = vpop.permute.xlu0 %4997
      %4999 = vrot.lane.b32.xlu0 %v4928, 4
      %v5000 = vpop.permute.xlu0 %4999
      %5001 = vrot.lane.b32.xlu0 %v4938, 4
      %v5002 = vpop.permute.xlu0 %5001
      %5035 = vst.msk [vmem:[#allocation2] sm:$0xf] %vm808, %v4940
      %5036 = vst.msk [vmem:[#allocation2 + $0x4] sm:$0xf] %vm808, %v4942
      %5037 = vst.msk [vmem:[#allocation2 + $0x8] sm:$0xf] %vm808, %v4944
      %5038 = vst.msk [vmem:[#allocation2 + $0xc] sm:$0xf] %vm808, %v4946
      %5039 = vst.msk [vmem:[#allocation2 + $0x10] sm:$0xf] %vm808, %v4948
      %5040 = vst.msk [vmem:[#allocation2 + $0x14] sm:$0xf] %vm808, %v4950
      %5041 = vst.msk [vmem:[#allocation2 + $0x18] sm:$0xf] %vm808, %v4952
      %5042 = vst.msk [vmem:[#allocation2 + $0x1c] sm:$0xf] %vm808, %v4954
      %5043 = vst.msk [vmem:[#allocation2 + $0x20] sm:$0xf] %vm808, %v4956
      %5044 = vst.msk [vmem:[#allocation2 + $0x24] sm:$0xf] %vm808, %v4958
      %5045 = vst.msk [vmem:[#allocation2 + $0x28] sm:$0xf] %vm808, %v4960
      %5046 = vst.msk [vmem:[#allocation2 + $0x2c] sm:$0xf] %vm808, %v4962
      %5047 = vst.msk [vmem:[#allocation2 + $0x30] sm:$0xf] %vm808, %v4964
      %5048 = vst.msk [vmem:[#allocation2 + $0x34] sm:$0xf] %vm808, %v4966
      %5049 = vst.msk [vmem:[#allocation2 + $0x38] sm:$0xf] %vm808, %v4968
      %5050 = vst.msk [vmem:[#allocation2 + $0x3c] sm:$0xf] %vm808, %v4970
      %5051 = vst.msk [vmem:[#allocation2 + $0x40] sm:$0xf] %vm808, %v4972
      %5052 = vst.msk [vmem:[#allocation2 + $0x44] sm:$0xf] %vm808, %v4974
      %5053 = vst.msk [vmem:[#allocation2 + $0x48] sm:$0xf] %vm808, %v4976
      %5054 = vst.msk [vmem:[#allocation2 + $0x4c] sm:$0xf] %vm808, %v4978
      %5055 = vst.msk [vmem:[#allocation2 + $0x50] sm:$0xf] %vm808, %v4980
      %5056 = vst.msk [vmem:[#allocation2 + $0x54] sm:$0xf] %vm808, %v4982
      %5057 = vst.msk [vmem:[#allocation2 + $0x58] sm:$0xf] %vm808, %v4984
      %5058 = vst.msk [vmem:[#allocation2 + $0x5c] sm:$0xf] %vm808, %v4986
      %5059 = vst.msk [vmem:[#allocation2 + $0x60] sm:$0xf] %vm808, %v4988
      %5060 = vst.msk [vmem:[#allocation2 + $0x64] sm:$0xf] %vm808, %v4990
      %5061 = vst.msk [vmem:[#allocation2 + $0x68] sm:$0xf] %vm808, %v4992
      %5062 = vst.msk [vmem:[#allocation2 + $0x6c] sm:$0xf] %vm808, %v4994
      %5063 = vst.msk [vmem:[#allocation2 + $0x70] sm:$0xf] %vm808, %v4996
      %5064 = vst.msk [vmem:[#allocation2 + $0x74] sm:$0xf] %vm808, %v4998
      %5065 = vst.msk [vmem:[#allocation2 + $0x78] sm:$0xf] %vm808, %v5000
      %5066 = vst.msk [vmem:[#allocation2 + $0x7c] sm:$0xf] %vm808, %v5002
      %s5067 = scalar_lea.vmem %s198, 24
      %v5068 = vld [vmem:[%s5067] sm:$0xf]
      %v5069 = vld [vmem:[%s5067 + $0x4] sm:$0xf]
      %v5070 = vld [vmem:[%s5067 + $0xc] sm:$0xf]
      %v5071 = vld [vmem:[%s5067 + $0x10] sm:$0xf]
      %v5072 = vld [vmem:[%s5067 + $0x18] sm:$0xf]
      %v5073 = vld [vmem:[%s5067 + $0x1c] sm:$0xf]
      %v5074 = vld [vmem:[%s5067 + $0x24] sm:$0xf]
      %v5075 = vld [vmem:[%s5067 + $0x28] sm:$0xf]
      %v5076 = vld [vmem:[%s5067 + $0x30] sm:$0xf]
      %v5077 = vld [vmem:[%s5067 + $0x34] sm:$0xf]
      %v5078 = vld [vmem:[%s5067 + $0x3c] sm:$0xf]
      %v5079 = vld [vmem:[%s5067 + $0x40] sm:$0xf]
      %v5080 = vld [vmem:[%s5067 + $0x48] sm:$0xf]
      %v5081 = vld [vmem:[%s5067 + $0x4c] sm:$0xf]
      %v5082 = vld [vmem:[%s5067 + $0x54] sm:$0xf]
      %v5083 = vld [vmem:[%s5067 + $0x58] sm:$0xf]
      %v5084 = vld [vmem:[%s5067 + $0x60] sm:$0xf]
      %v5085 = vld [vmem:[%s5067 + $0x64] sm:$0xf]
      %v5086 = vld [vmem:[%s5067 + $0x6c] sm:$0xf]
      %v5087 = vld [vmem:[%s5067 + $0x70] sm:$0xf]
      %v5088 = vld [vmem:[%s5067 + $0x78] sm:$0xf]
      %v5089 = vld [vmem:[%s5067 + $0x7c] sm:$0xf]
      %v5090 = vld [vmem:[%s5067 + $0x84] sm:$0xf]
      %v5091 = vld [vmem:[%s5067 + $0x88] sm:$0xf]
      %v5092 = vld [vmem:[%s5067 + $0x90] sm:$0xf]
      %v5093 = vld [vmem:[%s5067 + $0x94] sm:$0xf]
      %v5094 = vld [vmem:[%s5067 + $0x9c] sm:$0xf]
      %v5095 = vld [vmem:[%s5067 + $0xa0] sm:$0xf]
      %v5096 = vld [vmem:[%s5067 + $0xa8] sm:$0xf]
      %v5097 = vld [vmem:[%s5067 + $0xac] sm:$0xf]
      %v5098 = vld [vmem:[%s5067 + $0xb4] sm:$0xf]
      %v5099 = vld [vmem:[%s5067 + $0xb8] sm:$0xf]
      %5132 = vrot.lane.b32.xlu0 %v5068, 8
      %v5133 = vpop.permute.xlu0 %5132
      %5134 = vrot.lane.b32.xlu0 %v5069, 8
      %v5135 = vpop.permute.xlu0 %5134
      %5136 = vrot.lane.b32.xlu0 %v5070, 8
      %v5137 = vpop.permute.xlu0 %5136
      %5138 = vrot.lane.b32.xlu0 %v5071, 8
      %v5139 = vpop.permute.xlu0 %5138
      %5140 = vrot.lane.b32.xlu0 %v5072, 8
      %v5141 = vpop.permute.xlu0 %5140
      %5142 = vrot.lane.b32.xlu0 %v5073, 8
      %v5143 = vpop.permute.xlu0 %5142
      %5144 = vrot.lane.b32.xlu0 %v5074, 8
      %v5145 = vpop.permute.xlu0 %5144
      %5146 = vrot.lane.b32.xlu0 %v5075, 8
      %v5147 = vpop.permute.xlu0 %5146
      %5148 = vrot.lane.b32.xlu0 %v5076, 8
      %v5149 = vpop.permute.xlu0 %5148
      %5150 = vrot.lane.b32.xlu0 %v5077, 8
      %v5151 = vpop.permute.xlu0 %5150
      %5152 = vrot.lane.b32.xlu0 %v5078, 8
      %v5153 = vpop.permute.xlu0 %5152
      %5154 = vrot.lane.b32.xlu0 %v5079, 8
      %v5155 = vpop.permute.xlu0 %5154
      %5156 = vrot.lane.b32.xlu0 %v5080, 8
      %v5157 = vpop.permute.xlu0 %5156
      %5158 = vrot.lane.b32.xlu0 %v5081, 8
      %v5159 = vpop.permute.xlu0 %5158
      %5160 = vrot.lane.b32.xlu0 %v5082, 8
      %v5161 = vpop.permute.xlu0 %5160
      %5162 = vrot.lane.b32.xlu0 %v5083, 8
      %v5163 = vpop.permute.xlu0 %5162
      %5164 = vrot.lane.b32.xlu0 %v5084, 8
      %v5165 = vpop.permute.xlu0 %5164
      %5166 = vrot.lane.b32.xlu0 %v5085, 8
      %v5167 = vpop.permute.xlu0 %5166
      %5168 = vrot.lane.b32.xlu0 %v5086, 8
      %v5169 = vpop.permute.xlu0 %5168
      %5170 = vrot.lane.b32.xlu0 %v5087, 8
      %v5171 = vpop.permute.xlu0 %5170
      %5172 = vrot.lane.b32.xlu0 %v5088, 8
      %v5173 = vpop.permute.xlu0 %5172
      %5174 = vrot.lane.b32.xlu0 %v5089, 8
      %v5175 = vpop.permute.xlu0 %5174
      %5176 = vrot.lane.b32.xlu0 %v5090, 8
      %v5177 = vpop.permute.xlu0 %5176
      %5178 = vrot.lane.b32.xlu0 %v5091, 8
      %v5179 = vpop.permute.xlu0 %5178
      %5180 = vrot.lane.b32.xlu0 %v5092, 8
      %v5181 = vpop.permute.xlu0 %5180
      %5182 = vrot.lane.b32.xlu0 %v5093, 8
      %v5183 = vpop.permute.xlu0 %5182
      %5184 = vrot.lane.b32.xlu0 %v5094, 8
      %v5185 = vpop.permute.xlu0 %5184
      %5186 = vrot.lane.b32.xlu0 %v5095, 8
      %v5187 = vpop.permute.xlu0 %5186
      %5188 = vrot.lane.b32.xlu0 %v5096, 8
      %v5189 = vpop.permute.xlu0 %5188
      %5190 = vrot.lane.b32.xlu0 %v5097, 8
      %v5191 = vpop.permute.xlu0 %5190
      %5192 = vrot.lane.b32.xlu0 %v5098, 8
      %v5193 = vpop.permute.xlu0 %5192
      %5194 = vrot.lane.b32.xlu0 %v5099, 8
      %v5195 = vpop.permute.xlu0 %5194
      %5228 = vst.msk [vmem:[#allocation2] sm:$0xf] %vm1002, %v5133
      %5229 = vst.msk [vmem:[#allocation2 + $0x4] sm:$0xf] %vm1002, %v5135
      %5230 = vst.msk [vmem:[#allocation2 + $0x8] sm:$0xf] %vm1002, %v5137
      %5231 = vst.msk [vmem:[#allocation2 + $0xc] sm:$0xf] %vm1002, %v5139
      %5232 = vst.msk [vmem:[#allocation2 + $0x10] sm:$0xf] %vm1002, %v5141
      %5233 = vst.msk [vmem:[#allocation2 + $0x14] sm:$0xf] %vm1002, %v5143
      %5234 = vst.msk [vmem:[#allocation2 + $0x18] sm:$0xf] %vm1002, %v5145
      %5235 = vst.msk [vmem:[#allocation2 + $0x1c] sm:$0xf] %vm1002, %v5147
      %5236 = vst.msk [vmem:[#allocation2 + $0x20] sm:$0xf] %vm1002, %v5149
      %5237 = vst.msk [vmem:[#allocation2 + $0x24] sm:$0xf] %vm1002, %v5151
      %5238 = vst.msk [vmem:[#allocation2 + $0x28] sm:$0xf] %vm1002, %v5153
      %5239 = vst.msk [vmem:[#allocation2 + $0x2c] sm:$0xf] %vm1002, %v5155
      %5240 = vst.msk [vmem:[#allocation2 + $0x30] sm:$0xf] %vm1002, %v5157
      %5241 = vst.msk [vmem:[#allocation2 + $0x34] sm:$0xf] %vm1002, %v5159
      %5242 = vst.msk [vmem:[#allocation2 + $0x38] sm:$0xf] %vm1002, %v5161
      %5243 = vst.msk [vmem:[#allocation2 + $0x3c] sm:$0xf] %vm1002, %v5163
      %5244 = vst.msk [vmem:[#allocation2 + $0x40] sm:$0xf] %vm1002, %v5165
      %5245 = vst.msk [vmem:[#allocation2 + $0x44] sm:$0xf] %vm1002, %v5167
      %5246 = vst.msk [vmem:[#allocation2 + $0x48] sm:$0xf] %vm1002, %v5169
      %5247 = vst.msk [vmem:[#allocation2 + $0x4c] sm:$0xf] %vm1002, %v5171
      %5248 = vst.msk [vmem:[#allocation2 + $0x50] sm:$0xf] %vm1002, %v5173
      %5249 = vst.msk [vmem:[#allocation2 + $0x54] sm:$0xf] %vm1002, %v5175
      %5250 = vst.msk [vmem:[#allocation2 + $0x58] sm:$0xf] %vm1002, %v5177
      %5251 = vst.msk [vmem:[#allocation2 + $0x5c] sm:$0xf] %vm1002, %v5179
      %5252 = vst.msk [vmem:[#allocation2 + $0x60] sm:$0xf] %vm1002, %v5181
      %5253 = vst.msk [vmem:[#allocation2 + $0x64] sm:$0xf] %vm1002, %v5183
      %5254 = vst.msk [vmem:[#allocation2 + $0x68] sm:$0xf] %vm1002, %v5185
      %5255 = vst.msk [vmem:[#allocation2 + $0x6c] sm:$0xf] %vm1002, %v5187
      %5256 = vst.msk [vmem:[#allocation2 + $0x70] sm:$0xf] %vm1002, %v5189
      %5257 = vst.msk [vmem:[#allocation2 + $0x74] sm:$0xf] %vm1002, %v5191
      %5258 = vst.msk [vmem:[#allocation2 + $0x78] sm:$0xf] %vm1002, %v5193
      %5259 = vst.msk [vmem:[#allocation2 + $0x7c] sm:$0xf] %vm1002, %v5195
      %v5260 = vld [vmem:[%s5067] sm:$0xf]
      %v5261 = vld [vmem:[%s5067 + $0x4] sm:$0xf]
      %v5262 = vld [vmem:[%s5067 + $0x8] sm:$0x1]
      %v5263 = vld [vmem:[%s5067 + $0xc] sm:$0xf]
      %v5264 = vld [vmem:[%s5067 + $0x10] sm:$0xf]
      %v5265 = vld [vmem:[%s5067 + $0x14] sm:$0x1]
      %v5266 = vld [vmem:[%s5067 + $0x18] sm:$0xf]
      %v5267 = vld [vmem:[%s5067 + $0x1c] sm:$0xf]
      %v5268 = vld [vmem:[%s5067 + $0x20] sm:$0x1]
      %v5269 = vld [vmem:[%s5067 + $0x24] sm:$0xf]
      %v5270 = vld [vmem:[%s5067 + $0x28] sm:$0xf]
      %v5271 = vld [vmem:[%s5067 + $0x2c] sm:$0x1]
      %v5272 = vld [vmem:[%s5067 + $0x30] sm:$0xf]
      %v5273 = vld [vmem:[%s5067 + $0x34] sm:$0xf]
      %v5274 = vld [vmem:[%s5067 + $0x38] sm:$0x1]
      %v5275 = vld [vmem:[%s5067 + $0x3c] sm:$0xf]
      %v5276 = vld [vmem:[%s5067 + $0x40] sm:$0xf]
      %v5277 = vld [vmem:[%s5067 + $0x44] sm:$0x1]
      %v5278 = vld [vmem:[%s5067 + $0x48] sm:$0xf]
      %v5279 = vld [vmem:[%s5067 + $0x4c] sm:$0xf]
      %v5280 = vld [vmem:[%s5067 + $0x50] sm:$0x1]
      %v5281 = vld [vmem:[%s5067 + $0x54] sm:$0xf]
      %v5282 = vld [vmem:[%s5067 + $0x58] sm:$0xf]
      %v5283 = vld [vmem:[%s5067 + $0x5c] sm:$0x1]
      %v5284 = vld [vmem:[%s5067 + $0x60] sm:$0xf]
      %v5285 = vld [vmem:[%s5067 + $0x64] sm:$0xf]
      %v5286 = vld [vmem:[%s5067 + $0x68] sm:$0x1]
      %v5287 = vld [vmem:[%s5067 + $0x6c] sm:$0xf]
      %v5288 = vld [vmem:[%s5067 + $0x70] sm:$0xf]
      %v5289 = vld [vmem:[%s5067 + $0x74] sm:$0x1]
      %v5290 = vld [vmem:[%s5067 + $0x78] sm:$0xf]
      %v5291 = vld [vmem:[%s5067 + $0x7c] sm:$0xf]
      %v5292 = vld [vmem:[%s5067 + $0x80] sm:$0x1]
      %v5293 = vld [vmem:[%s5067 + $0x84] sm:$0xf]
      %v5294 = vld [vmem:[%s5067 + $0x88] sm:$0xf]
      %v5295 = vld [vmem:[%s5067 + $0x8c] sm:$0x1]
      %v5296 = vld [vmem:[%s5067 + $0x90] sm:$0xf]
      %v5297 = vld [vmem:[%s5067 + $0x94] sm:$0xf]
      %v5298 = vld [vmem:[%s5067 + $0x98] sm:$0x1]
      %v5299 = vld [vmem:[%s5067 + $0x9c] sm:$0xf]
      %v5300 = vld [vmem:[%s5067 + $0xa0] sm:$0xf]
      %v5301 = vld [vmem:[%s5067 + $0xa4] sm:$0x1]
      %v5302 = vld [vmem:[%s5067 + $0xa8] sm:$0xf]
      %v5303 = vld [vmem:[%s5067 + $0xac] sm:$0xf]
      %v5304 = vld [vmem:[%s5067 + $0xb0] sm:$0x1]
      %v5305 = vld [vmem:[%s5067 + $0xb4] sm:$0xf]
      %v5306 = vld [vmem:[%s5067 + $0xb8] sm:$0xf]
      %v5307 = vld [vmem:[%s5067 + $0xbc] sm:$0x1]
      %v5309 = vshrl.u32 %v5260, 16
      %v5311 = vrot.slane %v5309, 4
      %v5312 = vshll.u32 %v5260, 16
      %v5314 = vrot.slane %v5312, 5
      %v5315 = vor.u32 %v5311, %v5314
      %v5316 = vrot.slane %v5315, 4
      %v5318 = vshll.u32 %v5261, 16
      %v5320 = vrot.slane %v5318, 5
      %v5321 = vsel %vm327, %v5316, %v5320
      %v5322 = vshrl.u32 %v5261, 16
      %v5324 = vrot.slane %v5322, 4
      %v5325 = vor.u32 %v5324, %v5320
      %v5326 = vrot.slane %v5325, 4
      %v5328 = vshll.u32 %v5262, 16
      %v5330 = vrot.slane %v5328, 5
      %v5331 = vsel %vm327, %v5326, %v5330
      %v5333 = vshrl.u32 %v5263, 16
      %v5335 = vrot.slane %v5333, 4
      %v5336 = vshll.u32 %v5263, 16
      %v5338 = vrot.slane %v5336, 5
      %v5339 = vor.u32 %v5335, %v5338
      %v5340 = vrot.slane %v5339, 4
      %v5342 = vshll.u32 %v5264, 16
      %v5344 = vrot.slane %v5342, 5
      %v5345 = vsel %vm327, %v5340, %v5344
      %v5346 = vshrl.u32 %v5264, 16
      %v5348 = vrot.slane %v5346, 4
      %v5349 = vor.u32 %v5348, %v5344
      %v5350 = vrot.slane %v5349, 4
      %v5352 = vshll.u32 %v5265, 16
      %v5354 = vrot.slane %v5352, 5
      %v5355 = vsel %vm327, %v5350, %v5354
      %v5357 = vshrl.u32 %v5266, 16
      %v5359 = vrot.slane %v5357, 4
      %v5360 = vshll.u32 %v5266, 16
      %v5362 = vrot.slane %v5360, 5
      %v5363 = vor.u32 %v5359, %v5362
      %v5364 = vrot.slane %v5363, 4
      %v5366 = vshll.u32 %v5267, 16
      %v5368 = vrot.slane %v5366, 5
      %v5369 = vsel %vm327, %v5364, %v5368
      %v5370 = vshrl.u32 %v5267, 16
      %v5372 = vrot.slane %v5370, 4
      %v5373 = vor.u32 %v5372, %v5368
      %v5374 = vrot.slane %v5373, 4
      %v5376 = vshll.u32 %v5268, 16
      %v5378 = vrot.slane %v5376, 5
      %v5379 = vsel %vm327, %v5374, %v5378
      %v5381 = vshrl.u32 %v5269, 16
      %v5383 = vrot.slane %v5381, 4
      %v5384 = vshll.u32 %v5269, 16
      %v5386 = vrot.slane %v5384, 5
      %v5387 = vor.u32 %v5383, %v5386
      %v5388 = vrot.slane %v5387, 4
      %v5390 = vshll.u32 %v5270, 16
      %v5392 = vrot.slane %v5390, 5
      %v5393 = vsel %vm327, %v5388, %v5392
      %v5394 = vshrl.u32 %v5270, 16
      %v5396 = vrot.slane %v5394, 4
      %v5397 = vor.u32 %v5396, %v5392
      %v5398 = vrot.slane %v5397, 4
      %v5400 = vshll.u32 %v5271, 16
      %v5402 = vrot.slane %v5400, 5
      %v5403 = vsel %vm327, %v5398, %v5402
      %v5405 = vshrl.u32 %v5272, 16
      %v5407 = vrot.slane %v5405, 4
      %v5408 = vshll.u32 %v5272, 16
      %v5410 = vrot.slane %v5408, 5
      %v5411 = vor.u32 %v5407, %v5410
      %v5412 = vrot.slane %v5411, 4
      %v5414 = vshll.u32 %v5273, 16
      %v5416 = vrot.slane %v5414, 5
      %v5417 = vsel %vm327, %v5412, %v5416
      %v5418 = vshrl.u32 %v5273, 16
      %v5420 = vrot.slane %v5418, 4
      %v5421 = vor.u32 %v5420, %v5416
      %v5422 = vrot.slane %v5421, 4
      %v5424 = vshll.u32 %v5274, 16
      %v5426 = vrot.slane %v5424, 5
      %v5427 = vsel %vm327, %v5422, %v5426
      %v5429 = vshrl.u32 %v5275, 16
      %v5431 = vrot.slane %v5429, 4
      %v5432 = vshll.u32 %v5275, 16
      %v5434 = vrot.slane %v5432, 5
      %v5435 = vor.u32 %v5431, %v5434
      %v5436 = vrot.slane %v5435, 4
      %v5438 = vshll.u32 %v5276, 16
      %v5440 = vrot.slane %v5438, 5
      %v5441 = vsel %vm327, %v5436, %v5440
      %v5442 = vshrl.u32 %v5276, 16
      %v5444 = vrot.slane %v5442, 4
      %v5445 = vor.u32 %v5444, %v5440
      %v5446 = vrot.slane %v5445, 4
      %v5448 = vshll.u32 %v5277, 16
      %v5450 = vrot.slane %v5448, 5
      %v5451 = vsel %vm327, %v5446, %v5450
      %v5453 = vshrl.u32 %v5278, 16
      %v5455 = vrot.slane %v5453, 4
      %v5456 = vshll.u32 %v5278, 16
      %v5458 = vrot.slane %v5456, 5
      %v5459 = vor.u32 %v5455, %v5458
      %v5460 = vrot.slane %v5459, 4
      %v5462 = vshll.u32 %v5279, 16
      %v5464 = vrot.slane %v5462, 5
      %v5465 = vsel %vm327, %v5460, %v5464
      %v5466 = vshrl.u32 %v5279, 16
      %v5468 = vrot.slane %v5466, 4
      %v5469 = vor.u32 %v5468, %v5464
      %v5470 = vrot.slane %v5469, 4
      %v5472 = vshll.u32 %v5280, 16
      %v5474 = vrot.slane %v5472, 5
      %v5475 = vsel %vm327, %v5470, %v5474
      %v5477 = vshrl.u32 %v5281, 16
      %v5479 = vrot.slane %v5477, 4
      %v5480 = vshll.u32 %v5281, 16
      %v5482 = vrot.slane %v5480, 5
      %v5483 = vor.u32 %v5479, %v5482
      %v5484 = vrot.slane %v5483, 4
      %v5486 = vshll.u32 %v5282, 16
      %v5488 = vrot.slane %v5486, 5
      %v5489 = vsel %vm327, %v5484, %v5488
      %v5490 = vshrl.u32 %v5282, 16
      %v5492 = vrot.slane %v5490, 4
      %v5493 = vor.u32 %v5492, %v5488
      %v5494 = vrot.slane %v5493, 4
      %v5496 = vshll.u32 %v5283, 16
      %v5498 = vrot.slane %v5496, 5
      %v5499 = vsel %vm327, %v5494, %v5498
      %v5501 = vshrl.u32 %v5284, 16
      %v5503 = vrot.slane %v5501, 4
      %v5504 = vshll.u32 %v5284, 16
      %v5506 = vrot.slane %v5504, 5
      %v5507 = vor.u32 %v5503, %v5506
      %v5508 = vrot.slane %v5507, 4
      %v5510 = vshll.u32 %v5285, 16
      %v5512 = vrot.slane %v5510, 5
      %v5513 = vsel %vm327, %v5508, %v5512
      %v5514 = vshrl.u32 %v5285, 16
      %v5516 = vrot.slane %v5514, 4
      %v5517 = vor.u32 %v5516, %v5512
      %v5518 = vrot.slane %v5517, 4
      %v5520 = vshll.u32 %v5286, 16
      %v5522 = vrot.slane %v5520, 5
      %v5523 = vsel %vm327, %v5518, %v5522
      %v5525 = vshrl.u32 %v5287, 16
      %v5527 = vrot.slane %v5525, 4
      %v5528 = vshll.u32 %v5287, 16
      %v5530 = vrot.slane %v5528, 5
      %v5531 = vor.u32 %v5527, %v5530
      %v5532 = vrot.slane %v5531, 4
      %v5534 = vshll.u32 %v5288, 16
      %v5536 = vrot.slane %v5534, 5
      %v5537 = vsel %vm327, %v5532, %v5536
      %v5538 = vshrl.u32 %v5288, 16
      %v5540 = vrot.slane %v5538, 4
      %v5541 = vor.u32 %v5540, %v5536
      %v5542 = vrot.slane %v5541, 4
      %v5544 = vshll.u32 %v5289, 16
      %v5546 = vrot.slane %v5544, 5
      %v5547 = vsel %vm327, %v5542, %v5546
      %v5549 = vshrl.u32 %v5290, 16
      %v5551 = vrot.slane %v5549, 4
      %v5552 = vshll.u32 %v5290, 16
      %v5554 = vrot.slane %v5552, 5
      %v5555 = vor.u32 %v5551, %v5554
      %v5556 = vrot.slane %v5555, 4
      %v5558 = vshll.u32 %v5291, 16
      %v5560 = vrot.slane %v5558, 5
      %v5561 = vsel %vm327, %v5556, %v5560
      %v5562 = vshrl.u32 %v5291, 16
      %v5564 = vrot.slane %v5562, 4
      %v5565 = vor.u32 %v5564, %v5560
      %v5566 = vrot.slane %v5565, 4
      %v5568 = vshll.u32 %v5292, 16
      %v5570 = vrot.slane %v5568, 5
      %v5571 = vsel %vm327, %v5566, %v5570
      %v5573 = vshrl.u32 %v5293, 16
      %v5575 = vrot.slane %v5573, 4
      %v5576 = vshll.u32 %v5293, 16
      %v5578 = vrot.slane %v5576, 5
      %v5579 = vor.u32 %v5575, %v5578
      %v5580 = vrot.slane %v5579, 4
      %v5582 = vshll.u32 %v5294, 16
      %v5584 = vrot.slane %v5582, 5
      %v5585 = vsel %vm327, %v5580, %v5584
      %v5586 = vshrl.u32 %v5294, 16
      %v5588 = vrot.slane %v5586, 4
      %v5589 = vor.u32 %v5588, %v5584
      %v5590 = vrot.slane %v5589, 4
      %v5592 = vshll.u32 %v5295, 16
      %v5594 = vrot.slane %v5592, 5
      %v5595 = vsel %vm327, %v5590, %v5594
      %v5597 = vshrl.u32 %v5296, 16
      %v5599 = vrot.slane %v5597, 4
      %v5600 = vshll.u32 %v5296, 16
      %v5602 = vrot.slane %v5600, 5
      %v5603 = vor.u32 %v5599, %v5602
      %v5604 = vrot.slane %v5603, 4
      %v5606 = vshll.u32 %v5297, 16
      %v5608 = vrot.slane %v5606, 5
      %v5609 = vsel %vm327, %v5604, %v5608
      %v5610 = vshrl.u32 %v5297, 16
      %v5612 = vrot.slane %v5610, 4
      %v5613 = vor.u32 %v5612, %v5608
      %v5614 = vrot.slane %v5613, 4
      %v5616 = vshll.u32 %v5298, 16
      %v5618 = vrot.slane %v5616, 5
      %v5619 = vsel %vm327, %v5614, %v5618
      %v5621 = vshrl.u32 %v5299, 16
      %v5623 = vrot.slane %v5621, 4
      %v5624 = vshll.u32 %v5299, 16
      %v5626 = vrot.slane %v5624, 5
      %v5627 = vor.u32 %v5623, %v5626
      %v5628 = vrot.slane %v5627, 4
      %v5630 = vshll.u32 %v5300, 16
      %v5632 = vrot.slane %v5630, 5
      %v5633 = vsel %vm327, %v5628, %v5632
      %v5634 = vshrl.u32 %v5300, 16
      %v5636 = vrot.slane %v5634, 4
      %v5637 = vor.u32 %v5636, %v5632
      %v5638 = vrot.slane %v5637, 4
      %v5640 = vshll.u32 %v5301, 16
      %v5642 = vrot.slane %v5640, 5
      %v5643 = vsel %vm327, %v5638, %v5642
      %v5645 = vshrl.u32 %v5302, 16
      %v5647 = vrot.slane %v5645, 4
      %v5648 = vshll.u32 %v5302, 16
      %v5650 = vrot.slane %v5648, 5
      %v5651 = vor.u32 %v5647, %v5650
      %v5652 = vrot.slane %v5651, 4
      %v5654 = vshll.u32 %v5303, 16
      %v5656 = vrot.slane %v5654, 5
      %v5657 = vsel %vm327, %v5652, %v5656
      %v5658 = vshrl.u32 %v5303, 16
      %v5660 = vrot.slane %v5658, 4
      %v5661 = vor.u32 %v5660, %v5656
      %v5662 = vrot.slane %v5661, 4
      %v5664 = vshll.u32 %v5304, 16
      %v5666 = vrot.slane %v5664, 5
      %v5667 = vsel %vm327, %v5662, %v5666
      %v5669 = vshrl.u32 %v5305, 16
      %v5671 = vrot.slane %v5669, 4
      %v5672 = vshll.u32 %v5305, 16
      %v5674 = vrot.slane %v5672, 5
      %v5675 = vor.u32 %v5671, %v5674
      %v5676 = vrot.slane %v5675, 4
      %v5678 = vshll.u32 %v5306, 16
      %v5680 = vrot.slane %v5678, 5
      %v5681 = vsel %vm327, %v5676, %v5680
      %v5682 = vshrl.u32 %v5306, 16
      %v5684 = vrot.slane %v5682, 4
      %v5685 = vor.u32 %v5684, %v5680
      %v5686 = vrot.slane %v5685, 4
      %v5688 = vshll.u32 %v5307, 16
      %v5690 = vrot.slane %v5688, 5
      %v5691 = vsel %vm327, %v5686, %v5690
      %5692 = vrot.lane.b32.xlu0 %v5321, 12
      %v5693 = vpop.permute.xlu0 %5692
      %5694 = vrot.lane.b32.xlu0 %v5331, 12
      %v5695 = vpop.permute.xlu0 %5694
      %5696 = vrot.lane.b32.xlu0 %v5345, 12
      %v5697 = vpop.permute.xlu0 %5696
      %5698 = vrot.lane.b32.xlu0 %v5355, 12
      %v5699 = vpop.permute.xlu0 %5698
      %5700 = vrot.lane.b32.xlu0 %v5369, 12
      %v5701 = vpop.permute.xlu0 %5700
      %5702 = vrot.lane.b32.xlu0 %v5379, 12
      %v5703 = vpop.permute.xlu0 %5702
      %5704 = vrot.lane.b32.xlu0 %v5393, 12
      %v5705 = vpop.permute.xlu0 %5704
      %5706 = vrot.lane.b32.xlu0 %v5403, 12
      %v5707 = vpop.permute.xlu0 %5706
      %5708 = vrot.lane.b32.xlu0 %v5417, 12
      %v5709 = vpop.permute.xlu0 %5708
      %5710 = vrot.lane.b32.xlu0 %v5427, 12
      %v5711 = vpop.permute.xlu0 %5710
      %5712 = vrot.lane.b32.xlu0 %v5441, 12
      %v5713 = vpop.permute.xlu0 %5712
      %5714 = vrot.lane.b32.xlu0 %v5451, 12
      %v5715 = vpop.permute.xlu0 %5714
      %5716 = vrot.lane.b32.xlu0 %v5465, 12
      %v5717 = vpop.permute.xlu0 %5716
      %5718 = vrot.lane.b32.xlu0 %v5475, 12
      %v5719 = vpop.permute.xlu0 %5718
      %5720 = vrot.lane.b32.xlu0 %v5489, 12
      %v5721 = vpop.permute.xlu0 %5720
      %5722 = vrot.lane.b32.xlu0 %v5499, 12
      %v5723 = vpop.permute.xlu0 %5722
      %5724 = vrot.lane.b32.xlu0 %v5513, 12
      %v5725 = vpop.permute.xlu0 %5724
      %5726 = vrot.lane.b32.xlu0 %v5523, 12
      %v5727 = vpop.permute.xlu0 %5726
      %5728 = vrot.lane.b32.xlu0 %v5537, 12
      %v5729 = vpop.permute.xlu0 %5728
      %5730 = vrot.lane.b32.xlu0 %v5547, 12
      %v5731 = vpop.permute.xlu0 %5730
      %5732 = vrot.lane.b32.xlu0 %v5561, 12
      %v5733 = vpop.permute.xlu0 %5732
      %5734 = vrot.lane.b32.xlu0 %v5571, 12
      %v5735 = vpop.permute.xlu0 %5734
      %5736 = vrot.lane.b32.xlu0 %v5585, 12
      %v5737 = vpop.permute.xlu0 %5736
      %5738 = vrot.lane.b32.xlu0 %v5595, 12
      %v5739 = vpop.permute.xlu0 %5738
      %5740 = vrot.lane.b32.xlu0 %v5609, 12
      %v5741 = vpop.permute.xlu0 %5740
      %5742 = vrot.lane.b32.xlu0 %v5619, 12
      %v5743 = vpop.permute.xlu0 %5742
      %5744 = vrot.lane.b32.xlu0 %v5633, 12
      %v5745 = vpop.permute.xlu0 %5744
      %5746 = vrot.lane.b32.xlu0 %v5643, 12
      %v5747 = vpop.permute.xlu0 %5746
      %5748 = vrot.lane.b32.xlu0 %v5657, 12
      %v5749 = vpop.permute.xlu0 %5748
      %5750 = vrot.lane.b32.xlu0 %v5667, 12
      %v5751 = vpop.permute.xlu0 %5750
      %5752 = vrot.lane.b32.xlu0 %v5681, 12
      %v5753 = vpop.permute.xlu0 %5752
      %5754 = vrot.lane.b32.xlu0 %v5691, 12
      %v5755 = vpop.permute.xlu0 %5754
      %5788 = vst.msk [vmem:[#allocation2] sm:$0xf] %vm1563, %v5693
      %5789 = vst.msk [vmem:[#allocation2 + $0x4] sm:$0xf] %vm1563, %v5695
      %5790 = vst.msk [vmem:[#allocation2 + $0x8] sm:$0xf] %vm1563, %v5697
      %5791 = vst.msk [vmem:[#allocation2 + $0xc] sm:$0xf] %vm1563, %v5699
      %5792 = vst.msk [vmem:[#allocation2 + $0x10] sm:$0xf] %vm1563, %v5701
      %5793 = vst.msk [vmem:[#allocation2 + $0x14] sm:$0xf] %vm1563, %v5703
      %5794 = vst.msk [vmem:[#allocation2 + $0x18] sm:$0xf] %vm1563, %v5705
      %5795 = vst.msk [vmem:[#allocation2 + $0x1c] sm:$0xf] %vm1563, %v5707
      %5796 = vst.msk [vmem:[#allocation2 + $0x20] sm:$0xf] %vm1563, %v5709
      %5797 = vst.msk [vmem:[#allocation2 + $0x24] sm:$0xf] %vm1563, %v5711
      %5798 = vst.msk [vmem:[#allocation2 + $0x28] sm:$0xf] %vm1563, %v5713
      %5799 = vst.msk [vmem:[#allocation2 + $0x2c] sm:$0xf] %vm1563, %v5715
      %5800 = vst.msk [vmem:[#allocation2 + $0x30] sm:$0xf] %vm1563, %v5717
      %5801 = vst.msk [vmem:[#allocation2 + $0x34] sm:$0xf] %vm1563, %v5719
      %5802 = vst.msk [vmem:[#allocation2 + $0x38] sm:$0xf] %vm1563, %v5721
      %5803 = vst.msk [vmem:[#allocation2 + $0x3c] sm:$0xf] %vm1563, %v5723
      %5804 = vst.msk [vmem:[#allocation2 + $0x40] sm:$0xf] %vm1563, %v5725
      %5805 = vst.msk [vmem:[#allocation2 + $0x44] sm:$0xf] %vm1563, %v5727
      %5806 = vst.msk [vmem:[#allocation2 + $0x48] sm:$0xf] %vm1563, %v5729
      %5807 = vst.msk [vmem:[#allocation2 + $0x4c] sm:$0xf] %vm1563, %v5731
      %5808 = vst.msk [vmem:[#allocation2 + $0x50] sm:$0xf] %vm1563, %v5733
      %5809 = vst.msk [vmem:[#allocation2 + $0x54] sm:$0xf] %vm1563, %v5735
      %5810 = vst.msk [vmem:[#allocation2 + $0x58] sm:$0xf] %vm1563, %v5737
      %5811 = vst.msk [vmem:[#allocation2 + $0x5c] sm:$0xf] %vm1563, %v5739
      %5812 = vst.msk [vmem:[#allocation2 + $0x60] sm:$0xf] %vm1563, %v5741
      %5813 = vst.msk [vmem:[#allocation2 + $0x64] sm:$0xf] %vm1563, %v5743
      %5814 = vst.msk [vmem:[#allocation2 + $0x68] sm:$0xf] %vm1563, %v5745
      %5815 = vst.msk [vmem:[#allocation2 + $0x6c] sm:$0xf] %vm1563, %v5747
      %5816 = vst.msk [vmem:[#allocation2 + $0x70] sm:$0xf] %vm1563, %v5749
      %5817 = vst.msk [vmem:[#allocation2 + $0x74] sm:$0xf] %vm1563, %v5751
      %5818 = vst.msk [vmem:[#allocation2 + $0x78] sm:$0xf] %vm1563, %v5753
      %5819 = vst.msk [vmem:[#allocation2 + $0x7c] sm:$0xf] %vm1563, %v5755
      %v5820 = vld [vmem:[#allocation2] sm:$0xf]
      %v5821 = vld [vmem:[#allocation2 + $0x4] sm:$0xf]
      %v5822 = vld [vmem:[#allocation2 + $0x8] sm:$0xf]
      %v5823 = vld [vmem:[#allocation2 + $0xc] sm:$0xf]
      %v5824 = vld [vmem:[#allocation2 + $0x10] sm:$0xf]
      %v5825 = vld [vmem:[#allocation2 + $0x14] sm:$0xf]
      %v5826 = vld [vmem:[#allocation2 + $0x18] sm:$0xf]
      %v5827 = vld [vmem:[#allocation2 + $0x1c] sm:$0xf]
      %v5828 = vld [vmem:[#allocation2 + $0x20] sm:$0xf]
      %v5829 = vld [vmem:[#allocation2 + $0x24] sm:$0xf]
      %v5830 = vld [vmem:[#allocation2 + $0x28] sm:$0xf]
      %v5831 = vld [vmem:[#allocation2 + $0x2c] sm:$0xf]
      %v5832 = vld [vmem:[#allocation2 + $0x30] sm:$0xf]
      %v5833 = vld [vmem:[#allocation2 + $0x34] sm:$0xf]
      %v5834 = vld [vmem:[#allocation2 + $0x38] sm:$0xf]
      %v5835 = vld [vmem:[#allocation2 + $0x3c] sm:$0xf]
      %v5836 = vld [vmem:[#allocation2 + $0x40] sm:$0xf]
      %v5837 = vld [vmem:[#allocation2 + $0x44] sm:$0xf]
      %v5838 = vld [vmem:[#allocation2 + $0x48] sm:$0xf]
      %v5839 = vld [vmem:[#allocation2 + $0x4c] sm:$0xf]
      %v5840 = vld [vmem:[#allocation2 + $0x50] sm:$0xf]
      %v5841 = vld [vmem:[#allocation2 + $0x54] sm:$0xf]
      %v5842 = vld [vmem:[#allocation2 + $0x58] sm:$0xf]
      %v5843 = vld [vmem:[#allocation2 + $0x5c] sm:$0xf]
      %v5844 = vld [vmem:[#allocation2 + $0x60] sm:$0xf]
      %v5845 = vld [vmem:[#allocation2 + $0x64] sm:$0xf]
      %v5846 = vld [vmem:[#allocation2 + $0x68] sm:$0xf]
      %v5847 = vld [vmem:[#allocation2 + $0x6c] sm:$0xf]
      %v5848 = vld [vmem:[#allocation2 + $0x70] sm:$0xf]
      %v5849 = vld [vmem:[#allocation2 + $0x74] sm:$0xf]
      %v5850 = vld [vmem:[#allocation2 + $0x78] sm:$0xf]
      %v5851 = vld [vmem:[#allocation2 + $0x7c] sm:$0xf]
      %s5852 = scalar_lea.vmem %s1, 16
      %v5853 = vld [vmem:[%s5852] sm:$0xf]
      %v5854 = vld [vmem:[%s5852 + $0x4] sm:$0xf]
      %v5887 = vunpack.c.l.b16 %v5820
      %v5888 = vunpack.c.l.b16 %v5821
      %v5889 = vunpack.c.l.b16 %v5822
      %v5890 = vunpack.c.l.b16 %v5823
      %v5891 = vunpack.c.l.b16 %v5824
      %v5892 = vunpack.c.l.b16 %v5825
      %v5893 = vunpack.c.l.b16 %v5826
      %v5894 = vunpack.c.l.b16 %v5827
      %v5895 = vunpack.c.l.b16 %v5828
      %v5896 = vunpack.c.l.b16 %v5829
      %v5897 = vunpack.c.l.b16 %v5830
      %v5898 = vunpack.c.l.b16 %v5831
      %v5899 = vunpack.c.l.b16 %v5832
      %v5900 = vunpack.c.l.b16 %v5833
      %v5901 = vunpack.c.l.b16 %v5834
      %v5902 = vunpack.c.l.b16 %v5835
      %v5903 = vunpack.c.l.b16 %v5836
      %v5904 = vunpack.c.l.b16 %v5837
      %v5905 = vunpack.c.l.b16 %v5838
      %v5906 = vunpack.c.l.b16 %v5839
      %v5907 = vunpack.c.l.b16 %v5840
      %v5908 = vunpack.c.l.b16 %v5841
      %v5909 = vunpack.c.l.b16 %v5842
      %v5910 = vunpack.c.l.b16 %v5843
      %v5911 = vunpack.c.l.b16 %v5844
      %v5912 = vunpack.c.l.b16 %v5845
      %v5913 = vunpack.c.l.b16 %v5846
      %v5914 = vunpack.c.l.b16 %v5847
      %v5915 = vunpack.c.l.b16 %v5848
      %v5916 = vunpack.c.l.b16 %v5849
      %v5917 = vunpack.c.l.b16 %v5850
      %v5918 = vunpack.c.l.b16 %v5851
      %v5919 = vpack.c.b16 %v5888, %v5887
      %v5920 = vpack.c.b16 %v5890, %v5889
      %v5921 = vpack.c.b16 %v5892, %v5891
      %v5922 = vpack.c.b16 %v5894, %v5893
      %v5923 = vpack.c.b16 %v5896, %v5895
      %v5924 = vpack.c.b16 %v5898, %v5897
      %v5925 = vpack.c.b16 %v5900, %v5899
      %v5926 = vpack.c.b16 %v5902, %v5901
      %v5927 = vpack.c.b16 %v5904, %v5903
      %v5928 = vpack.c.b16 %v5906, %v5905
      %v5929 = vpack.c.b16 %v5908, %v5907
      %v5930 = vpack.c.b16 %v5910, %v5909
      %v5931 = vpack.c.b16 %v5912, %v5911
      %v5932 = vpack.c.b16 %v5914, %v5913
      %v5933 = vpack.c.b16 %v5916, %v5915
      %v5934 = vpack.c.b16 %v5918, %v5917
      %v5937 = vunpack.c.l.b16 %v5853
      %v5938 = vunpack.c.l.b16 %v5854
      %v5939 = vpack.c.b16 %v5938, %v5937
      %v5942 = vsel %vm1722, %v5919, 0
      %v5945 = vsel %vm1722, %v5920, 0
      %v5948 = vsel %vm1722, %v5921, 0
      %v5951 = vsel %vm1722, %v5922, 0
      %v5954 = vsel %vm1722, %v5923, 0
      %v5957 = vsel %vm1722, %v5924, 0
      %v5960 = vsel %vm1722, %v5925, 0
      %v5963 = vsel %vm1722, %v5926, 0
      %v5966 = vsel %vm1722, %v5927, 0
      %v5969 = vsel %vm1722, %v5928, 0
      %v5972 = vsel %vm1722, %v5929, 0
      %v5975 = vsel %vm1722, %v5930, 0
      %v5978 = vsel %vm1722, %v5931, 0
      %v5981 = vsel %vm1722, %v5932, 0
      %v5984 = vsel %vm1722, %v5933, 0
      %v5987 = vsel %vm1722, %v5934, 0
      %5989 = vmatprep.subr.bf16.mxu0 0
      %5990 = vmatpush1.bf16.msra.mxu0 0
      %5991 = vmatprep.subr.bf16.mxu0 0
      %5992 = vmatpush1.bf16.msra.mxu0 0
      %5993 = vmatprep.subr.bf16.mxu0 0
      %5994 = vmatpush1.bf16.msra.mxu0 0
      %5995 = vmatprep.subr.bf16.mxu0 0
      %5996 = vmatpush1.bf16.msra.mxu0 0
      %5997 = vmatprep.subr.bf16.mxu0 0
      %5998 = vmatpush1.bf16.msra.mxu0 0
      %5999 = vmatprep.subr.bf16.mxu0 0
      %6000 = vmatpush1.bf16.msra.mxu0 0
      %6001 = vmatprep.subr.bf16.mxu0 0
      %6002 = vmatpush1.bf16.msra.mxu0 0
      %6003 = vmatprep.subr.bf16.mxu0 0
      %6004 = vmatpush1.bf16.msra.mxu0 %v5939
      %6005 = vmatprep.subr.bf16.mxu0 0
      %6006 = vmatpush2.bf16.msra.mxu0 0
      %6007 = vmatprep.subr.bf16.mxu0 0
      %6008 = vmatpush2.bf16.msra.mxu0 0
      %6009 = vmatprep.subr.bf16.mxu0 0
      %6010 = vmatpush2.bf16.msra.mxu0 0
      %6011 = vmatprep.subr.bf16.mxu0 0
      %6012 = vmatpush2.bf16.msra.mxu0 0
      %6013 = vmatprep.subr.bf16.mxu0 0
      %6014 = vmatpush2.bf16.msra.mxu0 0
      %6015 = vmatprep.subr.bf16.mxu0 0
      %6016 = vmatpush2.bf16.msra.mxu0 0
      %6017 = vmatprep.subr.bf16.mxu0 0
      %6018 = vmatpush2.bf16.msra.mxu0 0
      %6019 = vmatprep.subr.bf16.mxu0 0
      %6020 = vmatpush2.bf16.msra.mxu0 0
      %6021 = vmatprep.mubr.bf16.mxu0 0
      %6022 = vmatmul.mubr.bf16.gmra.mxu0 %v5942
      %v6023 = vpop.f32.mrf.mxu0
      %v6024 = vadd.f32 %v1634, %v6023
      %v6025 = vpop.f32.mrf.mxu0
      %v6026 = vpop.f32.mrf.mxu0
      %v6027 = vadd.f32 %v1634, %v6026
      %v6028 = vpop.f32.mrf.mxu0
      %6029 = vmatprep.mubr.bf16.mxu0 0
      %6030 = vmatmul.mubr.bf16.gmra.mxu0 %v5945
      %v6031 = vpop.f32.mrf.mxu0
      %v6032 = vadd.f32 %v1634, %v6031
      %v6033 = vpop.f32.mrf.mxu0
      %v6034 = vpop.f32.mrf.mxu0
      %v6035 = vadd.f32 %v1634, %v6034
      %v6036 = vpop.f32.mrf.mxu0
      %6037 = vmatprep.mubr.bf16.mxu0 0
      %6038 = vmatmul.mubr.bf16.gmra.mxu0 %v5948
      %v6039 = vpop.f32.mrf.mxu0
      %v6040 = vadd.f32 %v1634, %v6039
      %v6041 = vpop.f32.mrf.mxu0
      %v6042 = vpop.f32.mrf.mxu0
      %v6043 = vadd.f32 %v1634, %v6042
      %v6044 = vpop.f32.mrf.mxu0
      %6045 = vmatprep.mubr.bf16.mxu0 0
      %6046 = vmatmul.mubr.bf16.gmra.mxu0 %v5951
      %v6047 = vpop.f32.mrf.mxu0
      %v6048 = vadd.f32 %v1634, %v6047
      %v6049 = vpop.f32.mrf.mxu0
      %v6050 = vpop.f32.mrf.mxu0
      %v6051 = vadd.f32 %v1634, %v6050
      %v6052 = vpop.f32.mrf.mxu0
      %6053 = vmatprep.mubr.bf16.mxu0 0
      %6054 = vmatmul.mubr.bf16.gmra.mxu0 %v5954
      %v6055 = vpop.f32.mrf.mxu0
      %v6056 = vadd.f32 %v1634, %v6055
      %v6057 = vpop.f32.mrf.mxu0
      %v6058 = vpop.f32.mrf.mxu0
      %v6059 = vadd.f32 %v1634, %v6058
      %v6060 = vpop.f32.mrf.mxu0
      %6061 = vmatprep.mubr.bf16.mxu0 0
      %6062 = vmatmul.mubr.bf16.gmra.mxu0 %v5957
      %v6063 = vpop.f32.mrf.mxu0
      %v6064 = vadd.f32 %v1634, %v6063
      %v6065 = vpop.f32.mrf.mxu0
      %v6066 = vpop.f32.mrf.mxu0
      %v6067 = vadd.f32 %v1634, %v6066
      %v6068 = vpop.f32.mrf.mxu0
      %6069 = vmatprep.mubr.bf16.mxu0 0
      %6070 = vmatmul.mubr.bf16.gmra.mxu0 %v5960
      %v6071 = vpop.f32.mrf.mxu0
      %v6072 = vadd.f32 %v1634, %v6071
      %v6073 = vpop.f32.mrf.mxu0
      %v6074 = vpop.f32.mrf.mxu0
      %v6075 = vadd.f32 %v1634, %v6074
      %v6076 = vpop.f32.mrf.mxu0
      %6077 = vmatprep.mubr.bf16.mxu0 0
      %6078 = vmatmul.mubr.bf16.gmra.mxu0 %v5963
      %v6079 = vpop.f32.mrf.mxu0
      %v6080 = vadd.f32 %v1634, %v6079
      %v6081 = vpop.f32.mrf.mxu0
      %v6082 = vpop.f32.mrf.mxu0
      %v6083 = vadd.f32 %v1634, %v6082
      %v6084 = vpop.f32.mrf.mxu0
      %6085 = vmatprep.mubr.bf16.mxu0 0
      %6086 = vmatmul.mubr.bf16.gmra.mxu0 %v5966
      %v6087 = vpop.f32.mrf.mxu0
      %v6088 = vadd.f32 %v1634, %v6087
      %v6089 = vpop.f32.mrf.mxu0
      %v6090 = vpop.f32.mrf.mxu0
      %v6091 = vadd.f32 %v1634, %v6090
      %v6092 = vpop.f32.mrf.mxu0
      %6093 = vmatprep.mubr.bf16.mxu0 0
      %6094 = vmatmul.mubr.bf16.gmra.mxu0 %v5969
      %v6095 = vpop.f32.mrf.mxu0
      %v6096 = vadd.f32 %v1634, %v6095
      %v6097 = vpop.f32.mrf.mxu0
      %v6098 = vpop.f32.mrf.mxu0
      %v6099 = vadd.f32 %v1634, %v6098
      %v6100 = vpop.f32.mrf.mxu0
      %6101 = vmatprep.mubr.bf16.mxu0 0
      %6102 = vmatmul.mubr.bf16.gmra.mxu0 %v5972
      %v6103 = vpop.f32.mrf.mxu0
      %v6104 = vadd.f32 %v1634, %v6103
      %v6105 = vpop.f32.mrf.mxu0
      %v6106 = vpop.f32.mrf.mxu0
      %v6107 = vadd.f32 %v1634, %v6106
      %v6108 = vpop.f32.mrf.mxu0
      %6109 = vmatprep.mubr.bf16.mxu0 0
      %6110 = vmatmul.mubr.bf16.gmra.mxu0 %v5975
      %v6111 = vpop.f32.mrf.mxu0
      %v6112 = vadd.f32 %v1634, %v6111
      %v6113 = vpop.f32.mrf.mxu0
      %v6114 = vpop.f32.mrf.mxu0
      %v6115 = vadd.f32 %v1634, %v6114
      %v6116 = vpop.f32.mrf.mxu0
      %6117 = vmatprep.mubr.bf16.mxu0 0
      %6118 = vmatmul.mubr.bf16.gmra.mxu0 %v5978
      %v6119 = vpop.f32.mrf.mxu0
      %v6120 = vadd.f32 %v1634, %v6119
      %v6121 = vpop.f32.mrf.mxu0
      %v6122 = vpop.f32.mrf.mxu0
      %v6123 = vadd.f32 %v1634, %v6122
      %v6124 = vpop.f32.mrf.mxu0
      %6125 = vmatprep.mubr.bf16.mxu0 0
      %6126 = vmatmul.mubr.bf16.gmra.mxu0 %v5981
      %v6127 = vpop.f32.mrf.mxu0
      %v6128 = vadd.f32 %v1634, %v6127
      %v6129 = vpop.f32.mrf.mxu0
      %v6130 = vpop.f32.mrf.mxu0
      %v6131 = vadd.f32 %v1634, %v6130
      %v6132 = vpop.f32.mrf.mxu0
      %6133 = vmatprep.mubr.bf16.mxu0 0
      %6134 = vmatmul.mubr.bf16.gmra.mxu0 %v5984
      %v6135 = vpop.f32.mrf.mxu0
      %v6136 = vadd.f32 %v1634, %v6135
      %v6137 = vpop.f32.mrf.mxu0
      %v6138 = vpop.f32.mrf.mxu0
      %v6139 = vadd.f32 %v1634, %v6138
      %v6140 = vpop.f32.mrf.mxu0
      %6141 = vmatprep.mubr.bf16.mxu0 0
      %6142 = vmatmul.mubr.bf16.gmra.mxu0 %v5987
      %v6143 = vpop.f32.mrf.mxu0
      %v6144 = vadd.f32 %v1634, %v6143
      %v6145 = vpop.f32.mrf.mxu0
      %v6146 = vpop.f32.mrf.mxu0
      %v6147 = vadd.f32 %v1634, %v6146
      %v6148 = vpop.f32.mrf.mxu0
      %6149 = vdwg.mxu0
      %v6150 = vmax.f32 %v6024, 0.0
      %v6151 = vmax.f32 %v6027, 0.0
      %v6152 = vmax.f32 %v6032, 0.0
      %v6153 = vmax.f32 %v6035, 0.0
      %v6154 = vmax.f32 %v6040, 0.0
      %v6155 = vmax.f32 %v6043, 0.0
      %v6156 = vmax.f32 %v6048, 0.0
      %v6157 = vmax.f32 %v6051, 0.0
      %v6158 = vmax.f32 %v6056, 0.0
      %v6159 = vmax.f32 %v6059, 0.0
      %v6160 = vmax.f32 %v6064, 0.0
      %v6161 = vmax.f32 %v6067, 0.0
      %v6162 = vmax.f32 %v6072, 0.0
      %v6163 = vmax.f32 %v6075, 0.0
      %v6164 = vmax.f32 %v6080, 0.0
      %v6165 = vmax.f32 %v6083, 0.0
      %v6166 = vmax.f32 %v6088, 0.0
      %v6167 = vmax.f32 %v6091, 0.0
      %v6168 = vmax.f32 %v6096, 0.0
      %v6169 = vmax.f32 %v6099, 0.0
      %v6170 = vmax.f32 %v6104, 0.0
      %v6171 = vmax.f32 %v6107, 0.0
      %v6172 = vmax.f32 %v6112, 0.0
      %v6173 = vmax.f32 %v6115, 0.0
      %v6174 = vmax.f32 %v6120, 0.0
      %v6175 = vmax.f32 %v6123, 0.0
      %v6176 = vmax.f32 %v6128, 0.0
      %v6177 = vmax.f32 %v6131, 0.0
      %v6178 = vmax.f32 %v6136, 0.0
      %v6179 = vmax.f32 %v6139, 0.0
      %v6180 = vmax.f32 %v6144, 0.0
      %v6181 = vmax.f32 %v6147, 0.0
      %v6182 = vpack.c.bf16 %v6151, %v6150
      %v6183 = vpack.c.bf16 %v6153, %v6152
      %v6184 = vpack.c.bf16 %v6155, %v6154
      %v6185 = vpack.c.bf16 %v6157, %v6156
      %v6186 = vpack.c.bf16 %v6159, %v6158
      %v6187 = vpack.c.bf16 %v6161, %v6160
      %v6188 = vpack.c.bf16 %v6163, %v6162
      %v6189 = vpack.c.bf16 %v6165, %v6164
      %v6190 = vpack.c.bf16 %v6167, %v6166
      %v6191 = vpack.c.bf16 %v6169, %v6168
      %v6192 = vpack.c.bf16 %v6171, %v6170
      %v6193 = vpack.c.bf16 %v6173, %v6172
      %v6194 = vpack.c.bf16 %v6175, %v6174
      %v6195 = vpack.c.bf16 %v6177, %v6176
      %v6196 = vpack.c.bf16 %v6179, %v6178
      %v6197 = vpack.c.bf16 %v6181, %v6180
      %v6214 = vunpack.c.l.b16 %v6182
      %v6215 = vunpack.c.h.b16 %v6182
      %v6216 = vunpack.c.l.b16 %v6183
      %v6217 = vunpack.c.h.b16 %v6183
      %v6218 = vunpack.c.l.b16 %v6184
      %v6219 = vunpack.c.h.b16 %v6184
      %v6220 = vunpack.c.l.b16 %v6185
      %v6221 = vunpack.c.h.b16 %v6185
      %v6222 = vunpack.c.l.b16 %v6186
      %v6223 = vunpack.c.h.b16 %v6186
      %v6224 = vunpack.c.l.b16 %v6187
      %v6225 = vunpack.c.h.b16 %v6187
      %v6226 = vunpack.c.l.b16 %v6188
      %v6227 = vunpack.c.h.b16 %v6188
      %v6228 = vunpack.c.l.b16 %v6189
      %v6229 = vunpack.c.h.b16 %v6189
      %v6230 = vunpack.c.l.b16 %v6190
      %v6231 = vunpack.c.h.b16 %v6190
      %v6232 = vunpack.c.l.b16 %v6191
      %v6233 = vunpack.c.h.b16 %v6191
      %v6234 = vunpack.c.l.b16 %v6192
      %v6235 = vunpack.c.h.b16 %v6192
      %v6236 = vunpack.c.l.b16 %v6193
      %v6237 = vunpack.c.h.b16 %v6193
      %v6238 = vunpack.c.l.b16 %v6194
      %v6239 = vunpack.c.h.b16 %v6194
      %v6240 = vunpack.c.l.b16 %v6195
      %v6241 = vunpack.c.h.b16 %v6195
      %v6242 = vunpack.c.l.b16 %v6196
      %v6243 = vunpack.c.h.b16 %v6196
      %v6244 = vunpack.c.l.b16 %v6197
      %v6245 = vunpack.c.h.b16 %v6197
      %v6246 = vpack.c.b16 %v6214, %v6214
      %v6247 = vpack.c.b16 %v6215, %v6215
      %v6248 = vpack.c.b16 %v6216, %v6216
      %v6249 = vpack.c.b16 %v6217, %v6217
      %v6250 = vpack.c.b16 %v6218, %v6218
      %v6251 = vpack.c.b16 %v6219, %v6219
      %v6252 = vpack.c.b16 %v6220, %v6220
      %v6253 = vpack.c.b16 %v6221, %v6221
      %v6254 = vpack.c.b16 %v6222, %v6222
      %v6255 = vpack.c.b16 %v6223, %v6223
      %v6256 = vpack.c.b16 %v6224, %v6224
      %v6257 = vpack.c.b16 %v6225, %v6225
      %v6258 = vpack.c.b16 %v6226, %v6226
      %v6259 = vpack.c.b16 %v6227, %v6227
      %v6260 = vpack.c.b16 %v6228, %v6228
      %v6261 = vpack.c.b16 %v6229, %v6229
      %v6262 = vpack.c.b16 %v6230, %v6230
      %v6263 = vpack.c.b16 %v6231, %v6231
      %v6264 = vpack.c.b16 %v6232, %v6232
      %v6265 = vpack.c.b16 %v6233, %v6233
      %v6266 = vpack.c.b16 %v6234, %v6234
      %v6267 = vpack.c.b16 %v6235, %v6235
      %v6268 = vpack.c.b16 %v6236, %v6236
      %v6269 = vpack.c.b16 %v6237, %v6237
      %v6270 = vpack.c.b16 %v6238, %v6238
      %v6271 = vpack.c.b16 %v6239, %v6239
      %v6272 = vpack.c.b16 %v6240, %v6240
      %v6273 = vpack.c.b16 %v6241, %v6241
      %v6274 = vpack.c.b16 %v6242, %v6242
      %v6275 = vpack.c.b16 %v6243, %v6243
      %v6276 = vpack.c.b16 %v6244, %v6244
      %v6277 = vpack.c.b16 %v6245, %v6245
      %6278 = vrot.lane.b32.xlu0 %v6246, 16
      %v6279 = vpop.permute.xlu0 %6278
      %6280 = vrot.lane.b32.xlu0 %v6247, 16
      %v6281 = vpop.permute.xlu0 %6280
      %6282 = vrot.lane.b32.xlu0 %v6248, 16
      %v6283 = vpop.permute.xlu0 %6282
      %6284 = vrot.lane.b32.xlu0 %v6249, 16
      %v6285 = vpop.permute.xlu0 %6284
      %6286 = vrot.lane.b32.xlu0 %v6250, 16
      %v6287 = vpop.permute.xlu0 %6286
      %6288 = vrot.lane.b32.xlu0 %v6251, 16
      %v6289 = vpop.permute.xlu0 %6288
      %6290 = vrot.lane.b32.xlu0 %v6252, 16
      %v6291 = vpop.permute.xlu0 %6290
      %6292 = vrot.lane.b32.xlu0 %v6253, 16
      %v6293 = vpop.permute.xlu0 %6292
      %6294 = vrot.lane.b32.xlu0 %v6254, 16
      %v6295 = vpop.permute.xlu0 %6294
      %6296 = vrot.lane.b32.xlu0 %v6255, 16
      %v6297 = vpop.permute.xlu0 %6296
      %6298 = vrot.lane.b32.xlu0 %v6256, 16
      %v6299 = vpop.permute.xlu0 %6298
      %6300 = vrot.lane.b32.xlu0 %v6257, 16
      %v6301 = vpop.permute.xlu0 %6300
      %6302 = vrot.lane.b32.xlu0 %v6258, 16
      %v6303 = vpop.permute.xlu0 %6302
      %6304 = vrot.lane.b32.xlu0 %v6259, 16
      %v6305 = vpop.permute.xlu0 %6304
      %6306 = vrot.lane.b32.xlu0 %v6260, 16
      %v6307 = vpop.permute.xlu0 %6306
      %6308 = vrot.lane.b32.xlu0 %v6261, 16
      %v6309 = vpop.permute.xlu0 %6308
      %6310 = vrot.lane.b32.xlu0 %v6262, 16
      %v6311 = vpop.permute.xlu0 %6310
      %6312 = vrot.lane.b32.xlu0 %v6263, 16
      %v6313 = vpop.permute.xlu0 %6312
      %6314 = vrot.lane.b32.xlu0 %v6264, 16
      %v6315 = vpop.permute.xlu0 %6314
      %6316 = vrot.lane.b32.xlu0 %v6265, 16
      %v6317 = vpop.permute.xlu0 %6316
      %6318 = vrot.lane.b32.xlu0 %v6266, 16
      %v6319 = vpop.permute.xlu0 %6318
      %6320 = vrot.lane.b32.xlu0 %v6267, 16
      %v6321 = vpop.permute.xlu0 %6320
      %6322 = vrot.lane.b32.xlu0 %v6268, 16
      %v6323 = vpop.permute.xlu0 %6322
      %6324 = vrot.lane.b32.xlu0 %v6269, 16
      %v6325 = vpop.permute.xlu0 %6324
      %6326 = vrot.lane.b32.xlu0 %v6270, 16
      %v6327 = vpop.permute.xlu0 %6326
      %6328 = vrot.lane.b32.xlu0 %v6271, 16
      %v6329 = vpop.permute.xlu0 %6328
      %6330 = vrot.lane.b32.xlu0 %v6272, 16
      %v6331 = vpop.permute.xlu0 %6330
      %6332 = vrot.lane.b32.xlu0 %v6273, 16
      %v6333 = vpop.permute.xlu0 %6332
      %6334 = vrot.lane.b32.xlu0 %v6274, 16
      %v6335 = vpop.permute.xlu0 %6334
      %6336 = vrot.lane.b32.xlu0 %v6275, 16
      %v6337 = vpop.permute.xlu0 %6336
      %6338 = vrot.lane.b32.xlu0 %v6276, 16
      %v6339 = vpop.permute.xlu0 %6338
      %6340 = vrot.lane.b32.xlu0 %v6277, 16
      %v6341 = vpop.permute.xlu0 %6340
      %vm6374 = vcmask 191616
      %6375 = vst.msk [vmem:[%s208] sm:$0xf] %vm6374, %v6279
      %6376 = vst.msk [vmem:[%s208 + $0x4] sm:$0xf] %vm6374, %v6281
      %6377 = vst.msk [vmem:[%s208 + $0x8] sm:$0xf] %vm6374, %v6283
      %6378 = vst.msk [vmem:[%s208 + $0xc] sm:$0xf] %vm6374, %v6285
      %6379 = vst.msk [vmem:[%s208 + $0x10] sm:$0xf] %vm6374, %v6287
      %6380 = vst.msk [vmem:[%s208 + $0x14] sm:$0xf] %vm6374, %v6289
      %6381 = vst.msk [vmem:[%s208 + $0x18] sm:$0xf] %vm6374, %v6291
      %6382 = vst.msk [vmem:[%s208 + $0x1c] sm:$0xf] %vm6374, %v6293
      %6383 = vst.msk [vmem:[%s208 + $0x20] sm:$0xf] %vm6374, %v6295
      %6384 = vst.msk [vmem:[%s208 + $0x24] sm:$0xf] %vm6374, %v6297
      %6385 = vst.msk [vmem:[%s208 + $0x28] sm:$0xf] %vm6374, %v6299
      %6386 = vst.msk [vmem:[%s208 + $0x2c] sm:$0xf] %vm6374, %v6301
      %6387 = vst.msk [vmem:[%s208 + $0x30] sm:$0xf] %vm6374, %v6303
      %6388 = vst.msk [vmem:[%s208 + $0x34] sm:$0xf] %vm6374, %v6305
      %6389 = vst.msk [vmem:[%s208 + $0x38] sm:$0xf] %vm6374, %v6307
      %6390 = vst.msk [vmem:[%s208 + $0x3c] sm:$0xf] %vm6374, %v6309
      %6391 = vst.msk [vmem:[%s208 + $0x40] sm:$0xf] %vm6374, %v6311
      %6392 = vst.msk [vmem:[%s208 + $0x44] sm:$0xf] %vm6374, %v6313
      %6393 = vst.msk [vmem:[%s208 + $0x48] sm:$0xf] %vm6374, %v6315
      %6394 = vst.msk [vmem:[%s208 + $0x4c] sm:$0xf] %vm6374, %v6317
      %6395 = vst.msk [vmem:[%s208 + $0x50] sm:$0xf] %vm6374, %v6319
      %6396 = vst.msk [vmem:[%s208 + $0x54] sm:$0xf] %vm6374, %v6321
      %6397 = vst.msk [vmem:[%s208 + $0x58] sm:$0xf] %vm6374, %v6323
      %6398 = vst.msk [vmem:[%s208 + $0x5c] sm:$0xf] %vm6374, %v6325
      %6399 = vst.msk [vmem:[%s208 + $0x60] sm:$0xf] %vm6374, %v6327
      %6400 = vst.msk [vmem:[%s208 + $0x64] sm:$0xf] %vm6374, %v6329
      %6401 = vst.msk [vmem:[%s208 + $0x68] sm:$0xf] %vm6374, %v6331
      %6402 = vst.msk [vmem:[%s208 + $0x6c] sm:$0xf] %vm6374, %v6333
      %6403 = vst.msk [vmem:[%s208 + $0x70] sm:$0xf] %vm6374, %v6335
      %6404 = vst.msk [vmem:[%s208 + $0x74] sm:$0xf] %vm6374, %v6337
      %6405 = vst.msk [vmem:[%s208 + $0x78] sm:$0xf] %vm6374, %v6339
      %6406 = vst.msk [vmem:[%s208 + $0x7c] sm:$0xf] %vm6374, %v6341
      %v6407 = vld [vmem:[%s841] sm:$0xf]
      %v6408 = vld [vmem:[%s841 + $0x4] sm:$0xf]
      %v6409 = vld [vmem:[%s841 + $0x8] sm:$0x1]
      %v6410 = vld [vmem:[%s841 + $0xc] sm:$0xf]
      %v6411 = vld [vmem:[%s841 + $0x10] sm:$0xf]
      %v6412 = vld [vmem:[%s841 + $0x14] sm:$0x1]
      %v6413 = vld [vmem:[%s841 + $0x18] sm:$0xf]
      %v6414 = vld [vmem:[%s841 + $0x1c] sm:$0xf]
      %v6415 = vld [vmem:[%s841 + $0x20] sm:$0x1]
      %v6416 = vld [vmem:[%s841 + $0x24] sm:$0xf]
      %v6417 = vld [vmem:[%s841 + $0x28] sm:$0xf]
      %v6418 = vld [vmem:[%s841 + $0x2c] sm:$0x1]
      %v6419 = vld [vmem:[%s841 + $0x30] sm:$0xf]
      %v6420 = vld [vmem:[%s841 + $0x34] sm:$0xf]
      %v6421 = vld [vmem:[%s841 + $0x38] sm:$0x1]
      %v6422 = vld [vmem:[%s841 + $0x3c] sm:$0xf]
      %v6423 = vld [vmem:[%s841 + $0x40] sm:$0xf]
      %v6424 = vld [vmem:[%s841 + $0x44] sm:$0x1]
      %v6425 = vld [vmem:[%s841 + $0x48] sm:$0xf]
      %v6426 = vld [vmem:[%s841 + $0x4c] sm:$0xf]
      %v6427 = vld [vmem:[%s841 + $0x50] sm:$0x1]
      %v6428 = vld [vmem:[%s841 + $0x54] sm:$0xf]
      %v6429 = vld [vmem:[%s841 + $0x58] sm:$0xf]
      %v6430 = vld [vmem:[%s841 + $0x5c] sm:$0x1]
      %v6431 = vld [vmem:[%s841 + $0x60] sm:$0xf]
      %v6432 = vld [vmem:[%s841 + $0x64] sm:$0xf]
      %v6433 = vld [vmem:[%s841 + $0x68] sm:$0x1]
      %v6434 = vld [vmem:[%s841 + $0x6c] sm:$0xf]
      %v6435 = vld [vmem:[%s841 + $0x70] sm:$0xf]
      %v6436 = vld [vmem:[%s841 + $0x74] sm:$0x1]
      %v6437 = vld [vmem:[%s841 + $0x78] sm:$0xf]
      %v6438 = vld [vmem:[%s841 + $0x7c] sm:$0xf]
      %v6439 = vld [vmem:[%s841 + $0x80] sm:$0x1]
      %v6440 = vld [vmem:[%s841 + $0x84] sm:$0xf]
      %v6441 = vld [vmem:[%s841 + $0x88] sm:$0xf]
      %v6442 = vld [vmem:[%s841 + $0x8c] sm:$0x1]
      %v6443 = vld [vmem:[%s841 + $0x90] sm:$0xf]
      %v6444 = vld [vmem:[%s841 + $0x94] sm:$0xf]
      %v6445 = vld [vmem:[%s841 + $0x98] sm:$0x1]
      %v6446 = vld [vmem:[%s841 + $0x9c] sm:$0xf]
      %v6447 = vld [vmem:[%s841 + $0xa0] sm:$0xf]
      %v6448 = vld [vmem:[%s841 + $0xa4] sm:$0x1]
      %v6449 = vld [vmem:[%s841 + $0xa8] sm:$0xf]
      %v6450 = vld [vmem:[%s841 + $0xac] sm:$0xf]
      %v6451 = vld [vmem:[%s841 + $0xb0] sm:$0x1]
      %v6452 = vld [vmem:[%s841 + $0xb4] sm:$0xf]
      %v6453 = vld [vmem:[%s841 + $0xb8] sm:$0xf]
      %v6454 = vld [vmem:[%s841 + $0xbc] sm:$0x1]
      %v6456 = vshrl.u32 %v6407, 16
      %v6458 = vrot.slane %v6456, 4
      %v6459 = vshll.u32 %v6407, 16
      %v6461 = vrot.slane %v6459, 5
      %v6462 = vor.u32 %v6458, %v6461
      %v6463 = vrot.slane %v6462, 4
      %v6465 = vshll.u32 %v6408, 16
      %v6467 = vrot.slane %v6465, 5
      %v6468 = vsel %vm327, %v6463, %v6467
      %v6469 = vshrl.u32 %v6408, 16
      %v6471 = vrot.slane %v6469, 4
      %v6472 = vor.u32 %v6471, %v6467
      %v6473 = vrot.slane %v6472, 4
      %v6475 = vshll.u32 %v6409, 16
      %v6477 = vrot.slane %v6475, 5
      %v6478 = vsel %vm327, %v6473, %v6477
      %v6480 = vshrl.u32 %v6410, 16
      %v6482 = vrot.slane %v6480, 4
      %v6483 = vshll.u32 %v6410, 16
      %v6485 = vrot.slane %v6483, 5
      %v6486 = vor.u32 %v6482, %v6485
      %v6487 = vrot.slane %v6486, 4
      %v6489 = vshll.u32 %v6411, 16
      %v6491 = vrot.slane %v6489, 5
      %v6492 = vsel %vm327, %v6487, %v6491
      %v6493 = vshrl.u32 %v6411, 16
      %v6495 = vrot.slane %v6493, 4
      %v6496 = vor.u32 %v6495, %v6491
      %v6497 = vrot.slane %v6496, 4
      %v6499 = vshll.u32 %v6412, 16
      %v6501 = vrot.slane %v6499, 5
      %v6502 = vsel %vm327, %v6497, %v6501
      %v6504 = vshrl.u32 %v6413, 16
      %v6506 = vrot.slane %v6504, 4
      %v6507 = vshll.u32 %v6413, 16
      %v6509 = vrot.slane %v6507, 5
      %v6510 = vor.u32 %v6506, %v6509
      %v6511 = vrot.slane %v6510, 4
      %v6513 = vshll.u32 %v6414, 16
      %v6515 = vrot.slane %v6513, 5
      %v6516 = vsel %vm327, %v6511, %v6515
      %v6517 = vshrl.u32 %v6414, 16
      %v6519 = vrot.slane %v6517, 4
      %v6520 = vor.u32 %v6519, %v6515
      %v6521 = vrot.slane %v6520, 4
      %v6523 = vshll.u32 %v6415, 16
      %v6525 = vrot.slane %v6523, 5
      %v6526 = vsel %vm327, %v6521, %v6525
      %v6528 = vshrl.u32 %v6416, 16
      %v6530 = vrot.slane %v6528, 4
      %v6531 = vshll.u32 %v6416, 16
      %v6533 = vrot.slane %v6531, 5
      %v6534 = vor.u32 %v6530, %v6533
      %v6535 = vrot.slane %v6534, 4
      %v6537 = vshll.u32 %v6417, 16
      %v6539 = vrot.slane %v6537, 5
      %v6540 = vsel %vm327, %v6535, %v6539
      %v6541 = vshrl.u32 %v6417, 16
      %v6543 = vrot.slane %v6541, 4
      %v6544 = vor.u32 %v6543, %v6539
      %v6545 = vrot.slane %v6544, 4
      %v6547 = vshll.u32 %v6418, 16
      %v6549 = vrot.slane %v6547, 5
      %v6550 = vsel %vm327, %v6545, %v6549
      %v6552 = vshrl.u32 %v6419, 16
      %v6554 = vrot.slane %v6552, 4
      %v6555 = vshll.u32 %v6419, 16
      %v6557 = vrot.slane %v6555, 5
      %v6558 = vor.u32 %v6554, %v6557
      %v6559 = vrot.slane %v6558, 4
      %v6561 = vshll.u32 %v6420, 16
      %v6563 = vrot.slane %v6561, 5
      %v6564 = vsel %vm327, %v6559, %v6563
      %v6565 = vshrl.u32 %v6420, 16
      %v6567 = vrot.slane %v6565, 4
      %v6568 = vor.u32 %v6567, %v6563
      %v6569 = vrot.slane %v6568, 4
      %v6571 = vshll.u32 %v6421, 16
      %v6573 = vrot.slane %v6571, 5
      %v6574 = vsel %vm327, %v6569, %v6573
      %v6576 = vshrl.u32 %v6422, 16
      %v6578 = vrot.slane %v6576, 4
      %v6579 = vshll.u32 %v6422, 16
      %v6581 = vrot.slane %v6579, 5
      %v6582 = vor.u32 %v6578, %v6581
      %v6583 = vrot.slane %v6582, 4
      %v6585 = vshll.u32 %v6423, 16
      %v6587 = vrot.slane %v6585, 5
      %v6588 = vsel %vm327, %v6583, %v6587
      %v6589 = vshrl.u32 %v6423, 16
      %v6591 = vrot.slane %v6589, 4
      %v6592 = vor.u32 %v6591, %v6587
      %v6593 = vrot.slane %v6592, 4
      %v6595 = vshll.u32 %v6424, 16
      %v6597 = vrot.slane %v6595, 5
      %v6598 = vsel %vm327, %v6593, %v6597
      %v6600 = vshrl.u32 %v6425, 16
      %v6602 = vrot.slane %v6600, 4
      %v6603 = vshll.u32 %v6425, 16
      %v6605 = vrot.slane %v6603, 5
      %v6606 = vor.u32 %v6602, %v6605
      %v6607 = vrot.slane %v6606, 4
      %v6609 = vshll.u32 %v6426, 16
      %v6611 = vrot.slane %v6609, 5
      %v6612 = vsel %vm327, %v6607, %v6611
      %v6613 = vshrl.u32 %v6426, 16
      %v6615 = vrot.slane %v6613, 4
      %v6616 = vor.u32 %v6615, %v6611
      %v6617 = vrot.slane %v6616, 4
      %v6619 = vshll.u32 %v6427, 16
      %v6621 = vrot.slane %v6619, 5
      %v6622 = vsel %vm327, %v6617, %v6621
      %v6624 = vshrl.u32 %v6428, 16
      %v6626 = vrot.slane %v6624, 4
      %v6627 = vshll.u32 %v6428, 16
      %v6629 = vrot.slane %v6627, 5
      %v6630 = vor.u32 %v6626, %v6629
      %v6631 = vrot.slane %v6630, 4
      %v6633 = vshll.u32 %v6429, 16
      %v6635 = vrot.slane %v6633, 5
      %v6636 = vsel %vm327, %v6631, %v6635
      %v6637 = vshrl.u32 %v6429, 16
      %v6639 = vrot.slane %v6637, 4
      %v6640 = vor.u32 %v6639, %v6635
      %v6641 = vrot.slane %v6640, 4
      %v6643 = vshll.u32 %v6430, 16
      %v6645 = vrot.slane %v6643, 5
      %v6646 = vsel %vm327, %v6641, %v6645
      %v6648 = vshrl.u32 %v6431, 16
      %v6650 = vrot.slane %v6648, 4
      %v6651 = vshll.u32 %v6431, 16
      %v6653 = vrot.slane %v6651, 5
      %v6654 = vor.u32 %v6650, %v6653
      %v6655 = vrot.slane %v6654, 4
      %v6657 = vshll.u32 %v6432, 16
      %v6659 = vrot.slane %v6657, 5
      %v6660 = vsel %vm327, %v6655, %v6659
      %v6661 = vshrl.u32 %v6432, 16
      %v6663 = vrot.slane %v6661, 4
      %v6664 = vor.u32 %v6663, %v6659
      %v6665 = vrot.slane %v6664, 4
      %v6667 = vshll.u32 %v6433, 16
      %v6669 = vrot.slane %v6667, 5
      %v6670 = vsel %vm327, %v6665, %v6669
      %v6672 = vshrl.u32 %v6434, 16
      %v6674 = vrot.slane %v6672, 4
      %v6675 = vshll.u32 %v6434, 16
      %v6677 = vrot.slane %v6675, 5
      %v6678 = vor.u32 %v6674, %v6677
      %v6679 = vrot.slane %v6678, 4
      %v6681 = vshll.u32 %v6435, 16
      %v6683 = vrot.slane %v6681, 5
      %v6684 = vsel %vm327, %v6679, %v6683
      %v6685 = vshrl.u32 %v6435, 16
      %v6687 = vrot.slane %v6685, 4
      %v6688 = vor.u32 %v6687, %v6683
      %v6689 = vrot.slane %v6688, 4
      %v6691 = vshll.u32 %v6436, 16
      %v6693 = vrot.slane %v6691, 5
      %v6694 = vsel %vm327, %v6689, %v6693
      %v6696 = vshrl.u32 %v6437, 16
      %v6698 = vrot.slane %v6696, 4
      %v6699 = vshll.u32 %v6437, 16
      %v6701 = vrot.slane %v6699, 5
      %v6702 = vor.u32 %v6698, %v6701
      %v6703 = vrot.slane %v6702, 4
      %v6705 = vshll.u32 %v6438, 16
      %v6707 = vrot.slane %v6705, 5
      %v6708 = vsel %vm327, %v6703, %v6707
      %v6709 = vshrl.u32 %v6438, 16
      %v6711 = vrot.slane %v6709, 4
      %v6712 = vor.u32 %v6711, %v6707
      %v6713 = vrot.slane %v6712, 4
      %v6715 = vshll.u32 %v6439, 16
      %v6717 = vrot.slane %v6715, 5
      %v6718 = vsel %vm327, %v6713, %v6717
      %v6720 = vshrl.u32 %v6440, 16
      %v6722 = vrot.slane %v6720, 4
      %v6723 = vshll.u32 %v6440, 16
      %v6725 = vrot.slane %v6723, 5
      %v6726 = vor.u32 %v6722, %v6725
      %v6727 = vrot.slane %v6726, 4
      %v6729 = vshll.u32 %v6441, 16
      %v6731 = vrot.slane %v6729, 5
      %v6732 = vsel %vm327, %v6727, %v6731
      %v6733 = vshrl.u32 %v6441, 16
      %v6735 = vrot.slane %v6733, 4
      %v6736 = vor.u32 %v6735, %v6731
      %v6737 = vrot.slane %v6736, 4
      %v6739 = vshll.u32 %v6442, 16
      %v6741 = vrot.slane %v6739, 5
      %v6742 = vsel %vm327, %v6737, %v6741
      %v6744 = vshrl.u32 %v6443, 16
      %v6746 = vrot.slane %v6744, 4
      %v6747 = vshll.u32 %v6443, 16
      %v6749 = vrot.slane %v6747, 5
      %v6750 = vor.u32 %v6746, %v6749
      %v6751 = vrot.slane %v6750, 4
      %v6753 = vshll.u32 %v6444, 16
      %v6755 = vrot.slane %v6753, 5
      %v6756 = vsel %vm327, %v6751, %v6755
      %v6757 = vshrl.u32 %v6444, 16
      %v6759 = vrot.slane %v6757, 4
      %v6760 = vor.u32 %v6759, %v6755
      %v6761 = vrot.slane %v6760, 4
      %v6763 = vshll.u32 %v6445, 16
      %v6765 = vrot.slane %v6763, 5
      %v6766 = vsel %vm327, %v6761, %v6765
      %v6768 = vshrl.u32 %v6446, 16
      %v6770 = vrot.slane %v6768, 4
      %v6771 = vshll.u32 %v6446, 16
      %v6773 = vrot.slane %v6771, 5
      %v6774 = vor.u32 %v6770, %v6773
      %v6775 = vrot.slane %v6774, 4
      %v6777 = vshll.u32 %v6447, 16
      %v6779 = vrot.slane %v6777, 5
      %v6780 = vsel %vm327, %v6775, %v6779
      %v6781 = vshrl.u32 %v6447, 16
      %v6783 = vrot.slane %v6781, 4
      %v6784 = vor.u32 %v6783, %v6779
      %v6785 = vrot.slane %v6784, 4
      %v6787 = vshll.u32 %v6448, 16
      %v6789 = vrot.slane %v6787, 5
      %v6790 = vsel %vm327, %v6785, %v6789
      %v6792 = vshrl.u32 %v6449, 16
      %v6794 = vrot.slane %v6792, 4
      %v6795 = vshll.u32 %v6449, 16
      %v6797 = vrot.slane %v6795, 5
      %v6798 = vor.u32 %v6794, %v6797
      %v6799 = vrot.slane %v6798, 4
      %v6801 = vshll.u32 %v6450, 16
      %v6803 = vrot.slane %v6801, 5
      %v6804 = vsel %vm327, %v6799, %v6803
      %v6805 = vshrl.u32 %v6450, 16
      %v6807 = vrot.slane %v6805, 4
      %v6808 = vor.u32 %v6807, %v6803
      %v6809 = vrot.slane %v6808, 4
      %v6811 = vshll.u32 %v6451, 16
      %v6813 = vrot.slane %v6811, 5
      %v6814 = vsel %vm327, %v6809, %v6813
      %v6816 = vshrl.u32 %v6452, 16
      %v6818 = vrot.slane %v6816, 4
      %v6819 = vshll.u32 %v6452, 16
      %v6821 = vrot.slane %v6819, 5
      %v6822 = vor.u32 %v6818, %v6821
      %v6823 = vrot.slane %v6822, 4
      %v6825 = vshll.u32 %v6453, 16
      %v6827 = vrot.slane %v6825, 5
      %v6828 = vsel %vm327, %v6823, %v6827
      %v6829 = vshrl.u32 %v6453, 16
      %v6831 = vrot.slane %v6829, 4
      %v6832 = vor.u32 %v6831, %v6827
      %v6833 = vrot.slane %v6832, 4
      %v6835 = vshll.u32 %v6454, 16
      %v6837 = vrot.slane %v6835, 5
      %v6838 = vsel %vm327, %v6833, %v6837
      %6871 = vst.msk [vmem:[#allocation2] sm:$0xf] %vm244, %v6468
      %6872 = vst.msk [vmem:[#allocation2 + $0x4] sm:$0xf] %vm244, %v6478
      %6873 = vst.msk [vmem:[#allocation2 + $0x8] sm:$0xf] %vm244, %v6492
      %6874 = vst.msk [vmem:[#allocation2 + $0xc] sm:$0xf] %vm244, %v6502
      %6875 = vst.msk [vmem:[#allocation2 + $0x10] sm:$0xf] %vm244, %v6516
      %6876 = vst.msk [vmem:[#allocation2 + $0x14] sm:$0xf] %vm244, %v6526
      %6877 = vst.msk [vmem:[#allocation2 + $0x18] sm:$0xf] %vm244, %v6540
      %6878 = vst.msk [vmem:[#allocation2 + $0x1c] sm:$0xf] %vm244, %v6550
      %6879 = vst.msk [vmem:[#allocation2 + $0x20] sm:$0xf] %vm244, %v6564
      %6880 = vst.msk [vmem:[#allocation2 + $0x24] sm:$0xf] %vm244, %v6574
      %6881 = vst.msk [vmem:[#allocation2 + $0x28] sm:$0xf] %vm244, %v6588
      %6882 = vst.msk [vmem:[#allocation2 + $0x2c] sm:$0xf] %vm244, %v6598
      %6883 = vst.msk [vmem:[#allocation2 + $0x30] sm:$0xf] %vm244, %v6612
      %6884 = vst.msk [vmem:[#allocation2 + $0x34] sm:$0xf] %vm244, %v6622
      %6885 = vst.msk [vmem:[#allocation2 + $0x38] sm:$0xf] %vm244, %v6636
      %6886 = vst.msk [vmem:[#allocation2 + $0x3c] sm:$0xf] %vm244, %v6646
      %6887 = vst.msk [vmem:[#allocation2 + $0x40] sm:$0xf] %vm244, %v6660
      %6888 = vst.msk [vmem:[#allocation2 + $0x44] sm:$0xf] %vm244, %v6670
      %6889 = vst.msk [vmem:[#allocation2 + $0x48] sm:$0xf] %vm244, %v6684
      %6890 = vst.msk [vmem:[#allocation2 + $0x4c] sm:$0xf] %vm244, %v6694
      %6891 = vst.msk [vmem:[#allocation2 + $0x50] sm:$0xf] %vm244, %v6708
      %6892 = vst.msk [vmem:[#allocation2 + $0x54] sm:$0xf] %vm244, %v6718
      %6893 = vst.msk [vmem:[#allocation2 + $0x58] sm:$0xf] %vm244, %v6732
      %6894 = vst.msk [vmem:[#allocation2 + $0x5c] sm:$0xf] %vm244, %v6742
      %6895 = vst.msk [vmem:[#allocation2 + $0x60] sm:$0xf] %vm244, %v6756
      %6896 = vst.msk [vmem:[#allocation2 + $0x64] sm:$0xf] %vm244, %v6766
      %6897 = vst.msk [vmem:[#allocation2 + $0x68] sm:$0xf] %vm244, %v6780
      %6898 = vst.msk [vmem:[#allocation2 + $0x6c] sm:$0xf] %vm244, %v6790
      %6899 = vst.msk [vmem:[#allocation2 + $0x70] sm:$0xf] %vm244, %v6804
      %6900 = vst.msk [vmem:[#allocation2 + $0x74] sm:$0xf] %vm244, %v6814
      %6901 = vst.msk [vmem:[#allocation2 + $0x78] sm:$0xf] %vm244, %v6828
      %6902 = vst.msk [vmem:[#allocation2 + $0x7c] sm:$0xf] %vm244, %v6838
      %v6903 = vld [vmem:[%s841] sm:$0xe]
      %v6904 = vld [vmem:[%s841 + $0x4] sm:$0xf]
      %v6905 = vld [vmem:[%s841 + $0x8] sm:$0x1]
      %v6906 = vld [vmem:[%s841 + $0xc] sm:$0xe]
      %v6907 = vld [vmem:[%s841 + $0x10] sm:$0xf]
      %v6908 = vld [vmem:[%s841 + $0x14] sm:$0x1]
      %v6909 = vld [vmem:[%s841 + $0x18] sm:$0xe]
      %v6910 = vld [vmem:[%s841 + $0x1c] sm:$0xf]
      %v6911 = vld [vmem:[%s841 + $0x20] sm:$0x1]
      %v6912 = vld [vmem:[%s841 + $0x24] sm:$0xe]
      %v6913 = vld [vmem:[%s841 + $0x28] sm:$0xf]
      %v6914 = vld [vmem:[%s841 + $0x2c] sm:$0x1]
      %v6915 = vld [vmem:[%s841 + $0x30] sm:$0xe]
      %v6916 = vld [vmem:[%s841 + $0x34] sm:$0xf]
      %v6917 = vld [vmem:[%s841 + $0x38] sm:$0x1]
      %v6918 = vld [vmem:[%s841 + $0x3c] sm:$0xe]
      %v6919 = vld [vmem:[%s841 + $0x40] sm:$0xf]
      %v6920 = vld [vmem:[%s841 + $0x44] sm:$0x1]
      %v6921 = vld [vmem:[%s841 + $0x48] sm:$0xe]
      %v6922 = vld [vmem:[%s841 + $0x4c] sm:$0xf]
      %v6923 = vld [vmem:[%s841 + $0x50] sm:$0x1]
      %v6924 = vld [vmem:[%s841 + $0x54] sm:$0xe]
      %v6925 = vld [vmem:[%s841 + $0x58] sm:$0xf]
      %v6926 = vld [vmem:[%s841 + $0x5c] sm:$0x1]
      %v6927 = vld [vmem:[%s841 + $0x60] sm:$0xe]
      %v6928 = vld [vmem:[%s841 + $0x64] sm:$0xf]
      %v6929 = vld [vmem:[%s841 + $0x68] sm:$0x1]
      %v6930 = vld [vmem:[%s841 + $0x6c] sm:$0xe]
      %v6931 = vld [vmem:[%s841 + $0x70] sm:$0xf]
      %v6932 = vld [vmem:[%s841 + $0x74] sm:$0x1]
      %v6933 = vld [vmem:[%s841 + $0x78] sm:$0xe]
      %v6934 = vld [vmem:[%s841 + $0x7c] sm:$0xf]
      %v6935 = vld [vmem:[%s841 + $0x80] sm:$0x1]
      %v6936 = vld [vmem:[%s841 + $0x84] sm:$0xe]
      %v6937 = vld [vmem:[%s841 + $0x88] sm:$0xf]
      %v6938 = vld [vmem:[%s841 + $0x8c] sm:$0x1]
      %v6939 = vld [vmem:[%s841 + $0x90] sm:$0xe]
      %v6940 = vld [vmem:[%s841 + $0x94] sm:$0xf]
      %v6941 = vld [vmem:[%s841 + $0x98] sm:$0x1]
      %v6942 = vld [vmem:[%s841 + $0x9c] sm:$0xe]
      %v6943 = vld [vmem:[%s841 + $0xa0] sm:$0xf]
      %v6944 = vld [vmem:[%s841 + $0xa4] sm:$0x1]
      %v6945 = vld [vmem:[%s841 + $0xa8] sm:$0xe]
      %v6946 = vld [vmem:[%s841 + $0xac] sm:$0xf]
      %v6947 = vld [vmem:[%s841 + $0xb0] sm:$0x1]
      %v6948 = vld [vmem:[%s841 + $0xb4] sm:$0xe]
      %v6949 = vld [vmem:[%s841 + $0xb8] sm:$0xf]
      %v6950 = vld [vmem:[%s841 + $0xbc] sm:$0x1]
      %v6999 = vrot.slane %v6903, 5
      %v7000 = vrot.slane %v6999, 4
      %v7001 = vrot.slane %v6904, 5
      %v7002 = vsel %vm2719, %v7000, %v7001
      %v7003 = vrot.slane %v7001, 4
      %v7004 = vrot.slane %v6905, 5
      %v7005 = vsel %vm2719, %v7003, %v7004
      %v7006 = vrot.slane %v6906, 5
      %v7007 = vrot.slane %v7006, 4
      %v7008 = vrot.slane %v6907, 5
      %v7009 = vsel %vm2719, %v7007, %v7008
      %v7010 = vrot.slane %v7008, 4
      %v7011 = vrot.slane %v6908, 5
      %v7012 = vsel %vm2719, %v7010, %v7011
      %v7013 = vrot.slane %v6909, 5
      %v7014 = vrot.slane %v7013, 4
      %v7015 = vrot.slane %v6910, 5
      %v7016 = vsel %vm2719, %v7014, %v7015
      %v7017 = vrot.slane %v7015, 4
      %v7018 = vrot.slane %v6911, 5
      %v7019 = vsel %vm2719, %v7017, %v7018
      %v7020 = vrot.slane %v6912, 5
      %v7021 = vrot.slane %v7020, 4
      %v7022 = vrot.slane %v6913, 5
      %v7023 = vsel %vm2719, %v7021, %v7022
      %v7024 = vrot.slane %v7022, 4
      %v7025 = vrot.slane %v6914, 5
      %v7026 = vsel %vm2719, %v7024, %v7025
      %v7027 = vrot.slane %v6915, 5
      %v7028 = vrot.slane %v7027, 4
      %v7029 = vrot.slane %v6916, 5
      %v7030 = vsel %vm2719, %v7028, %v7029
      %v7031 = vrot.slane %v7029, 4
      %v7032 = vrot.slane %v6917, 5
      %v7033 = vsel %vm2719, %v7031, %v7032
      %v7034 = vrot.slane %v6918, 5
      %v7035 = vrot.slane %v7034, 4
      %v7036 = vrot.slane %v6919, 5
      %v7037 = vsel %vm2719, %v7035, %v7036
      %v7038 = vrot.slane %v7036, 4
      %v7039 = vrot.slane %v6920, 5
      %v7040 = vsel %vm2719, %v7038, %v7039
      %v7041 = vrot.slane %v6921, 5
      %v7042 = vrot.slane %v7041, 4
      %v7043 = vrot.slane %v6922, 5
      %v7044 = vsel %vm2719, %v7042, %v7043
      %v7045 = vrot.slane %v7043, 4
      %v7046 = vrot.slane %v6923, 5
      %v7047 = vsel %vm2719, %v7045, %v7046
      %v7048 = vrot.slane %v6924, 5
      %v7049 = vrot.slane %v7048, 4
      %v7050 = vrot.slane %v6925, 5
      %v7051 = vsel %vm2719, %v7049, %v7050
      %v7052 = vrot.slane %v7050, 4
      %v7053 = vrot.slane %v6926, 5
      %v7054 = vsel %vm2719, %v7052, %v7053
      %v7055 = vrot.slane %v6927, 5
      %v7056 = vrot.slane %v7055, 4
      %v7057 = vrot.slane %v6928, 5
      %v7058 = vsel %vm2719, %v7056, %v7057
      %v7059 = vrot.slane %v7057, 4
      %v7060 = vrot.slane %v6929, 5
      %v7061 = vsel %vm2719, %v7059, %v7060
      %v7062 = vrot.slane %v6930, 5
      %v7063 = vrot.slane %v7062, 4
      %v7064 = vrot.slane %v6931, 5
      %v7065 = vsel %vm2719, %v7063, %v7064
      %v7066 = vrot.slane %v7064, 4
      %v7067 = vrot.slane %v6932, 5
      %v7068 = vsel %vm2719, %v7066, %v7067
      %v7069 = vrot.slane %v6933, 5
      %v7070 = vrot.slane %v7069, 4
      %v7071 = vrot.slane %v6934, 5
      %v7072 = vsel %vm2719, %v7070, %v7071
      %v7073 = vrot.slane %v7071, 4
      %v7074 = vrot.slane %v6935, 5
      %v7075 = vsel %vm2719, %v7073, %v7074
      %v7076 = vrot.slane %v6936, 5
      %v7077 = vrot.slane %v7076, 4
      %v7078 = vrot.slane %v6937, 5
      %v7079 = vsel %vm2719, %v7077, %v7078
      %v7080 = vrot.slane %v7078, 4
      %v7081 = vrot.slane %v6938, 5
      %v7082 = vsel %vm2719, %v7080, %v7081
      %v7083 = vrot.slane %v6939, 5
      %v7084 = vrot.slane %v7083, 4
      %v7085 = vrot.slane %v6940, 5
      %v7086 = vsel %vm2719, %v7084, %v7085
      %v7087 = vrot.slane %v7085, 4
      %v7088 = vrot.slane %v6941, 5
      %v7089 = vsel %vm2719, %v7087, %v7088
      %v7090 = vrot.slane %v6942, 5
      %v7091 = vrot.slane %v7090, 4
      %v7092 = vrot.slane %v6943, 5
      %v7093 = vsel %vm2719, %v7091, %v7092
      %v7094 = vrot.slane %v7092, 4
      %v7095 = vrot.slane %v6944, 5
      %v7096 = vsel %vm2719, %v7094, %v7095
      %v7097 = vrot.slane %v6945, 5
      %v7098 = vrot.slane %v7097, 4
      %v7099 = vrot.slane %v6946, 5
      %v7100 = vsel %vm2719, %v7098, %v7099
      %v7101 = vrot.slane %v7099, 4
      %v7102 = vrot.slane %v6947, 5
      %v7103 = vsel %vm2719, %v7101, %v7102
      %v7104 = vrot.slane %v6948, 5
      %v7105 = vrot.slane %v7104, 4
      %v7106 = vrot.slane %v6949, 5
      %v7107 = vsel %vm2719, %v7105, %v7106
      %v7108 = vrot.slane %v7106, 4
      %v7109 = vrot.slane %v6950, 5
      %v7110 = vsel %vm2719, %v7108, %v7109
      %7111 = vrot.lane.b32.xlu0 %v7002, 4
      %v7112 = vpop.permute.xlu0 %7111
      %7113 = vrot.lane.b32.xlu0 %v7005, 4
      %v7114 = vpop.permute.xlu0 %7113
      %7115 = vrot.lane.b32.xlu0 %v7009, 4
      %v7116 = vpop.permute.xlu0 %7115
      %7117 = vrot.lane.b32.xlu0 %v7012, 4
      %v7118 = vpop.permute.xlu0 %7117
      %7119 = vrot.lane.b32.xlu0 %v7016, 4
      %v7120 = vpop.permute.xlu0 %7119
      %7121 = vrot.lane.b32.xlu0 %v7019, 4
      %v7122 = vpop.permute.xlu0 %7121
      %7123 = vrot.lane.b32.xlu0 %v7023, 4
      %v7124 = vpop.permute.xlu0 %7123
      %7125 = vrot.lane.b32.xlu0 %v7026, 4
      %v7126 = vpop.permute.xlu0 %7125
      %7127 = vrot.lane.b32.xlu0 %v7030, 4
      %v7128 = vpop.permute.xlu0 %7127
      %7129 = vrot.lane.b32.xlu0 %v7033, 4
      %v7130 = vpop.permute.xlu0 %7129
      %7131 = vrot.lane.b32.xlu0 %v7037, 4
      %v7132 = vpop.permute.xlu0 %7131
      %7133 = vrot.lane.b32.xlu0 %v7040, 4
      %v7134 = vpop.permute.xlu0 %7133
      %7135 = vrot.lane.b32.xlu0 %v7044, 4
      %v7136 = vpop.permute.xlu0 %7135
      %7137 = vrot.lane.b32.xlu0 %v7047, 4
      %v7138 = vpop.permute.xlu0 %7137
      %7139 = vrot.lane.b32.xlu0 %v7051, 4
      %v7140 = vpop.permute.xlu0 %7139
      %7141 = vrot.lane.b32.xlu0 %v7054, 4
      %v7142 = vpop.permute.xlu0 %7141
      %7143 = vrot.lane.b32.xlu0 %v7058, 4
      %v7144 = vpop.permute.xlu0 %7143
      %7145 = vrot.lane.b32.xlu0 %v7061, 4
      %v7146 = vpop.permute.xlu0 %7145
      %7147 = vrot.lane.b32.xlu0 %v7065, 4
      %v7148 = vpop.permute.xlu0 %7147
      %7149 = vrot.lane.b32.xlu0 %v7068, 4
      %v7150 = vpop.permute.xlu0 %7149
      %7151 = vrot.lane.b32.xlu0 %v7072, 4
      %v7152 = vpop.permute.xlu0 %7151
      %7153 = vrot.lane.b32.xlu0 %v7075, 4
      %v7154 = vpop.permute.xlu0 %7153
      %7155 = vrot.lane.b32.xlu0 %v7079, 4
      %v7156 = vpop.permute.xlu0 %7155
      %7157 = vrot.lane.b32.xlu0 %v7082, 4
      %v7158 = vpop.permute.xlu0 %7157
      %7159 = vrot.lane.b32.xlu0 %v7086, 4
      %v7160 = vpop.permute.xlu0 %7159
      %7161 = vrot.lane.b32.xlu0 %v7089, 4
      %v7162 = vpop.permute.xlu0 %7161
      %7163 = vrot.lane.b32.xlu0 %v7093, 4
      %v7164 = vpop.permute.xlu0 %7163
      %7165 = vrot.lane.b32.xlu0 %v7096, 4
      %v7166 = vpop.permute.xlu0 %7165
      %7167 = vrot.lane.b32.xlu0 %v7100, 4
      %v7168 = vpop.permute.xlu0 %7167
      %7169 = vrot.lane.b32.xlu0 %v7103, 4
      %v7170 = vpop.permute.xlu0 %7169
      %7171 = vrot.lane.b32.xlu0 %v7107, 4
      %v7172 = vpop.permute.xlu0 %7171
      %7173 = vrot.lane.b32.xlu0 %v7110, 4
      %v7174 = vpop.permute.xlu0 %7173
      %7207 = vst.msk [vmem:[#allocation2] sm:$0xf] %vm808, %v7112
      %7208 = vst.msk [vmem:[#allocation2 + $0x4] sm:$0xf] %vm808, %v7114
      %7209 = vst.msk [vmem:[#allocation2 + $0x8] sm:$0xf] %vm808, %v7116
      %7210 = vst.msk [vmem:[#allocation2 + $0xc] sm:$0xf] %vm808, %v7118
      %7211 = vst.msk [vmem:[#allocation2 + $0x10] sm:$0xf] %vm808, %v7120
      %7212 = vst.msk [vmem:[#allocation2 + $0x14] sm:$0xf] %vm808, %v7122
      %7213 = vst.msk [vmem:[#allocation2 + $0x18] sm:$0xf] %vm808, %v7124
      %7214 = vst.msk [vmem:[#allocation2 + $0x1c] sm:$0xf] %vm808, %v7126
      %7215 = vst.msk [vmem:[#allocation2 + $0x20] sm:$0xf] %vm808, %v7128
      %7216 = vst.msk [vmem:[#allocation2 + $0x24] sm:$0xf] %vm808, %v7130
      %7217 = vst.msk [vmem:[#allocation2 + $0x28] sm:$0xf] %vm808, %v7132
      %7218 = vst.msk [vmem:[#allocation2 + $0x2c] sm:$0xf] %vm808, %v7134
      %7219 = vst.msk [vmem:[#allocation2 + $0x30] sm:$0xf] %vm808, %v7136
      %7220 = vst.msk [vmem:[#allocation2 + $0x34] sm:$0xf] %vm808, %v7138
      %7221 = vst.msk [vmem:[#allocation2 + $0x38] sm:$0xf] %vm808, %v7140
      %7222 = vst.msk [vmem:[#allocation2 + $0x3c] sm:$0xf] %vm808, %v7142
      %7223 = vst.msk [vmem:[#allocation2 + $0x40] sm:$0xf] %vm808, %v7144
      %7224 = vst.msk [vmem:[#allocation2 + $0x44] sm:$0xf] %vm808, %v7146
      %7225 = vst.msk [vmem:[#allocation2 + $0x48] sm:$0xf] %vm808, %v7148
      %7226 = vst.msk [vmem:[#allocation2 + $0x4c] sm:$0xf] %vm808, %v7150
      %7227 = vst.msk [vmem:[#allocation2 + $0x50] sm:$0xf] %vm808, %v7152
      %7228 = vst.msk [vmem:[#allocation2 + $0x54] sm:$0xf] %vm808, %v7154
      %7229 = vst.msk [vmem:[#allocation2 + $0x58] sm:$0xf] %vm808, %v7156
      %7230 = vst.msk [vmem:[#allocation2 + $0x5c] sm:$0xf] %vm808, %v7158
      %7231 = vst.msk [vmem:[#allocation2 + $0x60] sm:$0xf] %vm808, %v7160
      %7232 = vst.msk [vmem:[#allocation2 + $0x64] sm:$0xf] %vm808, %v7162
      %7233 = vst.msk [vmem:[#allocation2 + $0x68] sm:$0xf] %vm808, %v7164
      %7234 = vst.msk [vmem:[#allocation2 + $0x6c] sm:$0xf] %vm808, %v7166
      %7235 = vst.msk [vmem:[#allocation2 + $0x70] sm:$0xf] %vm808, %v7168
      %7236 = vst.msk [vmem:[#allocation2 + $0x74] sm:$0xf] %vm808, %v7170
      %7237 = vst.msk [vmem:[#allocation2 + $0x78] sm:$0xf] %vm808, %v7172
      %7238 = vst.msk [vmem:[#allocation2 + $0x7c] sm:$0xf] %vm808, %v7174
      %v7239 = vld [vmem:[%s5067] sm:$0xf]
      %v7240 = vld [vmem:[%s5067 + $0x4] sm:$0xf]
      %v7241 = vld [vmem:[%s5067 + $0x8] sm:$0x1]
      %v7242 = vld [vmem:[%s5067 + $0xc] sm:$0xf]
      %v7243 = vld [vmem:[%s5067 + $0x10] sm:$0xf]
      %v7244 = vld [vmem:[%s5067 + $0x14] sm:$0x1]
      %v7245 = vld [vmem:[%s5067 + $0x18] sm:$0xf]
      %v7246 = vld [vmem:[%s5067 + $0x1c] sm:$0xf]
      %v7247 = vld [vmem:[%s5067 + $0x20] sm:$0x1]
      %v7248 = vld [vmem:[%s5067 + $0x24] sm:$0xf]
      %v7249 = vld [vmem:[%s5067 + $0x28] sm:$0xf]
      %v7250 = vld [vmem:[%s5067 + $0x2c] sm:$0x1]
      %v7251 = vld [vmem:[%s5067 + $0x30] sm:$0xf]
      %v7252 = vld [vmem:[%s5067 + $0x34] sm:$0xf]
      %v7253 = vld [vmem:[%s5067 + $0x38] sm:$0x1]
      %v7254 = vld [vmem:[%s5067 + $0x3c] sm:$0xf]
      %v7255 = vld [vmem:[%s5067 + $0x40] sm:$0xf]
      %v7256 = vld [vmem:[%s5067 + $0x44] sm:$0x1]
      %v7257 = vld [vmem:[%s5067 + $0x48] sm:$0xf]
      %v7258 = vld [vmem:[%s5067 + $0x4c] sm:$0xf]
      %v7259 = vld [vmem:[%s5067 + $0x50] sm:$0x1]
      %v7260 = vld [vmem:[%s5067 + $0x54] sm:$0xf]
      %v7261 = vld [vmem:[%s5067 + $0x58] sm:$0xf]
      %v7262 = vld [vmem:[%s5067 + $0x5c] sm:$0x1]
      %v7263 = vld [vmem:[%s5067 + $0x60] sm:$0xf]
      %v7264 = vld [vmem:[%s5067 + $0x64] sm:$0xf]
      %v7265 = vld [vmem:[%s5067 + $0x68] sm:$0x1]
      %v7266 = vld [vmem:[%s5067 + $0x6c] sm:$0xf]
      %v7267 = vld [vmem:[%s5067 + $0x70] sm:$0xf]
      %v7268 = vld [vmem:[%s5067 + $0x74] sm:$0x1]
      %v7269 = vld [vmem:[%s5067 + $0x78] sm:$0xf]
      %v7270 = vld [vmem:[%s5067 + $0x7c] sm:$0xf]
      %v7271 = vld [vmem:[%s5067 + $0x80] sm:$0x1]
      %v7272 = vld [vmem:[%s5067 + $0x84] sm:$0xf]
      %v7273 = vld [vmem:[%s5067 + $0x88] sm:$0xf]
      %v7274 = vld [vmem:[%s5067 + $0x8c] sm:$0x1]
      %v7275 = vld [vmem:[%s5067 + $0x90] sm:$0xf]
      %v7276 = vld [vmem:[%s5067 + $0x94] sm:$0xf]
      %v7277 = vld [vmem:[%s5067 + $0x98] sm:$0x1]
      %v7278 = vld [vmem:[%s5067 + $0x9c] sm:$0xf]
      %v7279 = vld [vmem:[%s5067 + $0xa0] sm:$0xf]
      %v7280 = vld [vmem:[%s5067 + $0xa4] sm:$0x1]
      %v7281 = vld [vmem:[%s5067 + $0xa8] sm:$0xf]
      %v7282 = vld [vmem:[%s5067 + $0xac] sm:$0xf]
      %v7283 = vld [vmem:[%s5067 + $0xb0] sm:$0x1]
      %v7284 = vld [vmem:[%s5067 + $0xb4] sm:$0xf]
      %v7285 = vld [vmem:[%s5067 + $0xb8] sm:$0xf]
      %v7286 = vld [vmem:[%s5067 + $0xbc] sm:$0x1]
      %v7288 = vshrl.u32 %v7239, 16
      %v7290 = vrot.slane %v7288, 4
      %v7291 = vshll.u32 %v7239, 16
      %v7293 = vrot.slane %v7291, 5
      %v7294 = vor.u32 %v7290, %v7293
      %v7295 = vrot.slane %v7294, 4
      %v7297 = vshll.u32 %v7240, 16
      %v7299 = vrot.slane %v7297, 5
      %v7300 = vsel %vm327, %v7295, %v7299
      %v7301 = vshrl.u32 %v7240, 16
      %v7303 = vrot.slane %v7301, 4
      %v7304 = vor.u32 %v7303, %v7299
      %v7305 = vrot.slane %v7304, 4
      %v7307 = vshll.u32 %v7241, 16
      %v7309 = vrot.slane %v7307, 5
      %v7310 = vsel %vm327, %v7305, %v7309
      %v7312 = vshrl.u32 %v7242, 16
      %v7314 = vrot.slane %v7312, 4
      %v7315 = vshll.u32 %v7242, 16
      %v7317 = vrot.slane %v7315, 5
      %v7318 = vor.u32 %v7314, %v7317
      %v7319 = vrot.slane %v7318, 4
      %v7321 = vshll.u32 %v7243, 16
      %v7323 = vrot.slane %v7321, 5
      %v7324 = vsel %vm327, %v7319, %v7323
      %v7325 = vshrl.u32 %v7243, 16
      %v7327 = vrot.slane %v7325, 4
      %v7328 = vor.u32 %v7327, %v7323
      %v7329 = vrot.slane %v7328, 4
      %v7331 = vshll.u32 %v7244, 16
      %v7333 = vrot.slane %v7331, 5
      %v7334 = vsel %vm327, %v7329, %v7333
      %v7336 = vshrl.u32 %v7245, 16
      %v7338 = vrot.slane %v7336, 4
      %v7339 = vshll.u32 %v7245, 16
      %v7341 = vrot.slane %v7339, 5
      %v7342 = vor.u32 %v7338, %v7341
      %v7343 = vrot.slane %v7342, 4
      %v7345 = vshll.u32 %v7246, 16
      %v7347 = vrot.slane %v7345, 5
      %v7348 = vsel %vm327, %v7343, %v7347
      %v7349 = vshrl.u32 %v7246, 16
      %v7351 = vrot.slane %v7349, 4
      %v7352 = vor.u32 %v7351, %v7347
      %v7353 = vrot.slane %v7352, 4
      %v7355 = vshll.u32 %v7247, 16
      %v7357 = vrot.slane %v7355, 5
      %v7358 = vsel %vm327, %v7353, %v7357
      %v7360 = vshrl.u32 %v7248, 16
      %v7362 = vrot.slane %v7360, 4
      %v7363 = vshll.u32 %v7248, 16
      %v7365 = vrot.slane %v7363, 5
      %v7366 = vor.u32 %v7362, %v7365
      %v7367 = vrot.slane %v7366, 4
      %v7369 = vshll.u32 %v7249, 16
      %v7371 = vrot.slane %v7369, 5
      %v7372 = vsel %vm327, %v7367, %v7371
      %v7373 = vshrl.u32 %v7249, 16
      %v7375 = vrot.slane %v7373, 4
      %v7376 = vor.u32 %v7375, %v7371
      %v7377 = vrot.slane %v7376, 4
      %v7379 = vshll.u32 %v7250, 16
      %v7381 = vrot.slane %v7379, 5
      %v7382 = vsel %vm327, %v7377, %v7381
      %v7384 = vshrl.u32 %v7251, 16
      %v7386 = vrot.slane %v7384, 4
      %v7387 = vshll.u32 %v7251, 16
      %v7389 = vrot.slane %v7387, 5
      %v7390 = vor.u32 %v7386, %v7389
      %v7391 = vrot.slane %v7390, 4
      %v7393 = vshll.u32 %v7252, 16
      %v7395 = vrot.slane %v7393, 5
      %v7396 = vsel %vm327, %v7391, %v7395
      %v7397 = vshrl.u32 %v7252, 16
      %v7399 = vrot.slane %v7397, 4
      %v7400 = vor.u32 %v7399, %v7395
      %v7401 = vrot.slane %v7400, 4
      %v7403 = vshll.u32 %v7253, 16
      %v7405 = vrot.slane %v7403, 5
      %v7406 = vsel %vm327, %v7401, %v7405
      %v7408 = vshrl.u32 %v7254, 16
      %v7410 = vrot.slane %v7408, 4
      %v7411 = vshll.u32 %v7254, 16
      %v7413 = vrot.slane %v7411, 5
      %v7414 = vor.u32 %v7410, %v7413
      %v7415 = vrot.slane %v7414, 4
      %v7417 = vshll.u32 %v7255, 16
      %v7419 = vrot.slane %v7417, 5
      %v7420 = vsel %vm327, %v7415, %v7419
      %v7421 = vshrl.u32 %v7255, 16
      %v7423 = vrot.slane %v7421, 4
      %v7424 = vor.u32 %v7423, %v7419
      %v7425 = vrot.slane %v7424, 4
      %v7427 = vshll.u32 %v7256, 16
      %v7429 = vrot.slane %v7427, 5
      %v7430 = vsel %vm327, %v7425, %v7429
      %v7432 = vshrl.u32 %v7257, 16
      %v7434 = vrot.slane %v7432, 4
      %v7435 = vshll.u32 %v7257, 16
      %v7437 = vrot.slane %v7435, 5
      %v7438 = vor.u32 %v7434, %v7437
      %v7439 = vrot.slane %v7438, 4
      %v7441 = vshll.u32 %v7258, 16
      %v7443 = vrot.slane %v7441, 5
      %v7444 = vsel %vm327, %v7439, %v7443
      %v7445 = vshrl.u32 %v7258, 16
      %v7447 = vrot.slane %v7445, 4
      %v7448 = vor.u32 %v7447, %v7443
      %v7449 = vrot.slane %v7448, 4
      %v7451 = vshll.u32 %v7259, 16
      %v7453 = vrot.slane %v7451, 5
      %v7454 = vsel %vm327, %v7449, %v7453
      %v7456 = vshrl.u32 %v7260, 16
      %v7458 = vrot.slane %v7456, 4
      %v7459 = vshll.u32 %v7260, 16
      %v7461 = vrot.slane %v7459, 5
      %v7462 = vor.u32 %v7458, %v7461
      %v7463 = vrot.slane %v7462, 4
      %v7465 = vshll.u32 %v7261, 16
      %v7467 = vrot.slane %v7465, 5
      %v7468 = vsel %vm327, %v7463, %v7467
      %v7469 = vshrl.u32 %v7261, 16
      %v7471 = vrot.slane %v7469, 4
      %v7472 = vor.u32 %v7471, %v7467
      %v7473 = vrot.slane %v7472, 4
      %v7475 = vshll.u32 %v7262, 16
      %v7477 = vrot.slane %v7475, 5
      %v7478 = vsel %vm327, %v7473, %v7477
      %v7480 = vshrl.u32 %v7263, 16
      %v7482 = vrot.slane %v7480, 4
      %v7483 = vshll.u32 %v7263, 16
      %v7485 = vrot.slane %v7483, 5
      %v7486 = vor.u32 %v7482, %v7485
      %v7487 = vrot.slane %v7486, 4
      %v7489 = vshll.u32 %v7264, 16
      %v7491 = vrot.slane %v7489, 5
      %v7492 = vsel %vm327, %v7487, %v7491
      %v7493 = vshrl.u32 %v7264, 16
      %v7495 = vrot.slane %v7493, 4
      %v7496 = vor.u32 %v7495, %v7491
      %v7497 = vrot.slane %v7496, 4
      %v7499 = vshll.u32 %v7265, 16
      %v7501 = vrot.slane %v7499, 5
      %v7502 = vsel %vm327, %v7497, %v7501
      %v7504 = vshrl.u32 %v7266, 16
      %v7506 = vrot.slane %v7504, 4
      %v7507 = vshll.u32 %v7266, 16
      %v7509 = vrot.slane %v7507, 5
      %v7510 = vor.u32 %v7506, %v7509
      %v7511 = vrot.slane %v7510, 4
      %v7513 = vshll.u32 %v7267, 16
      %v7515 = vrot.slane %v7513, 5
      %v7516 = vsel %vm327, %v7511, %v7515
      %v7517 = vshrl.u32 %v7267, 16
      %v7519 = vrot.slane %v7517, 4
      %v7520 = vor.u32 %v7519, %v7515
      %v7521 = vrot.slane %v7520, 4
      %v7523 = vshll.u32 %v7268, 16
      %v7525 = vrot.slane %v7523, 5
      %v7526 = vsel %vm327, %v7521, %v7525
      %v7528 = vshrl.u32 %v7269, 16
      %v7530 = vrot.slane %v7528, 4
      %v7531 = vshll.u32 %v7269, 16
      %v7533 = vrot.slane %v7531, 5
      %v7534 = vor.u32 %v7530, %v7533
      %v7535 = vrot.slane %v7534, 4
      %v7537 = vshll.u32 %v7270, 16
      %v7539 = vrot.slane %v7537, 5
      %v7540 = vsel %vm327, %v7535, %v7539
      %v7541 = vshrl.u32 %v7270, 16
      %v7543 = vrot.slane %v7541, 4
      %v7544 = vor.u32 %v7543, %v7539
      %v7545 = vrot.slane %v7544, 4
      %v7547 = vshll.u32 %v7271, 16
      %v7549 = vrot.slane %v7547, 5
      %v7550 = vsel %vm327, %v7545, %v7549
      %v7552 = vshrl.u32 %v7272, 16
      %v7554 = vrot.slane %v7552, 4
      %v7555 = vshll.u32 %v7272, 16
      %v7557 = vrot.slane %v7555, 5
      %v7558 = vor.u32 %v7554, %v7557
      %v7559 = vrot.slane %v7558, 4
      %v7561 = vshll.u32 %v7273, 16
      %v7563 = vrot.slane %v7561, 5
      %v7564 = vsel %vm327, %v7559, %v7563
      %v7565 = vshrl.u32 %v7273, 16
      %v7567 = vrot.slane %v7565, 4
      %v7568 = vor.u32 %v7567, %v7563
      %v7569 = vrot.slane %v7568, 4
      %v7571 = vshll.u32 %v7274, 16
      %v7573 = vrot.slane %v7571, 5
      %v7574 = vsel %vm327, %v7569, %v7573
      %v7576 = vshrl.u32 %v7275, 16
      %v7578 = vrot.slane %v7576, 4
      %v7579 = vshll.u32 %v7275, 16
      %v7581 = vrot.slane %v7579, 5
      %v7582 = vor.u32 %v7578, %v7581
      %v7583 = vrot.slane %v7582, 4
      %v7585 = vshll.u32 %v7276, 16
      %v7587 = vrot.slane %v7585, 5
      %v7588 = vsel %vm327, %v7583, %v7587
      %v7589 = vshrl.u32 %v7276, 16
      %v7591 = vrot.slane %v7589, 4
      %v7592 = vor.u32 %v7591, %v7587
      %v7593 = vrot.slane %v7592, 4
      %v7595 = vshll.u32 %v7277, 16
      %v7597 = vrot.slane %v7595, 5
      %v7598 = vsel %vm327, %v7593, %v7597
      %v7600 = vshrl.u32 %v7278, 16
      %v7602 = vrot.slane %v7600, 4
      %v7603 = vshll.u32 %v7278, 16
      %v7605 = vrot.slane %v7603, 5
      %v7606 = vor.u32 %v7602, %v7605
      %v7607 = vrot.slane %v7606, 4
      %v7609 = vshll.u32 %v7279, 16
      %v7611 = vrot.slane %v7609, 5
      %v7612 = vsel %vm327, %v7607, %v7611
      %v7613 = vshrl.u32 %v7279, 16
      %v7615 = vrot.slane %v7613, 4
      %v7616 = vor.u32 %v7615, %v7611
      %v7617 = vrot.slane %v7616, 4
      %v7619 = vshll.u32 %v7280, 16
      %v7621 = vrot.slane %v7619, 5
      %v7622 = vsel %vm327, %v7617, %v7621
      %v7624 = vshrl.u32 %v7281, 16
      %v7626 = vrot.slane %v7624, 4
      %v7627 = vshll.u32 %v7281, 16
      %v7629 = vrot.slane %v7627, 5
      %v7630 = vor.u32 %v7626, %v7629
      %v7631 = vrot.slane %v7630, 4
      %v7633 = vshll.u32 %v7282, 16
      %v7635 = vrot.slane %v7633, 5
      %v7636 = vsel %vm327, %v7631, %v7635
      %v7637 = vshrl.u32 %v7282, 16
      %v7639 = vrot.slane %v7637, 4
      %v7640 = vor.u32 %v7639, %v7635
      %v7641 = vrot.slane %v7640, 4
      %v7643 = vshll.u32 %v7283, 16
      %v7645 = vrot.slane %v7643, 5
      %v7646 = vsel %vm327, %v7641, %v7645
      %v7648 = vshrl.u32 %v7284, 16
      %v7650 = vrot.slane %v7648, 4
      %v7651 = vshll.u32 %v7284, 16
      %v7653 = vrot.slane %v7651, 5
      %v7654 = vor.u32 %v7650, %v7653
      %v7655 = vrot.slane %v7654, 4
      %v7657 = vshll.u32 %v7285, 16
      %v7659 = vrot.slane %v7657, 5
      %v7660 = vsel %vm327, %v7655, %v7659
      %v7661 = vshrl.u32 %v7285, 16
      %v7663 = vrot.slane %v7661, 4
      %v7664 = vor.u32 %v7663, %v7659
      %v7665 = vrot.slane %v7664, 4
      %v7667 = vshll.u32 %v7286, 16
      %v7669 = vrot.slane %v7667, 5
      %v7670 = vsel %vm327, %v7665, %v7669
      %7671 = vrot.lane.b32.xlu0 %v7300, 8
      %v7672 = vpop.permute.xlu0 %7671
      %7673 = vrot.lane.b32.xlu0 %v7310, 8
      %v7674 = vpop.permute.xlu0 %7673
      %7675 = vrot.lane.b32.xlu0 %v7324, 8
      %v7676 = vpop.permute.xlu0 %7675
      %7677 = vrot.lane.b32.xlu0 %v7334, 8
      %v7678 = vpop.permute.xlu0 %7677
      %7679 = vrot.lane.b32.xlu0 %v7348, 8
      %v7680 = vpop.permute.xlu0 %7679
      %7681 = vrot.lane.b32.xlu0 %v7358, 8
      %v7682 = vpop.permute.xlu0 %7681
      %7683 = vrot.lane.b32.xlu0 %v7372, 8
      %v7684 = vpop.permute.xlu0 %7683
      %7685 = vrot.lane.b32.xlu0 %v7382, 8
      %v7686 = vpop.permute.xlu0 %7685
      %7687 = vrot.lane.b32.xlu0 %v7396, 8
      %v7688 = vpop.permute.xlu0 %7687
      %7689 = vrot.lane.b32.xlu0 %v7406, 8
      %v7690 = vpop.permute.xlu0 %7689
      %7691 = vrot.lane.b32.xlu0 %v7420, 8
      %v7692 = vpop.permute.xlu0 %7691
      %7693 = vrot.lane.b32.xlu0 %v7430, 8
      %v7694 = vpop.permute.xlu0 %7693
      %7695 = vrot.lane.b32.xlu0 %v7444, 8
      %v7696 = vpop.permute.xlu0 %7695
      %7697 = vrot.lane.b32.xlu0 %v7454, 8
      %v7698 = vpop.permute.xlu0 %7697
      %7699 = vrot.lane.b32.xlu0 %v7468, 8
      %v7700 = vpop.permute.xlu0 %7699
      %7701 = vrot.lane.b32.xlu0 %v7478, 8
      %v7702 = vpop.permute.xlu0 %7701
      %7703 = vrot.lane.b32.xlu0 %v7492, 8
      %v7704 = vpop.permute.xlu0 %7703
      %7705 = vrot.lane.b32.xlu0 %v7502, 8
      %v7706 = vpop.permute.xlu0 %7705
      %7707 = vrot.lane.b32.xlu0 %v7516, 8
      %v7708 = vpop.permute.xlu0 %7707
      %7709 = vrot.lane.b32.xlu0 %v7526, 8
      %v7710 = vpop.permute.xlu0 %7709
      %7711 = vrot.lane.b32.xlu0 %v7540, 8
      %v7712 = vpop.permute.xlu0 %7711
      %7713 = vrot.lane.b32.xlu0 %v7550, 8
      %v7714 = vpop.permute.xlu0 %7713
      %7715 = vrot.lane.b32.xlu0 %v7564, 8
      %v7716 = vpop.permute.xlu0 %7715
      %7717 = vrot.lane.b32.xlu0 %v7574, 8
      %v7718 = vpop.permute.xlu0 %7717
      %7719 = vrot.lane.b32.xlu0 %v7588, 8
      %v7720 = vpop.permute.xlu0 %7719
      %7721 = vrot.lane.b32.xlu0 %v7598, 8
      %v7722 = vpop.permute.xlu0 %7721
      %7723 = vrot.lane.b32.xlu0 %v7612, 8
      %v7724 = vpop.permute.xlu0 %7723
      %7725 = vrot.lane.b32.xlu0 %v7622, 8
      %v7726 = vpop.permute.xlu0 %7725
      %7727 = vrot.lane.b32.xlu0 %v7636, 8
      %v7728 = vpop.permute.xlu0 %7727
      %7729 = vrot.lane.b32.xlu0 %v7646, 8
      %v7730 = vpop.permute.xlu0 %7729
      %7731 = vrot.lane.b32.xlu0 %v7660, 8
      %v7732 = vpop.permute.xlu0 %7731
      %7733 = vrot.lane.b32.xlu0 %v7670, 8
      %v7734 = vpop.permute.xlu0 %7733
      %7767 = vst.msk [vmem:[#allocation2] sm:$0xf] %vm1002, %v7672
      %7768 = vst.msk [vmem:[#allocation2 + $0x4] sm:$0xf] %vm1002, %v7674
      %7769 = vst.msk [vmem:[#allocation2 + $0x8] sm:$0xf] %vm1002, %v7676
      %7770 = vst.msk [vmem:[#allocation2 + $0xc] sm:$0xf] %vm1002, %v7678
      %7771 = vst.msk [vmem:[#allocation2 + $0x10] sm:$0xf] %vm1002, %v7680
      %7772 = vst.msk [vmem:[#allocation2 + $0x14] sm:$0xf] %vm1002, %v7682
      %7773 = vst.msk [vmem:[#allocation2 + $0x18] sm:$0xf] %vm1002, %v7684
      %7774 = vst.msk [vmem:[#allocation2 + $0x1c] sm:$0xf] %vm1002, %v7686
      %7775 = vst.msk [vmem:[#allocation2 + $0x20] sm:$0xf] %vm1002, %v7688
      %7776 = vst.msk [vmem:[#allocation2 + $0x24] sm:$0xf] %vm1002, %v7690
      %7777 = vst.msk [vmem:[#allocation2 + $0x28] sm:$0xf] %vm1002, %v7692
      %7778 = vst.msk [vmem:[#allocation2 + $0x2c] sm:$0xf] %vm1002, %v7694
      %7779 = vst.msk [vmem:[#allocation2 + $0x30] sm:$0xf] %vm1002, %v7696
      %7780 = vst.msk [vmem:[#allocation2 + $0x34] sm:$0xf] %vm1002, %v7698
      %7781 = vst.msk [vmem:[#allocation2 + $0x38] sm:$0xf] %vm1002, %v7700
      %7782 = vst.msk [vmem:[#allocation2 + $0x3c] sm:$0xf] %vm1002, %v7702
      %7783 = vst.msk [vmem:[#allocation2 + $0x40] sm:$0xf] %vm1002, %v7704
      %7784 = vst.msk [vmem:[#allocation2 + $0x44] sm:$0xf] %vm1002, %v7706
      %7785 = vst.msk [vmem:[#allocation2 + $0x48] sm:$0xf] %vm1002, %v7708
      %7786 = vst.msk [vmem:[#allocation2 + $0x4c] sm:$0xf] %vm1002, %v7710
      %7787 = vst.msk [vmem:[#allocation2 + $0x50] sm:$0xf] %vm1002, %v7712
      %7788 = vst.msk [vmem:[#allocation2 + $0x54] sm:$0xf] %vm1002, %v7714
      %7789 = vst.msk [vmem:[#allocation2 + $0x58] sm:$0xf] %vm1002, %v7716
      %7790 = vst.msk [vmem:[#allocation2 + $0x5c] sm:$0xf] %vm1002, %v7718
      %7791 = vst.msk [vmem:[#allocation2 + $0x60] sm:$0xf] %vm1002, %v7720
      %7792 = vst.msk [vmem:[#allocation2 + $0x64] sm:$0xf] %vm1002, %v7722
      %7793 = vst.msk [vmem:[#allocation2 + $0x68] sm:$0xf] %vm1002, %v7724
      %7794 = vst.msk [vmem:[#allocation2 + $0x6c] sm:$0xf] %vm1002, %v7726
      %7795 = vst.msk [vmem:[#allocation2 + $0x70] sm:$0xf] %vm1002, %v7728
      %7796 = vst.msk [vmem:[#allocation2 + $0x74] sm:$0xf] %vm1002, %v7730
      %7797 = vst.msk [vmem:[#allocation2 + $0x78] sm:$0xf] %vm1002, %v7732
      %7798 = vst.msk [vmem:[#allocation2 + $0x7c] sm:$0xf] %vm1002, %v7734
      %v7799 = vld [vmem:[%s5067] sm:$0xe]
      %v7800 = vld [vmem:[%s5067 + $0x4] sm:$0xf]
      %v7801 = vld [vmem:[%s5067 + $0x8] sm:$0x1]
      %v7802 = vld [vmem:[%s5067 + $0xc] sm:$0xe]
      %v7803 = vld [vmem:[%s5067 + $0x10] sm:$0xf]
      %v7804 = vld [vmem:[%s5067 + $0x14] sm:$0x1]
      %v7805 = vld [vmem:[%s5067 + $0x18] sm:$0xe]
      %v7806 = vld [vmem:[%s5067 + $0x1c] sm:$0xf]
      %v7807 = vld [vmem:[%s5067 + $0x20] sm:$0x1]
      %v7808 = vld [vmem:[%s5067 + $0x24] sm:$0xe]
      %v7809 = vld [vmem:[%s5067 + $0x28] sm:$0xf]
      %v7810 = vld [vmem:[%s5067 + $0x2c] sm:$0x1]
      %v7811 = vld [vmem:[%s5067 + $0x30] sm:$0xe]
      %v7812 = vld [vmem:[%s5067 + $0x34] sm:$0xf]
      %v7813 = vld [vmem:[%s5067 + $0x38] sm:$0x1]
      %v7814 = vld [vmem:[%s5067 + $0x3c] sm:$0xe]
      %v7815 = vld [vmem:[%s5067 + $0x40] sm:$0xf]
      %v7816 = vld [vmem:[%s5067 + $0x44] sm:$0x1]
      %v7817 = vld [vmem:[%s5067 + $0x48] sm:$0xe]
      %v7818 = vld [vmem:[%s5067 + $0x4c] sm:$0xf]
      %v7819 = vld [vmem:[%s5067 + $0x50] sm:$0x1]
      %v7820 = vld [vmem:[%s5067 + $0x54] sm:$0xe]
      %v7821 = vld [vmem:[%s5067 + $0x58] sm:$0xf]
      %v7822 = vld [vmem:[%s5067 + $0x5c] sm:$0x1]
      %v7823 = vld [vmem:[%s5067 + $0x60] sm:$0xe]
      %v7824 = vld [vmem:[%s5067 + $0x64] sm:$0xf]
      %v7825 = vld [vmem:[%s5067 + $0x68] sm:$0x1]
      %v7826 = vld [vmem:[%s5067 + $0x6c] sm:$0xe]
      %v7827 = vld [vmem:[%s5067 + $0x70] sm:$0xf]
      %v7828 = vld [vmem:[%s5067 + $0x74] sm:$0x1]
      %v7829 = vld [vmem:[%s5067 + $0x78] sm:$0xe]
      %v7830 = vld [vmem:[%s5067 + $0x7c] sm:$0xf]
      %v7831 = vld [vmem:[%s5067 + $0x80] sm:$0x1]
      %v7832 = vld [vmem:[%s5067 + $0x84] sm:$0xe]
      %v7833 = vld [vmem:[%s5067 + $0x88] sm:$0xf]
      %v7834 = vld [vmem:[%s5067 + $0x8c] sm:$0x1]
      %v7835 = vld [vmem:[%s5067 + $0x90] sm:$0xe]
      %v7836 = vld [vmem:[%s5067 + $0x94] sm:$0xf]
      %v7837 = vld [vmem:[%s5067 + $0x98] sm:$0x1]
      %v7838 = vld [vmem:[%s5067 + $0x9c] sm:$0xe]
      %v7839 = vld [vmem:[%s5067 + $0xa0] sm:$0xf]
      %v7840 = vld [vmem:[%s5067 + $0xa4] sm:$0x1]
      %v7841 = vld [vmem:[%s5067 + $0xa8] sm:$0xe]
      %v7842 = vld [vmem:[%s5067 + $0xac] sm:$0xf]
      %v7843 = vld [vmem:[%s5067 + $0xb0] sm:$0x1]
      %v7844 = vld [vmem:[%s5067 + $0xb4] sm:$0xe]
      %v7845 = vld [vmem:[%s5067 + $0xb8] sm:$0xf]
      %v7846 = vld [vmem:[%s5067 + $0xbc] sm:$0x1]
      %v7895 = vrot.slane %v7799, 5
      %v7896 = vrot.slane %v7895, 4
      %v7897 = vrot.slane %v7800, 5
      %v7898 = vsel %vm2719, %v7896, %v7897
      %v7899 = vrot.slane %v7897, 4
      %v7900 = vrot.slane %v7801, 5
      %v7901 = vsel %vm2719, %v7899, %v7900
      %v7902 = vrot.slane %v7802, 5
      %v7903 = vrot.slane %v7902, 4
      %v7904 = vrot.slane %v7803, 5
      %v7905 = vsel %vm2719, %v7903, %v7904
      %v7906 = vrot.slane %v7904, 4
      %v7907 = vrot.slane %v7804, 5
      %v7908 = vsel %vm2719, %v7906, %v7907
      %v7909 = vrot.slane %v7805, 5
      %v7910 = vrot.slane %v7909, 4
      %v7911 = vrot.slane %v7806, 5
      %v7912 = vsel %vm2719, %v7910, %v7911
      %v7913 = vrot.slane %v7911, 4
      %v7914 = vrot.slane %v7807, 5
      %v7915 = vsel %vm2719, %v7913, %v7914
      %v7916 = vrot.slane %v7808, 5
      %v7917 = vrot.slane %v7916, 4
      %v7918 = vrot.slane %v7809, 5
      %v7919 = vsel %vm2719, %v7917, %v7918
      %v7920 = vrot.slane %v7918, 4
      %v7921 = vrot.slane %v7810, 5
      %v7922 = vsel %vm2719, %v7920, %v7921
      %v7923 = vrot.slane %v7811, 5
      %v7924 = vrot.slane %v7923, 4
      %v7925 = vrot.slane %v7812, 5
      %v7926 = vsel %vm2719, %v7924, %v7925
      %v7927 = vrot.slane %v7925, 4
      %v7928 = vrot.slane %v7813, 5
      %v7929 = vsel %vm2719, %v7927, %v7928
      %v7930 = vrot.slane %v7814, 5
      %v7931 = vrot.slane %v7930, 4
      %v7932 = vrot.slane %v7815, 5
      %v7933 = vsel %vm2719, %v7931, %v7932
      %v7934 = vrot.slane %v7932, 4
      %v7935 = vrot.slane %v7816, 5
      %v7936 = vsel %vm2719, %v7934, %v7935
      %v7937 = vrot.slane %v7817, 5
      %v7938 = vrot.slane %v7937, 4
      %v7939 = vrot.slane %v7818, 5
      %v7940 = vsel %vm2719, %v7938, %v7939
      %v7941 = vrot.slane %v7939, 4
      %v7942 = vrot.slane %v7819, 5
      %v7943 = vsel %vm2719, %v7941, %v7942
      %v7944 = vrot.slane %v7820, 5
      %v7945 = vrot.slane %v7944, 4
      %v7946 = vrot.slane %v7821, 5
      %v7947 = vsel %vm2719, %v7945, %v7946
      %v7948 = vrot.slane %v7946, 4
      %v7949 = vrot.slane %v7822, 5
      %v7950 = vsel %vm2719, %v7948, %v7949
      %v7951 = vrot.slane %v7823, 5
      %v7952 = vrot.slane %v7951, 4
      %v7953 = vrot.slane %v7824, 5
      %v7954 = vsel %vm2719, %v7952, %v7953
      %v7955 = vrot.slane %v7953, 4
      %v7956 = vrot.slane %v7825, 5
      %v7957 = vsel %vm2719, %v7955, %v7956
      %v7958 = vrot.slane %v7826, 5
      %v7959 = vrot.slane %v7958, 4
      %v7960 = vrot.slane %v7827, 5
      %v7961 = vsel %vm2719, %v7959, %v7960
      %v7962 = vrot.slane %v7960, 4
      %v7963 = vrot.slane %v7828, 5
      %v7964 = vsel %vm2719, %v7962, %v7963
      %v7965 = vrot.slane %v7829, 5
      %v7966 = vrot.slane %v7965, 4
      %v7967 = vrot.slane %v7830, 5
      %v7968 = vsel %vm2719, %v7966, %v7967
      %v7969 = vrot.slane %v7967, 4
      %v7970 = vrot.slane %v7831, 5
      %v7971 = vsel %vm2719, %v7969, %v7970
      %v7972 = vrot.slane %v7832, 5
      %v7973 = vrot.slane %v7972, 4
      %v7974 = vrot.slane %v7833, 5
      %v7975 = vsel %vm2719, %v7973, %v7974
      %v7976 = vrot.slane %v7974, 4
      %v7977 = vrot.slane %v7834, 5
      %v7978 = vsel %vm2719, %v7976, %v7977
      %v7979 = vrot.slane %v7835, 5
      %v7980 = vrot.slane %v7979, 4
      %v7981 = vrot.slane %v7836, 5
      %v7982 = vsel %vm2719, %v7980, %v7981
      %v7983 = vrot.slane %v7981, 4
      %v7984 = vrot.slane %v7837, 5
      %v7985 = vsel %vm2719, %v7983, %v7984
      %v7986 = vrot.slane %v7838, 5
      %v7987 = vrot.slane %v7986, 4
      %v7988 = vrot.slane %v7839, 5
      %v7989 = vsel %vm2719, %v7987, %v7988
      %v7990 = vrot.slane %v7988, 4
      %v7991 = vrot.slane %v7840, 5
      %v7992 = vsel %vm2719, %v7990, %v7991
      %v7993 = vrot.slane %v7841, 5
      %v7994 = vrot.slane %v7993, 4
      %v7995 = vrot.slane %v7842, 5
      %v7996 = vsel %vm2719, %v7994, %v7995
      %v7997 = vrot.slane %v7995, 4
      %v7998 = vrot.slane %v7843, 5
      %v7999 = vsel %vm2719, %v7997, %v7998
      %v8000 = vrot.slane %v7844, 5
      %v8001 = vrot.slane %v8000, 4
      %v8002 = vrot.slane %v7845, 5
      %v8003 = vsel %vm2719, %v8001, %v8002
      %v8004 = vrot.slane %v8002, 4
      %v8005 = vrot.slane %v7846, 5
      %v8006 = vsel %vm2719, %v8004, %v8005
      %8007 = vrot.lane.b32.xlu0 %v7898, 12
      %v8008 = vpop.permute.xlu0 %8007
      %8009 = vrot.lane.b32.xlu0 %v7901, 12
      %v8010 = vpop.permute.xlu0 %8009
      %8011 = vrot.lane.b32.xlu0 %v7905, 12
      %v8012 = vpop.permute.xlu0 %8011
      %8013 = vrot.lane.b32.xlu0 %v7908, 12
      %v8014 = vpop.permute.xlu0 %8013
      %8015 = vrot.lane.b32.xlu0 %v7912, 12
      %v8016 = vpop.permute.xlu0 %8015
      %8017 = vrot.lane.b32.xlu0 %v7915, 12
      %v8018 = vpop.permute.xlu0 %8017
      %8019 = vrot.lane.b32.xlu0 %v7919, 12
      %v8020 = vpop.permute.xlu0 %8019
      %8021 = vrot.lane.b32.xlu0 %v7922, 12
      %v8022 = vpop.permute.xlu0 %8021
      %8023 = vrot.lane.b32.xlu0 %v7926, 12
      %v8024 = vpop.permute.xlu0 %8023
      %8025 = vrot.lane.b32.xlu0 %v7929, 12
      %v8026 = vpop.permute.xlu0 %8025
      %8027 = vrot.lane.b32.xlu0 %v7933, 12
      %v8028 = vpop.permute.xlu0 %8027
      %8029 = vrot.lane.b32.xlu0 %v7936, 12
      %v8030 = vpop.permute.xlu0 %8029
      %8031 = vrot.lane.b32.xlu0 %v7940, 12
      %v8032 = vpop.permute.xlu0 %8031
      %8033 = vrot.lane.b32.xlu0 %v7943, 12
      %v8034 = vpop.permute.xlu0 %8033
      %8035 = vrot.lane.b32.xlu0 %v7947, 12
      %v8036 = vpop.permute.xlu0 %8035
      %8037 = vrot.lane.b32.xlu0 %v7950, 12
      %v8038 = vpop.permute.xlu0 %8037
      %8039 = vrot.lane.b32.xlu0 %v7954, 12
      %v8040 = vpop.permute.xlu0 %8039
      %8041 = vrot.lane.b32.xlu0 %v7957, 12
      %v8042 = vpop.permute.xlu0 %8041
      %8043 = vrot.lane.b32.xlu0 %v7961, 12
      %v8044 = vpop.permute.xlu0 %8043
      %8045 = vrot.lane.b32.xlu0 %v7964, 12
      %v8046 = vpop.permute.xlu0 %8045
      %8047 = vrot.lane.b32.xlu0 %v7968, 12
      %v8048 = vpop.permute.xlu0 %8047
      %8049 = vrot.lane.b32.xlu0 %v7971, 12
      %v8050 = vpop.permute.xlu0 %8049
      %8051 = vrot.lane.b32.xlu0 %v7975, 12
      %v8052 = vpop.permute.xlu0 %8051
      %8053 = vrot.lane.b32.xlu0 %v7978, 12
      %v8054 = vpop.permute.xlu0 %8053
      %8055 = vrot.lane.b32.xlu0 %v7982, 12
      %v8056 = vpop.permute.xlu0 %8055
      %8057 = vrot.lane.b32.xlu0 %v7985, 12
      %v8058 = vpop.permute.xlu0 %8057
      %8059 = vrot.lane.b32.xlu0 %v7989, 12
      %v8060 = vpop.permute.xlu0 %8059
      %8061 = vrot.lane.b32.xlu0 %v7992, 12
      %v8062 = vpop.permute.xlu0 %8061
      %8063 = vrot.lane.b32.xlu0 %v7996, 12
      %v8064 = vpop.permute.xlu0 %8063
      %8065 = vrot.lane.b32.xlu0 %v7999, 12
      %v8066 = vpop.permute.xlu0 %8065
      %8067 = vrot.lane.b32.xlu0 %v8003, 12
      %v8068 = vpop.permute.xlu0 %8067
      %8069 = vrot.lane.b32.xlu0 %v8006, 12
      %v8070 = vpop.permute.xlu0 %8069
      %8103 = vst.msk [vmem:[#allocation2] sm:$0xf] %vm1563, %v8008
      %8104 = vst.msk [vmem:[#allocation2 + $0x4] sm:$0xf] %vm1563, %v8010
      %8105 = vst.msk [vmem:[#allocation2 + $0x8] sm:$0xf] %vm1563, %v8012
      %8106 = vst.msk [vmem:[#allocation2 + $0xc] sm:$0xf] %vm1563, %v8014
      %8107 = vst.msk [vmem:[#allocation2 + $0x10] sm:$0xf] %vm1563, %v8016
      %8108 = vst.msk [vmem:[#allocation2 + $0x14] sm:$0xf] %vm1563, %v8018
      %8109 = vst.msk [vmem:[#allocation2 + $0x18] sm:$0xf] %vm1563, %v8020
      %8110 = vst.msk [vmem:[#allocation2 + $0x1c] sm:$0xf] %vm1563, %v8022
      %8111 = vst.msk [vmem:[#allocation2 + $0x20] sm:$0xf] %vm1563, %v8024
      %8112 = vst.msk [vmem:[#allocation2 + $0x24] sm:$0xf] %vm1563, %v8026
      %8113 = vst.msk [vmem:[#allocation2 + $0x28] sm:$0xf] %vm1563, %v8028
      %8114 = vst.msk [vmem:[#allocation2 + $0x2c] sm:$0xf] %vm1563, %v8030
      %8115 = vst.msk [vmem:[#allocation2 + $0x30] sm:$0xf] %vm1563, %v8032
      %8116 = vst.msk [vmem:[#allocation2 + $0x34] sm:$0xf] %vm1563, %v8034
      %8117 = vst.msk [vmem:[#allocation2 + $0x38] sm:$0xf] %vm1563, %v8036
      %8118 = vst.msk [vmem:[#allocation2 + $0x3c] sm:$0xf] %vm1563, %v8038
      %8119 = vst.msk [vmem:[#allocation2 + $0x40] sm:$0xf] %vm1563, %v8040
      %8120 = vst.msk [vmem:[#allocation2 + $0x44] sm:$0xf] %vm1563, %v8042
      %8121 = vst.msk [vmem:[#allocation2 + $0x48] sm:$0xf] %vm1563, %v8044
      %8122 = vst.msk [vmem:[#allocation2 + $0x4c] sm:$0xf] %vm1563, %v8046
      %8123 = vst.msk [vmem:[#allocation2 + $0x50] sm:$0xf] %vm1563, %v8048
      %8124 = vst.msk [vmem:[#allocation2 + $0x54] sm:$0xf] %vm1563, %v8050
      %8125 = vst.msk [vmem:[#allocation2 + $0x58] sm:$0xf] %vm1563, %v8052
      %8126 = vst.msk [vmem:[#allocation2 + $0x5c] sm:$0xf] %vm1563, %v8054
      %8127 = vst.msk [vmem:[#allocation2 + $0x60] sm:$0xf] %vm1563, %v8056
      %8128 = vst.msk [vmem:[#allocation2 + $0x64] sm:$0xf] %vm1563, %v8058
      %8129 = vst.msk [vmem:[#allocation2 + $0x68] sm:$0xf] %vm1563, %v8060
      %8130 = vst.msk [vmem:[#allocation2 + $0x6c] sm:$0xf] %vm1563, %v8062
      %8131 = vst.msk [vmem:[#allocation2 + $0x70] sm:$0xf] %vm1563, %v8064
      %8132 = vst.msk [vmem:[#allocation2 + $0x74] sm:$0xf] %vm1563, %v8066
      %8133 = vst.msk [vmem:[#allocation2 + $0x78] sm:$0xf] %vm1563, %v8068
      %8134 = vst.msk [vmem:[#allocation2 + $0x7c] sm:$0xf] %vm1563, %v8070
      %v8135 = vld [vmem:[#allocation2] sm:$0xf]
      %v8136 = vld [vmem:[#allocation2 + $0x4] sm:$0xf]
      %v8137 = vld [vmem:[#allocation2 + $0x8] sm:$0xf]
      %v8138 = vld [vmem:[#allocation2 + $0xc] sm:$0xf]
      %v8139 = vld [vmem:[#allocation2 + $0x10] sm:$0xf]
      %v8140 = vld [vmem:[#allocation2 + $0x14] sm:$0xf]
      %v8141 = vld [vmem:[#allocation2 + $0x18] sm:$0xf]
      %v8142 = vld [vmem:[#allocation2 + $0x1c] sm:$0xf]
      %v8143 = vld [vmem:[#allocation2 + $0x20] sm:$0xf]
      %v8144 = vld [vmem:[#allocation2 + $0x24] sm:$0xf]
      %v8145 = vld [vmem:[#allocation2 + $0x28] sm:$0xf]
      %v8146 = vld [vmem:[#allocation2 + $0x2c] sm:$0xf]
      %v8147 = vld [vmem:[#allocation2 + $0x30] sm:$0xf]
      %v8148 = vld [vmem:[#allocation2 + $0x34] sm:$0xf]
      %v8149 = vld [vmem:[#allocation2 + $0x38] sm:$0xf]
      %v8150 = vld [vmem:[#allocation2 + $0x3c] sm:$0xf]
      %v8151 = vld [vmem:[#allocation2 + $0x40] sm:$0xf]
      %v8152 = vld [vmem:[#allocation2 + $0x44] sm:$0xf]
      %v8153 = vld [vmem:[#allocation2 + $0x48] sm:$0xf]
      %v8154 = vld [vmem:[#allocation2 + $0x4c] sm:$0xf]
      %v8155 = vld [vmem:[#allocation2 + $0x50] sm:$0xf]
      %v8156 = vld [vmem:[#allocation2 + $0x54] sm:$0xf]
      %v8157 = vld [vmem:[#allocation2 + $0x58] sm:$0xf]
      %v8158 = vld [vmem:[#allocation2 + $0x5c] sm:$0xf]
      %v8159 = vld [vmem:[#allocation2 + $0x60] sm:$0xf]
      %v8160 = vld [vmem:[#allocation2 + $0x64] sm:$0xf]
      %v8161 = vld [vmem:[#allocation2 + $0x68] sm:$0xf]
      %v8162 = vld [vmem:[#allocation2 + $0x6c] sm:$0xf]
      %v8163 = vld [vmem:[#allocation2 + $0x70] sm:$0xf]
      %v8164 = vld [vmem:[#allocation2 + $0x74] sm:$0xf]
      %v8165 = vld [vmem:[#allocation2 + $0x78] sm:$0xf]
      %v8166 = vld [vmem:[#allocation2 + $0x7c] sm:$0xf]
      %s8167 = scalar_lea.vmem %s1, 24
      %v8168 = vld [vmem:[%s8167] sm:$0xf]
      %v8169 = vld [vmem:[%s8167 + $0x4] sm:$0xf]
      %v8202 = vunpack.c.l.b16 %v8135
      %v8203 = vunpack.c.l.b16 %v8136
      %v8204 = vunpack.c.l.b16 %v8137
      %v8205 = vunpack.c.l.b16 %v8138
      %v8206 = vunpack.c.l.b16 %v8139
      %v8207 = vunpack.c.l.b16 %v8140
      %v8208 = vunpack.c.l.b16 %v8141
      %v8209 = vunpack.c.l.b16 %v8142
      %v8210 = vunpack.c.l.b16 %v8143
      %v8211 = vunpack.c.l.b16 %v8144
      %v8212 = vunpack.c.l.b16 %v8145
      %v8213 = vunpack.c.l.b16 %v8146
      %v8214 = vunpack.c.l.b16 %v8147
      %v8215 = vunpack.c.l.b16 %v8148
      %v8216 = vunpack.c.l.b16 %v8149
      %v8217 = vunpack.c.l.b16 %v8150
      %v8218 = vunpack.c.l.b16 %v8151
      %v8219 = vunpack.c.l.b16 %v8152
      %v8220 = vunpack.c.l.b16 %v8153
      %v8221 = vunpack.c.l.b16 %v8154
      %v8222 = vunpack.c.l.b16 %v8155
      %v8223 = vunpack.c.l.b16 %v8156
      %v8224 = vunpack.c.l.b16 %v8157
      %v8225 = vunpack.c.l.b16 %v8158
      %v8226 = vunpack.c.l.b16 %v8159
      %v8227 = vunpack.c.l.b16 %v8160
      %v8228 = vunpack.c.l.b16 %v8161
      %v8229 = vunpack.c.l.b16 %v8162
      %v8230 = vunpack.c.l.b16 %v8163
      %v8231 = vunpack.c.l.b16 %v8164
      %v8232 = vunpack.c.l.b16 %v8165
      %v8233 = vunpack.c.l.b16 %v8166
      %v8234 = vpack.c.b16 %v8203, %v8202
      %v8235 = vpack.c.b16 %v8205, %v8204
      %v8236 = vpack.c.b16 %v8207, %v8206
      %v8237 = vpack.c.b16 %v8209, %v8208
      %v8238 = vpack.c.b16 %v8211, %v8210
      %v8239 = vpack.c.b16 %v8213, %v8212
      %v8240 = vpack.c.b16 %v8215, %v8214
      %v8241 = vpack.c.b16 %v8217, %v8216
      %v8242 = vpack.c.b16 %v8219, %v8218
      %v8243 = vpack.c.b16 %v8221, %v8220
      %v8244 = vpack.c.b16 %v8223, %v8222
      %v8245 = vpack.c.b16 %v8225, %v8224
      %v8246 = vpack.c.b16 %v8227, %v8226
      %v8247 = vpack.c.b16 %v8229, %v8228
      %v8248 = vpack.c.b16 %v8231, %v8230
      %v8249 = vpack.c.b16 %v8233, %v8232
      %v8252 = vunpack.c.l.b16 %v8168
      %v8253 = vunpack.c.l.b16 %v8169
      %v8254 = vpack.c.b16 %v8253, %v8252
      %v8257 = vsel %vm1722, %v8234, 0
      %v8260 = vsel %vm1722, %v8235, 0
      %v8263 = vsel %vm1722, %v8236, 0
      %v8266 = vsel %vm1722, %v8237, 0
      %v8269 = vsel %vm1722, %v8238, 0
      %v8272 = vsel %vm1722, %v8239, 0
      %v8275 = vsel %vm1722, %v8240, 0
      %v8278 = vsel %vm1722, %v8241, 0
      %v8281 = vsel %vm1722, %v8242, 0
      %v8284 = vsel %vm1722, %v8243, 0
      %v8287 = vsel %vm1722, %v8244, 0
      %v8290 = vsel %vm1722, %v8245, 0
      %v8293 = vsel %vm1722, %v8246, 0
      %v8296 = vsel %vm1722, %v8247, 0
      %v8299 = vsel %vm1722, %v8248, 0
      %v8302 = vsel %vm1722, %v8249, 0
      %8304 = vmatprep.subr.bf16.mxu0 0
      %8305 = vmatpush1.bf16.msra.mxu0 0
      %8306 = vmatprep.subr.bf16.mxu0 0
      %8307 = vmatpush1.bf16.msra.mxu0 0
      %8308 = vmatprep.subr.bf16.mxu0 0
      %8309 = vmatpush1.bf16.msra.mxu0 0
      %8310 = vmatprep.subr.bf16.mxu0 0
      %8311 = vmatpush1.bf16.msra.mxu0 0
      %8312 = vmatprep.subr.bf16.mxu0 0
      %8313 = vmatpush1.bf16.msra.mxu0 0
      %8314 = vmatprep.subr.bf16.mxu0 0
      %8315 = vmatpush1.bf16.msra.mxu0 0
      %8316 = vmatprep.subr.bf16.mxu0 0
      %8317 = vmatpush1.bf16.msra.mxu0 0
      %8318 = vmatprep.subr.bf16.mxu0 0
      %8319 = vmatpush1.bf16.msra.mxu0 %v8254
      %8320 = vmatprep.subr.bf16.mxu0 0
      %8321 = vmatpush2.bf16.msra.mxu0 0
      %8322 = vmatprep.subr.bf16.mxu0 0
      %8323 = vmatpush2.bf16.msra.mxu0 0
      %8324 = vmatprep.subr.bf16.mxu0 0
      %8325 = vmatpush2.bf16.msra.mxu0 0
      %8326 = vmatprep.subr.bf16.mxu0 0
      %8327 = vmatpush2.bf16.msra.mxu0 0
      %8328 = vmatprep.subr.bf16.mxu0 0
      %8329 = vmatpush2.bf16.msra.mxu0 0
      %8330 = vmatprep.subr.bf16.mxu0 0
      %8331 = vmatpush2.bf16.msra.mxu0 0
      %8332 = vmatprep.subr.bf16.mxu0 0
      %8333 = vmatpush2.bf16.msra.mxu0 0
      %8334 = vmatprep.subr.bf16.mxu0 0
      %8335 = vmatpush2.bf16.msra.mxu0 0
      %8336 = vmatprep.mubr.bf16.mxu0 0
      %8337 = vmatmul.mubr.bf16.gmra.mxu0 %v8257
      %v8338 = vpop.f32.mrf.mxu0
      %v8339 = vadd.f32 %v1634, %v8338
      %v8340 = vpop.f32.mrf.mxu0
      %v8341 = vpop.f32.mrf.mxu0
      %v8342 = vadd.f32 %v1634, %v8341
      %v8343 = vpop.f32.mrf.mxu0
      %8344 = vmatprep.mubr.bf16.mxu0 0
      %8345 = vmatmul.mubr.bf16.gmra.mxu0 %v8260
      %v8346 = vpop.f32.mrf.mxu0
      %v8347 = vadd.f32 %v1634, %v8346
      %v8348 = vpop.f32.mrf.mxu0
      %v8349 = vpop.f32.mrf.mxu0
      %v8350 = vadd.f32 %v1634, %v8349
      %v8351 = vpop.f32.mrf.mxu0
      %8352 = vmatprep.mubr.bf16.mxu0 0
      %8353 = vmatmul.mubr.bf16.gmra.mxu0 %v8263
      %v8354 = vpop.f32.mrf.mxu0
      %v8355 = vadd.f32 %v1634, %v8354
      %v8356 = vpop.f32.mrf.mxu0
      %v8357 = vpop.f32.mrf.mxu0
      %v8358 = vadd.f32 %v1634, %v8357
      %v8359 = vpop.f32.mrf.mxu0
      %8360 = vmatprep.mubr.bf16.mxu0 0
      %8361 = vmatmul.mubr.bf16.gmra.mxu0 %v8266
      %v8362 = vpop.f32.mrf.mxu0
      %v8363 = vadd.f32 %v1634, %v8362
      %v8364 = vpop.f32.mrf.mxu0
      %v8365 = vpop.f32.mrf.mxu0
      %v8366 = vadd.f32 %v1634, %v8365
      %v8367 = vpop.f32.mrf.mxu0
      %8368 = vmatprep.mubr.bf16.mxu0 0
      %8369 = vmatmul.mubr.bf16.gmra.mxu0 %v8269
      %v8370 = vpop.f32.mrf.mxu0
      %v8371 = vadd.f32 %v1634, %v8370
      %v8372 = vpop.f32.mrf.mxu0
      %v8373 = vpop.f32.mrf.mxu0
      %v8374 = vadd.f32 %v1634, %v8373
      %v8375 = vpop.f32.mrf.mxu0
      %8376 = vmatprep.mubr.bf16.mxu0 0
      %8377 = vmatmul.mubr.bf16.gmra.mxu0 %v8272
      %v8378 = vpop.f32.mrf.mxu0
      %v8379 = vadd.f32 %v1634, %v8378
      %v8380 = vpop.f32.mrf.mxu0
      %v8381 = vpop.f32.mrf.mxu0
      %v8382 = vadd.f32 %v1634, %v8381
      %v8383 = vpop.f32.mrf.mxu0
      %8384 = vmatprep.mubr.bf16.mxu0 0
      %8385 = vmatmul.mubr.bf16.gmra.mxu0 %v8275
      %v8386 = vpop.f32.mrf.mxu0
      %v8387 = vadd.f32 %v1634, %v8386
      %v8388 = vpop.f32.mrf.mxu0
      %v8389 = vpop.f32.mrf.mxu0
      %v8390 = vadd.f32 %v1634, %v8389
      %v8391 = vpop.f32.mrf.mxu0
      %8392 = vmatprep.mubr.bf16.mxu0 0
      %8393 = vmatmul.mubr.bf16.gmra.mxu0 %v8278
      %v8394 = vpop.f32.mrf.mxu0
      %v8395 = vadd.f32 %v1634, %v8394
      %v8396 = vpop.f32.mrf.mxu0
      %v8397 = vpop.f32.mrf.mxu0
      %v8398 = vadd.f32 %v1634, %v8397
      %v8399 = vpop.f32.mrf.mxu0
      %8400 = vmatprep.mubr.bf16.mxu0 0
      %8401 = vmatmul.mubr.bf16.gmra.mxu0 %v8281
      %v8402 = vpop.f32.mrf.mxu0
      %v8403 = vadd.f32 %v1634, %v8402
      %v8404 = vpop.f32.mrf.mxu0
      %v8405 = vpop.f32.mrf.mxu0
      %v8406 = vadd.f32 %v1634, %v8405
      %v8407 = vpop.f32.mrf.mxu0
      %8408 = vmatprep.mubr.bf16.mxu0 0
      %8409 = vmatmul.mubr.bf16.gmra.mxu0 %v8284
      %v8410 = vpop.f32.mrf.mxu0
      %v8411 = vadd.f32 %v1634, %v8410
      %v8412 = vpop.f32.mrf.mxu0
      %v8413 = vpop.f32.mrf.mxu0
      %v8414 = vadd.f32 %v1634, %v8413
      %v8415 = vpop.f32.mrf.mxu0
      %8416 = vmatprep.mubr.bf16.mxu0 0
      %8417 = vmatmul.mubr.bf16.gmra.mxu0 %v8287
      %v8418 = vpop.f32.mrf.mxu0
      %v8419 = vadd.f32 %v1634, %v8418
      %v8420 = vpop.f32.mrf.mxu0
      %v8421 = vpop.f32.mrf.mxu0
      %v8422 = vadd.f32 %v1634, %v8421
      %v8423 = vpop.f32.mrf.mxu0
      %8424 = vmatprep.mubr.bf16.mxu0 0
      %8425 = vmatmul.mubr.bf16.gmra.mxu0 %v8290
      %v8426 = vpop.f32.mrf.mxu0
      %v8427 = vadd.f32 %v1634, %v8426
      %v8428 = vpop.f32.mrf.mxu0
      %v8429 = vpop.f32.mrf.mxu0
      %v8430 = vadd.f32 %v1634, %v8429
      %v8431 = vpop.f32.mrf.mxu0
      %8432 = vmatprep.mubr.bf16.mxu0 0
      %8433 = vmatmul.mubr.bf16.gmra.mxu0 %v8293
      %v8434 = vpop.f32.mrf.mxu0
      %v8435 = vadd.f32 %v1634, %v8434
      %v8436 = vpop.f32.mrf.mxu0
      %v8437 = vpop.f32.mrf.mxu0
      %v8438 = vadd.f32 %v1634, %v8437
      %v8439 = vpop.f32.mrf.mxu0
      %8440 = vmatprep.mubr.bf16.mxu0 0
      %8441 = vmatmul.mubr.bf16.gmra.mxu0 %v8296
      %v8442 = vpop.f32.mrf.mxu0
      %v8443 = vadd.f32 %v1634, %v8442
      %v8444 = vpop.f32.mrf.mxu0
      %v8445 = vpop.f32.mrf.mxu0
      %v8446 = vadd.f32 %v1634, %v8445
      %v8447 = vpop.f32.mrf.mxu0
      %8448 = vmatprep.mubr.bf16.mxu0 0
      %8449 = vmatmul.mubr.bf16.gmra.mxu0 %v8299
      %v8450 = vpop.f32.mrf.mxu0
      %v8451 = vadd.f32 %v1634, %v8450
      %v8452 = vpop.f32.mrf.mxu0
      %v8453 = vpop.f32.mrf.mxu0
      %v8454 = vadd.f32 %v1634, %v8453
      %v8455 = vpop.f32.mrf.mxu0
      %8456 = vmatprep.mubr.bf16.mxu0 0
      %8457 = vmatmul.mubr.bf16.gmra.mxu0 %v8302
      %v8458 = vpop.f32.mrf.mxu0
      %v8459 = vadd.f32 %v1634, %v8458
      %v8460 = vpop.f32.mrf.mxu0
      %v8461 = vpop.f32.mrf.mxu0
      %v8462 = vadd.f32 %v1634, %v8461
      %v8463 = vpop.f32.mrf.mxu0
      %8464 = vdwg.mxu0
      %v8465 = vmax.f32 %v8339, 0.0
      %v8466 = vmax.f32 %v8342, 0.0
      %v8467 = vmax.f32 %v8347, 0.0
      %v8468 = vmax.f32 %v8350, 0.0
      %v8469 = vmax.f32 %v8355, 0.0
      %v8470 = vmax.f32 %v8358, 0.0
      %v8471 = vmax.f32 %v8363, 0.0
      %v8472 = vmax.f32 %v8366, 0.0
      %v8473 = vmax.f32 %v8371, 0.0
      %v8474 = vmax.f32 %v8374, 0.0
      %v8475 = vmax.f32 %v8379, 0.0
      %v8476 = vmax.f32 %v8382, 0.0
      %v8477 = vmax.f32 %v8387, 0.0
      %v8478 = vmax.f32 %v8390, 0.0
      %v8479 = vmax.f32 %v8395, 0.0
      %v8480 = vmax.f32 %v8398, 0.0
      %v8481 = vmax.f32 %v8403, 0.0
      %v8482 = vmax.f32 %v8406, 0.0
      %v8483 = vmax.f32 %v8411, 0.0
      %v8484 = vmax.f32 %v8414, 0.0
      %v8485 = vmax.f32 %v8419, 0.0
      %v8486 = vmax.f32 %v8422, 0.0
      %v8487 = vmax.f32 %v8427, 0.0
      %v8488 = vmax.f32 %v8430, 0.0
      %v8489 = vmax.f32 %v8435, 0.0
      %v8490 = vmax.f32 %v8438, 0.0
      %v8491 = vmax.f32 %v8443, 0.0
      %v8492 = vmax.f32 %v8446, 0.0
      %v8493 = vmax.f32 %v8451, 0.0
      %v8494 = vmax.f32 %v8454, 0.0
      %v8495 = vmax.f32 %v8459, 0.0
      %v8496 = vmax.f32 %v8462, 0.0
      %v8497 = vpack.c.bf16 %v8466, %v8465
      %v8498 = vpack.c.bf16 %v8468, %v8467
      %v8499 = vpack.c.bf16 %v8470, %v8469
      %v8500 = vpack.c.bf16 %v8472, %v8471
      %v8501 = vpack.c.bf16 %v8474, %v8473
      %v8502 = vpack.c.bf16 %v8476, %v8475
      %v8503 = vpack.c.bf16 %v8478, %v8477
      %v8504 = vpack.c.bf16 %v8480, %v8479
      %v8505 = vpack.c.bf16 %v8482, %v8481
      %v8506 = vpack.c.bf16 %v8484, %v8483
      %v8507 = vpack.c.bf16 %v8486, %v8485
      %v8508 = vpack.c.bf16 %v8488, %v8487
      %v8509 = vpack.c.bf16 %v8490, %v8489
      %v8510 = vpack.c.bf16 %v8492, %v8491
      %v8511 = vpack.c.bf16 %v8494, %v8493
      %v8512 = vpack.c.bf16 %v8496, %v8495
      %v8529 = vunpack.c.l.b16 %v8497
      %v8530 = vunpack.c.h.b16 %v8497
      %v8531 = vunpack.c.l.b16 %v8498
      %v8532 = vunpack.c.h.b16 %v8498
      %v8533 = vunpack.c.l.b16 %v8499
      %v8534 = vunpack.c.h.b16 %v8499
      %v8535 = vunpack.c.l.b16 %v8500
      %v8536 = vunpack.c.h.b16 %v8500
      %v8537 = vunpack.c.l.b16 %v8501
      %v8538 = vunpack.c.h.b16 %v8501
      %v8539 = vunpack.c.l.b16 %v8502
      %v8540 = vunpack.c.h.b16 %v8502
      %v8541 = vunpack.c.l.b16 %v8503
      %v8542 = vunpack.c.h.b16 %v8503
      %v8543 = vunpack.c.l.b16 %v8504
      %v8544 = vunpack.c.h.b16 %v8504
      %v8545 = vunpack.c.l.b16 %v8505
      %v8546 = vunpack.c.h.b16 %v8505
      %v8547 = vunpack.c.l.b16 %v8506
      %v8548 = vunpack.c.h.b16 %v8506
      %v8549 = vunpack.c.l.b16 %v8507
      %v8550 = vunpack.c.h.b16 %v8507
      %v8551 = vunpack.c.l.b16 %v8508
      %v8552 = vunpack.c.h.b16 %v8508
      %v8553 = vunpack.c.l.b16 %v8509
      %v8554 = vunpack.c.h.b16 %v8509
      %v8555 = vunpack.c.l.b16 %v8510
      %v8556 = vunpack.c.h.b16 %v8510
      %v8557 = vunpack.c.l.b16 %v8511
      %v8558 = vunpack.c.h.b16 %v8511
      %v8559 = vunpack.c.l.b16 %v8512
      %v8560 = vunpack.c.h.b16 %v8512
      %v8561 = vpack.c.b16 %v8529, %v8529
      %v8562 = vpack.c.b16 %v8530, %v8530
      %v8563 = vpack.c.b16 %v8531, %v8531
      %v8564 = vpack.c.b16 %v8532, %v8532
      %v8565 = vpack.c.b16 %v8533, %v8533
      %v8566 = vpack.c.b16 %v8534, %v8534
      %v8567 = vpack.c.b16 %v8535, %v8535
      %v8568 = vpack.c.b16 %v8536, %v8536
      %v8569 = vpack.c.b16 %v8537, %v8537
      %v8570 = vpack.c.b16 %v8538, %v8538
      %v8571 = vpack.c.b16 %v8539, %v8539
      %v8572 = vpack.c.b16 %v8540, %v8540
      %v8573 = vpack.c.b16 %v8541, %v8541
      %v8574 = vpack.c.b16 %v8542, %v8542
      %v8575 = vpack.c.b16 %v8543, %v8543
      %v8576 = vpack.c.b16 %v8544, %v8544
      %v8577 = vpack.c.b16 %v8545, %v8545
      %v8578 = vpack.c.b16 %v8546, %v8546
      %v8579 = vpack.c.b16 %v8547, %v8547
      %v8580 = vpack.c.b16 %v8548, %v8548
      %v8581 = vpack.c.b16 %v8549, %v8549
      %v8582 = vpack.c.b16 %v8550, %v8550
      %v8583 = vpack.c.b16 %v8551, %v8551
      %v8584 = vpack.c.b16 %v8552, %v8552
      %v8585 = vpack.c.b16 %v8553, %v8553
      %v8586 = vpack.c.b16 %v8554, %v8554
      %v8587 = vpack.c.b16 %v8555, %v8555
      %v8588 = vpack.c.b16 %v8556, %v8556
      %v8589 = vpack.c.b16 %v8557, %v8557
      %v8590 = vpack.c.b16 %v8558, %v8558
      %v8591 = vpack.c.b16 %v8559, %v8559
      %v8592 = vpack.c.b16 %v8560, %v8560
      %8593 = vrot.lane.b32.xlu0 %v8561, 24
      %v8594 = vpop.permute.xlu0 %8593
      %8595 = vrot.lane.b32.xlu0 %v8562, 24
      %v8596 = vpop.permute.xlu0 %8595
      %8597 = vrot.lane.b32.xlu0 %v8563, 24
      %v8598 = vpop.permute.xlu0 %8597
      %8599 = vrot.lane.b32.xlu0 %v8564, 24
      %v8600 = vpop.permute.xlu0 %8599
      %8601 = vrot.lane.b32.xlu0 %v8565, 24
      %v8602 = vpop.permute.xlu0 %8601
      %8603 = vrot.lane.b32.xlu0 %v8566, 24
      %v8604 = vpop.permute.xlu0 %8603
      %8605 = vrot.lane.b32.xlu0 %v8567, 24
      %v8606 = vpop.permute.xlu0 %8605
      %8607 = vrot.lane.b32.xlu0 %v8568, 24
      %v8608 = vpop.permute.xlu0 %8607
      %8609 = vrot.lane.b32.xlu0 %v8569, 24
      %v8610 = vpop.permute.xlu0 %8609
      %8611 = vrot.lane.b32.xlu0 %v8570, 24
      %v8612 = vpop.permute.xlu0 %8611
      %8613 = vrot.lane.b32.xlu0 %v8571, 24
      %v8614 = vpop.permute.xlu0 %8613
      %8615 = vrot.lane.b32.xlu0 %v8572, 24
      %v8616 = vpop.permute.xlu0 %8615
      %8617 = vrot.lane.b32.xlu0 %v8573, 24
      %v8618 = vpop.permute.xlu0 %8617
      %8619 = vrot.lane.b32.xlu0 %v8574, 24
      %v8620 = vpop.permute.xlu0 %8619
      %8621 = vrot.lane.b32.xlu0 %v8575, 24
      %v8622 = vpop.permute.xlu0 %8621
      %8623 = vrot.lane.b32.xlu0 %v8576, 24
      %v8624 = vpop.permute.xlu0 %8623
      %8625 = vrot.lane.b32.xlu0 %v8577, 24
      %v8626 = vpop.permute.xlu0 %8625
      %8627 = vrot.lane.b32.xlu0 %v8578, 24
      %v8628 = vpop.permute.xlu0 %8627
      %8629 = vrot.lane.b32.xlu0 %v8579, 24
      %v8630 = vpop.permute.xlu0 %8629
      %8631 = vrot.lane.b32.xlu0 %v8580, 24
      %v8632 = vpop.permute.xlu0 %8631
      %8633 = vrot.lane.b32.xlu0 %v8581, 24
      %v8634 = vpop.permute.xlu0 %8633
      %8635 = vrot.lane.b32.xlu0 %v8582, 24
      %v8636 = vpop.permute.xlu0 %8635
      %8637 = vrot.lane.b32.xlu0 %v8583, 24
      %v8638 = vpop.permute.xlu0 %8637
      %8639 = vrot.lane.b32.xlu0 %v8584, 24
      %v8640 = vpop.permute.xlu0 %8639
      %8641 = vrot.lane.b32.xlu0 %v8585, 24
      %v8642 = vpop.permute.xlu0 %8641
      %8643 = vrot.lane.b32.xlu0 %v8586, 24
      %v8644 = vpop.permute.xlu0 %8643
      %8645 = vrot.lane.b32.xlu0 %v8587, 24
      %v8646 = vpop.permute.xlu0 %8645
      %8647 = vrot.lane.b32.xlu0 %v8588, 24
      %v8648 = vpop.permute.xlu0 %8647
      %8649 = vrot.lane.b32.xlu0 %v8589, 24
      %v8650 = vpop.permute.xlu0 %8649
      %8651 = vrot.lane.b32.xlu0 %v8590, 24
      %v8652 = vpop.permute.xlu0 %8651
      %8653 = vrot.lane.b32.xlu0 %v8591, 24
      %v8654 = vpop.permute.xlu0 %8653
      %8655 = vrot.lane.b32.xlu0 %v8592, 24
      %v8656 = vpop.permute.xlu0 %8655
      %vm8689 = vcmask 257216
      %8690 = vst.msk [vmem:[%s208] sm:$0xf] %vm8689, %v8594
      %8691 = vst.msk [vmem:[%s208 + $0x4] sm:$0xf] %vm8689, %v8596
      %8692 = vst.msk [vmem:[%s208 + $0x8] sm:$0xf] %vm8689, %v8598
      %8693 = vst.msk [vmem:[%s208 + $0xc] sm:$0xf] %vm8689, %v8600
      %8694 = vst.msk [vmem:[%s208 + $0x10] sm:$0xf] %vm8689, %v8602
      %8695 = vst.msk [vmem:[%s208 + $0x14] sm:$0xf] %vm8689, %v8604
      %8696 = vst.msk [vmem:[%s208 + $0x18] sm:$0xf] %vm8689, %v8606
      %8697 = vst.msk [vmem:[%s208 + $0x1c] sm:$0xf] %vm8689, %v8608
      %8698 = vst.msk [vmem:[%s208 + $0x20] sm:$0xf] %vm8689, %v8610
      %8699 = vst.msk [vmem:[%s208 + $0x24] sm:$0xf] %vm8689, %v8612
      %8700 = vst.msk [vmem:[%s208 + $0x28] sm:$0xf] %vm8689, %v8614
      %8701 = vst.msk [vmem:[%s208 + $0x2c] sm:$0xf] %vm8689, %v8616
      %8702 = vst.msk [vmem:[%s208 + $0x30] sm:$0xf] %vm8689, %v8618
      %8703 = vst.msk [vmem:[%s208 + $0x34] sm:$0xf] %vm8689, %v8620
      %8704 = vst.msk [vmem:[%s208 + $0x38] sm:$0xf] %vm8689, %v8622
      %8705 = vst.msk [vmem:[%s208 + $0x3c] sm:$0xf] %vm8689, %v8624
      %8706 = vst.msk [vmem:[%s208 + $0x40] sm:$0xf] %vm8689, %v8626
      %8707 = vst.msk [vmem:[%s208 + $0x44] sm:$0xf] %vm8689, %v8628
      %8708 = vst.msk [vmem:[%s208 + $0x48] sm:$0xf] %vm8689, %v8630
      %8709 = vst.msk [vmem:[%s208 + $0x4c] sm:$0xf] %vm8689, %v8632
      %8710 = vst.msk [vmem:[%s208 + $0x50] sm:$0xf] %vm8689, %v8634
      %8711 = vst.msk [vmem:[%s208 + $0x54] sm:$0xf] %vm8689, %v8636
      %8712 = vst.msk [vmem:[%s208 + $0x58] sm:$0xf] %vm8689, %v8638
      %8713 = vst.msk [vmem:[%s208 + $0x5c] sm:$0xf] %vm8689, %v8640
      %8714 = vst.msk [vmem:[%s208 + $0x60] sm:$0xf] %vm8689, %v8642
      %8715 = vst.msk [vmem:[%s208 + $0x64] sm:$0xf] %vm8689, %v8644
      %8716 = vst.msk [vmem:[%s208 + $0x68] sm:$0xf] %vm8689, %v8646
      %8717 = vst.msk [vmem:[%s208 + $0x6c] sm:$0xf] %vm8689, %v8648
      %8718 = vst.msk [vmem:[%s208 + $0x70] sm:$0xf] %vm8689, %v8650
      %8719 = vst.msk [vmem:[%s208 + $0x74] sm:$0xf] %vm8689, %v8652
      %8720 = vst.msk [vmem:[%s208 + $0x78] sm:$0xf] %vm8689, %v8654
      %8721 = vst.msk [vmem:[%s208 + $0x7c] sm:$0xf] %vm8689, %v8656
      %s8722 = smul.u32 16, %s19
      %p8723 = scmp.lt.s32.totalorder %s18, 1
      %s8724 = scalar_select %p8723, %s18, 1
      %p8725 = scmp.lt.s32.totalorder %s8722, 15
      %s8726 = scalar_select %p8725, %s8722, 15
      %s8727 = smul.addr %s8726, 2
      %s8728 = smul.addr %s8724, 32
      %s8729 = sadd.s32 %s8727, %s8728
      %s8730 = smul.addr %s8729, 4
      %s8731 = scalar_lea.vmem %s3, %s8730
      // Predicated region
      $region33: #{up_conv_forward.1} parent=31 // pred_check
        %p8732 = pneg %p116
      $region34: #{up_conv_forward.1} parent=31 // pred_check_branch
        %8734 = sbr.rel (%p8732) target = $region36
      $region35: #{up_conv_forward.1} parent=31 // pred_region
        %s8735 = smul.u32 16, %s19
      $region36: #{up_conv_forward.1} parent=31 // pred_fallthru
        _
    $region32: #{up_conv_forward.1} parent=5 // pred_fallthru
      _
    %p8736 = scmp.le.s32.totalorder 2, %s9
    // Predicated region
    $region37: #{up_conv_forward.1} parent=5 // pred_check
      %p8737 = pneg %p8736
    $region38: #{up_conv_forward.1} parent=5 // pred_check_branch
      %8739 = sbr.rel (%p8737) target = $region40
    $region39: #{up_conv_forward.1} parent=5 // pred_region
      %s8740 = ssub.s32 %s9, 2
      // Predicated region
      $region41: #{up_conv_forward.1} parent=39 // pred_check
        %p8741 = pneg %p122
      $region42: #{up_conv_forward.1} parent=39 // pred_check_branch
        %8743 = sbr.rel (%p8741) target = $region44
      $region43: #{up_conv_forward.1} parent=39 // pred_region
        %s8744 = smul.u32 16, %s21
        %p8745 = scmp.lt.s32.totalorder %s20, 1
        %s8746 = scalar_select %p8745, %s20, 1
        %p8747 = scmp.lt.s32.totalorder %s8744, 15
        %s8748 = scalar_select %p8747, %s8744, 15
        %s8749 = smul.addr %s8748, 2
        %s8750 = smul.addr %s8746, 32
        %s8751 = sadd.s32 %s8749, %s8750
        %s8752 = smul.addr %s8751, 4
        %s8753 = scalar_lea.vmem %s3, %s8752
      $region44: #{up_conv_forward.1} parent=39 // pred_fallthru
        _
    $region40: #{up_conv_forward.1} parent=5 // pred_fallthru
      _
  $region6: #{up_conv_forward.1} parent=0 // loop_footer
    %s13 = sadd.s32 1, %s9
  $region7: #{up_conv_forward.1} parent=0 // loop_footer_branch
    %8 = sbr.rel target = $region3
  $region8: #{up_conv_forward.1} parent=0 // loop_exit
    _

</llo_original>
